<compile_context>
chip_gen: v6e
topology: v6e:2x2x1
jax: 0.10.0
libtpu: 0.0.40
codegen_flags: <defaults>
</compile_context>

<pallas_src>
import numpy as np

import jax
import jax.numpy as jnp
from jax import lax
from jax.experimental import pallas as pl
from jax.experimental.pallas import tpu as pltpu

IMAGE_SIZE = 28
DEPTH = (4, 8)
NUM_CLASSES = 10
FC_HIDDEN = 512

# ---------------- padded-grid geometry ----------------
H1 = W1 = IMAGE_SIZE                 # 28
W1P = W1 + 4                         # 32 (padded width, pad=2 each side)
H1P = H1 + 4
SP1 = H1P * W1P                      # 1024

H2 = W2 = IMAGE_SIZE // 2            # 14
W2P = W2 + 4                         # 18
H2P = H2 + 4
SP2 = H2P * W2P                      # 324

H3 = W3 = IMAGE_SIZE // 4            # 7
S3 = H3 * W3                         # 49

# conv1 output is computed over the contiguous padded-flat range [C1_BASE, C1_BASE+C1_LEN)
C1_BASE = 2 * W1P + 2                                   # 66
C1_LEN = ((H1 + 1) * W1P + (W1 + 1)) - C1_BASE + 1      # 892
# conv2 output range on the 18x18 padded grid
C2_BASE = 2 * W2P + 2                                   # 38
C2_LEN = ((H2 + 1) * W2P + (W2 + 1)) - C2_BASE + 1      # 248

# pooling: window length that covers all 2x2 anchors (relative to C*_BASE)
P1_LEN = (2 + 2 * (H2 - 1)) * W1P + (2 + 2 * (W2 - 1)) - C1_BASE + 1   # 859
P2_LEN = (2 + 2 * (H3 - 1)) * W2P + (2 + 2 * (W3 - 1)) - C2_BASE + 1   # 229

# conv tap offsets in padded-flat coordinates (k = dy*5 + dx)
OFFS1 = [(dy - 2) * W1P + (dx - 2) for dy in range(5) for dx in range(5)]
OFFS2 = [(dy - 2) * W2P + (dx - 2) for dy in range(5) for dx in range(5)]


# ---------------- constant 0/1 pooling-selection matrices ----------------
def _pool1_selector():
    # max-of-4-shifts result (len P1_LEN) -> conv2's padded 18x18 grid (zero halo)
    s = np.zeros((P1_LEN, SP2), np.float32)
    for yo in range(H2):
        for xo in range(W2):
            q = (2 + 2 * yo) * W1P + (2 + 2 * xo) - C1_BASE
            j = (yo + 2) * W2P + (xo + 2)
            s[q, j] = 1.0
    return jnp.asarray(s)


def _pool2_selector():
    # max-of-4-shifts result (len P2_LEN) -> flat 7x7 feature index (torch .view order)
    s = np.zeros((P2_LEN, S3), np.float32)
    for yo in range(H3):
        for xo in range(W3):
            q = (2 + 2 * yo) * W2P + (2 + 2 * xo) - C2_BASE
            s[q, yo * W3 + xo] = 1.0
    return jnp.asarray(s)


# ---------------- the fused kernel ----------------
def _convnet_kernel(x_ref, w1_ref, b1_ref, w2_ref, b2_ref, s1_ref, s2_ref,
                    w3_ref, b3_ref, w4_ref, b4_ref, o_ref,
                    a1_ref, p1_ref, a2_ref, feat_ref):
    f32 = jnp.float32
    B = x_ref.shape[0]

    for b in range(B):
        # ---- conv1 (5x5, pad=2) + ReLU : lane-dense GEMM (4, 25) @ (25, 892)
        r1 = jnp.concatenate(
            [x_ref[b, :, pl.ds(C1_BASE + off, C1_LEN)] for off in OFFS1], axis=0)
        o1 = jnp.dot(w1_ref[...], r1, preferred_element_type=f32) + b1_ref[...]
        a1_ref[b] = jnp.maximum(o1, 0.0)

        # ---- maxpool 2x2: max of 4 shifted windows, then selection matmul that
        #      subsamples (stride 2) and re-grids onto conv2's zero-haloed padded grid
        m1 = jnp.maximum(
            jnp.maximum(a1_ref[b, :, pl.ds(0, P1_LEN)],
                        a1_ref[b, :, pl.ds(1, P1_LEN)]),
            jnp.maximum(a1_ref[b, :, pl.ds(W1P, P1_LEN)],
                        a1_ref[b, :, pl.ds(W1P + 1, P1_LEN)]))
        p1_ref[b] = jnp.dot(m1, s1_ref[...], preferred_element_type=f32)   # (4, 324)

        # ---- conv2 (5x5, pad=2) + ReLU : (8, 100) @ (100, 248)
        r2 = jnp.concatenate(
            [p1_ref[b, :, pl.ds(C2_BASE + off, C2_LEN)] for off in OFFS2], axis=0)
        o2 = jnp.dot(w2_ref[...], r2, preferred_element_type=f32) + b2_ref[...]
        a2_ref[b] = jnp.maximum(o2, 0.0)

        # ---- maxpool 2x2 -> (8, 49) features in torch's (c, y, x) flatten order
        m2 = jnp.maximum(
            jnp.maximum(a2_ref[b, :, pl.ds(0, P2_LEN)],
                        a2_ref[b, :, pl.ds(1, P2_LEN)]),
            jnp.maximum(a2_ref[b, :, pl.ds(W2P, P2_LEN)],
                        a2_ref[b, :, pl.ds(W2P + 1, P2_LEN)]))
        feat_ref[b] = jnp.dot(m2, s2_ref[...], preferred_element_type=f32)  # (8, 49)

    # ---- fc1 + ReLU : accumulate (B, 49) @ (49, 512) over the 8 channel blocks
    h = None
    for c in range(DEPTH[1]):
        t = jnp.dot(feat_ref[:, c, :], w3_ref[c], preferred_element_type=f32)
        h = t if h is None else h + t
    h = jnp.maximum(h + b3_ref[...], 0.0)
    # TODO(synk): F.dropout(training=True) is stochastic (no fixed-RNG torch equivalence);
    # implemented as identity (eval semantics).

    # ---- fc2 + log_softmax over dim=0 (the batch dim, as in the reference module)
    logits = jnp.dot(h, w4_ref[...], preferred_element_type=f32) + b4_ref[...]
    mx = jnp.max(logits, axis=0, keepdims=True)
    lse = jnp.log(jnp.sum(jnp.exp(logits - mx), axis=0, keepdims=True)) + mx
    o_ref[...] = (logits - lse).astype(o_ref.dtype)


# ---------------- wrapper ----------------
def convnet_forward(params, x):
    # x: (B, 1, 28, 28) NCHW float32
    B = x.shape[0]

    # tiny input prep: zero-pad (pad=2) and flatten onto the padded grid (8 KB at B=2)
    xpad = jnp.pad(x.astype(jnp.float32), ((0, 0), (0, 0), (2, 2), (2, 2)))
    xflat = xpad.reshape(B, 1, SP1)

    # weight packing (trace-time reshapes; K orders match the in-kernel patch ordering)
    w1m = params["conv1_w"].reshape(DEPTH[0], 25)                                   # (4, 25)
    b1c = params["conv1_b"].reshape(DEPTH[0], 1)
    w2m = jnp.transpose(params["conv2_w"], (0, 2, 3, 1)).reshape(DEPTH[1], DEPTH[0] * 25)  # (8, 100)
    b2c = params["conv2_b"].reshape(DEPTH[1], 1)
    w1r = params["fc1_w"].reshape(DEPTH[1], S3, FC_HIDDEN)                          # (8, 49, 512)
    bf1 = params["fc1_b"].reshape(1, FC_HIDDEN)
    wf2 = params["fc2_w"]                                                           # (512, 10)
    bf2 = params["fc2_b"].reshape(1, NUM_CLASSES)
    s1 = _pool1_selector()                                                          # (859, 324)
    s2 = _pool2_selector()                                                          # (229, 49)

    def full(shape):
        return pl.BlockSpec(shape, lambda i, _s=shape: (0,) * len(_s))

    in_specs = [
        full((B, 1, SP1)),
        full((DEPTH[0], 25)), full((DEPTH[0], 1)),
        full((DEPTH[1], DEPTH[0] * 25)), full((DEPTH[1], 1)),
        full((P1_LEN, SP2)), full((P2_LEN, S3)),
        full((DEPTH[1], S3, FC_HIDDEN)), full((1, FC_HIDDEN)),
        full((FC_HIDDEN, NUM_CLASSES)), full((1, NUM_CLASSES)),
    ]

    return pl.pallas_call(
        _convnet_kernel,
        out_shape=jax.ShapeDtypeStruct((B, NUM_CLASSES), jnp.float32),
        grid=(1,),
        in_specs=in_specs,
        out_specs=full((B, NUM_CLASSES)),
        scratch_shapes=[
            pltpu.VMEM((B, DEPTH[0], C1_LEN), jnp.float32),   # conv1 relu output window
            pltpu.VMEM((B, DEPTH[0], SP2), jnp.float32),      # pool1 on conv2's padded grid
            pltpu.VMEM((B, DEPTH[1], C2_LEN), jnp.float32),   # conv2 relu output window
            pltpu.VMEM((B, DEPTH[1], S3), jnp.float32),       # pooled features (B, 8, 49)
        ],
        compiler_params=pltpu.CompilerParams(
            dimension_semantics=("arbitrary",)),
    )(xflat, w1m, b1c, w2m, b2c, s1, s2, w1r, bf1, wf2, bf2)


# ---------------- pure-JAX reference (for correctness check) ----------------
def convnet_reference(params, x):
    prec = lax.Precision.HIGHEST

    def conv(y, w, b):
        out = lax.conv_general_dilated(
            y, w, window_strides=(1, 1), padding=((2, 2), (2, 2)),
            dimension_numbers=("NCHW", "OIHW", "NCHW"), precision=prec)
        return jax.nn.relu(out + b[None, :, None, None])

    def pool(y):
        B, C, H, W = y.shape
        return y.reshape(B, C, H // 2, 2, W // 2, 2).max(axis=(3, 5))

    y = pool(conv(x, params["conv1_w"], params["conv1_b"]))
    y = pool(conv(y, params["conv2_w"], params["conv2_b"]))
    y = y.reshape(x.shape[0], -1)
    y = jax.nn.relu(jnp.dot(y, params["fc1_w"], precision=prec) + params["fc1_b"])
    y = jnp.dot(y, params["fc2_w"], precision=prec) + params["fc2_b"]
    return jax.nn.log_softmax(y, axis=0)


# ---------------- deterministic parameter init ----------------
def init_params(key):
    ks = jax.random.split(key, 8)

    def u(k, shape, fan_in):
        bound = 1.0 / jnp.sqrt(jnp.float32(fan_in))
        return jax.random.uniform(k, shape, jnp.float32, -bound, bound)

    lin_in = (IMAGE_SIZE // 4) * (IMAGE_SIZE // 4) * DEPTH[1]  # 392
    return {
        "conv1_w": u(ks[0], (DEPTH[0], 1, 5, 5), 1 * 25),
        "conv1_b": u(ks[1], (DEPTH[0],), 1 * 25),
        "conv2_w": u(ks[2], (DEPTH[1], DEPTH[0], 5, 5), DEPTH[0] * 25),
        "conv2_b": u(ks[3], (DEPTH[1],), DEPTH[0] * 25),
        "fc1_w": u(ks[4], (lin_in, FC_HIDDEN), lin_in),
        "fc1_b": u(ks[5], (FC_HIDDEN,), lin_in),
        "fc2_w": u(ks[6], (FC_HIDDEN, NUM_CLASSES), FC_HIDDEN),
        "fc2_b": u(ks[7], (NUM_CLASSES,), FC_HIDDEN),
    }


if __name__ == "__main__":
    key = jax.random.PRNGKey(0)
    kx, kp = jax.random.split(key)
    # spatial must be 28: fc1 expects 7*7*8 = 392 features after the two pools
    x = jax.random.normal(kx, (2, 1, IMAGE_SIZE, IMAGE_SIZE), jnp.float32)
    params = init_params(kp)

    out = jax.block_until_ready(jax.jit(convnet_forward)(params, x))
    ref = jax.block_until_ready(jax.jit(convnet_reference)(params, x))

    assert out.shape == (2, NUM_CLASSES)
    assert bool(jnp.all(jnp.isfinite(out)))
    max_err = float(jnp.max(jnp.abs(out - ref)))
    assert max_err < 2e-3, f"mismatch vs reference: {max_err}"
    print("KERNEL_OK")
</pallas_src>

<mosaic_0001>
module attributes {stable_mosaic.version = 11 : i64} {
  func.func @_convnet_kernel(%arg0: i32, %arg1: memref<2x1x1024xf32, #tpu.memory_space<vmem>>, %arg2: memref<4x25xf32, #tpu.memory_space<vmem>>, %arg3: memref<4x1xf32, #tpu.memory_space<vmem>>, %arg4: memref<8x100xf32, #tpu.memory_space<vmem>>, %arg5: memref<8x1xf32, #tpu.memory_space<vmem>>, %arg6: memref<859x324xf32, #tpu.memory_space<vmem>>, %arg7: memref<229x49xf32, #tpu.memory_space<vmem>>, %arg8: memref<8x49x512xf32, #tpu.memory_space<vmem>>, %arg9: memref<1x512xf32, #tpu.memory_space<vmem>>, %arg10: memref<512x10xf32, #tpu.memory_space<vmem>>, %arg11: memref<1x10xf32, #tpu.memory_space<vmem>>, %arg12: memref<2x10xf32, #tpu.memory_space<vmem>>, %arg13: memref<2x4x892xf32, #tpu.memory_space<vmem>>, %arg14: memref<2x4x324xf32, #tpu.memory_space<vmem>>, %arg15: memref<2x8x248xf32, #tpu.memory_space<vmem>>, %arg16: memref<2x8x49xf32, #tpu.memory_space<vmem>>) attributes {dimension_semantics = [#tpu.dimension_semantics<arbitrary>], iteration_bounds = array<i64: 1>, scalar_prefetch = 0 : i64, scratch_operands = 4 : i64, tpu.core_type = #tpu.core_type<tc>, window_params = [{pipeline_mode = #tpu.pipeline_mode<synchronous>, transform_indices = @transform_0, window_bounds = array<i64: 2, 1, 1024>}, {pipeline_mode = #tpu.pipeline_mode<synchronous>, transform_indices = @transform_1, window_bounds = array<i64: 4, 25>}, {pipeline_mode = #tpu.pipeline_mode<synchronous>, transform_indices = @transform_2, window_bounds = array<i64: 4, 1>}, {pipeline_mode = #tpu.pipeline_mode<synchronous>, transform_indices = @transform_3, window_bounds = array<i64: 8, 100>}, {pipeline_mode = #tpu.pipeline_mode<synchronous>, transform_indices = @transform_4, window_bounds = array<i64: 8, 1>}, {pipeline_mode = #tpu.pipeline_mode<synchronous>, transform_indices = @transform_5, window_bounds = array<i64: 859, 324>}, {pipeline_mode = #tpu.pipeline_mode<synchronous>, transform_indices = @transform_6, window_bounds = array<i64: 229, 49>}, {pipeline_mode = #tpu.pipeline_mode<synchronous>, transform_indices = @transform_7, window_bounds = array<i64: 8, 49, 512>}, {pipeline_mode = #tpu.pipeline_mode<synchronous>, transform_indices = @transform_8, window_bounds = array<i64: 1, 512>}, {pipeline_mode = #tpu.pipeline_mode<synchronous>, transform_indices = @transform_9, window_bounds = array<i64: 512, 10>}, {pipeline_mode = #tpu.pipeline_mode<synchronous>, transform_indices = @transform_10, window_bounds = array<i64: 1, 10>}, {pipeline_mode = #tpu.pipeline_mode<synchronous>, transform_indices = @transform_11, window_bounds = array<i64: 2, 10>}]} {
    %c0 = arith.constant 0 : index
    %c0_0 = arith.constant 0 : index
    %c0_1 = arith.constant 0 : index
    %0 = vector.load %arg1[%c0, %c0_0, %c0_1] : memref<2x1x1024xf32, #tpu.memory_space<vmem>>, vector<1x1x892xf32>
    %1 = vector.shape_cast %0 : vector<1x1x892xf32> to vector<1x892xf32>
    %c0_2 = arith.constant 0 : index
    %c0_3 = arith.constant 0 : index
    %c1 = arith.constant 1 : index
    %2 = vector.load %arg1[%c0_2, %c0_3, %c1] : memref<2x1x1024xf32, #tpu.memory_space<vmem>>, vector<1x1x892xf32>
    %3 = vector.shape_cast %2 : vector<1x1x892xf32> to vector<1x892xf32>
    %c0_4 = arith.constant 0 : index
    %c0_5 = arith.constant 0 : index
    %c2 = arith.constant 2 : index
    %4 = vector.load %arg1[%c0_4, %c0_5, %c2] : memref<2x1x1024xf32, #tpu.memory_space<vmem>>, vector<1x1x892xf32>
    %5 = vector.shape_cast %4 : vector<1x1x892xf32> to vector<1x892xf32>
    %c0_6 = arith.constant 0 : index
    %c0_7 = arith.constant 0 : index
    %c3 = arith.constant 3 : index
    %6 = vector.load %arg1[%c0_6, %c0_7, %c3] : memref<2x1x1024xf32, #tpu.memory_space<vmem>>, vector<1x1x892xf32>
    %7 = vector.shape_cast %6 : vector<1x1x892xf32> to vector<1x892xf32>
    %c0_8 = arith.constant 0 : index
    %c0_9 = arith.constant 0 : index
    %c4 = arith.constant 4 : index
    %8 = vector.load %arg1[%c0_8, %c0_9, %c4] : memref<2x1x1024xf32, #tpu.memory_space<vmem>>, vector<1x1x892xf32>
    %9 = vector.shape_cast %8 : vector<1x1x892xf32> to vector<1x892xf32>
    %c0_10 = arith.constant 0 : index
    %c0_11 = arith.constant 0 : index
    %c32 = arith.constant 32 : index
    %10 = vector.load %arg1[%c0_10, %c0_11, %c32] : memref<2x1x1024xf32, #tpu.memory_space<vmem>>, vector<1x1x892xf32>
    %11 = vector.shape_cast %10 : vector<1x1x892xf32> to vector<1x892xf32>
    %c0_12 = arith.constant 0 : index
    %c0_13 = arith.constant 0 : index
    %c33 = arith.constant 33 : index
    %12 = vector.load %arg1[%c0_12, %c0_13, %c33] : memref<2x1x1024xf32, #tpu.memory_space<vmem>>, vector<1x1x892xf32>
    %13 = vector.shape_cast %12 : vector<1x1x892xf32> to vector<1x892xf32>
    %c0_14 = arith.constant 0 : index
    %c0_15 = arith.constant 0 : index
    %c34 = arith.constant 34 : index
    %14 = vector.load %arg1[%c0_14, %c0_15, %c34] : memref<2x1x1024xf32, #tpu.memory_space<vmem>>, vector<1x1x892xf32>
    %15 = vector.shape_cast %14 : vector<1x1x892xf32> to vector<1x892xf32>
    %c0_16 = arith.constant 0 : index
    %c0_17 = arith.constant 0 : index
    %c35 = arith.constant 35 : index
    %16 = vector.load %arg1[%c0_16, %c0_17, %c35] : memref<2x1x1024xf32, #tpu.memory_space<vmem>>, vector<1x1x892xf32>
    %17 = vector.shape_cast %16 : vector<1x1x892xf32> to vector<1x892xf32>
    %c0_18 = arith.constant 0 : index
    %c0_19 = arith.constant 0 : index
    %c36 = arith.constant 36 : index
    %18 = vector.load %arg1[%c0_18, %c0_19, %c36] : memref<2x1x1024xf32, #tpu.memory_space<vmem>>, vector<1x1x892xf32>
    %19 = vector.shape_cast %18 : vector<1x1x892xf32> to vector<1x892xf32>
    %c0_20 = arith.constant 0 : index
    %c0_21 = arith.constant 0 : index
    %c64 = arith.constant 64 : index
    %20 = vector.load %arg1[%c0_20, %c0_21, %c64] : memref<2x1x1024xf32, #tpu.memory_space<vmem>>, vector<1x1x892xf32>
    %21 = vector.shape_cast %20 : vector<1x1x892xf32> to vector<1x892xf32>
    %c0_22 = arith.constant 0 : index
    %c0_23 = arith.constant 0 : index
    %c65 = arith.constant 65 : index
    %22 = vector.load %arg1[%c0_22, %c0_23, %c65] : memref<2x1x1024xf32, #tpu.memory_space<vmem>>, vector<1x1x892xf32>
    %23 = vector.shape_cast %22 : vector<1x1x892xf32> to vector<1x892xf32>
    %c0_24 = arith.constant 0 : index
    %c0_25 = arith.constant 0 : index
    %c66 = arith.constant 66 : index
    %24 = vector.load %arg1[%c0_24, %c0_25, %c66] : memref<2x1x1024xf32, #tpu.memory_space<vmem>>, vector<1x1x892xf32>
    %25 = vector.shape_cast %24 : vector<1x1x892xf32> to vector<1x892xf32>
    %c0_26 = arith.constant 0 : index
    %c0_27 = arith.constant 0 : index
    %c67 = arith.constant 67 : index
    %26 = vector.load %arg1[%c0_26, %c0_27, %c67] : memref<2x1x1024xf32, #tpu.memory_space<vmem>>, vector<1x1x892xf32>
    %27 = vector.shape_cast %26 : vector<1x1x892xf32> to vector<1x892xf32>
    %c0_28 = arith.constant 0 : index
    %c0_29 = arith.constant 0 : index
    %c68 = arith.constant 68 : index
    %28 = vector.load %arg1[%c0_28, %c0_29, %c68] : memref<2x1x1024xf32, #tpu.memory_space<vmem>>, vector<1x1x892xf32>
    %29 = vector.shape_cast %28 : vector<1x1x892xf32> to vector<1x892xf32>
    %c0_30 = arith.constant 0 : index
    %c0_31 = arith.constant 0 : index
    %c96 = arith.constant 96 : index
    %30 = vector.load %arg1[%c0_30, %c0_31, %c96] : memref<2x1x1024xf32, #tpu.memory_space<vmem>>, vector<1x1x892xf32>
    %31 = vector.shape_cast %30 : vector<1x1x892xf32> to vector<1x892xf32>
    %c0_32 = arith.constant 0 : index
    %c0_33 = arith.constant 0 : index
    %c97 = arith.constant 97 : index
    %32 = vector.load %arg1[%c0_32, %c0_33, %c97] : memref<2x1x1024xf32, #tpu.memory_space<vmem>>, vector<1x1x892xf32>
    %33 = vector.shape_cast %32 : vector<1x1x892xf32> to vector<1x892xf32>
    %c0_34 = arith.constant 0 : index
    %c0_35 = arith.constant 0 : index
    %c98 = arith.constant 98 : index
    %34 = vector.load %arg1[%c0_34, %c0_35, %c98] : memref<2x1x1024xf32, #tpu.memory_space<vmem>>, vector<1x1x892xf32>
    %35 = vector.shape_cast %34 : vector<1x1x892xf32> to vector<1x892xf32>
    %c0_36 = arith.constant 0 : index
    %c0_37 = arith.constant 0 : index
    %c99 = arith.constant 99 : index
    %36 = vector.load %arg1[%c0_36, %c0_37, %c99] : memref<2x1x1024xf32, #tpu.memory_space<vmem>>, vector<1x1x892xf32>
    %37 = vector.shape_cast %36 : vector<1x1x892xf32> to vector<1x892xf32>
    %c0_38 = arith.constant 0 : index
    %c0_39 = arith.constant 0 : index
    %c100 = arith.constant 100 : index
    %38 = vector.load %arg1[%c0_38, %c0_39, %c100] : memref<2x1x1024xf32, #tpu.memory_space<vmem>>, vector<1x1x892xf32>
    %39 = vector.shape_cast %38 : vector<1x1x892xf32> to vector<1x892xf32>
    %c0_40 = arith.constant 0 : index
    %c0_41 = arith.constant 0 : index
    %c128 = arith.constant 128 : index
    %40 = vector.load %arg1[%c0_40, %c0_41, %c128] : memref<2x1x1024xf32, #tpu.memory_space<vmem>>, vector<1x1x892xf32>
    %41 = vector.shape_cast %40 : vector<1x1x892xf32> to vector<1x892xf32>
    %c0_42 = arith.constant 0 : index
    %c0_43 = arith.constant 0 : index
    %c129 = arith.constant 129 : index
    %42 = vector.load %arg1[%c0_42, %c0_43, %c129] : memref<2x1x1024xf32, #tpu.memory_space<vmem>>, vector<1x1x892xf32>
    %43 = vector.shape_cast %42 : vector<1x1x892xf32> to vector<1x892xf32>
    %c0_44 = arith.constant 0 : index
    %c0_45 = arith.constant 0 : index
    %c130 = arith.constant 130 : index
    %44 = vector.load %arg1[%c0_44, %c0_45, %c130] : memref<2x1x1024xf32, #tpu.memory_space<vmem>>, vector<1x1x892xf32>
    %45 = vector.shape_cast %44 : vector<1x1x892xf32> to vector<1x892xf32>
    %c0_46 = arith.constant 0 : index
    %c0_47 = arith.constant 0 : index
    %c131 = arith.constant 131 : index
    %46 = vector.load %arg1[%c0_46, %c0_47, %c131] : memref<2x1x1024xf32, #tpu.memory_space<vmem>>, vector<1x1x892xf32>
    %47 = vector.shape_cast %46 : vector<1x1x892xf32> to vector<1x892xf32>
    %c0_48 = arith.constant 0 : index
    %c0_49 = arith.constant 0 : index
    %c132 = arith.constant 132 : index
    %48 = vector.load %arg1[%c0_48, %c0_49, %c132] : memref<2x1x1024xf32, #tpu.memory_space<vmem>>, vector<1x1x892xf32>
    %49 = vector.shape_cast %48 : vector<1x1x892xf32> to vector<1x892xf32>
    %50 = tpu.concatenate %1, %3, %5, %7, %9, %11, %13, %15, %17, %19, %21, %23, %25, %27, %29, %31 in 0 : vector<1x892xf32>, vector<1x892xf32>, vector<1x892xf32>, vector<1x892xf32>, vector<1x892xf32>, vector<1x892xf32>, vector<1x892xf32>, vector<1x892xf32>, vector<1x892xf32>, vector<1x892xf32>, vector<1x892xf32>, vector<1x892xf32>, vector<1x892xf32>, vector<1x892xf32>, vector<1x892xf32>, vector<1x892xf32> -> vector<16x892xf32>
    %51 = tpu.concatenate %33, %35, %37, %39, %41, %43, %45, %47, %49 in 0 : vector<1x892xf32>, vector<1x892xf32>, vector<1x892xf32>, vector<1x892xf32>, vector<1x892xf32>, vector<1x892xf32>, vector<1x892xf32>, vector<1x892xf32>, vector<1x892xf32> -> vector<9x892xf32>
    %52 = tpu.concatenate %50, %51 in 0 : vector<16x892xf32>, vector<9x892xf32> -> vector<25x892xf32>
    %c0_50 = arith.constant 0 : index
    %c0_51 = arith.constant 0 : index
    %53 = vector.load %arg2[%c0_50, %c0_51] : memref<4x25xf32, #tpu.memory_space<vmem>>, vector<4x25xf32>
    %cst = arith.constant dense<0.000000e+00> : vector<4x892xf32>
    %54 = tpu.matmul %53, %52, %cst {dimension_numbers = #tpu.dot_dimension_numbers<[1], [0], [0], [1], [0, 0, 1, 1], [], []>} : vector<4x25xf32>, vector<25x892xf32>, vector<4x892xf32> -> vector<4x892xf32>
    %c0_52 = arith.constant 0 : index
    %c0_53 = arith.constant 0 : index
    %55 = vector.load %arg3[%c0_52, %c0_53] : memref<4x1xf32, #tpu.memory_space<vmem>>, vector<4x1xf32>
    %56 = vector.broadcast %55 : vector<4x1xf32> to vector<4x892xf32>
    %57 = arith.addf %54, %56 : vector<4x892xf32>
    %cst_54 = arith.constant 0.000000e+00 : f32
    %58 = vector.broadcast %cst_54 : f32 to vector<4x892xf32>
    %59 = arith.maximumf %57, %58 : vector<4x892xf32>
    %c0_55 = arith.constant 0 : index
    %c0_56 = arith.constant 0 : index
    %c0_57 = arith.constant 0 : index
    %60 = vector.load %arg13[%c0_55, %c0_56, %c0_57] : memref<2x4x892xf32, #tpu.memory_space<vmem>>, vector<1x4x892xf32>
    %61 = vector.shape_cast %60 : vector<1x4x892xf32> to vector<4x892xf32>
    %62 = vector.shape_cast %59 : vector<4x892xf32> to vector<1x4x892xf32>
    tpu.vector_store %arg13[%c0_55, %c0_56, %c0_57], %62 {strides = array<i32>} : memref<2x4x892xf32, #tpu.memory_space<vmem>>, vector<1x4x892xf32>,
    %c0_58 = arith.constant 0 : index
    %c0_59 = arith.constant 0 : index
    %c0_60 = arith.constant 0 : index
    %63 = vector.load %arg13[%c0_58, %c0_59, %c0_60] : memref<2x4x892xf32, #tpu.memory_space<vmem>>, vector<1x4x859xf32>
    %64 = vector.shape_cast %63 : vector<1x4x859xf32> to vector<4x859xf32>
    %c0_61 = arith.constant 0 : index
    %c0_62 = arith.constant 0 : index
    %c1_63 = arith.constant 1 : index
    %65 = vector.load %arg13[%c0_61, %c0_62, %c1_63] : memref<2x4x892xf32, #tpu.memory_space<vmem>>, vector<1x4x859xf32>
    %66 = vector.shape_cast %65 : vector<1x4x859xf32> to vector<4x859xf32>
    %67 = arith.maximumf %64, %66 : vector<4x859xf32>
    %c0_64 = arith.constant 0 : index
    %c0_65 = arith.constant 0 : index
    %c32_66 = arith.constant 32 : index
    %68 = vector.load %arg13[%c0_64, %c0_65, %c32_66] : memref<2x4x892xf32, #tpu.memory_space<vmem>>, vector<1x4x859xf32>
    %69 = vector.shape_cast %68 : vector<1x4x859xf32> to vector<4x859xf32>
    %c0_67 = arith.constant 0 : index
    %c0_68 = arith.constant 0 : index
    %c33_69 = arith.constant 33 : index
    %70 = vector.load %arg13[%c0_67, %c0_68, %c33_69] : memref<2x4x892xf32, #tpu.memory_space<vmem>>, vector<1x4x859xf32>
    %71 = vector.shape_cast %70 : vector<1x4x859xf32> to vector<4x859xf32>
    %72 = arith.maximumf %69, %71 : vector<4x859xf32>
    %73 = arith.maximumf %67, %72 : vector<4x859xf32>
    %c0_70 = arith.constant 0 : index
    %c0_71 = arith.constant 0 : index
    %74 = vector.load %arg6[%c0_70, %c0_71] : memref<859x324xf32, #tpu.memory_space<vmem>>, vector<859x324xf32>
    %cst_72 = arith.constant dense<0.000000e+00> : vector<4x324xf32>
    %75 = tpu.matmul %73, %74, %cst_72 {dimension_numbers = #tpu.dot_dimension_numbers<[1], [0], [0], [1], [0, 0, 1, 1], [], []>} : vector<4x859xf32>, vector<859x324xf32>, vector<4x324xf32> -> vector<4x324xf32>
    %c0_73 = arith.constant 0 : index
    %c0_74 = arith.constant 0 : index
    %c0_75 = arith.constant 0 : index
    %76 = vector.load %arg14[%c0_73, %c0_74, %c0_75] : memref<2x4x324xf32, #tpu.memory_space<vmem>>, vector<1x4x324xf32>
    %77 = vector.shape_cast %76 : vector<1x4x324xf32> to vector<4x324xf32>
    %78 = vector.shape_cast %75 : vector<4x324xf32> to vector<1x4x324xf32>
    tpu.vector_store %arg14[%c0_73, %c0_74, %c0_75], %78 {strides = array<i32>} : memref<2x4x324xf32, #tpu.memory_space<vmem>>, vector<1x4x324xf32>,
    %c0_76 = arith.constant 0 : index
    %c0_77 = arith.constant 0 : index
    %c0_78 = arith.constant 0 : index
    %79 = vector.load %arg14[%c0_76, %c0_77, %c0_78] : memref<2x4x324xf32, #tpu.memory_space<vmem>>, vector<1x4x248xf32>
    %80 = vector.shape_cast %79 : vector<1x4x248xf32> to vector<4x248xf32>
    %c0_79 = arith.constant 0 : index
    %c0_80 = arith.constant 0 : index
    %c1_81 = arith.constant 1 : index
    %81 = vector.load %arg14[%c0_79, %c0_80, %c1_81] : memref<2x4x324xf32, #tpu.memory_space<vmem>>, vector<1x4x248xf32>
    %82 = vector.shape_cast %81 : vector<1x4x248xf32> to vector<4x248xf32>
    %c0_82 = arith.constant 0 : index
    %c0_83 = arith.constant 0 : index
    %c2_84 = arith.constant 2 : index
    %83 = vector.load %arg14[%c0_82, %c0_83, %c2_84] : memref<2x4x324xf32, #tpu.memory_space<vmem>>, vector<1x4x248xf32>
    %84 = vector.shape_cast %83 : vector<1x4x248xf32> to vector<4x248xf32>
    %c0_85 = arith.constant 0 : index
    %c0_86 = arith.constant 0 : index
    %c3_87 = arith.constant 3 : index
    %85 = vector.load %arg14[%c0_85, %c0_86, %c3_87] : memref<2x4x324xf32, #tpu.memory_space<vmem>>, vector<1x4x248xf32>
    %86 = vector.shape_cast %85 : vector<1x4x248xf32> to vector<4x248xf32>
    %c0_88 = arith.constant 0 : index
    %c0_89 = arith.constant 0 : index
    %c4_90 = arith.constant 4 : index
    %87 = vector.load %arg14[%c0_88, %c0_89, %c4_90] : memref<2x4x324xf32, #tpu.memory_space<vmem>>, vector<1x4x248xf32>
    %88 = vector.shape_cast %87 : vector<1x4x248xf32> to vector<4x248xf32>
    %c0_91 = arith.constant 0 : index
    %c0_92 = arith.constant 0 : index
    %c18 = arith.constant 18 : index
    %89 = vector.load %arg14[%c0_91, %c0_92, %c18] : memref<2x4x324xf32, #tpu.memory_space<vmem>>, vector<1x4x248xf32>
    %90 = vector.shape_cast %89 : vector<1x4x248xf32> to vector<4x248xf32>
    %c0_93 = arith.constant 0 : index
    %c0_94 = arith.constant 0 : index
    %c19 = arith.constant 19 : index
    %91 = vector.load %arg14[%c0_93, %c0_94, %c19] : memref<2x4x324xf32, #tpu.memory_space<vmem>>, vector<1x4x248xf32>
    %92 = vector.shape_cast %91 : vector<1x4x248xf32> to vector<4x248xf32>
    %c0_95 = arith.constant 0 : index
    %c0_96 = arith.constant 0 : index
    %c20 = arith.constant 20 : index
    %93 = vector.load %arg14[%c0_95, %c0_96, %c20] : memref<2x4x324xf32, #tpu.memory_space<vmem>>, vector<1x4x248xf32>
    %94 = vector.shape_cast %93 : vector<1x4x248xf32> to vector<4x248xf32>
    %c0_97 = arith.constant 0 : index
    %c0_98 = arith.constant 0 : index
    %c21 = arith.constant 21 : index
    %95 = vector.load %arg14[%c0_97, %c0_98, %c21] : memref<2x4x324xf32, #tpu.memory_space<vmem>>, vector<1x4x248xf32>
    %96 = vector.shape_cast %95 : vector<1x4x248xf32> to vector<4x248xf32>
    %c0_99 = arith.constant 0 : index
    %c0_100 = arith.constant 0 : index
    %c22 = arith.constant 22 : index
    %97 = vector.load %arg14[%c0_99, %c0_100, %c22] : memref<2x4x324xf32, #tpu.memory_space<vmem>>, vector<1x4x248xf32>
    %98 = vector.shape_cast %97 : vector<1x4x248xf32> to vector<4x248xf32>
    %c0_101 = arith.constant 0 : index
    %c0_102 = arith.constant 0 : index
    %c36_103 = arith.constant 36 : index
    %99 = vector.load %arg14[%c0_101, %c0_102, %c36_103] : memref<2x4x324xf32, #tpu.memory_space<vmem>>, vector<1x4x248xf32>
    %100 = vector.shape_cast %99 : vector<1x4x248xf32> to vector<4x248xf32>
    %c0_104 = arith.constant 0 : index
    %c0_105 = arith.constant 0 : index
    %c37 = arith.constant 37 : index
    %101 = vector.load %arg14[%c0_104, %c0_105, %c37] : memref<2x4x324xf32, #tpu.memory_space<vmem>>, vector<1x4x248xf32>
    %102 = vector.shape_cast %101 : vector<1x4x248xf32> to vector<4x248xf32>
    %c0_106 = arith.constant 0 : index
    %c0_107 = arith.constant 0 : index
    %c38 = arith.constant 38 : index
    %103 = vector.load %arg14[%c0_106, %c0_107, %c38] : memref<2x4x324xf32, #tpu.memory_space<vmem>>, vector<1x4x248xf32>
    %104 = vector.shape_cast %103 : vector<1x4x248xf32> to vector<4x248xf32>
    %c0_108 = arith.constant 0 : index
    %c0_109 = arith.constant 0 : index
    %c39 = arith.constant 39 : index
    %105 = vector.load %arg14[%c0_108, %c0_109, %c39] : memref<2x4x324xf32, #tpu.memory_space<vmem>>, vector<1x4x248xf32>
    %106 = vector.shape_cast %105 : vector<1x4x248xf32> to vector<4x248xf32>
    %c0_110 = arith.constant 0 : index
    %c0_111 = arith.constant 0 : index
    %c40 = arith.constant 40 : index
    %107 = vector.load %arg14[%c0_110, %c0_111, %c40] : memref<2x4x324xf32, #tpu.memory_space<vmem>>, vector<1x4x248xf32>
    %108 = vector.shape_cast %107 : vector<1x4x248xf32> to vector<4x248xf32>
    %c0_112 = arith.constant 0 : index
    %c0_113 = arith.constant 0 : index
    %c54 = arith.constant 54 : index
    %109 = vector.load %arg14[%c0_112, %c0_113, %c54] : memref<2x4x324xf32, #tpu.memory_space<vmem>>, vector<1x4x248xf32>
    %110 = vector.shape_cast %109 : vector<1x4x248xf32> to vector<4x248xf32>
    %c0_114 = arith.constant 0 : index
    %c0_115 = arith.constant 0 : index
    %c55 = arith.constant 55 : index
    %111 = vector.load %arg14[%c0_114, %c0_115, %c55] : memref<2x4x324xf32, #tpu.memory_space<vmem>>, vector<1x4x248xf32>
    %112 = vector.shape_cast %111 : vector<1x4x248xf32> to vector<4x248xf32>
    %c0_116 = arith.constant 0 : index
    %c0_117 = arith.constant 0 : index
    %c56 = arith.constant 56 : index
    %113 = vector.load %arg14[%c0_116, %c0_117, %c56] : memref<2x4x324xf32, #tpu.memory_space<vmem>>, vector<1x4x248xf32>
    %114 = vector.shape_cast %113 : vector<1x4x248xf32> to vector<4x248xf32>
    %c0_118 = arith.constant 0 : index
    %c0_119 = arith.constant 0 : index
    %c57 = arith.constant 57 : index
    %115 = vector.load %arg14[%c0_118, %c0_119, %c57] : memref<2x4x324xf32, #tpu.memory_space<vmem>>, vector<1x4x248xf32>
    %116 = vector.shape_cast %115 : vector<1x4x248xf32> to vector<4x248xf32>
    %c0_120 = arith.constant 0 : index
    %c0_121 = arith.constant 0 : index
    %c58 = arith.constant 58 : index
    %117 = vector.load %arg14[%c0_120, %c0_121, %c58] : memref<2x4x324xf32, #tpu.memory_space<vmem>>, vector<1x4x248xf32>
    %118 = vector.shape_cast %117 : vector<1x4x248xf32> to vector<4x248xf32>
    %c0_122 = arith.constant 0 : index
    %c0_123 = arith.constant 0 : index
    %c72 = arith.constant 72 : index
    %119 = vector.load %arg14[%c0_122, %c0_123, %c72] : memref<2x4x324xf32, #tpu.memory_space<vmem>>, vector<1x4x248xf32>
    %120 = vector.shape_cast %119 : vector<1x4x248xf32> to vector<4x248xf32>
    %c0_124 = arith.constant 0 : index
    %c0_125 = arith.constant 0 : index
    %c73 = arith.constant 73 : index
    %121 = vector.load %arg14[%c0_124, %c0_125, %c73] : memref<2x4x324xf32, #tpu.memory_space<vmem>>, vector<1x4x248xf32>
    %122 = vector.shape_cast %121 : vector<1x4x248xf32> to vector<4x248xf32>
    %c0_126 = arith.constant 0 : index
    %c0_127 = arith.constant 0 : index
    %c74 = arith.constant 74 : index
    %123 = vector.load %arg14[%c0_126, %c0_127, %c74] : memref<2x4x324xf32, #tpu.memory_space<vmem>>, vector<1x4x248xf32>
    %124 = vector.shape_cast %123 : vector<1x4x248xf32> to vector<4x248xf32>
    %c0_128 = arith.constant 0 : index
    %c0_129 = arith.constant 0 : index
    %c75 = arith.constant 75 : index
    %125 = vector.load %arg14[%c0_128, %c0_129, %c75] : memref<2x4x324xf32, #tpu.memory_space<vmem>>, vector<1x4x248xf32>
    %126 = vector.shape_cast %125 : vector<1x4x248xf32> to vector<4x248xf32>
    %c0_130 = arith.constant 0 : index
    %c0_131 = arith.constant 0 : index
    %c76 = arith.constant 76 : index
    %127 = vector.load %arg14[%c0_130, %c0_131, %c76] : memref<2x4x324xf32, #tpu.memory_space<vmem>>, vector<1x4x248xf32>
    %128 = vector.shape_cast %127 : vector<1x4x248xf32> to vector<4x248xf32>
    %129 = tpu.concatenate %80, %82, %84, %86, %88, %90, %92, %94, %96, %98, %100, %102, %104, %106, %108, %110 in 0 : vector<4x248xf32>, vector<4x248xf32>, vector<4x248xf32>, vector<4x248xf32>, vector<4x248xf32>, vector<4x248xf32>, vector<4x248xf32>, vector<4x248xf32>, vector<4x248xf32>, vector<4x248xf32>, vector<4x248xf32>, vector<4x248xf32>, vector<4x248xf32>, vector<4x248xf32>, vector<4x248xf32>, vector<4x248xf32> -> vector<64x248xf32>
    %130 = tpu.concatenate %112, %114, %116, %118, %120, %122, %124, %126, %128 in 0 : vector<4x248xf32>, vector<4x248xf32>, vector<4x248xf32>, vector<4x248xf32>, vector<4x248xf32>, vector<4x248xf32>, vector<4x248xf32>, vector<4x248xf32>, vector<4x248xf32> -> vector<36x248xf32>
    %131 = tpu.concatenate %129, %130 in 0 : vector<64x248xf32>, vector<36x248xf32> -> vector<100x248xf32>
    %c0_132 = arith.constant 0 : index
    %c0_133 = arith.constant 0 : index
    %132 = vector.load %arg4[%c0_132, %c0_133] : memref<8x100xf32, #tpu.memory_space<vmem>>, vector<8x100xf32>
    %cst_134 = arith.constant dense<0.000000e+00> : vector<8x248xf32>
    %133 = tpu.matmul %132, %131, %cst_134 {dimension_numbers = #tpu.dot_dimension_numbers<[1], [0], [0], [1], [0, 0, 1, 1], [], []>} : vector<8x100xf32>, vector<100x248xf32>, vector<8x248xf32> -> vector<8x248xf32>
    %c0_135 = arith.constant 0 : index
    %c0_136 = arith.constant 0 : index
    %134 = vector.load %arg5[%c0_135, %c0_136] : memref<8x1xf32, #tpu.memory_space<vmem>>, vector<8x1xf32>
    %135 = vector.broadcast %134 : vector<8x1xf32> to vector<8x248xf32>
    %136 = arith.addf %133, %135 : vector<8x248xf32>
    %cst_137 = arith.constant 0.000000e+00 : f32
    %137 = vector.broadcast %cst_137 : f32 to vector<8x248xf32>
    %138 = arith.maximumf %136, %137 : vector<8x248xf32>
    %c0_138 = arith.constant 0 : index
    %c0_139 = arith.constant 0 : index
    %c0_140 = arith.constant 0 : index
    %139 = vector.load %arg15[%c0_138, %c0_139, %c0_140] : memref<2x8x248xf32, #tpu.memory_space<vmem>>, vector<1x8x248xf32>
    %140 = vector.shape_cast %139 : vector<1x8x248xf32> to vector<8x248xf32>
    %141 = vector.shape_cast %138 : vector<8x248xf32> to vector<1x8x248xf32>
    tpu.vector_store %arg15[%c0_138, %c0_139, %c0_140], %141 {strides = array<i32>} : memref<2x8x248xf32, #tpu.memory_space<vmem>>, vector<1x8x248xf32>,
    %c0_141 = arith.constant 0 : index
    %c0_142 = arith.constant 0 : index
    %c0_143 = arith.constant 0 : index
    %142 = vector.load %arg15[%c0_141, %c0_142, %c0_143] : memref<2x8x248xf32, #tpu.memory_space<vmem>>, vector<1x8x229xf32>
    %143 = vector.shape_cast %142 : vector<1x8x229xf32> to vector<8x229xf32>
    %c0_144 = arith.constant 0 : index
    %c0_145 = arith.constant 0 : index
    %c1_146 = arith.constant 1 : index
    %144 = vector.load %arg15[%c0_144, %c0_145, %c1_146] : memref<2x8x248xf32, #tpu.memory_space<vmem>>, vector<1x8x229xf32>
    %145 = vector.shape_cast %144 : vector<1x8x229xf32> to vector<8x229xf32>
    %146 = arith.maximumf %143, %145 : vector<8x229xf32>
    %c0_147 = arith.constant 0 : index
    %c0_148 = arith.constant 0 : index
    %c18_149 = arith.constant 18 : index
    %147 = vector.load %arg15[%c0_147, %c0_148, %c18_149] : memref<2x8x248xf32, #tpu.memory_space<vmem>>, vector<1x8x229xf32>
    %148 = vector.shape_cast %147 : vector<1x8x229xf32> to vector<8x229xf32>
    %c0_150 = arith.constant 0 : index
    %c0_151 = arith.constant 0 : index
    %c19_152 = arith.constant 19 : index
    %149 = vector.load %arg15[%c0_150, %c0_151, %c19_152] : memref<2x8x248xf32, #tpu.memory_space<vmem>>, vector<1x8x229xf32>
    %150 = vector.shape_cast %149 : vector<1x8x229xf32> to vector<8x229xf32>
    %151 = arith.maximumf %148, %150 : vector<8x229xf32>
    %152 = arith.maximumf %146, %151 : vector<8x229xf32>
    %c0_153 = arith.constant 0 : index
    %c0_154 = arith.constant 0 : index
    %153 = vector.load %arg7[%c0_153, %c0_154] : memref<229x49xf32, #tpu.memory_space<vmem>>, vector<229x49xf32>
    %cst_155 = arith.constant dense<0.000000e+00> : vector<8x49xf32>
    %154 = tpu.matmul %152, %153, %cst_155 {dimension_numbers = #tpu.dot_dimension_numbers<[1], [0], [0], [1], [0, 0, 1, 1], [], []>} : vector<8x229xf32>, vector<229x49xf32>, vector<8x49xf32> -> vector<8x49xf32>
    %c0_156 = arith.constant 0 : index
    %c0_157 = arith.constant 0 : index
    %c0_158 = arith.constant 0 : index
    %155 = vector.load %arg16[%c0_156, %c0_157, %c0_158] : memref<2x8x49xf32, #tpu.memory_space<vmem>>, vector<1x8x49xf32>
    %156 = vector.shape_cast %155 : vector<1x8x49xf32> to vector<8x49xf32>
    %157 = vector.shape_cast %154 : vector<8x49xf32> to vector<1x8x49xf32>
    tpu.vector_store %arg16[%c0_156, %c0_157, %c0_158], %157 {strides = array<i32>} : memref<2x8x49xf32, #tpu.memory_space<vmem>>, vector<1x8x49xf32>,
    %c1_159 = arith.constant 1 : index
    %c0_160 = arith.constant 0 : index
    %c0_161 = arith.constant 0 : index
    %158 = vector.load %arg1[%c1_159, %c0_160, %c0_161] : memref<2x1x1024xf32, #tpu.memory_space<vmem>>, vector<1x1x892xf32>
    %159 = vector.shape_cast %158 : vector<1x1x892xf32> to vector<1x892xf32>
    %c1_162 = arith.constant 1 : index
    %c0_163 = arith.constant 0 : index
    %c1_164 = arith.constant 1 : index
    %160 = vector.load %arg1[%c1_162, %c0_163, %c1_164] : memref<2x1x1024xf32, #tpu.memory_space<vmem>>, vector<1x1x892xf32>
    %161 = vector.shape_cast %160 : vector<1x1x892xf32> to vector<1x892xf32>
    %c1_165 = arith.constant 1 : index
    %c0_166 = arith.constant 0 : index
    %c2_167 = arith.constant 2 : index
    %162 = vector.load %arg1[%c1_165, %c0_166, %c2_167] : memref<2x1x1024xf32, #tpu.memory_space<vmem>>, vector<1x1x892xf32>
    %163 = vector.shape_cast %162 : vector<1x1x892xf32> to vector<1x892xf32>
    %c1_168 = arith.constant 1 : index
    %c0_169 = arith.constant 0 : index
    %c3_170 = arith.constant 3 : index
    %164 = vector.load %arg1[%c1_168, %c0_169, %c3_170] : memref<2x1x1024xf32, #tpu.memory_space<vmem>>, vector<1x1x892xf32>
    %165 = vector.shape_cast %164 : vector<1x1x892xf32> to vector<1x892xf32>
    %c1_171 = arith.constant 1 : index
    %c0_172 = arith.constant 0 : index
    %c4_173 = arith.constant 4 : index
    %166 = vector.load %arg1[%c1_171, %c0_172, %c4_173] : memref<2x1x1024xf32, #tpu.memory_space<vmem>>, vector<1x1x892xf32>
    %167 = vector.shape_cast %166 : vector<1x1x892xf32> to vector<1x892xf32>
    %c1_174 = arith.constant 1 : index
    %c0_175 = arith.constant 0 : index
    %c32_176 = arith.constant 32 : index
    %168 = vector.load %arg1[%c1_174, %c0_175, %c32_176] : memref<2x1x1024xf32, #tpu.memory_space<vmem>>, vector<1x1x892xf32>
    %169 = vector.shape_cast %168 : vector<1x1x892xf32> to vector<1x892xf32>
    %c1_177 = arith.constant 1 : index
    %c0_178 = arith.constant 0 : index
    %c33_179 = arith.constant 33 : index
    %170 = vector.load %arg1[%c1_177, %c0_178, %c33_179] : memref<2x1x1024xf32, #tpu.memory_space<vmem>>, vector<1x1x892xf32>
    %171 = vector.shape_cast %170 : vector<1x1x892xf32> to vector<1x892xf32>
    %c1_180 = arith.constant 1 : index
    %c0_181 = arith.constant 0 : index
    %c34_182 = arith.constant 34 : index
    %172 = vector.load %arg1[%c1_180, %c0_181, %c34_182] : memref<2x1x1024xf32, #tpu.memory_space<vmem>>, vector<1x1x892xf32>
    %173 = vector.shape_cast %172 : vector<1x1x892xf32> to vector<1x892xf32>
    %c1_183 = arith.constant 1 : index
    %c0_184 = arith.constant 0 : index
    %c35_185 = arith.constant 35 : index
    %174 = vector.load %arg1[%c1_183, %c0_184, %c35_185] : memref<2x1x1024xf32, #tpu.memory_space<vmem>>, vector<1x1x892xf32>
    %175 = vector.shape_cast %174 : vector<1x1x892xf32> to vector<1x892xf32>
    %c1_186 = arith.constant 1 : index
    %c0_187 = arith.constant 0 : index
    %c36_188 = arith.constant 36 : index
    %176 = vector.load %arg1[%c1_186, %c0_187, %c36_188] : memref<2x1x1024xf32, #tpu.memory_space<vmem>>, vector<1x1x892xf32>
    %177 = vector.shape_cast %176 : vector<1x1x892xf32> to vector<1x892xf32>
    %c1_189 = arith.constant 1 : index
    %c0_190 = arith.constant 0 : index
    %c64_191 = arith.constant 64 : index
    %178 = vector.load %arg1[%c1_189, %c0_190, %c64_191] : memref<2x1x1024xf32, #tpu.memory_space<vmem>>, vector<1x1x892xf32>
    %179 = vector.shape_cast %178 : vector<1x1x892xf32> to vector<1x892xf32>
    %c1_192 = arith.constant 1 : index
    %c0_193 = arith.constant 0 : index
    %c65_194 = arith.constant 65 : index
    %180 = vector.load %arg1[%c1_192, %c0_193, %c65_194] : memref<2x1x1024xf32, #tpu.memory_space<vmem>>, vector<1x1x892xf32>
    %181 = vector.shape_cast %180 : vector<1x1x892xf32> to vector<1x892xf32>
    %c1_195 = arith.constant 1 : index
    %c0_196 = arith.constant 0 : index
    %c66_197 = arith.constant 66 : index
    %182 = vector.load %arg1[%c1_195, %c0_196, %c66_197] : memref<2x1x1024xf32, #tpu.memory_space<vmem>>, vector<1x1x892xf32>
    %183 = vector.shape_cast %182 : vector<1x1x892xf32> to vector<1x892xf32>
    %c1_198 = arith.constant 1 : index
    %c0_199 = arith.constant 0 : index
    %c67_200 = arith.constant 67 : index
    %184 = vector.load %arg1[%c1_198, %c0_199, %c67_200] : memref<2x1x1024xf32, #tpu.memory_space<vmem>>, vector<1x1x892xf32>
    %185 = vector.shape_cast %184 : vector<1x1x892xf32> to vector<1x892xf32>
    %c1_201 = arith.constant 1 : index
    %c0_202 = arith.constant 0 : index
    %c68_203 = arith.constant 68 : index
    %186 = vector.load %arg1[%c1_201, %c0_202, %c68_203] : memref<2x1x1024xf32, #tpu.memory_space<vmem>>, vector<1x1x892xf32>
    %187 = vector.shape_cast %186 : vector<1x1x892xf32> to vector<1x892xf32>
    %c1_204 = arith.constant 1 : index
    %c0_205 = arith.constant 0 : index
    %c96_206 = arith.constant 96 : index
    %188 = vector.load %arg1[%c1_204, %c0_205, %c96_206] : memref<2x1x1024xf32, #tpu.memory_space<vmem>>, vector<1x1x892xf32>
    %189 = vector.shape_cast %188 : vector<1x1x892xf32> to vector<1x892xf32>
    %c1_207 = arith.constant 1 : index
    %c0_208 = arith.constant 0 : index
    %c97_209 = arith.constant 97 : index
    %190 = vector.load %arg1[%c1_207, %c0_208, %c97_209] : memref<2x1x1024xf32, #tpu.memory_space<vmem>>, vector<1x1x892xf32>
    %191 = vector.shape_cast %190 : vector<1x1x892xf32> to vector<1x892xf32>
    %c1_210 = arith.constant 1 : index
    %c0_211 = arith.constant 0 : index
    %c98_212 = arith.constant 98 : index
    %192 = vector.load %arg1[%c1_210, %c0_211, %c98_212] : memref<2x1x1024xf32, #tpu.memory_space<vmem>>, vector<1x1x892xf32>
    %193 = vector.shape_cast %192 : vector<1x1x892xf32> to vector<1x892xf32>
    %c1_213 = arith.constant 1 : index
    %c0_214 = arith.constant 0 : index
    %c99_215 = arith.constant 99 : index
    %194 = vector.load %arg1[%c1_213, %c0_214, %c99_215] : memref<2x1x1024xf32, #tpu.memory_space<vmem>>, vector<1x1x892xf32>
    %195 = vector.shape_cast %194 : vector<1x1x892xf32> to vector<1x892xf32>
    %c1_216 = arith.constant 1 : index
    %c0_217 = arith.constant 0 : index
    %c100_218 = arith.constant 100 : index
    %196 = vector.load %arg1[%c1_216, %c0_217, %c100_218] : memref<2x1x1024xf32, #tpu.memory_space<vmem>>, vector<1x1x892xf32>
    %197 = vector.shape_cast %196 : vector<1x1x892xf32> to vector<1x892xf32>
    %c1_219 = arith.constant 1 : index
    %c0_220 = arith.constant 0 : index
    %c128_221 = arith.constant 128 : index
    %198 = vector.load %arg1[%c1_219, %c0_220, %c128_221] : memref<2x1x1024xf32, #tpu.memory_space<vmem>>, vector<1x1x892xf32>
    %199 = vector.shape_cast %198 : vector<1x1x892xf32> to vector<1x892xf32>
    %c1_222 = arith.constant 1 : index
    %c0_223 = arith.constant 0 : index
    %c129_224 = arith.constant 129 : index
    %200 = vector.load %arg1[%c1_222, %c0_223, %c129_224] : memref<2x1x1024xf32, #tpu.memory_space<vmem>>, vector<1x1x892xf32>
    %201 = vector.shape_cast %200 : vector<1x1x892xf32> to vector<1x892xf32>
    %c1_225 = arith.constant 1 : index
    %c0_226 = arith.constant 0 : index
    %c130_227 = arith.constant 130 : index
    %202 = vector.load %arg1[%c1_225, %c0_226, %c130_227] : memref<2x1x1024xf32, #tpu.memory_space<vmem>>, vector<1x1x892xf32>
    %203 = vector.shape_cast %202 : vector<1x1x892xf32> to vector<1x892xf32>
    %c1_228 = arith.constant 1 : index
    %c0_229 = arith.constant 0 : index
    %c131_230 = arith.constant 131 : index
    %204 = vector.load %arg1[%c1_228, %c0_229, %c131_230] : memref<2x1x1024xf32, #tpu.memory_space<vmem>>, vector<1x1x892xf32>
    %205 = vector.shape_cast %204 : vector<1x1x892xf32> to vector<1x892xf32>
    %c1_231 = arith.constant 1 : index
    %c0_232 = arith.constant 0 : index
    %c132_233 = arith.constant 132 : index
    %206 = vector.load %arg1[%c1_231, %c0_232, %c132_233] : memref<2x1x1024xf32, #tpu.memory_space<vmem>>, vector<1x1x892xf32>
    %207 = vector.shape_cast %206 : vector<1x1x892xf32> to vector<1x892xf32>
    %208 = tpu.concatenate %159, %161, %163, %165, %167, %169, %171, %173, %175, %177, %179, %181, %183, %185, %187, %189 in 0 : vector<1x892xf32>, vector<1x892xf32>, vector<1x892xf32>, vector<1x892xf32>, vector<1x892xf32>, vector<1x892xf32>, vector<1x892xf32>, vector<1x892xf32>, vector<1x892xf32>, vector<1x892xf32>, vector<1x892xf32>, vector<1x892xf32>, vector<1x892xf32>, vector<1x892xf32>, vector<1x892xf32>, vector<1x892xf32> -> vector<16x892xf32>
    %209 = tpu.concatenate %191, %193, %195, %197, %199, %201, %203, %205, %207 in 0 : vector<1x892xf32>, vector<1x892xf32>, vector<1x892xf32>, vector<1x892xf32>, vector<1x892xf32>, vector<1x892xf32>, vector<1x892xf32>, vector<1x892xf32>, vector<1x892xf32> -> vector<9x892xf32>
    %210 = tpu.concatenate %208, %209 in 0 : vector<16x892xf32>, vector<9x892xf32> -> vector<25x892xf32>
    %c0_234 = arith.constant 0 : index
    %c0_235 = arith.constant 0 : index
    %211 = vector.load %arg2[%c0_234, %c0_235] : memref<4x25xf32, #tpu.memory_space<vmem>>, vector<4x25xf32>
    %cst_236 = arith.constant dense<0.000000e+00> : vector<4x892xf32>
    %212 = tpu.matmul %211, %210, %cst_236 {dimension_numbers = #tpu.dot_dimension_numbers<[1], [0], [0], [1], [0, 0, 1, 1], [], []>} : vector<4x25xf32>, vector<25x892xf32>, vector<4x892xf32> -> vector<4x892xf32>
    %c0_237 = arith.constant 0 : index
    %c0_238 = arith.constant 0 : index
    %213 = vector.load %arg3[%c0_237, %c0_238] : memref<4x1xf32, #tpu.memory_space<vmem>>, vector<4x1xf32>
    %214 = vector.broadcast %213 : vector<4x1xf32> to vector<4x892xf32>
    %215 = arith.addf %212, %214 : vector<4x892xf32>
    %cst_239 = arith.constant 0.000000e+00 : f32
    %216 = vector.broadcast %cst_239 : f32 to vector<4x892xf32>
    %217 = arith.maximumf %215, %216 : vector<4x892xf32>
    %c1_240 = arith.constant 1 : index
    %c0_241 = arith.constant 0 : index
    %c0_242 = arith.constant 0 : index
    %218 = vector.load %arg13[%c1_240, %c0_241, %c0_242] : memref<2x4x892xf32, #tpu.memory_space<vmem>>, vector<1x4x892xf32>
    %219 = vector.shape_cast %218 : vector<1x4x892xf32> to vector<4x892xf32>
    %220 = vector.shape_cast %217 : vector<4x892xf32> to vector<1x4x892xf32>
    tpu.vector_store %arg13[%c1_240, %c0_241, %c0_242], %220 {strides = array<i32>} : memref<2x4x892xf32, #tpu.memory_space<vmem>>, vector<1x4x892xf32>,
    %c1_243 = arith.constant 1 : index
    %c0_244 = arith.constant 0 : index
    %c0_245 = arith.constant 0 : index
    %221 = vector.load %arg13[%c1_243, %c0_244, %c0_245] : memref<2x4x892xf32, #tpu.memory_space<vmem>>, vector<1x4x859xf32>
    %222 = vector.shape_cast %221 : vector<1x4x859xf32> to vector<4x859xf32>
    %c1_246 = arith.constant 1 : index
    %c0_247 = arith.constant 0 : index
    %c1_248 = arith.constant 1 : index
    %223 = vector.load %arg13[%c1_246, %c0_247, %c1_248] : memref<2x4x892xf32, #tpu.memory_space<vmem>>, vector<1x4x859xf32>
    %224 = vector.shape_cast %223 : vector<1x4x859xf32> to vector<4x859xf32>
    %225 = arith.maximumf %222, %224 : vector<4x859xf32>
    %c1_249 = arith.constant 1 : index
    %c0_250 = arith.constant 0 : index
    %c32_251 = arith.constant 32 : index
    %226 = vector.load %arg13[%c1_249, %c0_250, %c32_251] : memref<2x4x892xf32, #tpu.memory_space<vmem>>, vector<1x4x859xf32>
    %227 = vector.shape_cast %226 : vector<1x4x859xf32> to vector<4x859xf32>
    %c1_252 = arith.constant 1 : index
    %c0_253 = arith.constant 0 : index
    %c33_254 = arith.constant 33 : index
    %228 = vector.load %arg13[%c1_252, %c0_253, %c33_254] : memref<2x4x892xf32, #tpu.memory_space<vmem>>, vector<1x4x859xf32>
    %229 = vector.shape_cast %228 : vector<1x4x859xf32> to vector<4x859xf32>
    %230 = arith.maximumf %227, %229 : vector<4x859xf32>
    %231 = arith.maximumf %225, %230 : vector<4x859xf32>
    %c0_255 = arith.constant 0 : index
    %c0_256 = arith.constant 0 : index
    %232 = vector.load %arg6[%c0_255, %c0_256] : memref<859x324xf32, #tpu.memory_space<vmem>>, vector<859x324xf32>
    %cst_257 = arith.constant dense<0.000000e+00> : vector<4x324xf32>
    %233 = tpu.matmul %231, %232, %cst_257 {dimension_numbers = #tpu.dot_dimension_numbers<[1], [0], [0], [1], [0, 0, 1, 1], [], []>} : vector<4x859xf32>, vector<859x324xf32>, vector<4x324xf32> -> vector<4x324xf32>
    %c1_258 = arith.constant 1 : index
    %c0_259 = arith.constant 0 : index
    %c0_260 = arith.constant 0 : index
    %234 = vector.load %arg14[%c1_258, %c0_259, %c0_260] : memref<2x4x324xf32, #tpu.memory_space<vmem>>, vector<1x4x324xf32>
    %235 = vector.shape_cast %234 : vector<1x4x324xf32> to vector<4x324xf32>
    %236 = vector.shape_cast %233 : vector<4x324xf32> to vector<1x4x324xf32>
    tpu.vector_store %arg14[%c1_258, %c0_259, %c0_260], %236 {strides = array<i32>} : memref<2x4x324xf32, #tpu.memory_space<vmem>>, vector<1x4x324xf32>,
    %c1_261 = arith.constant 1 : index
    %c0_262 = arith.constant 0 : index
    %c0_263 = arith.constant 0 : index
    %237 = vector.load %arg14[%c1_261, %c0_262, %c0_263] : memref<2x4x324xf32, #tpu.memory_space<vmem>>, vector<1x4x248xf32>
    %238 = vector.shape_cast %237 : vector<1x4x248xf32> to vector<4x248xf32>
    %c1_264 = arith.constant 1 : index
    %c0_265 = arith.constant 0 : index
    %c1_266 = arith.constant 1 : index
    %239 = vector.load %arg14[%c1_264, %c0_265, %c1_266] : memref<2x4x324xf32, #tpu.memory_space<vmem>>, vector<1x4x248xf32>
    %240 = vector.shape_cast %239 : vector<1x4x248xf32> to vector<4x248xf32>
    %c1_267 = arith.constant 1 : index
    %c0_268 = arith.constant 0 : index
    %c2_269 = arith.constant 2 : index
    %241 = vector.load %arg14[%c1_267, %c0_268, %c2_269] : memref<2x4x324xf32, #tpu.memory_space<vmem>>, vector<1x4x248xf32>
    %242 = vector.shape_cast %241 : vector<1x4x248xf32> to vector<4x248xf32>
    %c1_270 = arith.constant 1 : index
    %c0_271 = arith.constant 0 : index
    %c3_272 = arith.constant 3 : index
    %243 = vector.load %arg14[%c1_270, %c0_271, %c3_272] : memref<2x4x324xf32, #tpu.memory_space<vmem>>, vector<1x4x248xf32>
    %244 = vector.shape_cast %243 : vector<1x4x248xf32> to vector<4x248xf32>
    %c1_273 = arith.constant 1 : index
    %c0_274 = arith.constant 0 : index
    %c4_275 = arith.constant 4 : index
    %245 = vector.load %arg14[%c1_273, %c0_274, %c4_275] : memref<2x4x324xf32, #tpu.memory_space<vmem>>, vector<1x4x248xf32>
    %246 = vector.shape_cast %245 : vector<1x4x248xf32> to vector<4x248xf32>
    %c1_276 = arith.constant 1 : index
    %c0_277 = arith.constant 0 : index
    %c18_278 = arith.constant 18 : index
    %247 = vector.load %arg14[%c1_276, %c0_277, %c18_278] : memref<2x4x324xf32, #tpu.memory_space<vmem>>, vector<1x4x248xf32>
    %248 = vector.shape_cast %247 : vector<1x4x248xf32> to vector<4x248xf32>
    %c1_279 = arith.constant 1 : index
    %c0_280 = arith.constant 0 : index
    %c19_281 = arith.constant 19 : index
    %249 = vector.load %arg14[%c1_279, %c0_280, %c19_281] : memref<2x4x324xf32, #tpu.memory_space<vmem>>, vector<1x4x248xf32>
    %250 = vector.shape_cast %249 : vector<1x4x248xf32> to vector<4x248xf32>
    %c1_282 = arith.constant 1 : index
    %c0_283 = arith.constant 0 : index
    %c20_284 = arith.constant 20 : index
    %251 = vector.load %arg14[%c1_282, %c0_283, %c20_284] : memref<2x4x324xf32, #tpu.memory_space<vmem>>, vector<1x4x248xf32>
    %252 = vector.shape_cast %251 : vector<1x4x248xf32> to vector<4x248xf32>
    %c1_285 = arith.constant 1 : index
    %c0_286 = arith.constant 0 : index
    %c21_287 = arith.constant 21 : index
    %253 = vector.load %arg14[%c1_285, %c0_286, %c21_287] : memref<2x4x324xf32, #tpu.memory_space<vmem>>, vector<1x4x248xf32>
    %254 = vector.shape_cast %253 : vector<1x4x248xf32> to vector<4x248xf32>
    %c1_288 = arith.constant 1 : index
    %c0_289 = arith.constant 0 : index
    %c22_290 = arith.constant 22 : index
    %255 = vector.load %arg14[%c1_288, %c0_289, %c22_290] : memref<2x4x324xf32, #tpu.memory_space<vmem>>, vector<1x4x248xf32>
    %256 = vector.shape_cast %255 : vector<1x4x248xf32> to vector<4x248xf32>
    %c1_291 = arith.constant 1 : index
    %c0_292 = arith.constant 0 : index
    %c36_293 = arith.constant 36 : index
    %257 = vector.load %arg14[%c1_291, %c0_292, %c36_293] : memref<2x4x324xf32, #tpu.memory_space<vmem>>, vector<1x4x248xf32>
    %258 = vector.shape_cast %257 : vector<1x4x248xf32> to vector<4x248xf32>
    %c1_294 = arith.constant 1 : index
    %c0_295 = arith.constant 0 : index
    %c37_296 = arith.constant 37 : index
    %259 = vector.load %arg14[%c1_294, %c0_295, %c37_296] : memref<2x4x324xf32, #tpu.memory_space<vmem>>, vector<1x4x248xf32>
    %260 = vector.shape_cast %259 : vector<1x4x248xf32> to vector<4x248xf32>
    %c1_297 = arith.constant 1 : index
    %c0_298 = arith.constant 0 : index
    %c38_299 = arith.constant 38 : index
    %261 = vector.load %arg14[%c1_297, %c0_298, %c38_299] : memref<2x4x324xf32, #tpu.memory_space<vmem>>, vector<1x4x248xf32>
    %262 = vector.shape_cast %261 : vector<1x4x248xf32> to vector<4x248xf32>
    %c1_300 = arith.constant 1 : index
    %c0_301 = arith.constant 0 : index
    %c39_302 = arith.constant 39 : index
    %263 = vector.load %arg14[%c1_300, %c0_301, %c39_302] : memref<2x4x324xf32, #tpu.memory_space<vmem>>, vector<1x4x248xf32>
    %264 = vector.shape_cast %263 : vector<1x4x248xf32> to vector<4x248xf32>
    %c1_303 = arith.constant 1 : index
    %c0_304 = arith.constant 0 : index
    %c40_305 = arith.constant 40 : index
    %265 = vector.load %arg14[%c1_303, %c0_304, %c40_305] : memref<2x4x324xf32, #tpu.memory_space<vmem>>, vector<1x4x248xf32>
    %266 = vector.shape_cast %265 : vector<1x4x248xf32> to vector<4x248xf32>
    %c1_306 = arith.constant 1 : index
    %c0_307 = arith.constant 0 : index
    %c54_308 = arith.constant 54 : index
    %267 = vector.load %arg14[%c1_306, %c0_307, %c54_308] : memref<2x4x324xf32, #tpu.memory_space<vmem>>, vector<1x4x248xf32>
    %268 = vector.shape_cast %267 : vector<1x4x248xf32> to vector<4x248xf32>
    %c1_309 = arith.constant 1 : index
    %c0_310 = arith.constant 0 : index
    %c55_311 = arith.constant 55 : index
    %269 = vector.load %arg14[%c1_309, %c0_310, %c55_311] : memref<2x4x324xf32, #tpu.memory_space<vmem>>, vector<1x4x248xf32>
    %270 = vector.shape_cast %269 : vector<1x4x248xf32> to vector<4x248xf32>
    %c1_312 = arith.constant 1 : index
    %c0_313 = arith.constant 0 : index
    %c56_314 = arith.constant 56 : index
    %271 = vector.load %arg14[%c1_312, %c0_313, %c56_314] : memref<2x4x324xf32, #tpu.memory_space<vmem>>, vector<1x4x248xf32>
    %272 = vector.shape_cast %271 : vector<1x4x248xf32> to vector<4x248xf32>
    %c1_315 = arith.constant 1 : index
    %c0_316 = arith.constant 0 : index
    %c57_317 = arith.constant 57 : index
    %273 = vector.load %arg14[%c1_315, %c0_316, %c57_317] : memref<2x4x324xf32, #tpu.memory_space<vmem>>, vector<1x4x248xf32>
    %274 = vector.shape_cast %273 : vector<1x4x248xf32> to vector<4x248xf32>
    %c1_318 = arith.constant 1 : index
    %c0_319 = arith.constant 0 : index
    %c58_320 = arith.constant 58 : index
    %275 = vector.load %arg14[%c1_318, %c0_319, %c58_320] : memref<2x4x324xf32, #tpu.memory_space<vmem>>, vector<1x4x248xf32>
    %276 = vector.shape_cast %275 : vector<1x4x248xf32> to vector<4x248xf32>
    %c1_321 = arith.constant 1 : index
    %c0_322 = arith.constant 0 : index
    %c72_323 = arith.constant 72 : index
    %277 = vector.load %arg14[%c1_321, %c0_322, %c72_323] : memref<2x4x324xf32, #tpu.memory_space<vmem>>, vector<1x4x248xf32>
    %278 = vector.shape_cast %277 : vector<1x4x248xf32> to vector<4x248xf32>
    %c1_324 = arith.constant 1 : index
    %c0_325 = arith.constant 0 : index
    %c73_326 = arith.constant 73 : index
    %279 = vector.load %arg14[%c1_324, %c0_325, %c73_326] : memref<2x4x324xf32, #tpu.memory_space<vmem>>, vector<1x4x248xf32>
    %280 = vector.shape_cast %279 : vector<1x4x248xf32> to vector<4x248xf32>
    %c1_327 = arith.constant 1 : index
    %c0_328 = arith.constant 0 : index
    %c74_329 = arith.constant 74 : index
    %281 = vector.load %arg14[%c1_327, %c0_328, %c74_329] : memref<2x4x324xf32, #tpu.memory_space<vmem>>, vector<1x4x248xf32>
    %282 = vector.shape_cast %281 : vector<1x4x248xf32> to vector<4x248xf32>
    %c1_330 = arith.constant 1 : index
    %c0_331 = arith.constant 0 : index
    %c75_332 = arith.constant 75 : index
    %283 = vector.load %arg14[%c1_330, %c0_331, %c75_332] : memref<2x4x324xf32, #tpu.memory_space<vmem>>, vector<1x4x248xf32>
    %284 = vector.shape_cast %283 : vector<1x4x248xf32> to vector<4x248xf32>
    %c1_333 = arith.constant 1 : index
    %c0_334 = arith.constant 0 : index
    %c76_335 = arith.constant 76 : index
    %285 = vector.load %arg14[%c1_333, %c0_334, %c76_335] : memref<2x4x324xf32, #tpu.memory_space<vmem>>, vector<1x4x248xf32>
    %286 = vector.shape_cast %285 : vector<1x4x248xf32> to vector<4x248xf32>
    %287 = tpu.concatenate %238, %240, %242, %244, %246, %248, %250, %252, %254, %256, %258, %260, %262, %264, %266, %268 in 0 : vector<4x248xf32>, vector<4x248xf32>, vector<4x248xf32>, vector<4x248xf32>, vector<4x248xf32>, vector<4x248xf32>, vector<4x248xf32>, vector<4x248xf32>, vector<4x248xf32>, vector<4x248xf32>, vector<4x248xf32>, vector<4x248xf32>, vector<4x248xf32>, vector<4x248xf32>, vector<4x248xf32>, vector<4x248xf32> -> vector<64x248xf32>
    %288 = tpu.concatenate %270, %272, %274, %276, %278, %280, %282, %284, %286 in 0 : vector<4x248xf32>, vector<4x248xf32>, vector<4x248xf32>, vector<4x248xf32>, vector<4x248xf32>, vector<4x248xf32>, vector<4x248xf32>, vector<4x248xf32>, vector<4x248xf32> -> vector<36x248xf32>
    %289 = tpu.concatenate %287, %288 in 0 : vector<64x248xf32>, vector<36x248xf32> -> vector<100x248xf32>
    %c0_336 = arith.constant 0 : index
    %c0_337 = arith.constant 0 : index
    %290 = vector.load %arg4[%c0_336, %c0_337] : memref<8x100xf32, #tpu.memory_space<vmem>>, vector<8x100xf32>
    %cst_338 = arith.constant dense<0.000000e+00> : vector<8x248xf32>
    %291 = tpu.matmul %290, %289, %cst_338 {dimension_numbers = #tpu.dot_dimension_numbers<[1], [0], [0], [1], [0, 0, 1, 1], [], []>} : vector<8x100xf32>, vector<100x248xf32>, vector<8x248xf32> -> vector<8x248xf32>
    %c0_339 = arith.constant 0 : index
    %c0_340 = arith.constant 0 : index
    %292 = vector.load %arg5[%c0_339, %c0_340] : memref<8x1xf32, #tpu.memory_space<vmem>>, vector<8x1xf32>
    %293 = vector.broadcast %292 : vector<8x1xf32> to vector<8x248xf32>
    %294 = arith.addf %291, %293 : vector<8x248xf32>
    %cst_341 = arith.constant 0.000000e+00 : f32
    %295 = vector.broadcast %cst_341 : f32 to vector<8x248xf32>
    %296 = arith.maximumf %294, %295 : vector<8x248xf32>
    %c1_342 = arith.constant 1 : index
    %c0_343 = arith.constant 0 : index
    %c0_344 = arith.constant 0 : index
    %297 = vector.load %arg15[%c1_342, %c0_343, %c0_344] : memref<2x8x248xf32, #tpu.memory_space<vmem>>, vector<1x8x248xf32>
    %298 = vector.shape_cast %297 : vector<1x8x248xf32> to vector<8x248xf32>
    %299 = vector.shape_cast %296 : vector<8x248xf32> to vector<1x8x248xf32>
    tpu.vector_store %arg15[%c1_342, %c0_343, %c0_344], %299 {strides = array<i32>} : memref<2x8x248xf32, #tpu.memory_space<vmem>>, vector<1x8x248xf32>,
    %c1_345 = arith.constant 1 : index
    %c0_346 = arith.constant 0 : index
    %c0_347 = arith.constant 0 : index
    %300 = vector.load %arg15[%c1_345, %c0_346, %c0_347] : memref<2x8x248xf32, #tpu.memory_space<vmem>>, vector<1x8x229xf32>
    %301 = vector.shape_cast %300 : vector<1x8x229xf32> to vector<8x229xf32>
    %c1_348 = arith.constant 1 : index
    %c0_349 = arith.constant 0 : index
    %c1_350 = arith.constant 1 : index
    %302 = vector.load %arg15[%c1_348, %c0_349, %c1_350] : memref<2x8x248xf32, #tpu.memory_space<vmem>>, vector<1x8x229xf32>
    %303 = vector.shape_cast %302 : vector<1x8x229xf32> to vector<8x229xf32>
    %304 = arith.maximumf %301, %303 : vector<8x229xf32>
    %c1_351 = arith.constant 1 : index
    %c0_352 = arith.constant 0 : index
    %c18_353 = arith.constant 18 : index
    %305 = vector.load %arg15[%c1_351, %c0_352, %c18_353] : memref<2x8x248xf32, #tpu.memory_space<vmem>>, vector<1x8x229xf32>
    %306 = vector.shape_cast %305 : vector<1x8x229xf32> to vector<8x229xf32>
    %c1_354 = arith.constant 1 : index
    %c0_355 = arith.constant 0 : index
    %c19_356 = arith.constant 19 : index
    %307 = vector.load %arg15[%c1_354, %c0_355, %c19_356] : memref<2x8x248xf32, #tpu.memory_space<vmem>>, vector<1x8x229xf32>
    %308 = vector.shape_cast %307 : vector<1x8x229xf32> to vector<8x229xf32>
    %309 = arith.maximumf %306, %308 : vector<8x229xf32>
    %310 = arith.maximumf %304, %309 : vector<8x229xf32>
    %c0_357 = arith.constant 0 : index
    %c0_358 = arith.constant 0 : index
    %311 = vector.load %arg7[%c0_357, %c0_358] : memref<229x49xf32, #tpu.memory_space<vmem>>, vector<229x49xf32>
    %cst_359 = arith.constant dense<0.000000e+00> : vector<8x49xf32>
    %312 = tpu.matmul %310, %311, %cst_359 {dimension_numbers = #tpu.dot_dimension_numbers<[1], [0], [0], [1], [0, 0, 1, 1], [], []>} : vector<8x229xf32>, vector<229x49xf32>, vector<8x49xf32> -> vector<8x49xf32>
    %c1_360 = arith.constant 1 : index
    %c0_361 = arith.constant 0 : index
    %c0_362 = arith.constant 0 : index
    %313 = vector.load %arg16[%c1_360, %c0_361, %c0_362] : memref<2x8x49xf32, #tpu.memory_space<vmem>>, vector<1x8x49xf32>
    %314 = vector.shape_cast %313 : vector<1x8x49xf32> to vector<8x49xf32>
    %315 = vector.shape_cast %312 : vector<8x49xf32> to vector<1x8x49xf32>
    tpu.vector_store %arg16[%c1_360, %c0_361, %c0_362], %315 {strides = array<i32>} : memref<2x8x49xf32, #tpu.memory_space<vmem>>, vector<1x8x49xf32>,
    %c0_363 = arith.constant 0 : index
    %c0_364 = arith.constant 0 : index
    %c0_365 = arith.constant 0 : index
    %316 = vector.load %arg16[%c0_363, %c0_364, %c0_365] : memref<2x8x49xf32, #tpu.memory_space<vmem>>, vector<2x1x49xf32>
    %317 = vector.shape_cast %316 : vector<2x1x49xf32> to vector<2x49xf32>
    %c0_366 = arith.constant 0 : index
    %c0_367 = arith.constant 0 : index
    %c0_368 = arith.constant 0 : index
    %318 = vector.load %arg8[%c0_366, %c0_367, %c0_368] : memref<8x49x512xf32, #tpu.memory_space<vmem>>, vector<1x49x512xf32>
    %319 = vector.shape_cast %318 : vector<1x49x512xf32> to vector<49x512xf32>
    %cst_369 = arith.constant dense<0.000000e+00> : vector<2x512xf32>
    %320 = tpu.matmul %317, %319, %cst_369 {dimension_numbers = #tpu.dot_dimension_numbers<[1], [0], [0], [1], [0, 0, 1, 1], [], []>} : vector<2x49xf32>, vector<49x512xf32>, vector<2x512xf32> -> vector<2x512xf32>
    %c0_370 = arith.constant 0 : index
    %c1_371 = arith.constant 1 : index
    %c0_372 = arith.constant 0 : index
    %321 = vector.load %arg16[%c0_370, %c1_371, %c0_372] : memref<2x8x49xf32, #tpu.memory_space<vmem>>, vector<2x1x49xf32>
    %322 = vector.shape_cast %321 : vector<2x1x49xf32> to vector<2x49xf32>
    %c1_373 = arith.constant 1 : index
    %c0_374 = arith.constant 0 : index
    %c0_375 = arith.constant 0 : index
    %323 = vector.load %arg8[%c1_373, %c0_374, %c0_375] : memref<8x49x512xf32, #tpu.memory_space<vmem>>, vector<1x49x512xf32>
    %324 = vector.shape_cast %323 : vector<1x49x512xf32> to vector<49x512xf32>
    %cst_376 = arith.constant dense<0.000000e+00> : vector<2x512xf32>
    %325 = tpu.matmul %322, %324, %cst_376 {dimension_numbers = #tpu.dot_dimension_numbers<[1], [0], [0], [1], [0, 0, 1, 1], [], []>} : vector<2x49xf32>, vector<49x512xf32>, vector<2x512xf32> -> vector<2x512xf32>
    %326 = arith.addf %320, %325 : vector<2x512xf32>
    %c0_377 = arith.constant 0 : index
    %c2_378 = arith.constant 2 : index
    %c0_379 = arith.constant 0 : index
    %327 = vector.load %arg16[%c0_377, %c2_378, %c0_379] : memref<2x8x49xf32, #tpu.memory_space<vmem>>, vector<2x1x49xf32>
    %328 = vector.shape_cast %327 : vector<2x1x49xf32> to vector<2x49xf32>
    %c2_380 = arith.constant 2 : index
    %c0_381 = arith.constant 0 : index
    %c0_382 = arith.constant 0 : index
    %329 = vector.load %arg8[%c2_380, %c0_381, %c0_382] : memref<8x49x512xf32, #tpu.memory_space<vmem>>, vector<1x49x512xf32>
    %330 = vector.shape_cast %329 : vector<1x49x512xf32> to vector<49x512xf32>
    %cst_383 = arith.constant dense<0.000000e+00> : vector<2x512xf32>
    %331 = tpu.matmul %328, %330, %cst_383 {dimension_numbers = #tpu.dot_dimension_numbers<[1], [0], [0], [1], [0, 0, 1, 1], [], []>} : vector<2x49xf32>, vector<49x512xf32>, vector<2x512xf32> -> vector<2x512xf32>
    %332 = arith.addf %326, %331 : vector<2x512xf32>
    %c0_384 = arith.constant 0 : index
    %c3_385 = arith.constant 3 : index
    %c0_386 = arith.constant 0 : index
    %333 = vector.load %arg16[%c0_384, %c3_385, %c0_386] : memref<2x8x49xf32, #tpu.memory_space<vmem>>, vector<2x1x49xf32>
    %334 = vector.shape_cast %333 : vector<2x1x49xf32> to vector<2x49xf32>
    %c3_387 = arith.constant 3 : index
    %c0_388 = arith.constant 0 : index
    %c0_389 = arith.constant 0 : index
    %335 = vector.load %arg8[%c3_387, %c0_388, %c0_389] : memref<8x49x512xf32, #tpu.memory_space<vmem>>, vector<1x49x512xf32>
    %336 = vector.shape_cast %335 : vector<1x49x512xf32> to vector<49x512xf32>
    %cst_390 = arith.constant dense<0.000000e+00> : vector<2x512xf32>
    %337 = tpu.matmul %334, %336, %cst_390 {dimension_numbers = #tpu.dot_dimension_numbers<[1], [0], [0], [1], [0, 0, 1, 1], [], []>} : vector<2x49xf32>, vector<49x512xf32>, vector<2x512xf32> -> vector<2x512xf32>
    %338 = arith.addf %332, %337 : vector<2x512xf32>
    %c0_391 = arith.constant 0 : index
    %c4_392 = arith.constant 4 : index
    %c0_393 = arith.constant 0 : index
    %339 = vector.load %arg16[%c0_391, %c4_392, %c0_393] : memref<2x8x49xf32, #tpu.memory_space<vmem>>, vector<2x1x49xf32>
    %340 = vector.shape_cast %339 : vector<2x1x49xf32> to vector<2x49xf32>
    %c4_394 = arith.constant 4 : index
    %c0_395 = arith.constant 0 : index
    %c0_396 = arith.constant 0 : index
    %341 = vector.load %arg8[%c4_394, %c0_395, %c0_396] : memref<8x49x512xf32, #tpu.memory_space<vmem>>, vector<1x49x512xf32>
    %342 = vector.shape_cast %341 : vector<1x49x512xf32> to vector<49x512xf32>
    %cst_397 = arith.constant dense<0.000000e+00> : vector<2x512xf32>
    %343 = tpu.matmul %340, %342, %cst_397 {dimension_numbers = #tpu.dot_dimension_numbers<[1], [0], [0], [1], [0, 0, 1, 1], [], []>} : vector<2x49xf32>, vector<49x512xf32>, vector<2x512xf32> -> vector<2x512xf32>
    %344 = arith.addf %338, %343 : vector<2x512xf32>
    %c0_398 = arith.constant 0 : index
    %c5 = arith.constant 5 : index
    %c0_399 = arith.constant 0 : index
    %345 = vector.load %arg16[%c0_398, %c5, %c0_399] : memref<2x8x49xf32, #tpu.memory_space<vmem>>, vector<2x1x49xf32>
    %346 = vector.shape_cast %345 : vector<2x1x49xf32> to vector<2x49xf32>
    %c5_400 = arith.constant 5 : index
    %c0_401 = arith.constant 0 : index
    %c0_402 = arith.constant 0 : index
    %347 = vector.load %arg8[%c5_400, %c0_401, %c0_402] : memref<8x49x512xf32, #tpu.memory_space<vmem>>, vector<1x49x512xf32>
    %348 = vector.shape_cast %347 : vector<1x49x512xf32> to vector<49x512xf32>
    %cst_403 = arith.constant dense<0.000000e+00> : vector<2x512xf32>
    %349 = tpu.matmul %346, %348, %cst_403 {dimension_numbers = #tpu.dot_dimension_numbers<[1], [0], [0], [1], [0, 0, 1, 1], [], []>} : vector<2x49xf32>, vector<49x512xf32>, vector<2x512xf32> -> vector<2x512xf32>
    %350 = arith.addf %344, %349 : vector<2x512xf32>
    %c0_404 = arith.constant 0 : index
    %c6 = arith.constant 6 : index
    %c0_405 = arith.constant 0 : index
    %351 = vector.load %arg16[%c0_404, %c6, %c0_405] : memref<2x8x49xf32, #tpu.memory_space<vmem>>, vector<2x1x49xf32>
    %352 = vector.shape_cast %351 : vector<2x1x49xf32> to vector<2x49xf32>
    %c6_406 = arith.constant 6 : index
    %c0_407 = arith.constant 0 : index
    %c0_408 = arith.constant 0 : index
    %353 = vector.load %arg8[%c6_406, %c0_407, %c0_408] : memref<8x49x512xf32, #tpu.memory_space<vmem>>, vector<1x49x512xf32>
    %354 = vector.shape_cast %353 : vector<1x49x512xf32> to vector<49x512xf32>
    %cst_409 = arith.constant dense<0.000000e+00> : vector<2x512xf32>
    %355 = tpu.matmul %352, %354, %cst_409 {dimension_numbers = #tpu.dot_dimension_numbers<[1], [0], [0], [1], [0, 0, 1, 1], [], []>} : vector<2x49xf32>, vector<49x512xf32>, vector<2x512xf32> -> vector<2x512xf32>
    %356 = arith.addf %350, %355 : vector<2x512xf32>
    %c0_410 = arith.constant 0 : index
    %c7 = arith.constant 7 : index
    %c0_411 = arith.constant 0 : index
    %357 = vector.load %arg16[%c0_410, %c7, %c0_411] : memref<2x8x49xf32, #tpu.memory_space<vmem>>, vector<2x1x49xf32>
    %358 = vector.shape_cast %357 : vector<2x1x49xf32> to vector<2x49xf32>
    %c7_412 = arith.constant 7 : index
    %c0_413 = arith.constant 0 : index
    %c0_414 = arith.constant 0 : index
    %359 = vector.load %arg8[%c7_412, %c0_413, %c0_414] : memref<8x49x512xf32, #tpu.memory_space<vmem>>, vector<1x49x512xf32>
    %360 = vector.shape_cast %359 : vector<1x49x512xf32> to vector<49x512xf32>
    %cst_415 = arith.constant dense<0.000000e+00> : vector<2x512xf32>
    %361 = tpu.matmul %358, %360, %cst_415 {dimension_numbers = #tpu.dot_dimension_numbers<[1], [0], [0], [1], [0, 0, 1, 1], [], []>} : vector<2x49xf32>, vector<49x512xf32>, vector<2x512xf32> -> vector<2x512xf32>
    %362 = arith.addf %356, %361 : vector<2x512xf32>
    %c0_416 = arith.constant 0 : index
    %c0_417 = arith.constant 0 : index
    %363 = vector.load %arg9[%c0_416, %c0_417] : memref<1x512xf32, #tpu.memory_space<vmem>>, vector<1x512xf32>
    %364 = vector.broadcast %363 : vector<1x512xf32> to vector<2x512xf32>
    %365 = arith.addf %362, %364 : vector<2x512xf32>
    %cst_418 = arith.constant 0.000000e+00 : f32
    %366 = vector.broadcast %cst_418 : f32 to vector<2x512xf32>
    %367 = arith.maximumf %365, %366 : vector<2x512xf32>
    %c0_419 = arith.constant 0 : index
    %c0_420 = arith.constant 0 : index
    %368 = vector.load %arg10[%c0_419, %c0_420] : memref<512x10xf32, #tpu.memory_space<vmem>>, vector<512x10xf32>
    %cst_421 = arith.constant dense<0.000000e+00> : vector<2x10xf32>
    %369 = tpu.matmul %367, %368, %cst_421 {dimension_numbers = #tpu.dot_dimension_numbers<[1], [0], [0], [1], [0, 0, 1, 1], [], []>} : vector<2x512xf32>, vector<512x10xf32>, vector<2x10xf32> -> vector<2x10xf32>
    %c0_422 = arith.constant 0 : index
    %c0_423 = arith.constant 0 : index
    %370 = vector.load %arg11[%c0_422, %c0_423] : memref<1x10xf32, #tpu.memory_space<vmem>>, vector<1x10xf32>
    %371 = vector.broadcast %370 : vector<1x10xf32> to vector<2x10xf32>
    %372 = arith.addf %369, %371 : vector<2x10xf32>
    %cst_424 = arith.constant dense<0xFF800000> : vector<10xf32>
    %373 = vector.multi_reduction <maximumf>, %372, %cst_424 [0] : vector<2x10xf32> to vector<10xf32>
    %374 = vector.shape_cast %373 : vector<10xf32> to vector<1x10xf32>
    %375 = vector.broadcast %374 : vector<1x10xf32> to vector<2x10xf32>
    %376 = arith.subf %372, %375 : vector<2x10xf32>
    %377 = math.exp %376 : vector<2x10xf32>
    %cst_425 = arith.constant dense<0.000000e+00> : vector<10xf32>
    %378 = vector.multi_reduction <add>, %377, %cst_425 [0] : vector<2x10xf32> to vector<10xf32>
    %379 = vector.shape_cast %378 : vector<10xf32> to vector<1x10xf32>
    %380 = math.log %379 : vector<1x10xf32>
    %381 = arith.addf %380, %374 : vector<1x10xf32>
    %382 = vector.broadcast %381 : vector<1x10xf32> to vector<2x10xf32>
    %383 = arith.subf %372, %382 : vector<2x10xf32>
    %c0_426 = arith.constant 0 : index
    %c0_427 = arith.constant 0 : index
    %384 = vector.load %arg12[%c0_426, %c0_427] : memref<2x10xf32, #tpu.memory_space<vmem>>, vector<2x10xf32>
    tpu.vector_store %arg12[%c0_426, %c0_427], %383 {strides = array<i32>} : memref<2x10xf32, #tpu.memory_space<vmem>>, vector<2x10xf32>,
    return
  }
  func.func @transform_0(%arg0: i32) -> (i32, i32, i32) {
    %c0_i32 = arith.constant 0 : i32
    %c0_i32_0 = arith.constant 0 : i32
    %c0_i32_1 = arith.constant 0 : i32
    %c0_i32_2 = arith.constant 0 : i32
    return %c0_i32, %c0_i32_0, %c0_i32_1 : i32, i32, i32
  }
  func.func @transform_1(%arg0: i32) -> (i32, i32) {
    %c0_i32 = arith.constant 0 : i32
    %c0_i32_0 = arith.constant 0 : i32
    %c0_i32_1 = arith.constant 0 : i32
    return %c0_i32, %c0_i32_0 : i32, i32
  }
  func.func @transform_2(%arg0: i32) -> (i32, i32) {
    %c0_i32 = arith.constant 0 : i32
    %c0_i32_0 = arith.constant 0 : i32
    %c0_i32_1 = arith.constant 0 : i32
    return %c0_i32, %c0_i32_0 : i32, i32
  }
  func.func @transform_3(%arg0: i32) -> (i32, i32) {
    %c0_i32 = arith.constant 0 : i32
    %c0_i32_0 = arith.constant 0 : i32
    %c0_i32_1 = arith.constant 0 : i32
    return %c0_i32, %c0_i32_0 : i32, i32
  }
  func.func @transform_4(%arg0: i32) -> (i32, i32) {
    %c0_i32 = arith.constant 0 : i32
    %c0_i32_0 = arith.constant 0 : i32
    %c0_i32_1 = arith.constant 0 : i32
    return %c0_i32, %c0_i32_0 : i32, i32
  }
  func.func @transform_5(%arg0: i32) -> (i32, i32) {
    %c0_i32 = arith.constant 0 : i32
    %c0_i32_0 = arith.constant 0 : i32
    %c0_i32_1 = arith.constant 0 : i32
    return %c0_i32, %c0_i32_0 : i32, i32
  }
  func.func @transform_6(%arg0: i32) -> (i32, i32) {
    %c0_i32 = arith.constant 0 : i32
    %c0_i32_0 = arith.constant 0 : i32
    %c0_i32_1 = arith.constant 0 : i32
    return %c0_i32, %c0_i32_0 : i32, i32
  }
  func.func @transform_7(%arg0: i32) -> (i32, i32, i32) {
    %c0_i32 = arith.constant 0 : i32
    %c0_i32_0 = arith.constant 0 : i32
    %c0_i32_1 = arith.constant 0 : i32
    %c0_i32_2 = arith.constant 0 : i32
    return %c0_i32, %c0_i32_0, %c0_i32_1 : i32, i32, i32
  }
  func.func @transform_8(%arg0: i32) -> (i32, i32) {
    %c0_i32 = arith.constant 0 : i32
    %c0_i32_0 = arith.constant 0 : i32
    %c0_i32_1 = arith.constant 0 : i32
    return %c0_i32, %c0_i32_0 : i32, i32
  }
  func.func @transform_9(%arg0: i32) -> (i32, i32) {
    %c0_i32 = arith.constant 0 : i32
    %c0_i32_0 = arith.constant 0 : i32
    %c0_i32_1 = arith.constant 0 : i32
    return %c0_i32, %c0_i32_0 : i32, i32
  }
  func.func @transform_10(%arg0: i32) -> (i32, i32) {
    %c0_i32 = arith.constant 0 : i32
    %c0_i32_0 = arith.constant 0 : i32
    %c0_i32_1 = arith.constant 0 : i32
    return %c0_i32, %c0_i32_0 : i32, i32
  }
  func.func @transform_11(%arg0: i32) -> (i32, i32) {
    %c0_i32 = arith.constant 0 : i32
    %c0_i32_0 = arith.constant 0 : i32
    %c0_i32_1 = arith.constant 0 : i32
    return %c0_i32, %c0_i32_0 : i32, i32
  }
}

</mosaic_0001>

<llo_original>
// kernel: convnet_forward.1
$region0: #{convnet_forward.1}
  #allocation0 [shape = 'u32[]', space=smem, size = 0x4, offset = 0x4, fixed_abs, tag = 'smem constant byte address 0x4 - core index']
  #allocation1 [shape = 'u32[144,128]{1,0:T(1,128)}', space=vmem, size = 0x12000, scoped, tag = 'internal scratch']
  #allocation2 [shape = 'f32[2,4,892]{2,1,0:T(4,128)}', space=vmem, size = 0x7000, scoped, tag = 'scratch operand']
  #allocation3 [shape = 'f32[2,4,324]{2,1,0:T(4,128)}', space=vmem, size = 0x3000, scoped, tag = 'scratch operand']
  #allocation4 [shape = 'f32[2,8,248]{2,1,0:T(8,128)}', space=vmem, size = 0x4000, scoped, tag = 'scratch operand']
  #allocation5 [shape = 'f32[2,8,49]{2,1,0:T(8,128)}', space=vmem, size = 0x2000, scoped, tag = 'scratch operand']
  %s0 = inlined_call_operand.vmem [shape: f32[2,1,1024], index: 0, kind: input, shape index: {}]
  %s1 = inlined_call_operand.vmem [shape: f32[4,25], index: 1, kind: input, shape index: {}]
  %s2 = inlined_call_operand.vmem [shape: f32[4,1], index: 2, kind: input, shape index: {}]
  %s3 = inlined_call_operand.vmem [shape: f32[8,100], index: 3, kind: input, shape index: {}]
  %s4 = inlined_call_operand.vmem [shape: f32[8,1], index: 4, kind: input, shape index: {}]
  %s5 = inlined_call_operand.vmem [shape: f32[859,324], index: 5, kind: input, shape index: {}]
  %s6 = inlined_call_operand.vmem [shape: f32[229,49], index: 6, kind: input, shape index: {}]
  %s7 = inlined_call_operand.vmem [shape: f32[8,49,512], index: 7, kind: input, shape index: {}]
  %s8 = inlined_call_operand.vmem [shape: f32[1,512], index: 8, kind: input, shape index: {}]
  %s9 = inlined_call_operand.vmem [shape: f32[512,10], index: 9, kind: input, shape index: {}]
  %s10 = inlined_call_operand.vmem [shape: f32[1,10], index: 10, kind: input, shape index: {}]
  %s11 = inlined_call_operand.hbm [shape: f32[2,10], index: 11, kind: output, shape index: {}]
  %s12 = sld [smem:[#allocation0]]
  $region54: #{convnet_forward.1} parent=0
    _
  %s14 = ssub.s32 1, %s12
  %s15 = scalar_select 0, %s14, %s12
  $region1: #{convnet_forward.1} parent=0
    #allocation6 [shape = 'u8[1024]{0}', space=vmem, size = 0x400, scoped, tag = 'output window, operand 0, single buffered']
    #allocation7 [shape = 's32[1]{0}', space=sflag, size = 0x4, scoped, tag = 'scoped memory for convnet_forward.1']
    %16 = vsyncpa [#allocation7], 0
    // Predicated region
    $region2: #{convnet_forward.1} parent=1 // pred_check
      _
    $region3: #{convnet_forward.1} parent=1 // pred_check_branch
      %18 = sbr.rel (0) target = $region5
    $region4: #{convnet_forward.1} parent=1 // pred_region
      _
    $region5: #{convnet_forward.1} parent=1 // pred_fallthru
      _
    // Predicated region
    $region6: #{convnet_forward.1} parent=1 // pred_check
      _
    $region7: #{convnet_forward.1} parent=1 // pred_check_branch
      %20 = sbr.rel (0) target = $region9
    $region8: #{convnet_forward.1} parent=1 // pred_region
      _
    $region9: #{convnet_forward.1} parent=1 // pred_fallthru
      _
    // Predicated region
    $region10: #{convnet_forward.1} parent=1 // pred_check
      _
    $region11: #{convnet_forward.1} parent=1 // pred_check_branch
      %22 = sbr.rel (0) target = $region13
    $region12: #{convnet_forward.1} parent=1 // pred_region
      _
    $region13: #{convnet_forward.1} parent=1 // pred_fallthru
      _
    // Predicated region
    $region14: #{convnet_forward.1} parent=1 // pred_check
      _
    $region15: #{convnet_forward.1} parent=1 // pred_check_branch
      %24 = sbr.rel (0) target = $region17
    $region16: #{convnet_forward.1} parent=1 // pred_region
      _
    $region17: #{convnet_forward.1} parent=1 // pred_fallthru
      _
    // Predicated region
    $region18: #{convnet_forward.1} parent=1 // pred_check
      _
    $region19: #{convnet_forward.1} parent=1 // pred_check_branch
      %26 = sbr.rel (0) target = $region21
    $region20: #{convnet_forward.1} parent=1 // pred_region
      _
    $region21: #{convnet_forward.1} parent=1 // pred_fallthru
      _
    // Predicated region
    $region22: #{convnet_forward.1} parent=1 // pred_check
      _
    $region23: #{convnet_forward.1} parent=1 // pred_check_branch
      %28 = sbr.rel (0) target = $region25
    $region24: #{convnet_forward.1} parent=1 // pred_region
      _
    $region25: #{convnet_forward.1} parent=1 // pred_fallthru
      _
    // Predicated region
    $region26: #{convnet_forward.1} parent=1 // pred_check
      _
    $region27: #{convnet_forward.1} parent=1 // pred_check_branch
      %30 = sbr.rel (0) target = $region29
    $region28: #{convnet_forward.1} parent=1 // pred_region
      _
    $region29: #{convnet_forward.1} parent=1 // pred_fallthru
      _
    // Predicated region
    $region30: #{convnet_forward.1} parent=1 // pred_check
      _
    $region31: #{convnet_forward.1} parent=1 // pred_check_branch
      %32 = sbr.rel (0) target = $region33
    $region32: #{convnet_forward.1} parent=1 // pred_region
      _
    $region33: #{convnet_forward.1} parent=1 // pred_fallthru
      _
    // Predicated region
    $region34: #{convnet_forward.1} parent=1 // pred_check
      _
    $region35: #{convnet_forward.1} parent=1 // pred_check_branch
      %34 = sbr.rel (0) target = $region37
    $region36: #{convnet_forward.1} parent=1 // pred_region
      _
    $region37: #{convnet_forward.1} parent=1 // pred_fallthru
      _
    // Predicated region
    $region38: #{convnet_forward.1} parent=1 // pred_check
      _
    $region39: #{convnet_forward.1} parent=1 // pred_check_branch
      %36 = sbr.rel (0) target = $region41
    $region40: #{convnet_forward.1} parent=1 // pred_region
      _
    $region41: #{convnet_forward.1} parent=1 // pred_fallthru
      _
    // Predicated region
    $region42: #{convnet_forward.1} parent=1 // pred_check
      _
    $region43: #{convnet_forward.1} parent=1 // pred_check_branch
      %38 = sbr.rel (0) target = $region45
    $region44: #{convnet_forward.1} parent=1 // pred_region
      _
    $region45: #{convnet_forward.1} parent=1 // pred_fallthru
      _
    %v39 = vld [vmem:[%s0] sm:$0x7f]
    %v40 = vld [vmem:[%s0] sm:$0xff]
    %v41 = vld [vmem:[%s0 + $0x1] sm:$0x7f]
    %v42 = vld [vmem:[%s0 + $0x1] sm:$0xff]
    %v44 = vlaneseq
    %v45 = vshrl.u32 %v44, 7
    %v46 = vsub.s32 0, %v45
    %v47 = vrot.slane %v39, %v46
    %v48 = vlaneseq
    %v49 = vshrl.u32 %v48, 7
    %v50 = vsub.s32 1, %v49
    %v51 = vrot.slane %v39, %v50
    %v52 = vlaneseq
    %v53 = vshrl.u32 %v52, 7
    %v54 = vsub.s32 2, %v53
    %v55 = vrot.slane %v39, %v54
    %v56 = vlaneseq
    %v57 = vshrl.u32 %v56, 7
    %v58 = vsub.s32 3, %v57
    %v59 = vrot.slane %v39, %v58
    %v60 = vlaneseq
    %v61 = vshrl.u32 %v60, 7
    %v62 = vsub.s32 4, %v61
    %v63 = vrot.slane %v39, %v62
    %v64 = vlaneseq
    %v65 = vshrl.u32 %v64, 7
    %v66 = vsub.s32 5, %v65
    %v67 = vrot.slane %v39, %v66
    %v68 = vlaneseq
    %v69 = vshrl.u32 %v68, 7
    %v70 = vsub.s32 6, %v69
    %v71 = vrot.slane %v39, %v70
    %79 = vrot.lane.b32.xlu0 %v47, 127
    %v80 = vpop.permute.xlu0 %79
    %81 = vrot.lane.b32.xlu0 %v51, 127
    %v82 = vpop.permute.xlu0 %81
    %83 = vrot.lane.b32.xlu0 %v55, 127
    %v84 = vpop.permute.xlu0 %83
    %85 = vrot.lane.b32.xlu0 %v59, 127
    %v86 = vpop.permute.xlu0 %85
    %87 = vrot.lane.b32.xlu0 %v63, 127
    %v88 = vpop.permute.xlu0 %87
    %89 = vrot.lane.b32.xlu0 %v67, 127
    %v90 = vpop.permute.xlu0 %89
    %91 = vrot.lane.b32.xlu0 %v71, 127
    %v92 = vpop.permute.xlu0 %91
    %vm93 = vcmask 1039360
    %v94 = vsel %vm93, %v80, %v82
    %v95 = vsel %vm93, %v82, %v84
    %v96 = vsel %vm93, %v84, %v86
    %v97 = vsel %vm93, %v86, %v88
    %v98 = vsel %vm93, %v88, %v90
    %v99 = vsel %vm93, %v90, %v92
    %107 = vrot.lane.b32.xlu0 %v47, 126
    %v108 = vpop.permute.xlu0 %107
    %109 = vrot.lane.b32.xlu0 %v51, 126
    %v110 = vpop.permute.xlu0 %109
    %111 = vrot.lane.b32.xlu0 %v55, 126
    %v112 = vpop.permute.xlu0 %111
    %113 = vrot.lane.b32.xlu0 %v59, 126
    %v114 = vpop.permute.xlu0 %113
    %115 = vrot.lane.b32.xlu0 %v63, 126
    %v116 = vpop.permute.xlu0 %115
    %117 = vrot.lane.b32.xlu0 %v67, 126
    %v118 = vpop.permute.xlu0 %117
    %119 = vrot.lane.b32.xlu0 %v71, 126
    %v120 = vpop.permute.xlu0 %119
    %vm121 = vcmask 1031168
    %v122 = vsel %vm121, %v108, %v110
    %v123 = vsel %vm121, %v110, %v112
    %v124 = vsel %vm121, %v112, %v114
    %v125 = vsel %vm121, %v114, %v116
    %v126 = vsel %vm121, %v116, %v118
    %v127 = vsel %vm121, %v118, %v120
    %135 = vrot.lane.b32.xlu0 %v47, 125
    %v136 = vpop.permute.xlu0 %135
    %137 = vrot.lane.b32.xlu0 %v51, 125
    %v138 = vpop.permute.xlu0 %137
    %139 = vrot.lane.b32.xlu0 %v55, 125
    %v140 = vpop.permute.xlu0 %139
    %141 = vrot.lane.b32.xlu0 %v59, 125
    %v142 = vpop.permute.xlu0 %141
    %143 = vrot.lane.b32.xlu0 %v63, 125
    %v144 = vpop.permute.xlu0 %143
    %145 = vrot.lane.b32.xlu0 %v67, 125
    %v146 = vpop.permute.xlu0 %145
    %147 = vrot.lane.b32.xlu0 %v71, 125
    %v148 = vpop.permute.xlu0 %147
    %vm149 = vcmask 1022976
    %v150 = vsel %vm149, %v136, %v138
    %v151 = vsel %vm149, %v138, %v140
    %v152 = vsel %vm149, %v140, %v142
    %v153 = vsel %vm149, %v142, %v144
    %v154 = vsel %vm149, %v144, %v146
    %v155 = vsel %vm149, %v146, %v148
    %v164 = vlaneseq
    %v165 = vshrl.u32 %v164, 7
    %v166 = vsub.s32 0, %v165
    %v167 = vrot.slane %v40, %v166
    %v168 = vlaneseq
    %v169 = vshrl.u32 %v168, 7
    %v170 = vsub.s32 1, %v169
    %v171 = vrot.slane %v40, %v170
    %v172 = vlaneseq
    %v173 = vshrl.u32 %v172, 7
    %v174 = vsub.s32 2, %v173
    %v175 = vrot.slane %v40, %v174
    %v176 = vlaneseq
    %v177 = vshrl.u32 %v176, 7
    %v178 = vsub.s32 3, %v177
    %v179 = vrot.slane %v40, %v178
    %v180 = vlaneseq
    %v181 = vshrl.u32 %v180, 7
    %v182 = vsub.s32 4, %v181
    %v183 = vrot.slane %v40, %v182
    %v184 = vlaneseq
    %v185 = vshrl.u32 %v184, 7
    %v186 = vsub.s32 5, %v185
    %v187 = vrot.slane %v40, %v186
    %v188 = vlaneseq
    %v189 = vshrl.u32 %v188, 7
    %v190 = vsub.s32 6, %v189
    %v191 = vrot.slane %v40, %v190
    %192 = vrot.lane.b32.xlu0 %v167, 124
    %v193 = vpop.permute.xlu0 %192
    %194 = vrot.lane.b32.xlu0 %v171, 124
    %v195 = vpop.permute.xlu0 %194
    %196 = vrot.lane.b32.xlu0 %v175, 124
    %v197 = vpop.permute.xlu0 %196
    %198 = vrot.lane.b32.xlu0 %v179, 124
    %v199 = vpop.permute.xlu0 %198
    %200 = vrot.lane.b32.xlu0 %v183, 124
    %v201 = vpop.permute.xlu0 %200
    %202 = vrot.lane.b32.xlu0 %v187, 124
    %v203 = vpop.permute.xlu0 %202
    %204 = vrot.lane.b32.xlu0 %v191, 124
    %v205 = vpop.permute.xlu0 %204
    %vm206 = vcmask 1014784
    %v207 = vsel %vm206, %v193, %v195
    %v208 = vsel %vm206, %v195, %v197
    %v209 = vsel %vm206, %v197, %v199
    %v210 = vsel %vm206, %v199, %v201
    %v211 = vsel %vm206, %v201, %v203
    %v212 = vsel %vm206, %v203, %v205
    %v220 = vlaneseq
    %v221 = vshrl.u32 %v220, 7
    %v222 = vsub.s32 7, %v221
    %v223 = vrot.slane %v40, %v222
    %224 = vrot.lane.b32.xlu0 %v167, 96
    %v225 = vpop.permute.xlu0 %224
    %226 = vrot.lane.b32.xlu0 %v171, 96
    %v227 = vpop.permute.xlu0 %226
    %228 = vrot.lane.b32.xlu0 %v175, 96
    %v229 = vpop.permute.xlu0 %228
    %230 = vrot.lane.b32.xlu0 %v179, 96
    %v231 = vpop.permute.xlu0 %230
    %232 = vrot.lane.b32.xlu0 %v183, 96
    %v233 = vpop.permute.xlu0 %232
    %234 = vrot.lane.b32.xlu0 %v187, 96
    %v235 = vpop.permute.xlu0 %234
    %236 = vrot.lane.b32.xlu0 %v191, 96
    %v237 = vpop.permute.xlu0 %236
    %238 = vrot.lane.b32.xlu0 %v223, 96
    %v239 = vpop.permute.xlu0 %238
    %vm240 = vcmask 785408
    %v241 = vsel %vm240, %v225, %v227
    %v242 = vsel %vm240, %v227, %v229
    %v243 = vsel %vm240, %v229, %v231
    %v244 = vsel %vm240, %v231, %v233
    %v245 = vsel %vm240, %v233, %v235
    %v246 = vsel %vm240, %v235, %v237
    %v247 = vsel %vm240, %v237, %v239
    %255 = vrot.lane.b32.xlu0 %v167, 95
    %v256 = vpop.permute.xlu0 %255
    %257 = vrot.lane.b32.xlu0 %v171, 95
    %v258 = vpop.permute.xlu0 %257
    %259 = vrot.lane.b32.xlu0 %v175, 95
    %v260 = vpop.permute.xlu0 %259
    %261 = vrot.lane.b32.xlu0 %v179, 95
    %v262 = vpop.permute.xlu0 %261
    %263 = vrot.lane.b32.xlu0 %v183, 95
    %v264 = vpop.permute.xlu0 %263
    %265 = vrot.lane.b32.xlu0 %v187, 95
    %v266 = vpop.permute.xlu0 %265
    %267 = vrot.lane.b32.xlu0 %v191, 95
    %v268 = vpop.permute.xlu0 %267
    %269 = vrot.lane.b32.xlu0 %v223, 95
    %v270 = vpop.permute.xlu0 %269
    %vm271 = vcmask 777216
    %v272 = vsel %vm271, %v256, %v258
    %v273 = vsel %vm271, %v258, %v260
    %v274 = vsel %vm271, %v260, %v262
    %v275 = vsel %vm271, %v262, %v264
    %v276 = vsel %vm271, %v264, %v266
    %v277 = vsel %vm271, %v266, %v268
    %v278 = vsel %vm271, %v268, %v270
    %286 = vrot.lane.b32.xlu0 %v167, 94
    %v287 = vpop.permute.xlu0 %286
    %288 = vrot.lane.b32.xlu0 %v171, 94
    %v289 = vpop.permute.xlu0 %288
    %290 = vrot.lane.b32.xlu0 %v175, 94
    %v291 = vpop.permute.xlu0 %290
    %292 = vrot.lane.b32.xlu0 %v179, 94
    %v293 = vpop.permute.xlu0 %292
    %294 = vrot.lane.b32.xlu0 %v183, 94
    %v295 = vpop.permute.xlu0 %294
    %296 = vrot.lane.b32.xlu0 %v187, 94
    %v297 = vpop.permute.xlu0 %296
    %298 = vrot.lane.b32.xlu0 %v191, 94
    %v299 = vpop.permute.xlu0 %298
    %300 = vrot.lane.b32.xlu0 %v223, 94
    %v301 = vpop.permute.xlu0 %300
    %vm302 = vcmask 769024
    %v303 = vsel %vm302, %v287, %v289
    %v304 = vsel %vm302, %v289, %v291
    %v305 = vsel %vm302, %v291, %v293
    %v306 = vsel %vm302, %v293, %v295
    %v307 = vsel %vm302, %v295, %v297
    %v308 = vsel %vm302, %v297, %v299
    %v309 = vsel %vm302, %v299, %v301
    %317 = vrot.lane.b32.xlu0 %v167, 93
    %v318 = vpop.permute.xlu0 %317
    %319 = vrot.lane.b32.xlu0 %v171, 93
    %v320 = vpop.permute.xlu0 %319
    %321 = vrot.lane.b32.xlu0 %v175, 93
    %v322 = vpop.permute.xlu0 %321
    %323 = vrot.lane.b32.xlu0 %v179, 93
    %v324 = vpop.permute.xlu0 %323
    %325 = vrot.lane.b32.xlu0 %v183, 93
    %v326 = vpop.permute.xlu0 %325
    %327 = vrot.lane.b32.xlu0 %v187, 93
    %v328 = vpop.permute.xlu0 %327
    %329 = vrot.lane.b32.xlu0 %v191, 93
    %v330 = vpop.permute.xlu0 %329
    %331 = vrot.lane.b32.xlu0 %v223, 93
    %v332 = vpop.permute.xlu0 %331
    %vm333 = vcmask 760832
    %v334 = vsel %vm333, %v318, %v320
    %v335 = vsel %vm333, %v320, %v322
    %v336 = vsel %vm333, %v322, %v324
    %v337 = vsel %vm333, %v324, %v326
    %v338 = vsel %vm333, %v326, %v328
    %v339 = vsel %vm333, %v328, %v330
    %v340 = vsel %vm333, %v330, %v332
    %348 = vrot.lane.b32.xlu0 %v167, 92
    %v349 = vpop.permute.xlu0 %348
    %350 = vrot.lane.b32.xlu0 %v171, 92
    %v351 = vpop.permute.xlu0 %350
    %352 = vrot.lane.b32.xlu0 %v175, 92
    %v353 = vpop.permute.xlu0 %352
    %354 = vrot.lane.b32.xlu0 %v179, 92
    %v355 = vpop.permute.xlu0 %354
    %356 = vrot.lane.b32.xlu0 %v183, 92
    %v357 = vpop.permute.xlu0 %356
    %358 = vrot.lane.b32.xlu0 %v187, 92
    %v359 = vpop.permute.xlu0 %358
    %360 = vrot.lane.b32.xlu0 %v191, 92
    %v361 = vpop.permute.xlu0 %360
    %362 = vrot.lane.b32.xlu0 %v223, 92
    %v363 = vpop.permute.xlu0 %362
    %vm364 = vcmask 752640
    %v365 = vsel %vm364, %v349, %v351
    %v366 = vsel %vm364, %v351, %v353
    %v367 = vsel %vm364, %v353, %v355
    %v368 = vsel %vm364, %v355, %v357
    %v369 = vsel %vm364, %v357, %v359
    %v370 = vsel %vm364, %v359, %v361
    %v371 = vsel %vm364, %v361, %v363
    %379 = vrot.lane.b32.xlu0 %v167, 64
    %v380 = vpop.permute.xlu0 %379
    %381 = vrot.lane.b32.xlu0 %v171, 64
    %v382 = vpop.permute.xlu0 %381
    %383 = vrot.lane.b32.xlu0 %v175, 64
    %v384 = vpop.permute.xlu0 %383
    %385 = vrot.lane.b32.xlu0 %v179, 64
    %v386 = vpop.permute.xlu0 %385
    %387 = vrot.lane.b32.xlu0 %v183, 64
    %v388 = vpop.permute.xlu0 %387
    %389 = vrot.lane.b32.xlu0 %v187, 64
    %v390 = vpop.permute.xlu0 %389
    %391 = vrot.lane.b32.xlu0 %v191, 64
    %v392 = vpop.permute.xlu0 %391
    %393 = vrot.lane.b32.xlu0 %v223, 64
    %v394 = vpop.permute.xlu0 %393
    %vm395 = vcmask 523264
    %v396 = vsel %vm395, %v380, %v382
    %v397 = vsel %vm395, %v382, %v384
    %v398 = vsel %vm395, %v384, %v386
    %v399 = vsel %vm395, %v386, %v388
    %v400 = vsel %vm395, %v388, %v390
    %v401 = vsel %vm395, %v390, %v392
    %v402 = vsel %vm395, %v392, %v394
    %410 = vrot.lane.b32.xlu0 %v167, 63
    %v411 = vpop.permute.xlu0 %410
    %412 = vrot.lane.b32.xlu0 %v171, 63
    %v413 = vpop.permute.xlu0 %412
    %414 = vrot.lane.b32.xlu0 %v175, 63
    %v415 = vpop.permute.xlu0 %414
    %416 = vrot.lane.b32.xlu0 %v179, 63
    %v417 = vpop.permute.xlu0 %416
    %418 = vrot.lane.b32.xlu0 %v183, 63
    %v419 = vpop.permute.xlu0 %418
    %420 = vrot.lane.b32.xlu0 %v187, 63
    %v421 = vpop.permute.xlu0 %420
    %422 = vrot.lane.b32.xlu0 %v191, 63
    %v423 = vpop.permute.xlu0 %422
    %424 = vrot.lane.b32.xlu0 %v223, 63
    %v425 = vpop.permute.xlu0 %424
    %vm426 = vcmask 515072
    %v427 = vsel %vm426, %v411, %v413
    %v428 = vsel %vm426, %v413, %v415
    %v429 = vsel %vm426, %v415, %v417
    %v430 = vsel %vm426, %v417, %v419
    %v431 = vsel %vm426, %v419, %v421
    %v432 = vsel %vm426, %v421, %v423
    %v433 = vsel %vm426, %v423, %v425
    %441 = vrot.lane.b32.xlu0 %v167, 62
    %v442 = vpop.permute.xlu0 %441
    %443 = vrot.lane.b32.xlu0 %v171, 62
    %v444 = vpop.permute.xlu0 %443
    %445 = vrot.lane.b32.xlu0 %v175, 62
    %v446 = vpop.permute.xlu0 %445
    %447 = vrot.lane.b32.xlu0 %v179, 62
    %v448 = vpop.permute.xlu0 %447
    %449 = vrot.lane.b32.xlu0 %v183, 62
    %v450 = vpop.permute.xlu0 %449
    %451 = vrot.lane.b32.xlu0 %v187, 62
    %v452 = vpop.permute.xlu0 %451
    %453 = vrot.lane.b32.xlu0 %v191, 62
    %v454 = vpop.permute.xlu0 %453
    %455 = vrot.lane.b32.xlu0 %v223, 62
    %v456 = vpop.permute.xlu0 %455
    %vm457 = vcmask 506880
    %v458 = vsel %vm457, %v442, %v444
    %v459 = vsel %vm457, %v444, %v446
    %v460 = vsel %vm457, %v446, %v448
    %v461 = vsel %vm457, %v448, %v450
    %v462 = vsel %vm457, %v450, %v452
    %v463 = vsel %vm457, %v452, %v454
    %v464 = vsel %vm457, %v454, %v456
    %472 = vrot.lane.b32.xlu0 %v167, 61
    %v473 = vpop.permute.xlu0 %472
    %474 = vrot.lane.b32.xlu0 %v171, 61
    %v475 = vpop.permute.xlu0 %474
    %476 = vrot.lane.b32.xlu0 %v175, 61
    %v477 = vpop.permute.xlu0 %476
    %478 = vrot.lane.b32.xlu0 %v179, 61
    %v479 = vpop.permute.xlu0 %478
    %480 = vrot.lane.b32.xlu0 %v183, 61
    %v481 = vpop.permute.xlu0 %480
    %482 = vrot.lane.b32.xlu0 %v187, 61
    %v483 = vpop.permute.xlu0 %482
    %484 = vrot.lane.b32.xlu0 %v191, 61
    %v485 = vpop.permute.xlu0 %484
    %486 = vrot.lane.b32.xlu0 %v223, 61
    %v487 = vpop.permute.xlu0 %486
    %vm488 = vcmask 498688
    %v489 = vsel %vm488, %v473, %v475
    %v490 = vsel %vm488, %v475, %v477
    %v491 = vsel %vm488, %v477, %v479
    %v492 = vsel %vm488, %v479, %v481
    %v493 = vsel %vm488, %v481, %v483
    %v494 = vsel %vm488, %v483, %v485
    %v495 = vsel %vm488, %v485, %v487
    %503 = vrot.lane.b32.xlu0 %v167, 60
    %v504 = vpop.permute.xlu0 %503
    %505 = vrot.lane.b32.xlu0 %v171, 60
    %v506 = vpop.permute.xlu0 %505
    %507 = vrot.lane.b32.xlu0 %v175, 60
    %v508 = vpop.permute.xlu0 %507
    %509 = vrot.lane.b32.xlu0 %v179, 60
    %v510 = vpop.permute.xlu0 %509
    %511 = vrot.lane.b32.xlu0 %v183, 60
    %v512 = vpop.permute.xlu0 %511
    %513 = vrot.lane.b32.xlu0 %v187, 60
    %v514 = vpop.permute.xlu0 %513
    %515 = vrot.lane.b32.xlu0 %v191, 60
    %v516 = vpop.permute.xlu0 %515
    %517 = vrot.lane.b32.xlu0 %v223, 60
    %v518 = vpop.permute.xlu0 %517
    %vm519 = vcmask 490496
    %v520 = vsel %vm519, %v504, %v506
    %v521 = vsel %vm519, %v506, %v508
    %v522 = vsel %vm519, %v508, %v510
    %v523 = vsel %vm519, %v510, %v512
    %v524 = vsel %vm519, %v512, %v514
    %v525 = vsel %vm519, %v514, %v516
    %v526 = vsel %vm519, %v516, %v518
    %534 = vrot.lane.b32.xlu0 %v167, 32
    %v535 = vpop.permute.xlu0 %534
    %536 = vrot.lane.b32.xlu0 %v171, 32
    %v537 = vpop.permute.xlu0 %536
    %538 = vrot.lane.b32.xlu0 %v175, 32
    %v539 = vpop.permute.xlu0 %538
    %540 = vrot.lane.b32.xlu0 %v179, 32
    %v541 = vpop.permute.xlu0 %540
    %542 = vrot.lane.b32.xlu0 %v183, 32
    %v543 = vpop.permute.xlu0 %542
    %544 = vrot.lane.b32.xlu0 %v187, 32
    %v545 = vpop.permute.xlu0 %544
    %546 = vrot.lane.b32.xlu0 %v191, 32
    %v547 = vpop.permute.xlu0 %546
    %548 = vrot.lane.b32.xlu0 %v223, 32
    %v549 = vpop.permute.xlu0 %548
    %vm550 = vcmask 261120
    %v551 = vsel %vm550, %v535, %v537
    %v552 = vsel %vm550, %v537, %v539
    %v553 = vsel %vm550, %v539, %v541
    %v554 = vsel %vm550, %v541, %v543
    %v555 = vsel %vm550, %v543, %v545
    %v556 = vsel %vm550, %v545, %v547
    %v557 = vsel %vm550, %v547, %v549
    %vm565 = vcmask 1040384
    %v566 = vsel %vm565, %v47, %v94
    %v567 = vsel %vm565, %v51, %v95
    %v568 = vsel %vm565, %v55, %v96
    %v569 = vsel %vm565, %v59, %v97
    %v570 = vsel %vm565, %v63, %v98
    %v571 = vsel %vm565, %v67, %v99
    %v572 = vsel %vm565, %v71, %v92
    %vm573 = vcmask 1041408
    %v574 = vsel %vm573, %v566, %v122
    %v575 = vsel %vm573, %v567, %v123
    %v576 = vsel %vm573, %v568, %v124
    %v577 = vsel %vm573, %v569, %v125
    %v578 = vsel %vm573, %v570, %v126
    %v579 = vsel %vm573, %v571, %v127
    %v580 = vsel %vm573, %v572, %v120
    %vm581 = vcmask 1042432
    %v582 = vsel %vm581, %v574, %v150
    %v583 = vsel %vm581, %v575, %v151
    %v584 = vsel %vm581, %v576, %v152
    %v585 = vsel %vm581, %v577, %v153
    %v586 = vsel %vm581, %v578, %v154
    %v587 = vsel %vm581, %v579, %v155
    %v588 = vsel %vm581, %v580, %v148
    %vm589 = vcmask 1043456
    %v590 = vsel %vm589, %v582, %v207
    %v591 = vsel %vm589, %v583, %v208
    %v592 = vsel %vm589, %v584, %v209
    %v593 = vsel %vm589, %v585, %v210
    %v594 = vsel %vm589, %v586, %v211
    %v595 = vsel %vm589, %v587, %v212
    %v596 = vsel %vm589, %v588, %v205
    %vm597 = vcmask 1044480
    %v598 = vsel %vm597, %v590, %v241
    %v599 = vsel %vm597, %v591, %v242
    %v600 = vsel %vm597, %v592, %v243
    %v601 = vsel %vm597, %v593, %v244
    %v602 = vsel %vm597, %v594, %v245
    %v603 = vsel %vm597, %v595, %v246
    %v604 = vsel %vm597, %v596, %v247
    %vm605 = vcmask 1045504
    %v606 = vsel %vm605, %v598, %v272
    %v607 = vsel %vm605, %v599, %v273
    %v608 = vsel %vm605, %v600, %v274
    %v609 = vsel %vm605, %v601, %v275
    %v610 = vsel %vm605, %v602, %v276
    %v611 = vsel %vm605, %v603, %v277
    %v612 = vsel %vm605, %v604, %v278
    %vm613 = vcmask 1046528
    %v614 = vsel %vm613, %v606, %v303
    %v615 = vsel %vm613, %v607, %v304
    %v616 = vsel %vm613, %v608, %v305
    %v617 = vsel %vm613, %v609, %v306
    %v618 = vsel %vm613, %v610, %v307
    %v619 = vsel %vm613, %v611, %v308
    %v620 = vsel %vm613, %v612, %v309
    %v621 = vsel %vm565, %v334, %v365
    %v622 = vsel %vm565, %v335, %v366
    %v623 = vsel %vm565, %v336, %v367
    %v624 = vsel %vm565, %v337, %v368
    %v625 = vsel %vm565, %v338, %v369
    %v626 = vsel %vm565, %v339, %v370
    %v627 = vsel %vm565, %v340, %v371
    %v628 = vsel %vm573, %v621, %v396
    %v629 = vsel %vm573, %v622, %v397
    %v630 = vsel %vm573, %v623, %v398
    %v631 = vsel %vm573, %v624, %v399
    %v632 = vsel %vm573, %v625, %v400
    %v633 = vsel %vm573, %v626, %v401
    %v634 = vsel %vm573, %v627, %v402
    %v635 = vsel %vm581, %v628, %v427
    %v636 = vsel %vm581, %v629, %v428
    %v637 = vsel %vm581, %v630, %v429
    %v638 = vsel %vm581, %v631, %v430
    %v639 = vsel %vm581, %v632, %v431
    %v640 = vsel %vm581, %v633, %v432
    %v641 = vsel %vm581, %v634, %v433
    %v642 = vsel %vm589, %v635, %v458
    %v643 = vsel %vm589, %v636, %v459
    %v644 = vsel %vm589, %v637, %v460
    %v645 = vsel %vm589, %v638, %v461
    %v646 = vsel %vm589, %v639, %v462
    %v647 = vsel %vm589, %v640, %v463
    %v648 = vsel %vm589, %v641, %v464
    %v649 = vsel %vm597, %v642, %v489
    %v650 = vsel %vm597, %v643, %v490
    %v651 = vsel %vm597, %v644, %v491
    %v652 = vsel %vm597, %v645, %v492
    %v653 = vsel %vm597, %v646, %v493
    %v654 = vsel %vm597, %v647, %v494
    %v655 = vsel %vm597, %v648, %v495
    %v656 = vsel %vm605, %v649, %v520
    %v657 = vsel %vm605, %v650, %v521
    %v658 = vsel %vm605, %v651, %v522
    %v659 = vsel %vm605, %v652, %v523
    %v660 = vsel %vm605, %v653, %v524
    %v661 = vsel %vm605, %v654, %v525
    %v662 = vsel %vm605, %v655, %v526
    %v663 = vsel %vm613, %v656, %v551
    %v664 = vsel %vm613, %v657, %v552
    %v665 = vsel %vm613, %v658, %v553
    %v666 = vsel %vm613, %v659, %v554
    %v667 = vsel %vm613, %v660, %v555
    %v668 = vsel %vm613, %v661, %v556
    %v669 = vsel %vm613, %v662, %v557
    %678 = vrot.lane.b32.xlu0 %v167, 127
    %v679 = vpop.permute.xlu0 %678
    %680 = vrot.lane.b32.xlu0 %v171, 127
    %v681 = vpop.permute.xlu0 %680
    %682 = vrot.lane.b32.xlu0 %v175, 127
    %v683 = vpop.permute.xlu0 %682
    %684 = vrot.lane.b32.xlu0 %v179, 127
    %v685 = vpop.permute.xlu0 %684
    %686 = vrot.lane.b32.xlu0 %v183, 127
    %v687 = vpop.permute.xlu0 %686
    %688 = vrot.lane.b32.xlu0 %v187, 127
    %v689 = vpop.permute.xlu0 %688
    %690 = vrot.lane.b32.xlu0 %v191, 127
    %v691 = vpop.permute.xlu0 %690
    %692 = vrot.lane.b32.xlu0 %v223, 127
    %v693 = vpop.permute.xlu0 %692
    %v694 = vsel %vm93, %v679, %v681
    %v695 = vsel %vm93, %v681, %v683
    %v696 = vsel %vm93, %v683, %v685
    %v697 = vsel %vm93, %v685, %v687
    %v698 = vsel %vm93, %v687, %v689
    %v699 = vsel %vm93, %v689, %v691
    %v700 = vsel %vm93, %v691, %v693
    %709 = vrot.lane.b32.xlu0 %v167, 126
    %v710 = vpop.permute.xlu0 %709
    %711 = vrot.lane.b32.xlu0 %v171, 126
    %v712 = vpop.permute.xlu0 %711
    %713 = vrot.lane.b32.xlu0 %v175, 126
    %v714 = vpop.permute.xlu0 %713
    %715 = vrot.lane.b32.xlu0 %v179, 126
    %v716 = vpop.permute.xlu0 %715
    %717 = vrot.lane.b32.xlu0 %v183, 126
    %v718 = vpop.permute.xlu0 %717
    %719 = vrot.lane.b32.xlu0 %v187, 126
    %v720 = vpop.permute.xlu0 %719
    %721 = vrot.lane.b32.xlu0 %v191, 126
    %v722 = vpop.permute.xlu0 %721
    %723 = vrot.lane.b32.xlu0 %v223, 126
    %v724 = vpop.permute.xlu0 %723
    %v725 = vsel %vm121, %v710, %v712
    %v726 = vsel %vm121, %v712, %v714
    %v727 = vsel %vm121, %v714, %v716
    %v728 = vsel %vm121, %v716, %v718
    %v729 = vsel %vm121, %v718, %v720
    %v730 = vsel %vm121, %v720, %v722
    %v731 = vsel %vm121, %v722, %v724
    %740 = vrot.lane.b32.xlu0 %v167, 125
    %v741 = vpop.permute.xlu0 %740
    %742 = vrot.lane.b32.xlu0 %v171, 125
    %v743 = vpop.permute.xlu0 %742
    %744 = vrot.lane.b32.xlu0 %v175, 125
    %v745 = vpop.permute.xlu0 %744
    %746 = vrot.lane.b32.xlu0 %v179, 125
    %v747 = vpop.permute.xlu0 %746
    %748 = vrot.lane.b32.xlu0 %v183, 125
    %v749 = vpop.permute.xlu0 %748
    %750 = vrot.lane.b32.xlu0 %v187, 125
    %v751 = vpop.permute.xlu0 %750
    %752 = vrot.lane.b32.xlu0 %v191, 125
    %v753 = vpop.permute.xlu0 %752
    %754 = vrot.lane.b32.xlu0 %v223, 125
    %v755 = vpop.permute.xlu0 %754
    %v756 = vsel %vm149, %v741, %v743
    %v757 = vsel %vm149, %v743, %v745
    %v758 = vsel %vm149, %v745, %v747
    %v759 = vsel %vm149, %v747, %v749
    %v760 = vsel %vm149, %v749, %v751
    %v761 = vsel %vm149, %v751, %v753
    %v762 = vsel %vm149, %v753, %v755
    %v772 = vlaneseq
    %v773 = vshrl.u32 %v772, 7
    %v774 = vsub.s32 0, %v773
    %v775 = vrot.slane %v41, %v774
    %v776 = vlaneseq
    %v777 = vshrl.u32 %v776, 7
    %v778 = vsub.s32 1, %v777
    %v779 = vrot.slane %v41, %v778
    %v780 = vlaneseq
    %v781 = vshrl.u32 %v780, 7
    %v782 = vsub.s32 2, %v781
    %v783 = vrot.slane %v41, %v782
    %v784 = vlaneseq
    %v785 = vshrl.u32 %v784, 7
    %v786 = vsub.s32 3, %v785
    %v787 = vrot.slane %v41, %v786
    %v788 = vlaneseq
    %v789 = vshrl.u32 %v788, 7
    %v790 = vsub.s32 4, %v789
    %v791 = vrot.slane %v41, %v790
    %v792 = vlaneseq
    %v793 = vshrl.u32 %v792, 7
    %v794 = vsub.s32 5, %v793
    %v795 = vrot.slane %v41, %v794
    %v796 = vlaneseq
    %v797 = vshrl.u32 %v796, 7
    %v798 = vsub.s32 6, %v797
    %v799 = vrot.slane %v41, %v798
    %800 = vrot.lane.b32.xlu0 %v775, 97
    %v801 = vpop.permute.xlu0 %800
    %802 = vrot.lane.b32.xlu0 %v779, 97
    %v803 = vpop.permute.xlu0 %802
    %804 = vrot.lane.b32.xlu0 %v783, 97
    %v805 = vpop.permute.xlu0 %804
    %806 = vrot.lane.b32.xlu0 %v787, 97
    %v807 = vpop.permute.xlu0 %806
    %808 = vrot.lane.b32.xlu0 %v791, 97
    %v809 = vpop.permute.xlu0 %808
    %810 = vrot.lane.b32.xlu0 %v795, 97
    %v811 = vpop.permute.xlu0 %810
    %812 = vrot.lane.b32.xlu0 %v799, 97
    %v813 = vpop.permute.xlu0 %812
    %vm814 = vcmask 793600
    %v815 = vsel %vm814, %v801, %v803
    %v816 = vsel %vm814, %v803, %v805
    %v817 = vsel %vm814, %v805, %v807
    %v818 = vsel %vm814, %v807, %v809
    %v819 = vsel %vm814, %v809, %v811
    %v820 = vsel %vm814, %v811, %v813
    %829 = vrot.lane.b32.xlu0 %v775, 96
    %v830 = vpop.permute.xlu0 %829
    %831 = vrot.lane.b32.xlu0 %v779, 96
    %v832 = vpop.permute.xlu0 %831
    %833 = vrot.lane.b32.xlu0 %v783, 96
    %v834 = vpop.permute.xlu0 %833
    %835 = vrot.lane.b32.xlu0 %v787, 96
    %v836 = vpop.permute.xlu0 %835
    %837 = vrot.lane.b32.xlu0 %v791, 96
    %v838 = vpop.permute.xlu0 %837
    %839 = vrot.lane.b32.xlu0 %v795, 96
    %v840 = vpop.permute.xlu0 %839
    %841 = vrot.lane.b32.xlu0 %v799, 96
    %v842 = vpop.permute.xlu0 %841
    %v843 = vsel %vm240, %v830, %v832
    %v844 = vsel %vm240, %v832, %v834
    %v845 = vsel %vm240, %v834, %v836
    %v846 = vsel %vm240, %v836, %v838
    %v847 = vsel %vm240, %v838, %v840
    %v848 = vsel %vm240, %v840, %v842
    %857 = vrot.lane.b32.xlu0 %v775, 95
    %v858 = vpop.permute.xlu0 %857
    %859 = vrot.lane.b32.xlu0 %v779, 95
    %v860 = vpop.permute.xlu0 %859
    %861 = vrot.lane.b32.xlu0 %v783, 95
    %v862 = vpop.permute.xlu0 %861
    %863 = vrot.lane.b32.xlu0 %v787, 95
    %v864 = vpop.permute.xlu0 %863
    %865 = vrot.lane.b32.xlu0 %v791, 95
    %v866 = vpop.permute.xlu0 %865
    %867 = vrot.lane.b32.xlu0 %v795, 95
    %v868 = vpop.permute.xlu0 %867
    %869 = vrot.lane.b32.xlu0 %v799, 95
    %v870 = vpop.permute.xlu0 %869
    %v871 = vsel %vm271, %v858, %v860
    %v872 = vsel %vm271, %v860, %v862
    %v873 = vsel %vm271, %v862, %v864
    %v874 = vsel %vm271, %v864, %v866
    %v875 = vsel %vm271, %v866, %v868
    %v876 = vsel %vm271, %v868, %v870
    %885 = vrot.lane.b32.xlu0 %v775, 94
    %v886 = vpop.permute.xlu0 %885
    %887 = vrot.lane.b32.xlu0 %v779, 94
    %v888 = vpop.permute.xlu0 %887
    %889 = vrot.lane.b32.xlu0 %v783, 94
    %v890 = vpop.permute.xlu0 %889
    %891 = vrot.lane.b32.xlu0 %v787, 94
    %v892 = vpop.permute.xlu0 %891
    %893 = vrot.lane.b32.xlu0 %v791, 94
    %v894 = vpop.permute.xlu0 %893
    %895 = vrot.lane.b32.xlu0 %v795, 94
    %v896 = vpop.permute.xlu0 %895
    %897 = vrot.lane.b32.xlu0 %v799, 94
    %v898 = vpop.permute.xlu0 %897
    %v899 = vsel %vm302, %v886, %v888
    %v900 = vsel %vm302, %v888, %v890
    %v901 = vsel %vm302, %v890, %v892
    %v902 = vsel %vm302, %v892, %v894
    %v903 = vsel %vm302, %v894, %v896
    %v904 = vsel %vm302, %v896, %v898
    %v914 = vlaneseq
    %v915 = vshrl.u32 %v914, 7
    %v916 = vsub.s32 0, %v915
    %v917 = vrot.slane %v42, %v916
    %v918 = vlaneseq
    %v919 = vshrl.u32 %v918, 7
    %v920 = vsub.s32 1, %v919
    %v921 = vrot.slane %v42, %v920
    %v922 = vlaneseq
    %v923 = vshrl.u32 %v922, 7
    %v924 = vsub.s32 2, %v923
    %v925 = vrot.slane %v42, %v924
    %v926 = vlaneseq
    %v927 = vshrl.u32 %v926, 7
    %v928 = vsub.s32 3, %v927
    %v929 = vrot.slane %v42, %v928
    %v930 = vlaneseq
    %v931 = vshrl.u32 %v930, 7
    %v932 = vsub.s32 4, %v931
    %v933 = vrot.slane %v42, %v932
    %v934 = vlaneseq
    %v935 = vshrl.u32 %v934, 7
    %v936 = vsub.s32 5, %v935
    %v937 = vrot.slane %v42, %v936
    %v938 = vlaneseq
    %v939 = vshrl.u32 %v938, 7
    %v940 = vsub.s32 6, %v939
    %v941 = vrot.slane %v42, %v940
    %942 = vrot.lane.b32.xlu0 %v917, 93
    %v943 = vpop.permute.xlu0 %942
    %944 = vrot.lane.b32.xlu0 %v921, 93
    %v945 = vpop.permute.xlu0 %944
    %946 = vrot.lane.b32.xlu0 %v925, 93
    %v947 = vpop.permute.xlu0 %946
    %948 = vrot.lane.b32.xlu0 %v929, 93
    %v949 = vpop.permute.xlu0 %948
    %950 = vrot.lane.b32.xlu0 %v933, 93
    %v951 = vpop.permute.xlu0 %950
    %952 = vrot.lane.b32.xlu0 %v937, 93
    %v953 = vpop.permute.xlu0 %952
    %954 = vrot.lane.b32.xlu0 %v941, 93
    %v955 = vpop.permute.xlu0 %954
    %v956 = vsel %vm333, %v943, %v945
    %v957 = vsel %vm333, %v945, %v947
    %v958 = vsel %vm333, %v947, %v949
    %v959 = vsel %vm333, %v949, %v951
    %v960 = vsel %vm333, %v951, %v953
    %v961 = vsel %vm333, %v953, %v955
    %v962 = vsel %vm565, %v167, %v694
    %v963 = vsel %vm565, %v171, %v695
    %v964 = vsel %vm565, %v175, %v696
    %v965 = vsel %vm565, %v179, %v697
    %v966 = vsel %vm565, %v183, %v698
    %v967 = vsel %vm565, %v187, %v699
    %v968 = vsel %vm565, %v191, %v700
    %v969 = vsel %vm565, %v223, %v693
    %v970 = vsel %vm573, %v962, %v725
    %v971 = vsel %vm573, %v963, %v726
    %v972 = vsel %vm573, %v964, %v727
    %v973 = vsel %vm573, %v965, %v728
    %v974 = vsel %vm573, %v966, %v729
    %v975 = vsel %vm573, %v967, %v730
    %v976 = vsel %vm573, %v968, %v731
    %v977 = vsel %vm573, %v969, %v724
    %v978 = vsel %vm581, %v970, %v756
    %v979 = vsel %vm581, %v971, %v757
    %v980 = vsel %vm581, %v972, %v758
    %v981 = vsel %vm581, %v973, %v759
    %v982 = vsel %vm581, %v974, %v760
    %v983 = vsel %vm581, %v975, %v761
    %v984 = vsel %vm581, %v976, %v762
    %v985 = vsel %vm581, %v977, %v755
    %v986 = vsel %vm589, %v978, %v801
    %v987 = vsel %vm589, %v979, %v815
    %v988 = vsel %vm589, %v980, %v816
    %v989 = vsel %vm589, %v981, %v817
    %v990 = vsel %vm589, %v982, %v818
    %v991 = vsel %vm589, %v983, %v819
    %v992 = vsel %vm589, %v984, %v820
    %v993 = vsel %vm589, %v985, %v813
    %v994 = vsel %vm597, %v986, %v830
    %v995 = vsel %vm597, %v987, %v843
    %v996 = vsel %vm597, %v988, %v844
    %v997 = vsel %vm597, %v989, %v845
    %v998 = vsel %vm597, %v990, %v846
    %v999 = vsel %vm597, %v991, %v847
    %v1000 = vsel %vm597, %v992, %v848
    %v1001 = vsel %vm597, %v993, %v842
    %v1002 = vsel %vm605, %v994, %v858
    %v1003 = vsel %vm605, %v995, %v871
    %v1004 = vsel %vm605, %v996, %v872
    %v1005 = vsel %vm605, %v997, %v873
    %v1006 = vsel %vm605, %v998, %v874
    %v1007 = vsel %vm605, %v999, %v875
    %v1008 = vsel %vm605, %v1000, %v876
    %v1009 = vsel %vm605, %v1001, %v870
    %v1010 = vsel %vm613, %v1002, %v886
    %v1011 = vsel %vm613, %v1003, %v899
    %v1012 = vsel %vm613, %v1004, %v900
    %v1013 = vsel %vm613, %v1005, %v901
    %v1014 = vsel %vm613, %v1006, %v902
    %v1015 = vsel %vm613, %v1007, %v903
    %v1016 = vsel %vm613, %v1008, %v904
    %v1017 = vsel %vm613, %v1009, %v898
    %1026 = vrot.lane.b32.xlu0 %v1010, 31
    %v1027 = vpop.permute.xlu0 %1026
    %1028 = vrot.lane.b32.xlu0 %v1011, 31
    %v1029 = vpop.permute.xlu0 %1028
    %1030 = vrot.lane.b32.xlu0 %v1012, 31
    %v1031 = vpop.permute.xlu0 %1030
    %1032 = vrot.lane.b32.xlu0 %v1013, 31
    %v1033 = vpop.permute.xlu0 %1032
    %1034 = vrot.lane.b32.xlu0 %v1014, 31
    %v1035 = vpop.permute.xlu0 %1034
    %1036 = vrot.lane.b32.xlu0 %v1015, 31
    %v1037 = vpop.permute.xlu0 %1036
    %1038 = vrot.lane.b32.xlu0 %v1016, 31
    %v1039 = vpop.permute.xlu0 %1038
    %1040 = vrot.lane.b32.xlu0 %v1017, 31
    %v1041 = vpop.permute.xlu0 %1040
    %1042 = vrot.lane.b32.xlu0 %v943, 31
    %v1043 = vpop.permute.xlu0 %1042
    %1044 = vrot.lane.b32.xlu0 %v956, 31
    %v1045 = vpop.permute.xlu0 %1044
    %1046 = vrot.lane.b32.xlu0 %v957, 31
    %v1047 = vpop.permute.xlu0 %1046
    %1048 = vrot.lane.b32.xlu0 %v958, 31
    %v1049 = vpop.permute.xlu0 %1048
    %1050 = vrot.lane.b32.xlu0 %v959, 31
    %v1051 = vpop.permute.xlu0 %1050
    %1052 = vrot.lane.b32.xlu0 %v960, 31
    %v1053 = vpop.permute.xlu0 %1052
    %1054 = vrot.lane.b32.xlu0 %v961, 31
    %v1055 = vpop.permute.xlu0 %1054
    %1056 = vrot.lane.b32.xlu0 %v955, 31
    %v1057 = vpop.permute.xlu0 %1056
    %vm1058 = vcmask 252928
    %v1059 = vsel %vm1058, %v1027, %v1029
    %v1060 = vsel %vm1058, %v1029, %v1031
    %v1061 = vsel %vm1058, %v1031, %v1033
    %v1062 = vsel %vm1058, %v1033, %v1035
    %v1063 = vsel %vm1058, %v1035, %v1037
    %v1064 = vsel %vm1058, %v1037, %v1039
    %v1065 = vsel %vm1058, %v1039, %v1041
    %v1066 = vsel %vm1058, %v1043, %v1045
    %v1067 = vsel %vm1058, %v1045, %v1047
    %v1068 = vsel %vm1058, %v1047, %v1049
    %v1069 = vsel %vm1058, %v1049, %v1051
    %v1070 = vsel %vm1058, %v1051, %v1053
    %v1071 = vsel %vm1058, %v1053, %v1055
    %v1072 = vsel %vm1058, %v1055, %v1057
    %v1080 = vld [vmem:[%s1] sm:$0xf]
    %v1081 = vld [vmem:[%s2] sm:$0xf]
    %1083 = vset.pattern.permute.xlu0 0
    %1084 = vperm.xlu0 %1083, %v1081
    %v1085 = vpop.permute.xlu0 %1084
    %vm1087 = vcmask 203776
    %v1089 = vsel %vm1087, %v1080, 0
    %v1091 = vsel %vm565, %v1066, 0
    %v1093 = vsel %vm565, %v1067, 0
    %v1095 = vsel %vm565, %v1068, 0
    %v1097 = vsel %vm565, %v1069, 0
    %v1099 = vsel %vm565, %v1070, 0
    %v1101 = vsel %vm565, %v1071, 0
    %v1103 = vsel %vm565, %v1072, 0
    %1105 = vmatprep.subr.mxu0 0.0
    %1106 = vmatpush1.msra.mxu0 0.0
    %1107 = vmatprep.subr.mxu0 0.0
    %1108 = vmatpush1.msra.mxu0 0.0
    %1109 = vmatprep.subr.mxu0 0.0
    %1110 = vmatpush1.msra.mxu0 0.0
    %1111 = vmatprep.subr.mxu0 0.0
    %1112 = vmatpush1.msra.mxu0 0.0
    %1113 = vmatprep.subr.mxu0 0.0
    %1114 = vmatpush1.msra.mxu0 0.0
    %1115 = vmatprep.subr.mxu0 0.0
    %1116 = vmatpush1.msra.mxu0 0.0
    %1117 = vmatprep.subr.mxu0 0.0
    %1118 = vmatpush1.msra.mxu0 0.0
    %1119 = vmatprep.subr.mxu0 0.0
    %1120 = vmatpush1.msra.mxu0 0.0
    %1121 = vmatprep.subr.mxu0 0.0
    %1122 = vmatpush1.msra.mxu0 0.0
    %1123 = vmatprep.subr.mxu0 0.0
    %1124 = vmatpush1.msra.mxu0 0.0
    %1125 = vmatprep.subr.mxu0 0.0
    %1126 = vmatpush1.msra.mxu0 0.0
    %1127 = vmatprep.subr.mxu0 0.0
    %1128 = vmatpush1.msra.mxu0 0.0
    %1129 = vmatprep.subr.mxu0 %v1093
    %1130 = vmatpush1.msra.mxu0 %v1091
    %1131 = vmatprep.subr.mxu0 %v1060
    %1132 = vmatpush1.msra.mxu0 %v1059
    %1133 = vmatprep.subr.mxu0 %v664
    %1134 = vmatpush1.msra.mxu0 %v663
    %1135 = vmatprep.subr.mxu0 %v615
    %1136 = vmatpush1.msra.mxu0 %v614
    %1137 = vmatprep.subr.mxu0 0.0
    %1138 = vmatpush2.msra.mxu0 0.0
    %1139 = vmatprep.subr.mxu0 0.0
    %1140 = vmatpush2.msra.mxu0 0.0
    %1141 = vmatprep.subr.mxu0 0.0
    %1142 = vmatpush2.msra.mxu0 0.0
    %1143 = vmatprep.subr.mxu0 0.0
    %1144 = vmatpush2.msra.mxu0 0.0
    %1145 = vmatprep.subr.mxu0 0.0
    %1146 = vmatpush2.msra.mxu0 0.0
    %1147 = vmatprep.subr.mxu0 0.0
    %1148 = vmatpush2.msra.mxu0 0.0
    %1149 = vmatprep.subr.mxu0 0.0
    %1150 = vmatpush2.msra.mxu0 0.0
    %1151 = vmatprep.subr.mxu0 0.0
    %1152 = vmatpush2.msra.mxu0 0.0
    %1153 = vmatprep.subr.mxu0 0.0
    %1154 = vmatpush2.msra.mxu0 0.0
    %1155 = vmatprep.subr.mxu0 0.0
    %1156 = vmatpush2.msra.mxu0 0.0
    %1157 = vmatprep.subr.mxu0 0.0
    %1158 = vmatpush2.msra.mxu0 0.0
    %1159 = vmatprep.subr.mxu0 0.0
    %1160 = vmatpush2.msra.mxu0 0.0
    %1161 = vmatprep.subr.mxu0 0.0
    %1162 = vmatpush2.msra.mxu0 0.0
    %1163 = vmatprep.subr.mxu0 0.0
    %1164 = vmatpush2.msra.mxu0 0.0
    %1165 = vmatprep.subr.mxu0 0.0
    %1166 = vmatpush2.msra.mxu0 0.0
    %1167 = vmatprep.subr.mxu0 0.0
    %1168 = vmatpush2.msra.mxu0 0.0
    %1169 = vmatprep.mubr.f32.mxu0 0.0
    %1170 = vmatmul.mubr.f32.gmra.mxu0 %v1089
    %v1171 = vpop.f32.mrf.mxu0
    %v1172 = vadd.f32 %v1085, %v1171
    %v1173 = vpop.f32.mrf.mxu0
    %v1174 = vadd.f32 %v1085, %v1173
    %1175 = vdwg.mxu0
    %1176 = vmatprep.subr.mxu0 0.0
    %1177 = vmatpush1.msra.mxu0 0.0
    %1178 = vmatprep.subr.mxu0 0.0
    %1179 = vmatpush1.msra.mxu0 0.0
    %1180 = vmatprep.subr.mxu0 0.0
    %1181 = vmatpush1.msra.mxu0 0.0
    %1182 = vmatprep.subr.mxu0 0.0
    %1183 = vmatpush1.msra.mxu0 0.0
    %1184 = vmatprep.subr.mxu0 0.0
    %1185 = vmatpush1.msra.mxu0 0.0
    %1186 = vmatprep.subr.mxu0 0.0
    %1187 = vmatpush1.msra.mxu0 0.0
    %1188 = vmatprep.subr.mxu0 0.0
    %1189 = vmatpush1.msra.mxu0 0.0
    %1190 = vmatprep.subr.mxu0 0.0
    %1191 = vmatpush1.msra.mxu0 0.0
    %1192 = vmatprep.subr.mxu0 0.0
    %1193 = vmatpush1.msra.mxu0 0.0
    %1194 = vmatprep.subr.mxu0 0.0
    %1195 = vmatpush1.msra.mxu0 0.0
    %1196 = vmatprep.subr.mxu0 0.0
    %1197 = vmatpush1.msra.mxu0 0.0
    %1198 = vmatprep.subr.mxu0 0.0
    %1199 = vmatpush1.msra.mxu0 0.0
    %1200 = vmatprep.subr.mxu0 %v1097
    %1201 = vmatpush1.msra.mxu0 %v1095
    %1202 = vmatprep.subr.mxu0 %v1062
    %1203 = vmatpush1.msra.mxu0 %v1061
    %1204 = vmatprep.subr.mxu0 %v666
    %1205 = vmatpush1.msra.mxu0 %v665
    %1206 = vmatprep.subr.mxu0 %v617
    %1207 = vmatpush1.msra.mxu0 %v616
    %1208 = vmatprep.subr.mxu0 0.0
    %1209 = vmatpush2.msra.mxu0 0.0
    %1210 = vmatprep.subr.mxu0 0.0
    %1211 = vmatpush2.msra.mxu0 0.0
    %1212 = vmatprep.subr.mxu0 0.0
    %1213 = vmatpush2.msra.mxu0 0.0
    %1214 = vmatprep.subr.mxu0 0.0
    %1215 = vmatpush2.msra.mxu0 0.0
    %1216 = vmatprep.subr.mxu0 0.0
    %1217 = vmatpush2.msra.mxu0 0.0
    %1218 = vmatprep.subr.mxu0 0.0
    %1219 = vmatpush2.msra.mxu0 0.0
    %1220 = vmatprep.subr.mxu0 0.0
    %1221 = vmatpush2.msra.mxu0 0.0
    %1222 = vmatprep.subr.mxu0 0.0
    %1223 = vmatpush2.msra.mxu0 0.0
    %1224 = vmatprep.subr.mxu0 0.0
    %1225 = vmatpush2.msra.mxu0 0.0
    %1226 = vmatprep.subr.mxu0 0.0
    %1227 = vmatpush2.msra.mxu0 0.0
    %1228 = vmatprep.subr.mxu0 0.0
    %1229 = vmatpush2.msra.mxu0 0.0
    %1230 = vmatprep.subr.mxu0 0.0
    %1231 = vmatpush2.msra.mxu0 0.0
    %1232 = vmatprep.subr.mxu0 0.0
    %1233 = vmatpush2.msra.mxu0 0.0
    %1234 = vmatprep.subr.mxu0 0.0
    %1235 = vmatpush2.msra.mxu0 0.0
    %1236 = vmatprep.subr.mxu0 0.0
    %1237 = vmatpush2.msra.mxu0 0.0
    %1238 = vmatprep.subr.mxu0 0.0
    %1239 = vmatpush2.msra.mxu0 0.0
    %1240 = vmatprep.mubr.f32.mxu0 0.0
    %1241 = vmatmul.mubr.f32.gmra.mxu0 %v1089
    %v1242 = vpop.f32.mrf.mxu0
    %v1243 = vadd.f32 %v1085, %v1242
    %v1244 = vpop.f32.mrf.mxu0
    %v1245 = vadd.f32 %v1085, %v1244
    %1246 = vdwg.mxu0
    %1247 = vmatprep.subr.mxu0 0.0
    %1248 = vmatpush1.msra.mxu0 0.0
    %1249 = vmatprep.subr.mxu0 0.0
    %1250 = vmatpush1.msra.mxu0 0.0
    %1251 = vmatprep.subr.mxu0 0.0
    %1252 = vmatpush1.msra.mxu0 0.0
    %1253 = vmatprep.subr.mxu0 0.0
    %1254 = vmatpush1.msra.mxu0 0.0
    %1255 = vmatprep.subr.mxu0 0.0
    %1256 = vmatpush1.msra.mxu0 0.0
    %1257 = vmatprep.subr.mxu0 0.0
    %1258 = vmatpush1.msra.mxu0 0.0
    %1259 = vmatprep.subr.mxu0 0.0
    %1260 = vmatpush1.msra.mxu0 0.0
    %1261 = vmatprep.subr.mxu0 0.0
    %1262 = vmatpush1.msra.mxu0 0.0
    %1263 = vmatprep.subr.mxu0 0.0
    %1264 = vmatpush1.msra.mxu0 0.0
    %1265 = vmatprep.subr.mxu0 0.0
    %1266 = vmatpush1.msra.mxu0 0.0
    %1267 = vmatprep.subr.mxu0 0.0
    %1268 = vmatpush1.msra.mxu0 0.0
    %1269 = vmatprep.subr.mxu0 0.0
    %1270 = vmatpush1.msra.mxu0 0.0
    %1271 = vmatprep.subr.mxu0 %v1101
    %1272 = vmatpush1.msra.mxu0 %v1099
    %1273 = vmatprep.subr.mxu0 %v1064
    %1274 = vmatpush1.msra.mxu0 %v1063
    %1275 = vmatprep.subr.mxu0 %v668
    %1276 = vmatpush1.msra.mxu0 %v667
    %1277 = vmatprep.subr.mxu0 %v619
    %1278 = vmatpush1.msra.mxu0 %v618
    %1279 = vmatprep.subr.mxu0 0.0
    %1280 = vmatpush2.msra.mxu0 0.0
    %1281 = vmatprep.subr.mxu0 0.0
    %1282 = vmatpush2.msra.mxu0 0.0
    %1283 = vmatprep.subr.mxu0 0.0
    %1284 = vmatpush2.msra.mxu0 0.0
    %1285 = vmatprep.subr.mxu0 0.0
    %1286 = vmatpush2.msra.mxu0 0.0
    %1287 = vmatprep.subr.mxu0 0.0
    %1288 = vmatpush2.msra.mxu0 0.0
    %1289 = vmatprep.subr.mxu0 0.0
    %1290 = vmatpush2.msra.mxu0 0.0
    %1291 = vmatprep.subr.mxu0 0.0
    %1292 = vmatpush2.msra.mxu0 0.0
    %1293 = vmatprep.subr.mxu0 0.0
    %1294 = vmatpush2.msra.mxu0 0.0
    %1295 = vmatprep.subr.mxu0 0.0
    %1296 = vmatpush2.msra.mxu0 0.0
    %1297 = vmatprep.subr.mxu0 0.0
    %1298 = vmatpush2.msra.mxu0 0.0
    %1299 = vmatprep.subr.mxu0 0.0
    %1300 = vmatpush2.msra.mxu0 0.0
    %1301 = vmatprep.subr.mxu0 0.0
    %1302 = vmatpush2.msra.mxu0 0.0
    %1303 = vmatprep.subr.mxu0 0.0
    %1304 = vmatpush2.msra.mxu0 0.0
    %1305 = vmatprep.subr.mxu0 0.0
    %1306 = vmatpush2.msra.mxu0 0.0
    %1307 = vmatprep.subr.mxu0 0.0
    %1308 = vmatpush2.msra.mxu0 0.0
    %1309 = vmatprep.subr.mxu0 0.0
    %1310 = vmatpush2.msra.mxu0 0.0
    %1311 = vmatprep.mubr.f32.mxu0 0.0
    %1312 = vmatmul.mubr.f32.gmra.mxu0 %v1089
    %v1313 = vpop.f32.mrf.mxu0
    %v1314 = vadd.f32 %v1085, %v1313
    %v1315 = vpop.f32.mrf.mxu0
    %v1316 = vadd.f32 %v1085, %v1315
    %1317 = vdwg.mxu0
    %1318 = vmatprep.subr.mxu0 0.0
    %1319 = vmatpush1.msra.mxu0 0.0
    %1320 = vmatprep.subr.mxu0 0.0
    %1321 = vmatpush1.msra.mxu0 0.0
    %1322 = vmatprep.subr.mxu0 0.0
    %1323 = vmatpush1.msra.mxu0 0.0
    %1324 = vmatprep.subr.mxu0 0.0
    %1325 = vmatpush1.msra.mxu0 0.0
    %1326 = vmatprep.subr.mxu0 0.0
    %1327 = vmatpush1.msra.mxu0 0.0
    %1328 = vmatprep.subr.mxu0 0.0
    %1329 = vmatpush1.msra.mxu0 0.0
    %1330 = vmatprep.subr.mxu0 0.0
    %1331 = vmatpush1.msra.mxu0 0.0
    %1332 = vmatprep.subr.mxu0 0.0
    %1333 = vmatpush1.msra.mxu0 0.0
    %1334 = vmatprep.subr.mxu0 0.0
    %1335 = vmatpush1.msra.mxu0 0.0
    %1336 = vmatprep.subr.mxu0 0.0
    %1337 = vmatpush1.msra.mxu0 0.0
    %1338 = vmatprep.subr.mxu0 0.0
    %1339 = vmatpush1.msra.mxu0 0.0
    %1340 = vmatprep.subr.mxu0 0.0
    %1341 = vmatpush1.msra.mxu0 0.0
    %1342 = vmatprep.subr.mxu0 0.0
    %1343 = vmatpush1.msra.mxu0 %v1103
    %1344 = vmatprep.subr.mxu0 0.0
    %1345 = vmatpush1.msra.mxu0 %v1065
    %1346 = vmatprep.subr.mxu0 0.0
    %1347 = vmatpush1.msra.mxu0 %v669
    %1348 = vmatprep.subr.mxu0 0.0
    %1349 = vmatpush1.msra.mxu0 %v620
    %1350 = vmatprep.subr.mxu0 0.0
    %1351 = vmatpush2.msra.mxu0 0.0
    %1352 = vmatprep.subr.mxu0 0.0
    %1353 = vmatpush2.msra.mxu0 0.0
    %1354 = vmatprep.subr.mxu0 0.0
    %1355 = vmatpush2.msra.mxu0 0.0
    %1356 = vmatprep.subr.mxu0 0.0
    %1357 = vmatpush2.msra.mxu0 0.0
    %1358 = vmatprep.subr.mxu0 0.0
    %1359 = vmatpush2.msra.mxu0 0.0
    %1360 = vmatprep.subr.mxu0 0.0
    %1361 = vmatpush2.msra.mxu0 0.0
    %1362 = vmatprep.subr.mxu0 0.0
    %1363 = vmatpush2.msra.mxu0 0.0
    %1364 = vmatprep.subr.mxu0 0.0
    %1365 = vmatpush2.msra.mxu0 0.0
    %1366 = vmatprep.subr.mxu0 0.0
    %1367 = vmatpush2.msra.mxu0 0.0
    %1368 = vmatprep.subr.mxu0 0.0
    %1369 = vmatpush2.msra.mxu0 0.0
    %1370 = vmatprep.subr.mxu0 0.0
    %1371 = vmatpush2.msra.mxu0 0.0
    %1372 = vmatprep.subr.mxu0 0.0
    %1373 = vmatpush2.msra.mxu0 0.0
    %1374 = vmatprep.subr.mxu0 0.0
    %1375 = vmatpush2.msra.mxu0 0.0
    %1376 = vmatprep.subr.mxu0 0.0
    %1377 = vmatpush2.msra.mxu0 0.0
    %1378 = vmatprep.subr.mxu0 0.0
    %1379 = vmatpush2.msra.mxu0 0.0
    %1380 = vmatprep.subr.mxu0 0.0
    %1381 = vmatpush2.msra.mxu0 0.0
    %1382 = vmatprep.mubr.f32.mxu0 0.0
    %1383 = vmatmul.mubr.f32.gmra.mxu0 %v1089
    %v1384 = vpop.f32.mrf.mxu0
    %v1385 = vadd.f32 %v1085, %v1384
    %v1386 = vpop.f32.mrf.mxu0
    %1387 = vdwg.mxu0
    %v1388 = vmax.f32 %v1172, 0.0
    %v1389 = vmax.f32 %v1174, 0.0
    %v1390 = vmax.f32 %v1243, 0.0
    %v1391 = vmax.f32 %v1245, 0.0
    %v1392 = vmax.f32 %v1314, 0.0
    %v1393 = vmax.f32 %v1316, 0.0
    %v1394 = vmax.f32 %v1385, 0.0
    %v1401 = vcombine.low %v1388, %v1389
    %v1402 = vcombine.low %v1390, %v1391
    %v1403 = vcombine.low %v1392, %v1393
    %1407 = vst [vmem:[#allocation2] sm:$0xff] %v1401
    %1408 = vst [vmem:[#allocation2 + $0x8] sm:$0xff] %v1402
    %1409 = vst [vmem:[#allocation2 + $0x10] sm:$0xff] %v1403
    %vm1410 = vcmask 1010688
    %1411 = vst.msk [vmem:[#allocation2 + $0x18] sm:$0xf] %vm1410, %v1394
    %v1412 = vld [vmem:[#allocation2] sm:$0xff]
    %v1413 = vld [vmem:[#allocation2 + $0x8] sm:$0xff]
    %v1414 = vld [vmem:[#allocation2 + $0x10] sm:$0xff]
    %v1415 = vld [vmem:[#allocation2 + $0x18] sm:$0xf]
    %1420 = vrot.lane.b32.xlu0 %v1412, 127
    %v1421 = vpop.permute.xlu0 %1420
    %1422 = vrot.lane.b32.xlu0 %v1413, 127
    %v1423 = vpop.permute.xlu0 %1422
    %1424 = vrot.lane.b32.xlu0 %v1414, 127
    %v1425 = vpop.permute.xlu0 %1424
    %1426 = vrot.lane.b32.xlu0 %v1415, 127
    %v1427 = vpop.permute.xlu0 %1426
    %v1428 = vrot.slane %v1421, 4
    %v1429 = vrot.slane %v1423, 4
    %v1430 = vrot.slane %v1425, 4
    %v1431 = vrot.slane %v1427, 4
    %v1432 = vsel %vm589, %v1428, %v1429
    %v1433 = vsel %vm93, %v1421, %v1432
    %v1434 = vsel %vm589, %v1429, %v1430
    %v1435 = vsel %vm93, %v1423, %v1434
    %v1436 = vsel %vm589, %v1430, %v1431
    %v1437 = vsel %vm93, %v1425, %v1436
    %v1442 = vmax.f32 %v1412, %v1433
    %v1443 = vmax.f32 %v1413, %v1435
    %v1444 = vmax.f32 %v1414, %v1437
    %v1445 = vmax.f32 %v1415, %v1427
    %1450 = vrot.lane.b32.xlu0 %v1442, 96
    %v1451 = vpop.permute.xlu0 %1450
    %1452 = vrot.lane.b32.xlu0 %v1443, 96
    %v1453 = vpop.permute.xlu0 %1452
    %1454 = vrot.lane.b32.xlu0 %v1444, 96
    %v1455 = vpop.permute.xlu0 %1454
    %1456 = vrot.lane.b32.xlu0 %v1445, 96
    %v1457 = vpop.permute.xlu0 %1456
    %v1458 = vrot.slane %v1451, 4
    %v1459 = vrot.slane %v1453, 4
    %v1460 = vrot.slane %v1455, 4
    %v1461 = vrot.slane %v1457, 4
    %v1462 = vsel %vm589, %v1458, %v1459
    %v1463 = vsel %vm240, %v1451, %v1462
    %v1464 = vsel %vm589, %v1459, %v1460
    %v1465 = vsel %vm240, %v1453, %v1464
    %v1466 = vsel %vm589, %v1460, %v1461
    %v1467 = vsel %vm240, %v1455, %v1466
    %v1472 = vmax.f32 %v1442, %v1463
    %v1473 = vmax.f32 %v1443, %v1465
    %v1474 = vmax.f32 %v1444, %v1467
    %v1475 = vmax.f32 %v1445, %v1457
    %v1476 = vld [vmem:[%s5] sm:$0xff]
    %v1477 = vld [vmem:[%s5 + $0x8] sm:$0xff]
    %v1478 = vld [vmem:[%s5 + $0x10] sm:$0xff]
    %v1479 = vld [vmem:[%s5 + $0x18] sm:$0xff]
    %v1480 = vld [vmem:[%s5 + $0x20] sm:$0xff]
    %v1481 = vld [vmem:[%s5 + $0x28] sm:$0xff]
    %v1482 = vld [vmem:[%s5 + $0x30] sm:$0xff]
    %v1483 = vld [vmem:[%s5 + $0x38] sm:$0xff]
    %v1484 = vld [vmem:[%s5 + $0x40] sm:$0xff]
    %v1485 = vld [vmem:[%s5 + $0x48] sm:$0xff]
    %v1486 = vld [vmem:[%s5 + $0x50] sm:$0xff]
    %v1487 = vld [vmem:[%s5 + $0x58] sm:$0xff]
    %v1488 = vld [vmem:[%s5 + $0x60] sm:$0xff]
    %v1489 = vld [vmem:[%s5 + $0x68] sm:$0xff]
    %v1490 = vld [vmem:[%s5 + $0x70] sm:$0xff]
    %v1491 = vld [vmem:[%s5 + $0x78] sm:$0xff]
    %v1492 = vld [vmem:[%s5 + $0x80] sm:$0xff]
    %v1493 = vld [vmem:[%s5 + $0x88] sm:$0xff]
    %v1494 = vld [vmem:[%s5 + $0x90] sm:$0xff]
    %v1495 = vld [vmem:[%s5 + $0x98] sm:$0xff]
    %v1496 = vld [vmem:[%s5 + $0xa0] sm:$0xff]
    %v1497 = vld [vmem:[%s5 + $0xa8] sm:$0xff]
    %v1498 = vld [vmem:[%s5 + $0xb0] sm:$0xff]
    %v1499 = vld [vmem:[%s5 + $0xb8] sm:$0xff]
    %v1500 = vld [vmem:[%s5 + $0xc0] sm:$0xff]
    %v1501 = vld [vmem:[%s5 + $0xc8] sm:$0xff]
    %v1502 = vld [vmem:[%s5 + $0xd0] sm:$0xff]
    %v1503 = vld [vmem:[%s5 + $0xd8] sm:$0xff]
    %v1504 = vld [vmem:[%s5 + $0xe0] sm:$0xff]
    %v1505 = vld [vmem:[%s5 + $0xe8] sm:$0xff]
    %v1506 = vld [vmem:[%s5 + $0xf0] sm:$0xff]
    %v1507 = vld [vmem:[%s5 + $0xf8] sm:$0xff]
    %v1508 = vld [vmem:[%s5 + $0x100] sm:$0xff]
    %v1509 = vld [vmem:[%s5 + $0x108] sm:$0xff]
    %v1510 = vld [vmem:[%s5 + $0x110] sm:$0xff]
    %v1511 = vld [vmem:[%s5 + $0x118] sm:$0xff]
    %v1512 = vld [vmem:[%s5 + $0x120] sm:$0xff]
    %v1513 = vld [vmem:[%s5 + $0x128] sm:$0xff]
    %v1514 = vld [vmem:[%s5 + $0x130] sm:$0xff]
    %v1515 = vld [vmem:[%s5 + $0x138] sm:$0xff]
    %v1516 = vld [vmem:[%s5 + $0x140] sm:$0xff]
    %v1517 = vld [vmem:[%s5 + $0x148] sm:$0xff]
    %v1518 = vld [vmem:[%s5 + $0x150] sm:$0xff]
    %v1519 = vld [vmem:[%s5 + $0x158] sm:$0xff]
    %v1520 = vld [vmem:[%s5 + $0x160] sm:$0xff]
    %v1521 = vld [vmem:[%s5 + $0x168] sm:$0xff]
    %v1522 = vld [vmem:[%s5 + $0x170] sm:$0xff]
    %v1523 = vld [vmem:[%s5 + $0x178] sm:$0xff]
    %v1524 = vld [vmem:[%s5 + $0x180] sm:$0xff]
    %v1525 = vld [vmem:[%s5 + $0x188] sm:$0xff]
    %v1526 = vld [vmem:[%s5 + $0x190] sm:$0xff]
    %v1527 = vld [vmem:[%s5 + $0x198] sm:$0xff]
    %v1528 = vld [vmem:[%s5 + $0x1a0] sm:$0xff]
    %v1529 = vld [vmem:[%s5 + $0x1a8] sm:$0xff]
    %v1530 = vld [vmem:[%s5 + $0x1b0] sm:$0xff]
    %v1531 = vld [vmem:[%s5 + $0x1b8] sm:$0xff]
    %v1532 = vld [vmem:[%s5 + $0x1c0] sm:$0xff]
    %v1533 = vld [vmem:[%s5 + $0x1c8] sm:$0xff]
    %v1534 = vld [vmem:[%s5 + $0x1d0] sm:$0xff]
    %v1535 = vld [vmem:[%s5 + $0x1d8] sm:$0xff]
    %v1536 = vld [vmem:[%s5 + $0x1e0] sm:$0xff]
    %v1537 = vld [vmem:[%s5 + $0x1e8] sm:$0xff]
    %v1538 = vld [vmem:[%s5 + $0x1f0] sm:$0xff]
    %v1539 = vld [vmem:[%s5 + $0x1f8] sm:$0xff]
    %v1540 = vld [vmem:[%s5 + $0x200] sm:$0xff]
    %v1541 = vld [vmem:[%s5 + $0x208] sm:$0xff]
    %v1542 = vld [vmem:[%s5 + $0x210] sm:$0xff]
    %v1543 = vld [vmem:[%s5 + $0x218] sm:$0xff]
    %v1544 = vld [vmem:[%s5 + $0x220] sm:$0xff]
    %v1545 = vld [vmem:[%s5 + $0x228] sm:$0xff]
    %v1546 = vld [vmem:[%s5 + $0x230] sm:$0xff]
    %v1547 = vld [vmem:[%s5 + $0x238] sm:$0xff]
    %v1548 = vld [vmem:[%s5 + $0x240] sm:$0xff]
    %v1549 = vld [vmem:[%s5 + $0x248] sm:$0xff]
    %v1550 = vld [vmem:[%s5 + $0x250] sm:$0xff]
    %v1551 = vld [vmem:[%s5 + $0x258] sm:$0xff]
    %v1552 = vld [vmem:[%s5 + $0x260] sm:$0xff]
    %v1553 = vld [vmem:[%s5 + $0x268] sm:$0xff]
    %v1554 = vld [vmem:[%s5 + $0x270] sm:$0xff]
    %v1555 = vld [vmem:[%s5 + $0x278] sm:$0xff]
    %v1556 = vld [vmem:[%s5 + $0x280] sm:$0xff]
    %v1557 = vld [vmem:[%s5 + $0x288] sm:$0xff]
    %v1558 = vld [vmem:[%s5 + $0x290] sm:$0xff]
    %v1559 = vld [vmem:[%s5 + $0x298] sm:$0xff]
    %v1560 = vld [vmem:[%s5 + $0x2a0] sm:$0xff]
    %v1561 = vld [vmem:[%s5 + $0x2a8] sm:$0xff]
    %v1562 = vld [vmem:[%s5 + $0x2b0] sm:$0xff]
    %v1563 = vld [vmem:[%s5 + $0x2b8] sm:$0xff]
    %v1564 = vld [vmem:[%s5 + $0x2c0] sm:$0xff]
    %v1565 = vld [vmem:[%s5 + $0x2c8] sm:$0xff]
    %v1566 = vld [vmem:[%s5 + $0x2d0] sm:$0xff]
    %v1567 = vld [vmem:[%s5 + $0x2d8] sm:$0xff]
    %v1568 = vld [vmem:[%s5 + $0x2e0] sm:$0xff]
    %v1569 = vld [vmem:[%s5 + $0x2e8] sm:$0xff]
    %v1570 = vld [vmem:[%s5 + $0x2f0] sm:$0xff]
    %v1571 = vld [vmem:[%s5 + $0x2f8] sm:$0xff]
    %v1572 = vld [vmem:[%s5 + $0x300] sm:$0xff]
    %v1573 = vld [vmem:[%s5 + $0x308] sm:$0xff]
    %v1574 = vld [vmem:[%s5 + $0x310] sm:$0xff]
    %v1575 = vld [vmem:[%s5 + $0x318] sm:$0xff]
    %v1576 = vld [vmem:[%s5 + $0x320] sm:$0xff]
    %v1577 = vld [vmem:[%s5 + $0x328] sm:$0xff]
    %v1578 = vld [vmem:[%s5 + $0x330] sm:$0xff]
    %v1579 = vld [vmem:[%s5 + $0x338] sm:$0xff]
    %v1580 = vld [vmem:[%s5 + $0x340] sm:$0xff]
    %v1581 = vld [vmem:[%s5 + $0x348] sm:$0xff]
    %v1582 = vld [vmem:[%s5 + $0x350] sm:$0xff]
    %v1583 = vld [vmem:[%s5 + $0x358] sm:$0xff]
    %v1584 = vld [vmem:[%s5 + $0x360] sm:$0xff]
    %v1585 = vld [vmem:[%s5 + $0x368] sm:$0xff]
    %v1586 = vld [vmem:[%s5 + $0x370] sm:$0xff]
    %v1587 = vld [vmem:[%s5 + $0x378] sm:$0xff]
    %v1588 = vld [vmem:[%s5 + $0x380] sm:$0xff]
    %v1589 = vld [vmem:[%s5 + $0x388] sm:$0xff]
    %v1590 = vld [vmem:[%s5 + $0x390] sm:$0xff]
    %v1591 = vld [vmem:[%s5 + $0x398] sm:$0xff]
    %v1592 = vld [vmem:[%s5 + $0x3a0] sm:$0xff]
    %v1593 = vld [vmem:[%s5 + $0x3a8] sm:$0xff]
    %v1594 = vld [vmem:[%s5 + $0x3b0] sm:$0xff]
    %v1595 = vld [vmem:[%s5 + $0x3b8] sm:$0xff]
    %v1596 = vld [vmem:[%s5 + $0x3c0] sm:$0xff]
    %v1597 = vld [vmem:[%s5 + $0x3c8] sm:$0xff]
    %v1598 = vld [vmem:[%s5 + $0x3d0] sm:$0xff]
    %v1599 = vld [vmem:[%s5 + $0x3d8] sm:$0xff]
    %v1600 = vld [vmem:[%s5 + $0x3e0] sm:$0xff]
    %v1601 = vld [vmem:[%s5 + $0x3e8] sm:$0xff]
    %v1602 = vld [vmem:[%s5 + $0x3f0] sm:$0xff]
    %v1603 = vld [vmem:[%s5 + $0x3f8] sm:$0xff]
    %v1604 = vld [vmem:[%s5 + $0x400] sm:$0xff]
    %v1605 = vld [vmem:[%s5 + $0x408] sm:$0xff]
    %v1606 = vld [vmem:[%s5 + $0x410] sm:$0xff]
    %v1607 = vld [vmem:[%s5 + $0x418] sm:$0xff]
    %v1608 = vld [vmem:[%s5 + $0x420] sm:$0xff]
    %v1609 = vld [vmem:[%s5 + $0x428] sm:$0xff]
    %v1610 = vld [vmem:[%s5 + $0x430] sm:$0xff]
    %v1611 = vld [vmem:[%s5 + $0x438] sm:$0xff]
    %v1612 = vld [vmem:[%s5 + $0x440] sm:$0xff]
    %v1613 = vld [vmem:[%s5 + $0x448] sm:$0xff]
    %v1614 = vld [vmem:[%s5 + $0x450] sm:$0xff]
    %v1615 = vld [vmem:[%s5 + $0x458] sm:$0xff]
    %v1616 = vld [vmem:[%s5 + $0x460] sm:$0xff]
    %v1617 = vld [vmem:[%s5 + $0x468] sm:$0xff]
    %v1618 = vld [vmem:[%s5 + $0x470] sm:$0xff]
    %v1619 = vld [vmem:[%s5 + $0x478] sm:$0xff]
    %v1620 = vld [vmem:[%s5 + $0x480] sm:$0xff]
    %v1621 = vld [vmem:[%s5 + $0x488] sm:$0xff]
    %v1622 = vld [vmem:[%s5 + $0x490] sm:$0xff]
    %v1623 = vld [vmem:[%s5 + $0x498] sm:$0xff]
    %v1624 = vld [vmem:[%s5 + $0x4a0] sm:$0xff]
    %v1625 = vld [vmem:[%s5 + $0x4a8] sm:$0xff]
    %v1626 = vld [vmem:[%s5 + $0x4b0] sm:$0xff]
    %v1627 = vld [vmem:[%s5 + $0x4b8] sm:$0xff]
    %v1628 = vld [vmem:[%s5 + $0x4c0] sm:$0xff]
    %v1629 = vld [vmem:[%s5 + $0x4c8] sm:$0xff]
    %v1630 = vld [vmem:[%s5 + $0x4d0] sm:$0xff]
    %v1631 = vld [vmem:[%s5 + $0x4d8] sm:$0xff]
    %v1632 = vld [vmem:[%s5 + $0x4e0] sm:$0xff]
    %v1633 = vld [vmem:[%s5 + $0x4e8] sm:$0xff]
    %v1634 = vld [vmem:[%s5 + $0x4f0] sm:$0xff]
    %v1635 = vld [vmem:[%s5 + $0x4f8] sm:$0xff]
    %v1636 = vld [vmem:[%s5 + $0x500] sm:$0xff]
    %v1637 = vld [vmem:[%s5 + $0x508] sm:$0xff]
    %v1638 = vld [vmem:[%s5 + $0x510] sm:$0xff]
    %v1639 = vld [vmem:[%s5 + $0x518] sm:$0xff]
    %v1640 = vld [vmem:[%s5 + $0x520] sm:$0xff]
    %v1641 = vld [vmem:[%s5 + $0x528] sm:$0xff]
    %v1642 = vld [vmem:[%s5 + $0x530] sm:$0xff]
    %v1643 = vld [vmem:[%s5 + $0x538] sm:$0xff]
    %v1644 = vld [vmem:[%s5 + $0x540] sm:$0xff]
    %v1645 = vld [vmem:[%s5 + $0x548] sm:$0xff]
    %v1646 = vld [vmem:[%s5 + $0x550] sm:$0xff]
    %v1647 = vld [vmem:[%s5 + $0x558] sm:$0xff]
    %v1648 = vld [vmem:[%s5 + $0x560] sm:$0xff]
    %v1649 = vld [vmem:[%s5 + $0x568] sm:$0xff]
    %v1650 = vld [vmem:[%s5 + $0x570] sm:$0xff]
    %v1651 = vld [vmem:[%s5 + $0x578] sm:$0xff]
    %v1652 = vld [vmem:[%s5 + $0x580] sm:$0xff]
    %v1653 = vld [vmem:[%s5 + $0x588] sm:$0xff]
    %v1654 = vld [vmem:[%s5 + $0x590] sm:$0xff]
    %v1655 = vld [vmem:[%s5 + $0x598] sm:$0xff]
    %v1656 = vld [vmem:[%s5 + $0x5a0] sm:$0xff]
    %v1657 = vld [vmem:[%s5 + $0x5a8] sm:$0xff]
    %v1658 = vld [vmem:[%s5 + $0x5b0] sm:$0xff]
    %v1659 = vld [vmem:[%s5 + $0x5b8] sm:$0xff]
    %v1660 = vld [vmem:[%s5 + $0x5c0] sm:$0xff]
    %v1661 = vld [vmem:[%s5 + $0x5c8] sm:$0xff]
    %v1662 = vld [vmem:[%s5 + $0x5d0] sm:$0xff]
    %v1663 = vld [vmem:[%s5 + $0x5d8] sm:$0xff]
    %v1664 = vld [vmem:[%s5 + $0x5e0] sm:$0xff]
    %v1665 = vld [vmem:[%s5 + $0x5e8] sm:$0xff]
    %v1666 = vld [vmem:[%s5 + $0x5f0] sm:$0xff]
    %v1667 = vld [vmem:[%s5 + $0x5f8] sm:$0xff]
    %v1668 = vld [vmem:[%s5 + $0x600] sm:$0xff]
    %v1669 = vld [vmem:[%s5 + $0x608] sm:$0xff]
    %v1670 = vld [vmem:[%s5 + $0x610] sm:$0xff]
    %v1671 = vld [vmem:[%s5 + $0x618] sm:$0xff]
    %v1672 = vld [vmem:[%s5 + $0x620] sm:$0xff]
    %v1673 = vld [vmem:[%s5 + $0x628] sm:$0xff]
    %v1674 = vld [vmem:[%s5 + $0x630] sm:$0xff]
    %v1675 = vld [vmem:[%s5 + $0x638] sm:$0xff]
    %v1676 = vld [vmem:[%s5 + $0x640] sm:$0xff]
    %v1677 = vld [vmem:[%s5 + $0x648] sm:$0xff]
    %v1678 = vld [vmem:[%s5 + $0x650] sm:$0xff]
    %v1679 = vld [vmem:[%s5 + $0x658] sm:$0xff]
    %v1680 = vld [vmem:[%s5 + $0x660] sm:$0xff]
    %v1681 = vld [vmem:[%s5 + $0x668] sm:$0xff]
    %v1682 = vld [vmem:[%s5 + $0x670] sm:$0xff]
    %v1683 = vld [vmem:[%s5 + $0x678] sm:$0xff]
    %v1684 = vld [vmem:[%s5 + $0x680] sm:$0xff]
    %v1685 = vld [vmem:[%s5 + $0x688] sm:$0xff]
    %v1686 = vld [vmem:[%s5 + $0x690] sm:$0xff]
    %v1687 = vld [vmem:[%s5 + $0x698] sm:$0xff]
    %v1688 = vld [vmem:[%s5 + $0x6a0] sm:$0xff]
    %v1689 = vld [vmem:[%s5 + $0x6a8] sm:$0xff]
    %v1690 = vld [vmem:[%s5 + $0x6b0] sm:$0xff]
    %v1691 = vld [vmem:[%s5 + $0x6b8] sm:$0xff]
    %v1692 = vld [vmem:[%s5 + $0x6c0] sm:$0xff]
    %v1693 = vld [vmem:[%s5 + $0x6c8] sm:$0xff]
    %v1694 = vld [vmem:[%s5 + $0x6d0] sm:$0xff]
    %v1695 = vld [vmem:[%s5 + $0x6d8] sm:$0xff]
    %v1696 = vld [vmem:[%s5 + $0x6e0] sm:$0xff]
    %v1697 = vld [vmem:[%s5 + $0x6e8] sm:$0xff]
    %v1698 = vld [vmem:[%s5 + $0x6f0] sm:$0xff]
    %v1699 = vld [vmem:[%s5 + $0x6f8] sm:$0xff]
    %v1700 = vld [vmem:[%s5 + $0x700] sm:$0xff]
    %v1701 = vld [vmem:[%s5 + $0x708] sm:$0xff]
    %v1702 = vld [vmem:[%s5 + $0x710] sm:$0xff]
    %v1703 = vld [vmem:[%s5 + $0x718] sm:$0xff]
    %v1704 = vld [vmem:[%s5 + $0x720] sm:$0xff]
    %v1705 = vld [vmem:[%s5 + $0x728] sm:$0xff]
    %v1706 = vld [vmem:[%s5 + $0x730] sm:$0xff]
    %v1707 = vld [vmem:[%s5 + $0x738] sm:$0xff]
    %v1708 = vld [vmem:[%s5 + $0x740] sm:$0xff]
    %v1709 = vld [vmem:[%s5 + $0x748] sm:$0xff]
    %v1710 = vld [vmem:[%s5 + $0x750] sm:$0xff]
    %v1711 = vld [vmem:[%s5 + $0x758] sm:$0xff]
    %v1712 = vld [vmem:[%s5 + $0x760] sm:$0xff]
    %v1713 = vld [vmem:[%s5 + $0x768] sm:$0xff]
    %v1714 = vld [vmem:[%s5 + $0x770] sm:$0xff]
    %v1715 = vld [vmem:[%s5 + $0x778] sm:$0xff]
    %v1716 = vld [vmem:[%s5 + $0x780] sm:$0xff]
    %v1717 = vld [vmem:[%s5 + $0x788] sm:$0xff]
    %v1718 = vld [vmem:[%s5 + $0x790] sm:$0xff]
    %v1719 = vld [vmem:[%s5 + $0x798] sm:$0xff]
    %v1720 = vld [vmem:[%s5 + $0x7a0] sm:$0xff]
    %v1721 = vld [vmem:[%s5 + $0x7a8] sm:$0xff]
    %v1722 = vld [vmem:[%s5 + $0x7b0] sm:$0xff]
    %v1723 = vld [vmem:[%s5 + $0x7b8] sm:$0xff]
    %v1724 = vld [vmem:[%s5 + $0x7c0] sm:$0xff]
    %v1725 = vld [vmem:[%s5 + $0x7c8] sm:$0xff]
    %v1726 = vld [vmem:[%s5 + $0x7d0] sm:$0xff]
    %v1727 = vld [vmem:[%s5 + $0x7d8] sm:$0xff]
    %v1728 = vld [vmem:[%s5 + $0x7e0] sm:$0xff]
    %v1729 = vld [vmem:[%s5 + $0x7e8] sm:$0xff]
    %v1730 = vld [vmem:[%s5 + $0x7f0] sm:$0xff]
    %v1731 = vld [vmem:[%s5 + $0x7f8] sm:$0xff]
    %v1732 = vld [vmem:[%s5 + $0x800] sm:$0xff]
    %v1733 = vld [vmem:[%s5 + $0x808] sm:$0xff]
    %v1734 = vld [vmem:[%s5 + $0x810] sm:$0xff]
    %v1735 = vld [vmem:[%s5 + $0x818] sm:$0xff]
    %v1736 = vld [vmem:[%s5 + $0x820] sm:$0xff]
    %v1737 = vld [vmem:[%s5 + $0x828] sm:$0xff]
    %v1738 = vld [vmem:[%s5 + $0x830] sm:$0xff]
    %v1739 = vld [vmem:[%s5 + $0x838] sm:$0xff]
    %v1740 = vld [vmem:[%s5 + $0x840] sm:$0xff]
    %v1741 = vld [vmem:[%s5 + $0x848] sm:$0xff]
    %v1742 = vld [vmem:[%s5 + $0x850] sm:$0xff]
    %v1743 = vld [vmem:[%s5 + $0x858] sm:$0xff]
    %v1744 = vld [vmem:[%s5 + $0x860] sm:$0xff]
    %v1745 = vld [vmem:[%s5 + $0x868] sm:$0xff]
    %v1746 = vld [vmem:[%s5 + $0x870] sm:$0xff]
    %v1747 = vld [vmem:[%s5 + $0x878] sm:$0xff]
    %v1748 = vld [vmem:[%s5 + $0x880] sm:$0xff]
    %v1749 = vld [vmem:[%s5 + $0x888] sm:$0xff]
    %v1750 = vld [vmem:[%s5 + $0x890] sm:$0xff]
    %v1751 = vld [vmem:[%s5 + $0x898] sm:$0xff]
    %v1752 = vld [vmem:[%s5 + $0x8a0] sm:$0xff]
    %v1753 = vld [vmem:[%s5 + $0x8a8] sm:$0xff]
    %v1754 = vld [vmem:[%s5 + $0x8b0] sm:$0xff]
    %v1755 = vld [vmem:[%s5 + $0x8b8] sm:$0xff]
    %v1756 = vld [vmem:[%s5 + $0x8c0] sm:$0xff]
    %v1757 = vld [vmem:[%s5 + $0x8c8] sm:$0xff]
    %v1758 = vld [vmem:[%s5 + $0x8d0] sm:$0xff]
    %v1759 = vld [vmem:[%s5 + $0x8d8] sm:$0xff]
    %v1760 = vld [vmem:[%s5 + $0x8e0] sm:$0xff]
    %v1761 = vld [vmem:[%s5 + $0x8e8] sm:$0xff]
    %v1762 = vld [vmem:[%s5 + $0x8f0] sm:$0xff]
    %v1763 = vld [vmem:[%s5 + $0x8f8] sm:$0xff]
    %v1764 = vld [vmem:[%s5 + $0x900] sm:$0xff]
    %v1765 = vld [vmem:[%s5 + $0x908] sm:$0xff]
    %v1766 = vld [vmem:[%s5 + $0x910] sm:$0xff]
    %v1767 = vld [vmem:[%s5 + $0x918] sm:$0xff]
    %v1768 = vld [vmem:[%s5 + $0x920] sm:$0xff]
    %v1769 = vld [vmem:[%s5 + $0x928] sm:$0xff]
    %v1770 = vld [vmem:[%s5 + $0x930] sm:$0xff]
    %v1771 = vld [vmem:[%s5 + $0x938] sm:$0xff]
    %v1772 = vld [vmem:[%s5 + $0x940] sm:$0xff]
    %v1773 = vld [vmem:[%s5 + $0x948] sm:$0xff]
    %v1774 = vld [vmem:[%s5 + $0x950] sm:$0xff]
    %v1775 = vld [vmem:[%s5 + $0x958] sm:$0xff]
    %v1776 = vld [vmem:[%s5 + $0x960] sm:$0xff]
    %v1777 = vld [vmem:[%s5 + $0x968] sm:$0xff]
    %v1778 = vld [vmem:[%s5 + $0x970] sm:$0xff]
    %v1779 = vld [vmem:[%s5 + $0x978] sm:$0xff]
    %v1780 = vld [vmem:[%s5 + $0x980] sm:$0xff]
    %v1781 = vld [vmem:[%s5 + $0x988] sm:$0xff]
    %v1782 = vld [vmem:[%s5 + $0x990] sm:$0xff]
    %v1783 = vld [vmem:[%s5 + $0x998] sm:$0xff]
    %v1784 = vld [vmem:[%s5 + $0x9a0] sm:$0xff]
    %v1785 = vld [vmem:[%s5 + $0x9a8] sm:$0xff]
    %v1786 = vld [vmem:[%s5 + $0x9b0] sm:$0xff]
    %v1787 = vld [vmem:[%s5 + $0x9b8] sm:$0xff]
    %v1788 = vld [vmem:[%s5 + $0x9c0] sm:$0xff]
    %v1789 = vld [vmem:[%s5 + $0x9c8] sm:$0xff]
    %v1790 = vld [vmem:[%s5 + $0x9d0] sm:$0xff]
    %v1791 = vld [vmem:[%s5 + $0x9d8] sm:$0xff]
    %v1792 = vld [vmem:[%s5 + $0x9e0] sm:$0xff]
    %v1793 = vld [vmem:[%s5 + $0x9e8] sm:$0xff]
    %v1794 = vld [vmem:[%s5 + $0x9f0] sm:$0xff]
    %v1795 = vld [vmem:[%s5 + $0x9f8] sm:$0xff]
    %v1796 = vld [vmem:[%s5 + $0xa00] sm:$0xff]
    %v1797 = vld [vmem:[%s5 + $0xa08] sm:$0x7]
    %v1798 = vld [vmem:[%s5 + $0xa10] sm:$0x7]
    %v1799 = vld [vmem:[%s5 + $0xa18] sm:$0x7]
    %v1804 = vcombine.high %v1472, %v1472
    %v1805 = vcombine.high %v1473, %v1473
    %v1806 = vcombine.high %v1474, %v1474
    %vm1810 = vcmask 744448
    %v1811 = vsel %vm1810, %v1475, 0
    %v1814 = vsel %vm581, %v1797, 0
    %v1817 = vsel %vm581, %v1798, 0
    %v1820 = vsel %vm581, %v1799, 0
    %1822 = vmatprep.subr.mxu0 %v1522
    %1823 = vmatpush1.msra.mxu0 %v1521
    %1824 = vmatprep.subr.mxu0 %v1519
    %1825 = vmatpush1.msra.mxu0 %v1518
    %1826 = vmatprep.subr.mxu0 %v1516
    %1827 = vmatpush1.msra.mxu0 %v1515
    %1828 = vmatprep.subr.mxu0 %v1513
    %1829 = vmatpush1.msra.mxu0 %v1512
    %1830 = vmatprep.subr.mxu0 %v1510
    %1831 = vmatpush1.msra.mxu0 %v1509
    %1832 = vmatprep.subr.mxu0 %v1507
    %1833 = vmatpush1.msra.mxu0 %v1506
    %1834 = vmatprep.subr.mxu0 %v1504
    %1835 = vmatpush1.msra.mxu0 %v1503
    %1836 = vmatprep.subr.mxu0 %v1501
    %1837 = vmatpush1.msra.mxu0 %v1500
    %1838 = vmatprep.subr.mxu0 %v1498
    %1839 = vmatpush1.msra.mxu0 %v1497
    %1840 = vmatprep.subr.mxu0 %v1495
    %1841 = vmatpush1.msra.mxu0 %v1494
    %1842 = vmatprep.subr.mxu0 %v1492
    %1843 = vmatpush1.msra.mxu0 %v1491
    %1844 = vmatprep.subr.mxu0 %v1489
    %1845 = vmatpush1.msra.mxu0 %v1488
    %1846 = vmatprep.subr.mxu0 %v1486
    %1847 = vmatpush1.msra.mxu0 %v1485
    %1848 = vmatprep.subr.mxu0 %v1483
    %1849 = vmatpush1.msra.mxu0 %v1482
    %1850 = vmatprep.subr.mxu0 %v1480
    %1851 = vmatpush1.msra.mxu0 %v1479
    %1852 = vmatprep.subr.mxu0 %v1477
    %1853 = vmatpush1.msra.mxu0 %v1476
    %1854 = vmatprep.subr.mxu0 %v1570
    %1855 = vmatpush2.msra.mxu0 %v1569
    %1856 = vmatprep.subr.mxu0 %v1567
    %1857 = vmatpush2.msra.mxu0 %v1566
    %1858 = vmatprep.subr.mxu0 %v1564
    %1859 = vmatpush2.msra.mxu0 %v1563
    %1860 = vmatprep.subr.mxu0 %v1561
    %1861 = vmatpush2.msra.mxu0 %v1560
    %1862 = vmatprep.subr.mxu0 %v1558
    %1863 = vmatpush2.msra.mxu0 %v1557
    %1864 = vmatprep.subr.mxu0 %v1555
    %1865 = vmatpush2.msra.mxu0 %v1554
    %1866 = vmatprep.subr.mxu0 %v1552
    %1867 = vmatpush2.msra.mxu0 %v1551
    %1868 = vmatprep.subr.mxu0 %v1549
    %1869 = vmatpush2.msra.mxu0 %v1548
    %1870 = vmatprep.subr.mxu0 %v1546
    %1871 = vmatpush2.msra.mxu0 %v1545
    %1872 = vmatprep.subr.mxu0 %v1543
    %1873 = vmatpush2.msra.mxu0 %v1542
    %1874 = vmatprep.subr.mxu0 %v1540
    %1875 = vmatpush2.msra.mxu0 %v1539
    %1876 = vmatprep.subr.mxu0 %v1537
    %1877 = vmatpush2.msra.mxu0 %v1536
    %1878 = vmatprep.subr.mxu0 %v1534
    %1879 = vmatpush2.msra.mxu0 %v1533
    %1880 = vmatprep.subr.mxu0 %v1531
    %1881 = vmatpush2.msra.mxu0 %v1530
    %1882 = vmatprep.subr.mxu0 %v1528
    %1883 = vmatpush2.msra.mxu0 %v1527
    %1884 = vmatprep.subr.mxu0 %v1525
    %1885 = vmatpush2.msra.mxu0 %v1524
    %1886 = vmatprep.mubr.f32.mxu0 %v1804
    %1887 = vmatmul.mubr.f32.gmra.mxu0 %v1472
    %v1888 = vpop.f32.mrf.mxu0
    %v1889 = vadd.f32 0.0, %v1888
    %v1890 = vpop.f32.mrf.mxu0
    %v1891 = vadd.f32 0.0, %v1890
    %1892 = vdwg.mxu0
    %1893 = vmatprep.subr.mxu0 %v1618
    %1894 = vmatpush1.msra.mxu0 %v1617
    %1895 = vmatprep.subr.mxu0 %v1615
    %1896 = vmatpush1.msra.mxu0 %v1614
    %1897 = vmatprep.subr.mxu0 %v1612
    %1898 = vmatpush1.msra.mxu0 %v1611
    %1899 = vmatprep.subr.mxu0 %v1609
    %1900 = vmatpush1.msra.mxu0 %v1608
    %1901 = vmatprep.subr.mxu0 %v1606
    %1902 = vmatpush1.msra.mxu0 %v1605
    %1903 = vmatprep.subr.mxu0 %v1603
    %1904 = vmatpush1.msra.mxu0 %v1602
    %1905 = vmatprep.subr.mxu0 %v1600
    %1906 = vmatpush1.msra.mxu0 %v1599
    %1907 = vmatprep.subr.mxu0 %v1597
    %1908 = vmatpush1.msra.mxu0 %v1596
    %1909 = vmatprep.subr.mxu0 %v1594
    %1910 = vmatpush1.msra.mxu0 %v1593
    %1911 = vmatprep.subr.mxu0 %v1591
    %1912 = vmatpush1.msra.mxu0 %v1590
    %1913 = vmatprep.subr.mxu0 %v1588
    %1914 = vmatpush1.msra.mxu0 %v1587
    %1915 = vmatprep.subr.mxu0 %v1585
    %1916 = vmatpush1.msra.mxu0 %v1584
    %1917 = vmatprep.subr.mxu0 %v1582
    %1918 = vmatpush1.msra.mxu0 %v1581
    %1919 = vmatprep.subr.mxu0 %v1579
    %1920 = vmatpush1.msra.mxu0 %v1578
    %1921 = vmatprep.subr.mxu0 %v1576
    %1922 = vmatpush1.msra.mxu0 %v1575
    %1923 = vmatprep.subr.mxu0 %v1573
    %1924 = vmatpush1.msra.mxu0 %v1572
    %1925 = vmatprep.subr.mxu0 %v1666
    %1926 = vmatpush2.msra.mxu0 %v1665
    %1927 = vmatprep.subr.mxu0 %v1663
    %1928 = vmatpush2.msra.mxu0 %v1662
    %1929 = vmatprep.subr.mxu0 %v1660
    %1930 = vmatpush2.msra.mxu0 %v1659
    %1931 = vmatprep.subr.mxu0 %v1657
    %1932 = vmatpush2.msra.mxu0 %v1656
    %1933 = vmatprep.subr.mxu0 %v1654
    %1934 = vmatpush2.msra.mxu0 %v1653
    %1935 = vmatprep.subr.mxu0 %v1651
    %1936 = vmatpush2.msra.mxu0 %v1650
    %1937 = vmatprep.subr.mxu0 %v1648
    %1938 = vmatpush2.msra.mxu0 %v1647
    %1939 = vmatprep.subr.mxu0 %v1645
    %1940 = vmatpush2.msra.mxu0 %v1644
    %1941 = vmatprep.subr.mxu0 %v1642
    %1942 = vmatpush2.msra.mxu0 %v1641
    %1943 = vmatprep.subr.mxu0 %v1639
    %1944 = vmatpush2.msra.mxu0 %v1638
    %1945 = vmatprep.subr.mxu0 %v1636
    %1946 = vmatpush2.msra.mxu0 %v1635
    %1947 = vmatprep.subr.mxu0 %v1633
    %1948 = vmatpush2.msra.mxu0 %v1632
    %1949 = vmatprep.subr.mxu0 %v1630
    %1950 = vmatpush2.msra.mxu0 %v1629
    %1951 = vmatprep.subr.mxu0 %v1627
    %1952 = vmatpush2.msra.mxu0 %v1626
    %1953 = vmatprep.subr.mxu0 %v1624
    %1954 = vmatpush2.msra.mxu0 %v1623
    %1955 = vmatprep.subr.mxu0 %v1621
    %1956 = vmatpush2.msra.mxu0 %v1620
    %1957 = vmatprep.mubr.f32.mxu0 %v1805
    %1958 = vmatmul.mubr.f32.gmra.mxu0 %v1473
    %v1959 = vpop.f32.mrf.mxu0
    %v1960 = vadd.f32 %v1889, %v1959
    %v1961 = vpop.f32.mrf.mxu0
    %v1962 = vadd.f32 %v1891, %v1961
    %1963 = vdwg.mxu0
    %1964 = vmatprep.subr.mxu0 %v1714
    %1965 = vmatpush1.msra.mxu0 %v1713
    %1966 = vmatprep.subr.mxu0 %v1711
    %1967 = vmatpush1.msra.mxu0 %v1710
    %1968 = vmatprep.subr.mxu0 %v1708
    %1969 = vmatpush1.msra.mxu0 %v1707
    %1970 = vmatprep.subr.mxu0 %v1705
    %1971 = vmatpush1.msra.mxu0 %v1704
    %1972 = vmatprep.subr.mxu0 %v1702
    %1973 = vmatpush1.msra.mxu0 %v1701
    %1974 = vmatprep.subr.mxu0 %v1699
    %1975 = vmatpush1.msra.mxu0 %v1698
    %1976 = vmatprep.subr.mxu0 %v1696
    %1977 = vmatpush1.msra.mxu0 %v1695
    %1978 = vmatprep.subr.mxu0 %v1693
    %1979 = vmatpush1.msra.mxu0 %v1692
    %1980 = vmatprep.subr.mxu0 %v1690
    %1981 = vmatpush1.msra.mxu0 %v1689
    %1982 = vmatprep.subr.mxu0 %v1687
    %1983 = vmatpush1.msra.mxu0 %v1686
    %1984 = vmatprep.subr.mxu0 %v1684
    %1985 = vmatpush1.msra.mxu0 %v1683
    %1986 = vmatprep.subr.mxu0 %v1681
    %1987 = vmatpush1.msra.mxu0 %v1680
    %1988 = vmatprep.subr.mxu0 %v1678
    %1989 = vmatpush1.msra.mxu0 %v1677
    %1990 = vmatprep.subr.mxu0 %v1675
    %1991 = vmatpush1.msra.mxu0 %v1674
    %1992 = vmatprep.subr.mxu0 %v1672
    %1993 = vmatpush1.msra.mxu0 %v1671
    %1994 = vmatprep.subr.mxu0 %v1669
    %1995 = vmatpush1.msra.mxu0 %v1668
    %1996 = vmatprep.subr.mxu0 %v1762
    %1997 = vmatpush2.msra.mxu0 %v1761
    %1998 = vmatprep.subr.mxu0 %v1759
    %1999 = vmatpush2.msra.mxu0 %v1758
    %2000 = vmatprep.subr.mxu0 %v1756
    %2001 = vmatpush2.msra.mxu0 %v1755
    %2002 = vmatprep.subr.mxu0 %v1753
    %2003 = vmatpush2.msra.mxu0 %v1752
    %2004 = vmatprep.subr.mxu0 %v1750
    %2005 = vmatpush2.msra.mxu0 %v1749
    %2006 = vmatprep.subr.mxu0 %v1747
    %2007 = vmatpush2.msra.mxu0 %v1746
    %2008 = vmatprep.subr.mxu0 %v1744
    %2009 = vmatpush2.msra.mxu0 %v1743
    %2010 = vmatprep.subr.mxu0 %v1741
    %2011 = vmatpush2.msra.mxu0 %v1740
    %2012 = vmatprep.subr.mxu0 %v1738
    %2013 = vmatpush2.msra.mxu0 %v1737
    %2014 = vmatprep.subr.mxu0 %v1735
    %2015 = vmatpush2.msra.mxu0 %v1734
    %2016 = vmatprep.subr.mxu0 %v1732
    %2017 = vmatpush2.msra.mxu0 %v1731
    %2018 = vmatprep.subr.mxu0 %v1729
    %2019 = vmatpush2.msra.mxu0 %v1728
    %2020 = vmatprep.subr.mxu0 %v1726
    %2021 = vmatpush2.msra.mxu0 %v1725
    %2022 = vmatprep.subr.mxu0 %v1723
    %2023 = vmatpush2.msra.mxu0 %v1722
    %2024 = vmatprep.subr.mxu0 %v1720
    %2025 = vmatpush2.msra.mxu0 %v1719
    %2026 = vmatprep.subr.mxu0 %v1717
    %2027 = vmatpush2.msra.mxu0 %v1716
    %2028 = vmatprep.mubr.f32.mxu0 %v1806
    %2029 = vmatmul.mubr.f32.gmra.mxu0 %v1474
    %v2030 = vpop.f32.mrf.mxu0
    %v2031 = vadd.f32 %v1960, %v2030
    %v2032 = vpop.f32.mrf.mxu0
    %v2033 = vadd.f32 %v1962, %v2032
    %2034 = vdwg.mxu0
    %2035 = vmatprep.subr.mxu0 0.0
    %2036 = vmatpush1.msra.mxu0 0.0
    %2037 = vmatprep.subr.mxu0 0.0
    %2038 = vmatpush1.msra.mxu0 0.0
    %2039 = vmatprep.subr.mxu0 0.0
    %2040 = vmatpush1.msra.mxu0 0.0
    %2041 = vmatprep.subr.mxu0 0.0
    %2042 = vmatpush1.msra.mxu0 0.0
    %2043 = vmatprep.subr.mxu0 %v1817
    %2044 = vmatpush1.msra.mxu0 %v1814
    %2045 = vmatprep.subr.mxu0 %v1795
    %2046 = vmatpush1.msra.mxu0 %v1794
    %2047 = vmatprep.subr.mxu0 %v1792
    %2048 = vmatpush1.msra.mxu0 %v1791
    %2049 = vmatprep.subr.mxu0 %v1789
    %2050 = vmatpush1.msra.mxu0 %v1788
    %2051 = vmatprep.subr.mxu0 %v1786
    %2052 = vmatpush1.msra.mxu0 %v1785
    %2053 = vmatprep.subr.mxu0 %v1783
    %2054 = vmatpush1.msra.mxu0 %v1782
    %2055 = vmatprep.subr.mxu0 %v1780
    %2056 = vmatpush1.msra.mxu0 %v1779
    %2057 = vmatprep.subr.mxu0 %v1777
    %2058 = vmatpush1.msra.mxu0 %v1776
    %2059 = vmatprep.subr.mxu0 %v1774
    %2060 = vmatpush1.msra.mxu0 %v1773
    %2061 = vmatprep.subr.mxu0 %v1771
    %2062 = vmatpush1.msra.mxu0 %v1770
    %2063 = vmatprep.subr.mxu0 %v1768
    %2064 = vmatpush1.msra.mxu0 %v1767
    %2065 = vmatprep.subr.mxu0 %v1765
    %2066 = vmatpush1.msra.mxu0 %v1764
    %2067 = vmatprep.subr.mxu0 0.0
    %2068 = vmatpush2.msra.mxu0 0.0
    %2069 = vmatprep.subr.mxu0 0.0
    %2070 = vmatpush2.msra.mxu0 0.0
    %2071 = vmatprep.subr.mxu0 0.0
    %2072 = vmatpush2.msra.mxu0 0.0
    %2073 = vmatprep.subr.mxu0 0.0
    %2074 = vmatpush2.msra.mxu0 0.0
    %2075 = vmatprep.subr.mxu0 0.0
    %2076 = vmatpush2.msra.mxu0 0.0
    %2077 = vmatprep.subr.mxu0 0.0
    %2078 = vmatpush2.msra.mxu0 0.0
    %2079 = vmatprep.subr.mxu0 0.0
    %2080 = vmatpush2.msra.mxu0 0.0
    %2081 = vmatprep.subr.mxu0 0.0
    %2082 = vmatpush2.msra.mxu0 0.0
    %2083 = vmatprep.subr.mxu0 0.0
    %2084 = vmatpush2.msra.mxu0 0.0
    %2085 = vmatprep.subr.mxu0 0.0
    %2086 = vmatpush2.msra.mxu0 0.0
    %2087 = vmatprep.subr.mxu0 0.0
    %2088 = vmatpush2.msra.mxu0 0.0
    %2089 = vmatprep.subr.mxu0 0.0
    %2090 = vmatpush2.msra.mxu0 0.0
    %2091 = vmatprep.subr.mxu0 0.0
    %2092 = vmatpush2.msra.mxu0 0.0
    %2093 = vmatprep.subr.mxu0 0.0
    %2094 = vmatpush2.msra.mxu0 0.0
    %2095 = vmatprep.subr.mxu0 0.0
    %2096 = vmatpush2.msra.mxu0 0.0
    %2097 = vmatprep.subr.mxu0 0.0
    %2098 = vmatpush2.msra.mxu0 0.0
    %2099 = vmatprep.mubr.f32.mxu0 0.0
    %2100 = vmatmul.mubr.f32.gmra.mxu0 %v1811
    %v2101 = vpop.f32.mrf.mxu0
    %v2102 = vadd.f32 %v2031, %v2101
    %v2103 = vpop.f32.mrf.mxu0
    %v2104 = vadd.f32 %v2033, %v2103
    %2105 = vdwg.mxu0
    %2106 = vmatprep.subr.mxu0 0.0
    %2107 = vmatpush1.msra.mxu0 %v1523
    %2108 = vmatprep.subr.mxu0 0.0
    %2109 = vmatpush1.msra.mxu0 %v1520
    %2110 = vmatprep.subr.mxu0 0.0
    %2111 = vmatpush1.msra.mxu0 %v1517
    %2112 = vmatprep.subr.mxu0 0.0
    %2113 = vmatpush1.msra.mxu0 %v1514
    %2114 = vmatprep.subr.mxu0 0.0
    %2115 = vmatpush1.msra.mxu0 %v1511
    %2116 = vmatprep.subr.mxu0 0.0
    %2117 = vmatpush1.msra.mxu0 %v1508
    %2118 = vmatprep.subr.mxu0 0.0
    %2119 = vmatpush1.msra.mxu0 %v1505
    %2120 = vmatprep.subr.mxu0 0.0
    %2121 = vmatpush1.msra.mxu0 %v1502
    %2122 = vmatprep.subr.mxu0 0.0
    %2123 = vmatpush1.msra.mxu0 %v1499
    %2124 = vmatprep.subr.mxu0 0.0
    %2125 = vmatpush1.msra.mxu0 %v1496
    %2126 = vmatprep.subr.mxu0 0.0
    %2127 = vmatpush1.msra.mxu0 %v1493
    %2128 = vmatprep.subr.mxu0 0.0
    %2129 = vmatpush1.msra.mxu0 %v1490
    %2130 = vmatprep.subr.mxu0 0.0
    %2131 = vmatpush1.msra.mxu0 %v1487
    %2132 = vmatprep.subr.mxu0 0.0
    %2133 = vmatpush1.msra.mxu0 %v1484
    %2134 = vmatprep.subr.mxu0 0.0
    %2135 = vmatpush1.msra.mxu0 %v1481
    %2136 = vmatprep.subr.mxu0 0.0
    %2137 = vmatpush1.msra.mxu0 %v1478
    %2138 = vmatprep.subr.mxu0 0.0
    %2139 = vmatpush2.msra.mxu0 %v1571
    %2140 = vmatprep.subr.mxu0 0.0
    %2141 = vmatpush2.msra.mxu0 %v1568
    %2142 = vmatprep.subr.mxu0 0.0
    %2143 = vmatpush2.msra.mxu0 %v1565
    %2144 = vmatprep.subr.mxu0 0.0
    %2145 = vmatpush2.msra.mxu0 %v1562
    %2146 = vmatprep.subr.mxu0 0.0
    %2147 = vmatpush2.msra.mxu0 %v1559
    %2148 = vmatprep.subr.mxu0 0.0
    %2149 = vmatpush2.msra.mxu0 %v1556
    %2150 = vmatprep.subr.mxu0 0.0
    %2151 = vmatpush2.msra.mxu0 %v1553
    %2152 = vmatprep.subr.mxu0 0.0
    %2153 = vmatpush2.msra.mxu0 %v1550
    %2154 = vmatprep.subr.mxu0 0.0
    %2155 = vmatpush2.msra.mxu0 %v1547
    %2156 = vmatprep.subr.mxu0 0.0
    %2157 = vmatpush2.msra.mxu0 %v1544
    %2158 = vmatprep.subr.mxu0 0.0
    %2159 = vmatpush2.msra.mxu0 %v1541
    %2160 = vmatprep.subr.mxu0 0.0
    %2161 = vmatpush2.msra.mxu0 %v1538
    %2162 = vmatprep.subr.mxu0 0.0
    %2163 = vmatpush2.msra.mxu0 %v1535
    %2164 = vmatprep.subr.mxu0 0.0
    %2165 = vmatpush2.msra.mxu0 %v1532
    %2166 = vmatprep.subr.mxu0 0.0
    %2167 = vmatpush2.msra.mxu0 %v1529
    %2168 = vmatprep.subr.mxu0 0.0
    %2169 = vmatpush2.msra.mxu0 %v1526
    %2170 = vmatprep.mubr.f32.mxu0 %v1804
    %2171 = vmatmul.mubr.f32.gmra.mxu0 %v1472
    %v2172 = vpop.f32.mrf.mxu0
    %v2173 = vadd.f32 0.0, %v2172
    %v2174 = vpop.f32.mrf.mxu0
    %2175 = vdwg.mxu0
    %2176 = vmatprep.subr.mxu0 0.0
    %2177 = vmatpush1.msra.mxu0 %v1619
    %2178 = vmatprep.subr.mxu0 0.0
    %2179 = vmatpush1.msra.mxu0 %v1616
    %2180 = vmatprep.subr.mxu0 0.0
    %2181 = vmatpush1.msra.mxu0 %v1613
    %2182 = vmatprep.subr.mxu0 0.0
    %2183 = vmatpush1.msra.mxu0 %v1610
    %2184 = vmatprep.subr.mxu0 0.0
    %2185 = vmatpush1.msra.mxu0 %v1607
    %2186 = vmatprep.subr.mxu0 0.0
    %2187 = vmatpush1.msra.mxu0 %v1604
    %2188 = vmatprep.subr.mxu0 0.0
    %2189 = vmatpush1.msra.mxu0 %v1601
    %2190 = vmatprep.subr.mxu0 0.0
    %2191 = vmatpush1.msra.mxu0 %v1598
    %2192 = vmatprep.subr.mxu0 0.0
    %2193 = vmatpush1.msra.mxu0 %v1595
    %2194 = vmatprep.subr.mxu0 0.0
    %2195 = vmatpush1.msra.mxu0 %v1592
    %2196 = vmatprep.subr.mxu0 0.0
    %2197 = vmatpush1.msra.mxu0 %v1589
    %2198 = vmatprep.subr.mxu0 0.0
    %2199 = vmatpush1.msra.mxu0 %v1586
    %2200 = vmatprep.subr.mxu0 0.0
    %2201 = vmatpush1.msra.mxu0 %v1583
    %2202 = vmatprep.subr.mxu0 0.0
    %2203 = vmatpush1.msra.mxu0 %v1580
    %2204 = vmatprep.subr.mxu0 0.0
    %2205 = vmatpush1.msra.mxu0 %v1577
    %2206 = vmatprep.subr.mxu0 0.0
    %2207 = vmatpush1.msra.mxu0 %v1574
    %2208 = vmatprep.subr.mxu0 0.0
    %2209 = vmatpush2.msra.mxu0 %v1667
    %2210 = vmatprep.subr.mxu0 0.0
    %2211 = vmatpush2.msra.mxu0 %v1664
    %2212 = vmatprep.subr.mxu0 0.0
    %2213 = vmatpush2.msra.mxu0 %v1661
    %2214 = vmatprep.subr.mxu0 0.0
    %2215 = vmatpush2.msra.mxu0 %v1658
    %2216 = vmatprep.subr.mxu0 0.0
    %2217 = vmatpush2.msra.mxu0 %v1655
    %2218 = vmatprep.subr.mxu0 0.0
    %2219 = vmatpush2.msra.mxu0 %v1652
    %2220 = vmatprep.subr.mxu0 0.0
    %2221 = vmatpush2.msra.mxu0 %v1649
    %2222 = vmatprep.subr.mxu0 0.0
    %2223 = vmatpush2.msra.mxu0 %v1646
    %2224 = vmatprep.subr.mxu0 0.0
    %2225 = vmatpush2.msra.mxu0 %v1643
    %2226 = vmatprep.subr.mxu0 0.0
    %2227 = vmatpush2.msra.mxu0 %v1640
    %2228 = vmatprep.subr.mxu0 0.0
    %2229 = vmatpush2.msra.mxu0 %v1637
    %2230 = vmatprep.subr.mxu0 0.0
    %2231 = vmatpush2.msra.mxu0 %v1634
    %2232 = vmatprep.subr.mxu0 0.0
    %2233 = vmatpush2.msra.mxu0 %v1631
    %2234 = vmatprep.subr.mxu0 0.0
    %2235 = vmatpush2.msra.mxu0 %v1628
    %2236 = vmatprep.subr.mxu0 0.0
    %2237 = vmatpush2.msra.mxu0 %v1625
    %2238 = vmatprep.subr.mxu0 0.0
    %2239 = vmatpush2.msra.mxu0 %v1622
    %2240 = vmatprep.mubr.f32.mxu0 %v1805
    %2241 = vmatmul.mubr.f32.gmra.mxu0 %v1473
    %v2242 = vpop.f32.mrf.mxu0
    %v2243 = vadd.f32 %v2173, %v2242
    %v2244 = vpop.f32.mrf.mxu0
    %2245 = vdwg.mxu0
    %2246 = vmatprep.subr.mxu0 0.0
    %2247 = vmatpush1.msra.mxu0 %v1715
    %2248 = vmatprep.subr.mxu0 0.0
    %2249 = vmatpush1.msra.mxu0 %v1712
    %2250 = vmatprep.subr.mxu0 0.0
    %2251 = vmatpush1.msra.mxu0 %v1709
    %2252 = vmatprep.subr.mxu0 0.0
    %2253 = vmatpush1.msra.mxu0 %v1706
    %2254 = vmatprep.subr.mxu0 0.0
    %2255 = vmatpush1.msra.mxu0 %v1703
    %2256 = vmatprep.subr.mxu0 0.0
    %2257 = vmatpush1.msra.mxu0 %v1700
    %2258 = vmatprep.subr.mxu0 0.0
    %2259 = vmatpush1.msra.mxu0 %v1697
    %2260 = vmatprep.subr.mxu0 0.0
    %2261 = vmatpush1.msra.mxu0 %v1694
    %2262 = vmatprep.subr.mxu0 0.0
    %2263 = vmatpush1.msra.mxu0 %v1691
    %2264 = vmatprep.subr.mxu0 0.0
    %2265 = vmatpush1.msra.mxu0 %v1688
    %2266 = vmatprep.subr.mxu0 0.0
    %2267 = vmatpush1.msra.mxu0 %v1685
    %2268 = vmatprep.subr.mxu0 0.0
    %2269 = vmatpush1.msra.mxu0 %v1682
    %2270 = vmatprep.subr.mxu0 0.0
    %2271 = vmatpush1.msra.mxu0 %v1679
    %2272 = vmatprep.subr.mxu0 0.0
    %2273 = vmatpush1.msra.mxu0 %v1676
    %2274 = vmatprep.subr.mxu0 0.0
    %2275 = vmatpush1.msra.mxu0 %v1673
    %2276 = vmatprep.subr.mxu0 0.0
    %2277 = vmatpush1.msra.mxu0 %v1670
    %2278 = vmatprep.subr.mxu0 0.0
    %2279 = vmatpush2.msra.mxu0 %v1763
    %2280 = vmatprep.subr.mxu0 0.0
    %2281 = vmatpush2.msra.mxu0 %v1760
    %2282 = vmatprep.subr.mxu0 0.0
    %2283 = vmatpush2.msra.mxu0 %v1757
    %2284 = vmatprep.subr.mxu0 0.0
    %2285 = vmatpush2.msra.mxu0 %v1754
    %2286 = vmatprep.subr.mxu0 0.0
    %2287 = vmatpush2.msra.mxu0 %v1751
    %2288 = vmatprep.subr.mxu0 0.0
    %2289 = vmatpush2.msra.mxu0 %v1748
    %2290 = vmatprep.subr.mxu0 0.0
    %2291 = vmatpush2.msra.mxu0 %v1745
    %2292 = vmatprep.subr.mxu0 0.0
    %2293 = vmatpush2.msra.mxu0 %v1742
    %2294 = vmatprep.subr.mxu0 0.0
    %2295 = vmatpush2.msra.mxu0 %v1739
    %2296 = vmatprep.subr.mxu0 0.0
    %2297 = vmatpush2.msra.mxu0 %v1736
    %2298 = vmatprep.subr.mxu0 0.0
    %2299 = vmatpush2.msra.mxu0 %v1733
    %2300 = vmatprep.subr.mxu0 0.0
    %2301 = vmatpush2.msra.mxu0 %v1730
    %2302 = vmatprep.subr.mxu0 0.0
    %2303 = vmatpush2.msra.mxu0 %v1727
    %2304 = vmatprep.subr.mxu0 0.0
    %2305 = vmatpush2.msra.mxu0 %v1724
    %2306 = vmatprep.subr.mxu0 0.0
    %2307 = vmatpush2.msra.mxu0 %v1721
    %2308 = vmatprep.subr.mxu0 0.0
    %2309 = vmatpush2.msra.mxu0 %v1718
    %2310 = vmatprep.mubr.f32.mxu0 %v1806
    %2311 = vmatmul.mubr.f32.gmra.mxu0 %v1474
    %v2312 = vpop.f32.mrf.mxu0
    %v2313 = vadd.f32 %v2243, %v2312
    %v2314 = vpop.f32.mrf.mxu0
    %2315 = vdwg.mxu0
    %2316 = vmatprep.subr.mxu0 0.0
    %2317 = vmatpush1.msra.mxu0 0.0
    %2318 = vmatprep.subr.mxu0 0.0
    %2319 = vmatpush1.msra.mxu0 0.0
    %2320 = vmatprep.subr.mxu0 0.0
    %2321 = vmatpush1.msra.mxu0 0.0
    %2322 = vmatprep.subr.mxu0 0.0
    %2323 = vmatpush1.msra.mxu0 0.0
    %2324 = vmatprep.subr.mxu0 0.0
    %2325 = vmatpush1.msra.mxu0 %v1820
    %2326 = vmatprep.subr.mxu0 0.0
    %2327 = vmatpush1.msra.mxu0 %v1796
    %2328 = vmatprep.subr.mxu0 0.0
    %2329 = vmatpush1.msra.mxu0 %v1793
    %2330 = vmatprep.subr.mxu0 0.0
    %2331 = vmatpush1.msra.mxu0 %v1790
    %2332 = vmatprep.subr.mxu0 0.0
    %2333 = vmatpush1.msra.mxu0 %v1787
    %2334 = vmatprep.subr.mxu0 0.0
    %2335 = vmatpush1.msra.mxu0 %v1784
    %2336 = vmatprep.subr.mxu0 0.0
    %2337 = vmatpush1.msra.mxu0 %v1781
    %2338 = vmatprep.subr.mxu0 0.0
    %2339 = vmatpush1.msra.mxu0 %v1778
    %2340 = vmatprep.subr.mxu0 0.0
    %2341 = vmatpush1.msra.mxu0 %v1775
    %2342 = vmatprep.subr.mxu0 0.0
    %2343 = vmatpush1.msra.mxu0 %v1772
    %2344 = vmatprep.subr.mxu0 0.0
    %2345 = vmatpush1.msra.mxu0 %v1769
    %2346 = vmatprep.subr.mxu0 0.0
    %2347 = vmatpush1.msra.mxu0 %v1766
    %2348 = vmatprep.subr.mxu0 0.0
    %2349 = vmatpush2.msra.mxu0 0.0
    %2350 = vmatprep.subr.mxu0 0.0
    %2351 = vmatpush2.msra.mxu0 0.0
    %2352 = vmatprep.subr.mxu0 0.0
    %2353 = vmatpush2.msra.mxu0 0.0
    %2354 = vmatprep.subr.mxu0 0.0
    %2355 = vmatpush2.msra.mxu0 0.0
    %2356 = vmatprep.subr.mxu0 0.0
    %2357 = vmatpush2.msra.mxu0 0.0
    %2358 = vmatprep.subr.mxu0 0.0
    %2359 = vmatpush2.msra.mxu0 0.0
    %2360 = vmatprep.subr.mxu0 0.0
    %2361 = vmatpush2.msra.mxu0 0.0
    %2362 = vmatprep.subr.mxu0 0.0
    %2363 = vmatpush2.msra.mxu0 0.0
    %2364 = vmatprep.subr.mxu0 0.0
    %2365 = vmatpush2.msra.mxu0 0.0
    %2366 = vmatprep.subr.mxu0 0.0
    %2367 = vmatpush2.msra.mxu0 0.0
    %2368 = vmatprep.subr.mxu0 0.0
    %2369 = vmatpush2.msra.mxu0 0.0
    %2370 = vmatprep.subr.mxu0 0.0
    %2371 = vmatpush2.msra.mxu0 0.0
    %2372 = vmatprep.subr.mxu0 0.0
    %2373 = vmatpush2.msra.mxu0 0.0
    %2374 = vmatprep.subr.mxu0 0.0
    %2375 = vmatpush2.msra.mxu0 0.0
    %2376 = vmatprep.subr.mxu0 0.0
    %2377 = vmatpush2.msra.mxu0 0.0
    %2378 = vmatprep.subr.mxu0 0.0
    %2379 = vmatpush2.msra.mxu0 0.0
    %2380 = vmatprep.mubr.f32.mxu0 0.0
    %2381 = vmatmul.mubr.f32.gmra.mxu0 %v1811
    %v2382 = vpop.f32.mrf.mxu0
    %v2383 = vadd.f32 %v2313, %v2382
    %v2384 = vpop.f32.mrf.mxu0
    %2385 = vdwg.mxu0
    %v2388 = vcombine.low %v2102, %v2104
    %2390 = vst [vmem:[#allocation3] sm:$0xff] %v2388
    %vm2391 = vcmask 551936
    %2392 = vst.msk [vmem:[#allocation3 + $0x8] sm:$0xf] %vm2391, %v2383
    %v2393 = vld [vmem:[#allocation3] sm:$0xff]
    %v2394 = vld [vmem:[#allocation3 + $0x8] sm:$0xf]
    %v2396 = vcombine.high %v2393, %v2393
    %v2398 = vcombine.low %v2393, %v2393
    %2399 = vrot.lane.b32.xlu0 %v2398, 127
    %v2400 = vpop.permute.xlu0 %2399
    %2401 = vrot.lane.b32.xlu0 %v2393, 127
    %v2402 = vpop.permute.xlu0 %2401
    %v2403 = vsel %vm93, %v2400, %v2402
    %2406 = vrot.lane.b32.xlu0 %v2393, 126
    %v2407 = vpop.permute.xlu0 %2406
    %2408 = vrot.lane.b32.xlu0 %v2396, 126
    %v2409 = vpop.permute.xlu0 %2408
    %v2410 = vsel %vm121, %v2407, %v2409
    %2413 = vrot.lane.b32.xlu0 %v2398, 125
    %v2414 = vpop.permute.xlu0 %2413
    %2415 = vrot.lane.b32.xlu0 %v2393, 125
    %v2416 = vpop.permute.xlu0 %2415
    %v2417 = vsel %vm149, %v2414, %v2416
    %2420 = vrot.lane.b32.xlu0 %v2393, 124
    %v2421 = vpop.permute.xlu0 %2420
    %2422 = vrot.lane.b32.xlu0 %v2396, 124
    %v2423 = vpop.permute.xlu0 %2422
    %v2424 = vsel %vm206, %v2421, %v2423
    %v2428 = vcombine.low %v2394, %v2394
    %2429 = vrot.lane.b32.xlu0 %v2398, 110
    %v2430 = vpop.permute.xlu0 %2429
    %2431 = vrot.lane.b32.xlu0 %v2393, 110
    %v2432 = vpop.permute.xlu0 %2431
    %2433 = vrot.lane.b32.xlu0 %v2428, 110
    %v2434 = vpop.permute.xlu0 %2433
    %vm2435 = vcmask 900096
    %v2436 = vsel %vm2435, %v2430, %v2432
    %v2437 = vsel %vm2435, %v2432, %v2434
    %2440 = vrot.lane.b32.xlu0 %v2393, 109
    %v2441 = vpop.permute.xlu0 %2440
    %2442 = vrot.lane.b32.xlu0 %v2396, 109
    %v2443 = vpop.permute.xlu0 %2442
    %2444 = vrot.lane.b32.xlu0 %v2394, 109
    %v2445 = vpop.permute.xlu0 %2444
    %vm2446 = vcmask 891904
    %v2447 = vsel %vm2446, %v2441, %v2443
    %v2448 = vsel %vm2446, %v2443, %v2445
    %2451 = vrot.lane.b32.xlu0 %v2398, 108
    %v2452 = vpop.permute.xlu0 %2451
    %2453 = vrot.lane.b32.xlu0 %v2393, 108
    %v2454 = vpop.permute.xlu0 %2453
    %2455 = vrot.lane.b32.xlu0 %v2428, 108
    %v2456 = vpop.permute.xlu0 %2455
    %vm2457 = vcmask 883712
    %v2458 = vsel %vm2457, %v2452, %v2454
    %v2459 = vsel %vm2457, %v2454, %v2456
    %2462 = vrot.lane.b32.xlu0 %v2393, 107
    %v2463 = vpop.permute.xlu0 %2462
    %2464 = vrot.lane.b32.xlu0 %v2396, 107
    %v2465 = vpop.permute.xlu0 %2464
    %2466 = vrot.lane.b32.xlu0 %v2394, 107
    %v2467 = vpop.permute.xlu0 %2466
    %vm2468 = vcmask 875520
    %v2469 = vsel %vm2468, %v2463, %v2465
    %v2470 = vsel %vm2468, %v2465, %v2467
    %2473 = vrot.lane.b32.xlu0 %v2398, 106
    %v2474 = vpop.permute.xlu0 %2473
    %2475 = vrot.lane.b32.xlu0 %v2393, 106
    %v2476 = vpop.permute.xlu0 %2475
    %2477 = vrot.lane.b32.xlu0 %v2428, 106
    %v2478 = vpop.permute.xlu0 %2477
    %vm2479 = vcmask 867328
    %v2480 = vsel %vm2479, %v2474, %v2476
    %v2481 = vsel %vm2479, %v2476, %v2478
    %2484 = vrot.lane.b32.xlu0 %v2393, 92
    %v2485 = vpop.permute.xlu0 %2484
    %2486 = vrot.lane.b32.xlu0 %v2396, 92
    %v2487 = vpop.permute.xlu0 %2486
    %2488 = vrot.lane.b32.xlu0 %v2394, 92
    %v2489 = vpop.permute.xlu0 %2488
    %v2490 = vsel %vm364, %v2485, %v2487
    %v2491 = vsel %vm364, %v2487, %v2489
    %2494 = vrot.lane.b32.xlu0 %v2398, 91
    %v2495 = vpop.permute.xlu0 %2494
    %2496 = vrot.lane.b32.xlu0 %v2393, 91
    %v2497 = vpop.permute.xlu0 %2496
    %2498 = vrot.lane.b32.xlu0 %v2428, 91
    %v2499 = vpop.permute.xlu0 %2498
    %v2500 = vsel %vm1810, %v2495, %v2497
    %v2501 = vsel %vm1810, %v2497, %v2499
    %2504 = vrot.lane.b32.xlu0 %v2393, 90
    %v2505 = vpop.permute.xlu0 %2504
    %2506 = vrot.lane.b32.xlu0 %v2396, 90
    %v2507 = vpop.permute.xlu0 %2506
    %2508 = vrot.lane.b32.xlu0 %v2394, 90
    %v2509 = vpop.permute.xlu0 %2508
    %vm2510 = vcmask 736256
    %v2511 = vsel %vm2510, %v2505, %v2507
    %v2512 = vsel %vm2510, %v2507, %v2509
    %2515 = vrot.lane.b32.xlu0 %v2398, 89
    %v2516 = vpop.permute.xlu0 %2515
    %2517 = vrot.lane.b32.xlu0 %v2393, 89
    %v2518 = vpop.permute.xlu0 %2517
    %2519 = vrot.lane.b32.xlu0 %v2428, 89
    %v2520 = vpop.permute.xlu0 %2519
    %vm2521 = vcmask 728064
    %v2522 = vsel %vm2521, %v2516, %v2518
    %v2523 = vsel %vm2521, %v2518, %v2520
    %2526 = vrot.lane.b32.xlu0 %v2393, 88
    %v2527 = vpop.permute.xlu0 %2526
    %2528 = vrot.lane.b32.xlu0 %v2396, 88
    %v2529 = vpop.permute.xlu0 %2528
    %2530 = vrot.lane.b32.xlu0 %v2394, 88
    %v2531 = vpop.permute.xlu0 %2530
    %vm2532 = vcmask 719872
    %v2533 = vsel %vm2532, %v2527, %v2529
    %v2534 = vsel %vm2532, %v2529, %v2531
    %2537 = vrot.lane.b32.xlu0 %v2398, 74
    %v2538 = vpop.permute.xlu0 %2537
    %2539 = vrot.lane.b32.xlu0 %v2393, 74
    %v2540 = vpop.permute.xlu0 %2539
    %2541 = vrot.lane.b32.xlu0 %v2428, 74
    %v2542 = vpop.permute.xlu0 %2541
    %vm2543 = vcmask 605184
    %v2544 = vsel %vm2543, %v2538, %v2540
    %v2545 = vsel %vm2543, %v2540, %v2542
    %v2548 = vsel %vm589, %v2393, %v2403
    %v2549 = vsel %vm589, %v2396, %v2402
    %v2550 = vsel %vm589, %v2410, %v2417
    %v2551 = vsel %vm589, %v2409, %v2416
    %v2552 = vsel %vm589, %v2424, %v2436
    %v2553 = vsel %vm589, %v2423, %v2437
    %v2554 = vsel %vm589, %v2447, %v2458
    %v2555 = vsel %vm589, %v2448, %v2459
    %v2556 = vsel %vm589, %v2469, %v2480
    %v2557 = vsel %vm589, %v2470, %v2481
    %v2558 = vsel %vm589, %v2490, %v2500
    %v2559 = vsel %vm589, %v2491, %v2501
    %v2560 = vsel %vm589, %v2511, %v2522
    %v2561 = vsel %vm589, %v2512, %v2523
    %v2562 = vsel %vm589, %v2533, %v2544
    %v2563 = vsel %vm589, %v2534, %v2545
    %2564 = vrot.lane.b32.xlu0 %v2428, 127
    %v2565 = vpop.permute.xlu0 %2564
    %v2566 = vsel %vm93, %v2402, %v2565
    %2569 = vrot.lane.b32.xlu0 %v2394, 126
    %v2570 = vpop.permute.xlu0 %2569
    %v2571 = vsel %vm121, %v2409, %v2570
    %2574 = vrot.lane.b32.xlu0 %v2428, 125
    %v2575 = vpop.permute.xlu0 %2574
    %v2576 = vsel %vm149, %v2416, %v2575
    %2579 = vrot.lane.b32.xlu0 %v2393, 111
    %v2580 = vpop.permute.xlu0 %2579
    %2581 = vrot.lane.b32.xlu0 %v2396, 111
    %v2582 = vpop.permute.xlu0 %2581
    %2583 = vrot.lane.b32.xlu0 %v2394, 111
    %v2584 = vpop.permute.xlu0 %2583
    %vm2585 = vcmask 908288
    %v2586 = vsel %vm2585, %v2580, %v2582
    %v2587 = vsel %vm2585, %v2582, %v2584
    %v2594 = vsel %vm589, %v2396, %v2566
    %v2595 = vsel %vm589, %v2394, %v2565
    %v2596 = vsel %vm589, %v2571, %v2576
    %v2597 = vsel %vm589, %v2570, %v2575
    %v2598 = vsel %vm589, %v2586, %v2436
    %v2599 = vsel %vm589, %v2587, %v2437
    %v2600 = vsel %vm589, %v2584, %v2434
    %v2601 = vsel %vm589, %v2445, %v2456
    %2614 = vrot.lane.b32.xlu0 %v2548, 73
    %v2615 = vpop.permute.xlu0 %2614
    %2616 = vrot.lane.b32.xlu0 %v2594, 73
    %v2617 = vpop.permute.xlu0 %2616
    %2618 = vrot.lane.b32.xlu0 %v2595, 73
    %v2619 = vpop.permute.xlu0 %2618
    %2620 = vrot.lane.b32.xlu0 %v2550, 73
    %v2621 = vpop.permute.xlu0 %2620
    %2622 = vrot.lane.b32.xlu0 %v2596, 73
    %v2623 = vpop.permute.xlu0 %2622
    %2624 = vrot.lane.b32.xlu0 %v2597, 73
    %v2625 = vpop.permute.xlu0 %2624
    %2626 = vrot.lane.b32.xlu0 %v2598, 73
    %v2627 = vpop.permute.xlu0 %2626
    %2628 = vrot.lane.b32.xlu0 %v2599, 73
    %v2629 = vpop.permute.xlu0 %2628
    %2630 = vrot.lane.b32.xlu0 %v2600, 73
    %v2631 = vpop.permute.xlu0 %2630
    %2632 = vrot.lane.b32.xlu0 %v2554, 73
    %v2633 = vpop.permute.xlu0 %2632
    %2634 = vrot.lane.b32.xlu0 %v2555, 73
    %v2635 = vpop.permute.xlu0 %2634
    %2636 = vrot.lane.b32.xlu0 %v2601, 73
    %v2637 = vpop.permute.xlu0 %2636
    %2638 = vrot.lane.b32.xlu0 %v2469, 73
    %v2639 = vpop.permute.xlu0 %2638
    %2640 = vrot.lane.b32.xlu0 %v2470, 73
    %v2641 = vpop.permute.xlu0 %2640
    %2642 = vrot.lane.b32.xlu0 %v2467, 73
    %v2643 = vpop.permute.xlu0 %2642
    %vm2644 = vcmask 596992
    %v2645 = vsel %vm2644, %v2615, %v2617
    %v2646 = vsel %vm2644, %v2617, %v2619
    %v2647 = vsel %vm2644, %v2621, %v2623
    %v2648 = vsel %vm2644, %v2623, %v2625
    %v2649 = vsel %vm2644, %v2627, %v2629
    %v2650 = vsel %vm2644, %v2629, %v2631
    %v2651 = vsel %vm2644, %v2633, %v2635
    %v2652 = vsel %vm2644, %v2635, %v2637
    %v2653 = vsel %vm2644, %v2639, %v2641
    %v2654 = vsel %vm2644, %v2641, %v2643
    %v2663 = vld [vmem:[%s3] sm:$0xff]
    %v2664 = vld [vmem:[%s4] sm:$0xff]
    %2666 = vset.pattern.permute.xlu0 0
    %2667 = vperm.xlu0 %2666, %v2664
    %v2668 = vpop.permute.xlu0 %2667
    %vm2670 = vcmask 818176
    %v2672 = vsel %vm2670, %v2663, 0
    %v2674 = vsel %vm589, %v2653, 0
    %v2676 = vsel %vm589, %v2654, 0
    %2678 = vmatprep.subr.mxu0 0.0
    %2679 = vmatpush1.msra.mxu0 0.0
    %2680 = vmatprep.subr.mxu0 0.0
    %2681 = vmatpush1.msra.mxu0 0.0
    %2682 = vmatprep.subr.mxu0 0.0
    %2683 = vmatpush1.msra.mxu0 0.0
    %2684 = vmatprep.subr.mxu0 %v2676
    %2685 = vmatpush1.msra.mxu0 %v2674
    %2686 = vmatprep.subr.mxu0 %v2652
    %2687 = vmatpush1.msra.mxu0 %v2651
    %2688 = vmatprep.subr.mxu0 %v2650
    %2689 = vmatpush1.msra.mxu0 %v2649
    %2690 = vmatprep.subr.mxu0 %v2648
    %2691 = vmatpush1.msra.mxu0 %v2647
    %2692 = vmatprep.subr.mxu0 %v2646
    %2693 = vmatpush1.msra.mxu0 %v2645
    %2694 = vmatprep.subr.mxu0 %v2563
    %2695 = vmatpush1.msra.mxu0 %v2562
    %2696 = vmatprep.subr.mxu0 %v2561
    %2697 = vmatpush1.msra.mxu0 %v2560
    %2698 = vmatprep.subr.mxu0 %v2559
    %2699 = vmatpush1.msra.mxu0 %v2558
    %2700 = vmatprep.subr.mxu0 %v2557
    %2701 = vmatpush1.msra.mxu0 %v2556
    %2702 = vmatprep.subr.mxu0 %v2555
    %2703 = vmatpush1.msra.mxu0 %v2554
    %2704 = vmatprep.subr.mxu0 %v2553
    %2705 = vmatpush1.msra.mxu0 %v2552
    %2706 = vmatprep.subr.mxu0 %v2551
    %2707 = vmatpush1.msra.mxu0 %v2550
    %2708 = vmatprep.subr.mxu0 %v2549
    %2709 = vmatpush1.msra.mxu0 %v2548
    %2710 = vmatprep.subr.mxu0 0.0
    %2711 = vmatpush2.msra.mxu0 0.0
    %2712 = vmatprep.subr.mxu0 0.0
    %2713 = vmatpush2.msra.mxu0 0.0
    %2714 = vmatprep.subr.mxu0 0.0
    %2715 = vmatpush2.msra.mxu0 0.0
    %2716 = vmatprep.subr.mxu0 0.0
    %2717 = vmatpush2.msra.mxu0 0.0
    %2718 = vmatprep.subr.mxu0 0.0
    %2719 = vmatpush2.msra.mxu0 0.0
    %2720 = vmatprep.subr.mxu0 0.0
    %2721 = vmatpush2.msra.mxu0 0.0
    %2722 = vmatprep.subr.mxu0 0.0
    %2723 = vmatpush2.msra.mxu0 0.0
    %2724 = vmatprep.subr.mxu0 0.0
    %2725 = vmatpush2.msra.mxu0 0.0
    %2726 = vmatprep.subr.mxu0 0.0
    %2727 = vmatpush2.msra.mxu0 0.0
    %2728 = vmatprep.subr.mxu0 0.0
    %2729 = vmatpush2.msra.mxu0 0.0
    %2730 = vmatprep.subr.mxu0 0.0
    %2731 = vmatpush2.msra.mxu0 0.0
    %2732 = vmatprep.subr.mxu0 0.0
    %2733 = vmatpush2.msra.mxu0 0.0
    %2734 = vmatprep.subr.mxu0 0.0
    %2735 = vmatpush2.msra.mxu0 0.0
    %2736 = vmatprep.subr.mxu0 0.0
    %2737 = vmatpush2.msra.mxu0 0.0
    %2738 = vmatprep.subr.mxu0 0.0
    %2739 = vmatpush2.msra.mxu0 0.0
    %2740 = vmatprep.subr.mxu0 0.0
    %2741 = vmatpush2.msra.mxu0 0.0
    %2742 = vmatprep.mubr.f32.mxu0 0.0
    %2743 = vmatmul.mubr.f32.gmra.mxu0 %v2672
    %v2744 = vpop.f32.mrf.mxu0
    %v2745 = vadd.f32 %v2668, %v2744
    %v2746 = vpop.f32.mrf.mxu0
    %v2747 = vadd.f32 %v2668, %v2746
    %2748 = vdwg.mxu0
    %v2749 = vmax.f32 %v2745, 0.0
    %v2750 = vmax.f32 %v2747, 0.0
    %2751 = vst [vmem:[#allocation4] sm:$0xff] %v2749
    %vm2752 = vcmask 982016
    %2753 = vst.msk [vmem:[#allocation4 + $0x8] sm:$0xff] %vm2752, %v2750
    %v2754 = vld [vmem:[#allocation4] sm:$0xff]
    %v2755 = vld [vmem:[#allocation4 + $0x8] sm:$0xff]
    %2758 = vrot.lane.b32.xlu0 %v2754, 127
    %v2759 = vpop.permute.xlu0 %2758
    %2760 = vrot.lane.b32.xlu0 %v2755, 127
    %v2761 = vpop.permute.xlu0 %2760
    %v2762 = vsel %vm93, %v2759, %v2761
    %v2765 = vmax.f32 %v2754, %v2762
    %v2766 = vmax.f32 %v2755, %v2761
    %2769 = vrot.lane.b32.xlu0 %v2765, 110
    %v2770 = vpop.permute.xlu0 %2769
    %2771 = vrot.lane.b32.xlu0 %v2766, 110
    %v2772 = vpop.permute.xlu0 %2771
    %v2773 = vsel %vm2435, %v2770, %v2772
    %v2776 = vmax.f32 %v2765, %v2773
    %v2777 = vmax.f32 %v2766, %v2772
    %v2778 = vld [vmem:[%s6] sm:$0xff]
    %v2779 = vld [vmem:[%s6 + $0x8] sm:$0xff]
    %v2780 = vld [vmem:[%s6 + $0x10] sm:$0xff]
    %v2781 = vld [vmem:[%s6 + $0x18] sm:$0xff]
    %v2782 = vld [vmem:[%s6 + $0x20] sm:$0xff]
    %v2783 = vld [vmem:[%s6 + $0x28] sm:$0xff]
    %v2784 = vld [vmem:[%s6 + $0x30] sm:$0xff]
    %v2785 = vld [vmem:[%s6 + $0x38] sm:$0xff]
    %v2786 = vld [vmem:[%s6 + $0x40] sm:$0xff]
    %v2787 = vld [vmem:[%s6 + $0x48] sm:$0xff]
    %v2788 = vld [vmem:[%s6 + $0x50] sm:$0xff]
    %v2789 = vld [vmem:[%s6 + $0x58] sm:$0xff]
    %v2790 = vld [vmem:[%s6 + $0x60] sm:$0xff]
    %v2791 = vld [vmem:[%s6 + $0x68] sm:$0xff]
    %v2792 = vld [vmem:[%s6 + $0x70] sm:$0xff]
    %v2793 = vld [vmem:[%s6 + $0x78] sm:$0xff]
    %v2794 = vld [vmem:[%s6 + $0x80] sm:$0xff]
    %v2795 = vld [vmem:[%s6 + $0x88] sm:$0xff]
    %v2796 = vld [vmem:[%s6 + $0x90] sm:$0xff]
    %v2797 = vld [vmem:[%s6 + $0x98] sm:$0xff]
    %v2798 = vld [vmem:[%s6 + $0xa0] sm:$0xff]
    %v2799 = vld [vmem:[%s6 + $0xa8] sm:$0xff]
    %v2800 = vld [vmem:[%s6 + $0xb0] sm:$0xff]
    %v2801 = vld [vmem:[%s6 + $0xb8] sm:$0xff]
    %v2802 = vld [vmem:[%s6 + $0xc0] sm:$0xff]
    %v2803 = vld [vmem:[%s6 + $0xc8] sm:$0xff]
    %v2804 = vld [vmem:[%s6 + $0xd0] sm:$0xff]
    %v2805 = vld [vmem:[%s6 + $0xd8] sm:$0xff]
    %v2806 = vld [vmem:[%s6 + $0xe0] sm:$0x1f]
    %vm2807 = vcmask 826368
    %v2809 = vsel %vm2807, %v2777, 0
    %v2812 = vsel %vm597, %v2806, 0
    %2814 = vmatprep.subr.mxu0 0.0
    %2815 = vmatpush1.msra.mxu0 %v2793
    %2816 = vmatprep.subr.mxu0 0.0
    %2817 = vmatpush1.msra.mxu0 %v2792
    %2818 = vmatprep.subr.mxu0 0.0
    %2819 = vmatpush1.msra.mxu0 %v2791
    %2820 = vmatprep.subr.mxu0 0.0
    %2821 = vmatpush1.msra.mxu0 %v2790
    %2822 = vmatprep.subr.mxu0 0.0
    %2823 = vmatpush1.msra.mxu0 %v2789
    %2824 = vmatprep.subr.mxu0 0.0
    %2825 = vmatpush1.msra.mxu0 %v2788
    %2826 = vmatprep.subr.mxu0 0.0
    %2827 = vmatpush1.msra.mxu0 %v2787
    %2828 = vmatprep.subr.mxu0 0.0
    %2829 = vmatpush1.msra.mxu0 %v2786
    %2830 = vmatprep.subr.mxu0 0.0
    %2831 = vmatpush1.msra.mxu0 %v2785
    %2832 = vmatprep.subr.mxu0 0.0
    %2833 = vmatpush1.msra.mxu0 %v2784
    %2834 = vmatprep.subr.mxu0 0.0
    %2835 = vmatpush1.msra.mxu0 %v2783
    %2836 = vmatprep.subr.mxu0 0.0
    %2837 = vmatpush1.msra.mxu0 %v2782
    %2838 = vmatprep.subr.mxu0 0.0
    %2839 = vmatpush1.msra.mxu0 %v2781
    %2840 = vmatprep.subr.mxu0 0.0
    %2841 = vmatpush1.msra.mxu0 %v2780
    %2842 = vmatprep.subr.mxu0 0.0
    %2843 = vmatpush1.msra.mxu0 %v2779
    %2844 = vmatprep.subr.mxu0 0.0
    %2845 = vmatpush1.msra.mxu0 %v2778
    %2846 = vmatprep.subr.mxu0 0.0
    %2847 = vmatpush2.msra.mxu0 0.0
    %2848 = vmatprep.subr.mxu0 0.0
    %2849 = vmatpush2.msra.mxu0 0.0
    %2850 = vmatprep.subr.mxu0 0.0
    %2851 = vmatpush2.msra.mxu0 0.0
    %2852 = vmatprep.subr.mxu0 0.0
    %2853 = vmatpush2.msra.mxu0 %v2812
    %2854 = vmatprep.subr.mxu0 0.0
    %2855 = vmatpush2.msra.mxu0 %v2805
    %2856 = vmatprep.subr.mxu0 0.0
    %2857 = vmatpush2.msra.mxu0 %v2804
    %2858 = vmatprep.subr.mxu0 0.0
    %2859 = vmatpush2.msra.mxu0 %v2803
    %2860 = vmatprep.subr.mxu0 0.0
    %2861 = vmatpush2.msra.mxu0 %v2802
    %2862 = vmatprep.subr.mxu0 0.0
    %2863 = vmatpush2.msra.mxu0 %v2801
    %2864 = vmatprep.subr.mxu0 0.0
    %2865 = vmatpush2.msra.mxu0 %v2800
    %2866 = vmatprep.subr.mxu0 0.0
    %2867 = vmatpush2.msra.mxu0 %v2799
    %2868 = vmatprep.subr.mxu0 0.0
    %2869 = vmatpush2.msra.mxu0 %v2798
    %2870 = vmatprep.subr.mxu0 0.0
    %2871 = vmatpush2.msra.mxu0 %v2797
    %2872 = vmatprep.subr.mxu0 0.0
    %2873 = vmatpush2.msra.mxu0 %v2796
    %2874 = vmatprep.subr.mxu0 0.0
    %2875 = vmatpush2.msra.mxu0 %v2795
    %2876 = vmatprep.subr.mxu0 0.0
    %2877 = vmatpush2.msra.mxu0 %v2794
    %2878 = vmatprep.mubr.f32.mxu0 %v2809
    %2879 = vmatmul.mubr.f32.gmra.mxu0 %v2776
    %v2880 = vpop.f32.mrf.mxu0
    %v2881 = vadd.f32 0.0, %v2880
    %v2882 = vpop.f32.mrf.mxu0
    %2883 = vdwg.mxu0
    %vm2884 = vcmask 400384
    %2885 = vst.msk [vmem:[#allocation5] sm:$0xff] %vm2884, %v2881
    %s2886 = scalar_lea.vmem %s0, 8
    %v2887 = vld [vmem:[%s2886] sm:$0x7f]
    %v2888 = vld [vmem:[%s2886] sm:$0xff]
    %v2889 = vld [vmem:[%s2886 + $0x1] sm:$0x7f]
    %v2890 = vld [vmem:[%s2886 + $0x1] sm:$0xff]
    %v2892 = vlaneseq
    %v2893 = vshrl.u32 %v2892, 7
    %v2894 = vsub.s32 0, %v2893
    %v2895 = vrot.slane %v2887, %v2894
    %v2896 = vlaneseq
    %v2897 = vshrl.u32 %v2896, 7
    %v2898 = vsub.s32 1, %v2897
    %v2899 = vrot.slane %v2887, %v2898
    %v2900 = vlaneseq
    %v2901 = vshrl.u32 %v2900, 7
    %v2902 = vsub.s32 2, %v2901
    %v2903 = vrot.slane %v2887, %v2902
    %v2904 = vlaneseq
    %v2905 = vshrl.u32 %v2904, 7
    %v2906 = vsub.s32 3, %v2905
    %v2907 = vrot.slane %v2887, %v2906
    %v2908 = vlaneseq
    %v2909 = vshrl.u32 %v2908, 7
    %v2910 = vsub.s32 4, %v2909
    %v2911 = vrot.slane %v2887, %v2910
    %v2912 = vlaneseq
    %v2913 = vshrl.u32 %v2912, 7
    %v2914 = vsub.s32 5, %v2913
    %v2915 = vrot.slane %v2887, %v2914
    %v2916 = vlaneseq
    %v2917 = vshrl.u32 %v2916, 7
    %v2918 = vsub.s32 6, %v2917
    %v2919 = vrot.slane %v2887, %v2918
    %2927 = vrot.lane.b32.xlu0 %v2895, 127
    %v2928 = vpop.permute.xlu0 %2927
    %2929 = vrot.lane.b32.xlu0 %v2899, 127
    %v2930 = vpop.permute.xlu0 %2929
    %2931 = vrot.lane.b32.xlu0 %v2903, 127
    %v2932 = vpop.permute.xlu0 %2931
    %2933 = vrot.lane.b32.xlu0 %v2907, 127
    %v2934 = vpop.permute.xlu0 %2933
    %2935 = vrot.lane.b32.xlu0 %v2911, 127
    %v2936 = vpop.permute.xlu0 %2935
    %2937 = vrot.lane.b32.xlu0 %v2915, 127
    %v2938 = vpop.permute.xlu0 %2937
    %2939 = vrot.lane.b32.xlu0 %v2919, 127
    %v2940 = vpop.permute.xlu0 %2939
    %v2941 = vsel %vm93, %v2928, %v2930
    %v2942 = vsel %vm93, %v2930, %v2932
    %v2943 = vsel %vm93, %v2932, %v2934
    %v2944 = vsel %vm93, %v2934, %v2936
    %v2945 = vsel %vm93, %v2936, %v2938
    %v2946 = vsel %vm93, %v2938, %v2940
    %2954 = vrot.lane.b32.xlu0 %v2895, 126
    %v2955 = vpop.permute.xlu0 %2954
    %2956 = vrot.lane.b32.xlu0 %v2899, 126
    %v2957 = vpop.permute.xlu0 %2956
    %2958 = vrot.lane.b32.xlu0 %v2903, 126
    %v2959 = vpop.permute.xlu0 %2958
    %2960 = vrot.lane.b32.xlu0 %v2907, 126
    %v2961 = vpop.permute.xlu0 %2960
    %2962 = vrot.lane.b32.xlu0 %v2911, 126
    %v2963 = vpop.permute.xlu0 %2962
    %2964 = vrot.lane.b32.xlu0 %v2915, 126
    %v2965 = vpop.permute.xlu0 %2964
    %2966 = vrot.lane.b32.xlu0 %v2919, 126
    %v2967 = vpop.permute.xlu0 %2966
    %v2968 = vsel %vm121, %v2955, %v2957
    %v2969 = vsel %vm121, %v2957, %v2959
    %v2970 = vsel %vm121, %v2959, %v2961
    %v2971 = vsel %vm121, %v2961, %v2963
    %v2972 = vsel %vm121, %v2963, %v2965
    %v2973 = vsel %vm121, %v2965, %v2967
    %2981 = vrot.lane.b32.xlu0 %v2895, 125
    %v2982 = vpop.permute.xlu0 %2981
    %2983 = vrot.lane.b32.xlu0 %v2899, 125
    %v2984 = vpop.permute.xlu0 %2983
    %2985 = vrot.lane.b32.xlu0 %v2903, 125
    %v2986 = vpop.permute.xlu0 %2985
    %2987 = vrot.lane.b32.xlu0 %v2907, 125
    %v2988 = vpop.permute.xlu0 %2987
    %2989 = vrot.lane.b32.xlu0 %v2911, 125
    %v2990 = vpop.permute.xlu0 %2989
    %2991 = vrot.lane.b32.xlu0 %v2915, 125
    %v2992 = vpop.permute.xlu0 %2991
    %2993 = vrot.lane.b32.xlu0 %v2919, 125
    %v2994 = vpop.permute.xlu0 %2993
    %v2995 = vsel %vm149, %v2982, %v2984
    %v2996 = vsel %vm149, %v2984, %v2986
    %v2997 = vsel %vm149, %v2986, %v2988
    %v2998 = vsel %vm149, %v2988, %v2990
    %v2999 = vsel %vm149, %v2990, %v2992
    %v3000 = vsel %vm149, %v2992, %v2994
    %v3009 = vlaneseq
    %v3010 = vshrl.u32 %v3009, 7
    %v3011 = vsub.s32 0, %v3010
    %v3012 = vrot.slane %v2888, %v3011
    %v3013 = vlaneseq
    %v3014 = vshrl.u32 %v3013, 7
    %v3015 = vsub.s32 1, %v3014
    %v3016 = vrot.slane %v2888, %v3015
    %v3017 = vlaneseq
    %v3018 = vshrl.u32 %v3017, 7
    %v3019 = vsub.s32 2, %v3018
    %v3020 = vrot.slane %v2888, %v3019
    %v3021 = vlaneseq
    %v3022 = vshrl.u32 %v3021, 7
    %v3023 = vsub.s32 3, %v3022
    %v3024 = vrot.slane %v2888, %v3023
    %v3025 = vlaneseq
    %v3026 = vshrl.u32 %v3025, 7
    %v3027 = vsub.s32 4, %v3026
    %v3028 = vrot.slane %v2888, %v3027
    %v3029 = vlaneseq
    %v3030 = vshrl.u32 %v3029, 7
    %v3031 = vsub.s32 5, %v3030
    %v3032 = vrot.slane %v2888, %v3031
    %v3033 = vlaneseq
    %v3034 = vshrl.u32 %v3033, 7
    %v3035 = vsub.s32 6, %v3034
    %v3036 = vrot.slane %v2888, %v3035
    %3037 = vrot.lane.b32.xlu0 %v3012, 124
    %v3038 = vpop.permute.xlu0 %3037
    %3039 = vrot.lane.b32.xlu0 %v3016, 124
    %v3040 = vpop.permute.xlu0 %3039
    %3041 = vrot.lane.b32.xlu0 %v3020, 124
    %v3042 = vpop.permute.xlu0 %3041
    %3043 = vrot.lane.b32.xlu0 %v3024, 124
    %v3044 = vpop.permute.xlu0 %3043
    %3045 = vrot.lane.b32.xlu0 %v3028, 124
    %v3046 = vpop.permute.xlu0 %3045
    %3047 = vrot.lane.b32.xlu0 %v3032, 124
    %v3048 = vpop.permute.xlu0 %3047
    %3049 = vrot.lane.b32.xlu0 %v3036, 124
    %v3050 = vpop.permute.xlu0 %3049
    %v3051 = vsel %vm206, %v3038, %v3040
    %v3052 = vsel %vm206, %v3040, %v3042
    %v3053 = vsel %vm206, %v3042, %v3044
    %v3054 = vsel %vm206, %v3044, %v3046
    %v3055 = vsel %vm206, %v3046, %v3048
    %v3056 = vsel %vm206, %v3048, %v3050
    %v3064 = vlaneseq
    %v3065 = vshrl.u32 %v3064, 7
    %v3066 = vsub.s32 7, %v3065
    %v3067 = vrot.slane %v2888, %v3066
    %3068 = vrot.lane.b32.xlu0 %v3012, 96
    %v3069 = vpop.permute.xlu0 %3068
    %3070 = vrot.lane.b32.xlu0 %v3016, 96
    %v3071 = vpop.permute.xlu0 %3070
    %3072 = vrot.lane.b32.xlu0 %v3020, 96
    %v3073 = vpop.permute.xlu0 %3072
    %3074 = vrot.lane.b32.xlu0 %v3024, 96
    %v3075 = vpop.permute.xlu0 %3074
    %3076 = vrot.lane.b32.xlu0 %v3028, 96
    %v3077 = vpop.permute.xlu0 %3076
    %3078 = vrot.lane.b32.xlu0 %v3032, 96
    %v3079 = vpop.permute.xlu0 %3078
    %3080 = vrot.lane.b32.xlu0 %v3036, 96
    %v3081 = vpop.permute.xlu0 %3080
    %3082 = vrot.lane.b32.xlu0 %v3067, 96
    %v3083 = vpop.permute.xlu0 %3082
    %v3084 = vsel %vm240, %v3069, %v3071
    %v3085 = vsel %vm240, %v3071, %v3073
    %v3086 = vsel %vm240, %v3073, %v3075
    %v3087 = vsel %vm240, %v3075, %v3077
    %v3088 = vsel %vm240, %v3077, %v3079
    %v3089 = vsel %vm240, %v3079, %v3081
    %v3090 = vsel %vm240, %v3081, %v3083
    %3098 = vrot.lane.b32.xlu0 %v3012, 95
    %v3099 = vpop.permute.xlu0 %3098
    %3100 = vrot.lane.b32.xlu0 %v3016, 95
    %v3101 = vpop.permute.xlu0 %3100
    %3102 = vrot.lane.b32.xlu0 %v3020, 95
    %v3103 = vpop.permute.xlu0 %3102
    %3104 = vrot.lane.b32.xlu0 %v3024, 95
    %v3105 = vpop.permute.xlu0 %3104
    %3106 = vrot.lane.b32.xlu0 %v3028, 95
    %v3107 = vpop.permute.xlu0 %3106
    %3108 = vrot.lane.b32.xlu0 %v3032, 95
    %v3109 = vpop.permute.xlu0 %3108
    %3110 = vrot.lane.b32.xlu0 %v3036, 95
    %v3111 = vpop.permute.xlu0 %3110
    %3112 = vrot.lane.b32.xlu0 %v3067, 95
    %v3113 = vpop.permute.xlu0 %3112
    %v3114 = vsel %vm271, %v3099, %v3101
    %v3115 = vsel %vm271, %v3101, %v3103
    %v3116 = vsel %vm271, %v3103, %v3105
    %v3117 = vsel %vm271, %v3105, %v3107
    %v3118 = vsel %vm271, %v3107, %v3109
    %v3119 = vsel %vm271, %v3109, %v3111
    %v3120 = vsel %vm271, %v3111, %v3113
    %3128 = vrot.lane.b32.xlu0 %v3012, 94
    %v3129 = vpop.permute.xlu0 %3128
    %3130 = vrot.lane.b32.xlu0 %v3016, 94
    %v3131 = vpop.permute.xlu0 %3130
    %3132 = vrot.lane.b32.xlu0 %v3020, 94
    %v3133 = vpop.permute.xlu0 %3132
    %3134 = vrot.lane.b32.xlu0 %v3024, 94
    %v3135 = vpop.permute.xlu0 %3134
    %3136 = vrot.lane.b32.xlu0 %v3028, 94
    %v3137 = vpop.permute.xlu0 %3136
    %3138 = vrot.lane.b32.xlu0 %v3032, 94
    %v3139 = vpop.permute.xlu0 %3138
    %3140 = vrot.lane.b32.xlu0 %v3036, 94
    %v3141 = vpop.permute.xlu0 %3140
    %3142 = vrot.lane.b32.xlu0 %v3067, 94
    %v3143 = vpop.permute.xlu0 %3142
    %v3144 = vsel %vm302, %v3129, %v3131
    %v3145 = vsel %vm302, %v3131, %v3133
    %v3146 = vsel %vm302, %v3133, %v3135
    %v3147 = vsel %vm302, %v3135, %v3137
    %v3148 = vsel %vm302, %v3137, %v3139
    %v3149 = vsel %vm302, %v3139, %v3141
    %v3150 = vsel %vm302, %v3141, %v3143
    %3158 = vrot.lane.b32.xlu0 %v3012, 93
    %v3159 = vpop.permute.xlu0 %3158
    %3160 = vrot.lane.b32.xlu0 %v3016, 93
    %v3161 = vpop.permute.xlu0 %3160
    %3162 = vrot.lane.b32.xlu0 %v3020, 93
    %v3163 = vpop.permute.xlu0 %3162
    %3164 = vrot.lane.b32.xlu0 %v3024, 93
    %v3165 = vpop.permute.xlu0 %3164
    %3166 = vrot.lane.b32.xlu0 %v3028, 93
    %v3167 = vpop.permute.xlu0 %3166
    %3168 = vrot.lane.b32.xlu0 %v3032, 93
    %v3169 = vpop.permute.xlu0 %3168
    %3170 = vrot.lane.b32.xlu0 %v3036, 93
    %v3171 = vpop.permute.xlu0 %3170
    %3172 = vrot.lane.b32.xlu0 %v3067, 93
    %v3173 = vpop.permute.xlu0 %3172
    %v3174 = vsel %vm333, %v3159, %v3161
    %v3175 = vsel %vm333, %v3161, %v3163
    %v3176 = vsel %vm333, %v3163, %v3165
    %v3177 = vsel %vm333, %v3165, %v3167
    %v3178 = vsel %vm333, %v3167, %v3169
    %v3179 = vsel %vm333, %v3169, %v3171
    %v3180 = vsel %vm333, %v3171, %v3173
    %3188 = vrot.lane.b32.xlu0 %v3012, 92
    %v3189 = vpop.permute.xlu0 %3188
    %3190 = vrot.lane.b32.xlu0 %v3016, 92
    %v3191 = vpop.permute.xlu0 %3190
    %3192 = vrot.lane.b32.xlu0 %v3020, 92
    %v3193 = vpop.permute.xlu0 %3192
    %3194 = vrot.lane.b32.xlu0 %v3024, 92
    %v3195 = vpop.permute.xlu0 %3194
    %3196 = vrot.lane.b32.xlu0 %v3028, 92
    %v3197 = vpop.permute.xlu0 %3196
    %3198 = vrot.lane.b32.xlu0 %v3032, 92
    %v3199 = vpop.permute.xlu0 %3198
    %3200 = vrot.lane.b32.xlu0 %v3036, 92
    %v3201 = vpop.permute.xlu0 %3200
    %3202 = vrot.lane.b32.xlu0 %v3067, 92
    %v3203 = vpop.permute.xlu0 %3202
    %v3204 = vsel %vm364, %v3189, %v3191
    %v3205 = vsel %vm364, %v3191, %v3193
    %v3206 = vsel %vm364, %v3193, %v3195
    %v3207 = vsel %vm364, %v3195, %v3197
    %v3208 = vsel %vm364, %v3197, %v3199
    %v3209 = vsel %vm364, %v3199, %v3201
    %v3210 = vsel %vm364, %v3201, %v3203
    %3218 = vrot.lane.b32.xlu0 %v3012, 64
    %v3219 = vpop.permute.xlu0 %3218
    %3220 = vrot.lane.b32.xlu0 %v3016, 64
    %v3221 = vpop.permute.xlu0 %3220
    %3222 = vrot.lane.b32.xlu0 %v3020, 64
    %v3223 = vpop.permute.xlu0 %3222
    %3224 = vrot.lane.b32.xlu0 %v3024, 64
    %v3225 = vpop.permute.xlu0 %3224
    %3226 = vrot.lane.b32.xlu0 %v3028, 64
    %v3227 = vpop.permute.xlu0 %3226
    %3228 = vrot.lane.b32.xlu0 %v3032, 64
    %v3229 = vpop.permute.xlu0 %3228
    %3230 = vrot.lane.b32.xlu0 %v3036, 64
    %v3231 = vpop.permute.xlu0 %3230
    %3232 = vrot.lane.b32.xlu0 %v3067, 64
    %v3233 = vpop.permute.xlu0 %3232
    %v3234 = vsel %vm395, %v3219, %v3221
    %v3235 = vsel %vm395, %v3221, %v3223
    %v3236 = vsel %vm395, %v3223, %v3225
    %v3237 = vsel %vm395, %v3225, %v3227
    %v3238 = vsel %vm395, %v3227, %v3229
    %v3239 = vsel %vm395, %v3229, %v3231
    %v3240 = vsel %vm395, %v3231, %v3233
    %3248 = vrot.lane.b32.xlu0 %v3012, 63
    %v3249 = vpop.permute.xlu0 %3248
    %3250 = vrot.lane.b32.xlu0 %v3016, 63
    %v3251 = vpop.permute.xlu0 %3250
    %3252 = vrot.lane.b32.xlu0 %v3020, 63
    %v3253 = vpop.permute.xlu0 %3252
    %3254 = vrot.lane.b32.xlu0 %v3024, 63
    %v3255 = vpop.permute.xlu0 %3254
    %3256 = vrot.lane.b32.xlu0 %v3028, 63
    %v3257 = vpop.permute.xlu0 %3256
    %3258 = vrot.lane.b32.xlu0 %v3032, 63
    %v3259 = vpop.permute.xlu0 %3258
    %3260 = vrot.lane.b32.xlu0 %v3036, 63
    %v3261 = vpop.permute.xlu0 %3260
    %3262 = vrot.lane.b32.xlu0 %v3067, 63
    %v3263 = vpop.permute.xlu0 %3262
    %v3264 = vsel %vm426, %v3249, %v3251
    %v3265 = vsel %vm426, %v3251, %v3253
    %v3266 = vsel %vm426, %v3253, %v3255
    %v3267 = vsel %vm426, %v3255, %v3257
    %v3268 = vsel %vm426, %v3257, %v3259
    %v3269 = vsel %vm426, %v3259, %v3261
    %v3270 = vsel %vm426, %v3261, %v3263
    %3278 = vrot.lane.b32.xlu0 %v3012, 62
    %v3279 = vpop.permute.xlu0 %3278
    %3280 = vrot.lane.b32.xlu0 %v3016, 62
    %v3281 = vpop.permute.xlu0 %3280
    %3282 = vrot.lane.b32.xlu0 %v3020, 62
    %v3283 = vpop.permute.xlu0 %3282
    %3284 = vrot.lane.b32.xlu0 %v3024, 62
    %v3285 = vpop.permute.xlu0 %3284
    %3286 = vrot.lane.b32.xlu0 %v3028, 62
    %v3287 = vpop.permute.xlu0 %3286
    %3288 = vrot.lane.b32.xlu0 %v3032, 62
    %v3289 = vpop.permute.xlu0 %3288
    %3290 = vrot.lane.b32.xlu0 %v3036, 62
    %v3291 = vpop.permute.xlu0 %3290
    %3292 = vrot.lane.b32.xlu0 %v3067, 62
    %v3293 = vpop.permute.xlu0 %3292
    %v3294 = vsel %vm457, %v3279, %v3281
    %v3295 = vsel %vm457, %v3281, %v3283
    %v3296 = vsel %vm457, %v3283, %v3285
    %v3297 = vsel %vm457, %v3285, %v3287
    %v3298 = vsel %vm457, %v3287, %v3289
    %v3299 = vsel %vm457, %v3289, %v3291
    %v3300 = vsel %vm457, %v3291, %v3293
    %3308 = vrot.lane.b32.xlu0 %v3012, 61
    %v3309 = vpop.permute.xlu0 %3308
    %3310 = vrot.lane.b32.xlu0 %v3016, 61
    %v3311 = vpop.permute.xlu0 %3310
    %3312 = vrot.lane.b32.xlu0 %v3020, 61
    %v3313 = vpop.permute.xlu0 %3312
    %3314 = vrot.lane.b32.xlu0 %v3024, 61
    %v3315 = vpop.permute.xlu0 %3314
    %3316 = vrot.lane.b32.xlu0 %v3028, 61
    %v3317 = vpop.permute.xlu0 %3316
    %3318 = vrot.lane.b32.xlu0 %v3032, 61
    %v3319 = vpop.permute.xlu0 %3318
    %3320 = vrot.lane.b32.xlu0 %v3036, 61
    %v3321 = vpop.permute.xlu0 %3320
    %3322 = vrot.lane.b32.xlu0 %v3067, 61
    %v3323 = vpop.permute.xlu0 %3322
    %v3324 = vsel %vm488, %v3309, %v3311
    %v3325 = vsel %vm488, %v3311, %v3313
    %v3326 = vsel %vm488, %v3313, %v3315
    %v3327 = vsel %vm488, %v3315, %v3317
    %v3328 = vsel %vm488, %v3317, %v3319
    %v3329 = vsel %vm488, %v3319, %v3321
    %v3330 = vsel %vm488, %v3321, %v3323
    %3338 = vrot.lane.b32.xlu0 %v3012, 60
    %v3339 = vpop.permute.xlu0 %3338
    %3340 = vrot.lane.b32.xlu0 %v3016, 60
    %v3341 = vpop.permute.xlu0 %3340
    %3342 = vrot.lane.b32.xlu0 %v3020, 60
    %v3343 = vpop.permute.xlu0 %3342
    %3344 = vrot.lane.b32.xlu0 %v3024, 60
    %v3345 = vpop.permute.xlu0 %3344
    %3346 = vrot.lane.b32.xlu0 %v3028, 60
    %v3347 = vpop.permute.xlu0 %3346
    %3348 = vrot.lane.b32.xlu0 %v3032, 60
    %v3349 = vpop.permute.xlu0 %3348
    %3350 = vrot.lane.b32.xlu0 %v3036, 60
    %v3351 = vpop.permute.xlu0 %3350
    %3352 = vrot.lane.b32.xlu0 %v3067, 60
    %v3353 = vpop.permute.xlu0 %3352
    %v3354 = vsel %vm519, %v3339, %v3341
    %v3355 = vsel %vm519, %v3341, %v3343
    %v3356 = vsel %vm519, %v3343, %v3345
    %v3357 = vsel %vm519, %v3345, %v3347
    %v3358 = vsel %vm519, %v3347, %v3349
    %v3359 = vsel %vm519, %v3349, %v3351
    %v3360 = vsel %vm519, %v3351, %v3353
    %3368 = vrot.lane.b32.xlu0 %v3012, 32
    %v3369 = vpop.permute.xlu0 %3368
    %3370 = vrot.lane.b32.xlu0 %v3016, 32
    %v3371 = vpop.permute.xlu0 %3370
    %3372 = vrot.lane.b32.xlu0 %v3020, 32
    %v3373 = vpop.permute.xlu0 %3372
    %3374 = vrot.lane.b32.xlu0 %v3024, 32
    %v3375 = vpop.permute.xlu0 %3374
    %3376 = vrot.lane.b32.xlu0 %v3028, 32
    %v3377 = vpop.permute.xlu0 %3376
    %3378 = vrot.lane.b32.xlu0 %v3032, 32
    %v3379 = vpop.permute.xlu0 %3378
    %3380 = vrot.lane.b32.xlu0 %v3036, 32
    %v3381 = vpop.permute.xlu0 %3380
    %3382 = vrot.lane.b32.xlu0 %v3067, 32
    %v3383 = vpop.permute.xlu0 %3382
    %v3384 = vsel %vm550, %v3369, %v3371
    %v3385 = vsel %vm550, %v3371, %v3373
    %v3386 = vsel %vm550, %v3373, %v3375
    %v3387 = vsel %vm550, %v3375, %v3377
    %v3388 = vsel %vm550, %v3377, %v3379
    %v3389 = vsel %vm550, %v3379, %v3381
    %v3390 = vsel %vm550, %v3381, %v3383
    %v3398 = vsel %vm565, %v2895, %v2941
    %v3399 = vsel %vm565, %v2899, %v2942
    %v3400 = vsel %vm565, %v2903, %v2943
    %v3401 = vsel %vm565, %v2907, %v2944
    %v3402 = vsel %vm565, %v2911, %v2945
    %v3403 = vsel %vm565, %v2915, %v2946
    %v3404 = vsel %vm565, %v2919, %v2940
    %v3405 = vsel %vm573, %v3398, %v2968
    %v3406 = vsel %vm573, %v3399, %v2969
    %v3407 = vsel %vm573, %v3400, %v2970
    %v3408 = vsel %vm573, %v3401, %v2971
    %v3409 = vsel %vm573, %v3402, %v2972
    %v3410 = vsel %vm573, %v3403, %v2973
    %v3411 = vsel %vm573, %v3404, %v2967
    %v3412 = vsel %vm581, %v3405, %v2995
    %v3413 = vsel %vm581, %v3406, %v2996
    %v3414 = vsel %vm581, %v3407, %v2997
    %v3415 = vsel %vm581, %v3408, %v2998
    %v3416 = vsel %vm581, %v3409, %v2999
    %v3417 = vsel %vm581, %v3410, %v3000
    %v3418 = vsel %vm581, %v3411, %v2994
    %v3419 = vsel %vm589, %v3412, %v3051
    %v3420 = vsel %vm589, %v3413, %v3052
    %v3421 = vsel %vm589, %v3414, %v3053
    %v3422 = vsel %vm589, %v3415, %v3054
    %v3423 = vsel %vm589, %v3416, %v3055
    %v3424 = vsel %vm589, %v3417, %v3056
    %v3425 = vsel %vm589, %v3418, %v3050
    %v3426 = vsel %vm597, %v3419, %v3084
    %v3427 = vsel %vm597, %v3420, %v3085
    %v3428 = vsel %vm597, %v3421, %v3086
    %v3429 = vsel %vm597, %v3422, %v3087
    %v3430 = vsel %vm597, %v3423, %v3088
    %v3431 = vsel %vm597, %v3424, %v3089
    %v3432 = vsel %vm597, %v3425, %v3090
    %v3433 = vsel %vm605, %v3426, %v3114
    %v3434 = vsel %vm605, %v3427, %v3115
    %v3435 = vsel %vm605, %v3428, %v3116
    %v3436 = vsel %vm605, %v3429, %v3117
    %v3437 = vsel %vm605, %v3430, %v3118
    %v3438 = vsel %vm605, %v3431, %v3119
    %v3439 = vsel %vm605, %v3432, %v3120
    %v3440 = vsel %vm613, %v3433, %v3144
    %v3441 = vsel %vm613, %v3434, %v3145
    %v3442 = vsel %vm613, %v3435, %v3146
    %v3443 = vsel %vm613, %v3436, %v3147
    %v3444 = vsel %vm613, %v3437, %v3148
    %v3445 = vsel %vm613, %v3438, %v3149
    %v3446 = vsel %vm613, %v3439, %v3150
    %v3447 = vsel %vm565, %v3174, %v3204
    %v3448 = vsel %vm565, %v3175, %v3205
    %v3449 = vsel %vm565, %v3176, %v3206
    %v3450 = vsel %vm565, %v3177, %v3207
    %v3451 = vsel %vm565, %v3178, %v3208
    %v3452 = vsel %vm565, %v3179, %v3209
    %v3453 = vsel %vm565, %v3180, %v3210
    %v3454 = vsel %vm573, %v3447, %v3234
    %v3455 = vsel %vm573, %v3448, %v3235
    %v3456 = vsel %vm573, %v3449, %v3236
    %v3457 = vsel %vm573, %v3450, %v3237
    %v3458 = vsel %vm573, %v3451, %v3238
    %v3459 = vsel %vm573, %v3452, %v3239
    %v3460 = vsel %vm573, %v3453, %v3240
    %v3461 = vsel %vm581, %v3454, %v3264
    %v3462 = vsel %vm581, %v3455, %v3265
    %v3463 = vsel %vm581, %v3456, %v3266
    %v3464 = vsel %vm581, %v3457, %v3267
    %v3465 = vsel %vm581, %v3458, %v3268
    %v3466 = vsel %vm581, %v3459, %v3269
    %v3467 = vsel %vm581, %v3460, %v3270
    %v3468 = vsel %vm589, %v3461, %v3294
    %v3469 = vsel %vm589, %v3462, %v3295
    %v3470 = vsel %vm589, %v3463, %v3296
    %v3471 = vsel %vm589, %v3464, %v3297
    %v3472 = vsel %vm589, %v3465, %v3298
    %v3473 = vsel %vm589, %v3466, %v3299
    %v3474 = vsel %vm589, %v3467, %v3300
    %v3475 = vsel %vm597, %v3468, %v3324
    %v3476 = vsel %vm597, %v3469, %v3325
    %v3477 = vsel %vm597, %v3470, %v3326
    %v3478 = vsel %vm597, %v3471, %v3327
    %v3479 = vsel %vm597, %v3472, %v3328
    %v3480 = vsel %vm597, %v3473, %v3329
    %v3481 = vsel %vm597, %v3474, %v3330
    %v3482 = vsel %vm605, %v3475, %v3354
    %v3483 = vsel %vm605, %v3476, %v3355
    %v3484 = vsel %vm605, %v3477, %v3356
    %v3485 = vsel %vm605, %v3478, %v3357
    %v3486 = vsel %vm605, %v3479, %v3358
    %v3487 = vsel %vm605, %v3480, %v3359
    %v3488 = vsel %vm605, %v3481, %v3360
    %v3489 = vsel %vm613, %v3482, %v3384
    %v3490 = vsel %vm613, %v3483, %v3385
    %v3491 = vsel %vm613, %v3484, %v3386
    %v3492 = vsel %vm613, %v3485, %v3387
    %v3493 = vsel %vm613, %v3486, %v3388
    %v3494 = vsel %vm613, %v3487, %v3389
    %v3495 = vsel %vm613, %v3488, %v3390
    %3504 = vrot.lane.b32.xlu0 %v3012, 127
    %v3505 = vpop.permute.xlu0 %3504
    %3506 = vrot.lane.b32.xlu0 %v3016, 127
    %v3507 = vpop.permute.xlu0 %3506
    %3508 = vrot.lane.b32.xlu0 %v3020, 127
    %v3509 = vpop.permute.xlu0 %3508
    %3510 = vrot.lane.b32.xlu0 %v3024, 127
    %v3511 = vpop.permute.xlu0 %3510
    %3512 = vrot.lane.b32.xlu0 %v3028, 127
    %v3513 = vpop.permute.xlu0 %3512
    %3514 = vrot.lane.b32.xlu0 %v3032, 127
    %v3515 = vpop.permute.xlu0 %3514
    %3516 = vrot.lane.b32.xlu0 %v3036, 127
    %v3517 = vpop.permute.xlu0 %3516
    %3518 = vrot.lane.b32.xlu0 %v3067, 127
    %v3519 = vpop.permute.xlu0 %3518
    %v3520 = vsel %vm93, %v3505, %v3507
    %v3521 = vsel %vm93, %v3507, %v3509
    %v3522 = vsel %vm93, %v3509, %v3511
    %v3523 = vsel %vm93, %v3511, %v3513
    %v3524 = vsel %vm93, %v3513, %v3515
    %v3525 = vsel %vm93, %v3515, %v3517
    %v3526 = vsel %vm93, %v3517, %v3519
    %3535 = vrot.lane.b32.xlu0 %v3012, 126
    %v3536 = vpop.permute.xlu0 %3535
    %3537 = vrot.lane.b32.xlu0 %v3016, 126
    %v3538 = vpop.permute.xlu0 %3537
    %3539 = vrot.lane.b32.xlu0 %v3020, 126
    %v3540 = vpop.permute.xlu0 %3539
    %3541 = vrot.lane.b32.xlu0 %v3024, 126
    %v3542 = vpop.permute.xlu0 %3541
    %3543 = vrot.lane.b32.xlu0 %v3028, 126
    %v3544 = vpop.permute.xlu0 %3543
    %3545 = vrot.lane.b32.xlu0 %v3032, 126
    %v3546 = vpop.permute.xlu0 %3545
    %3547 = vrot.lane.b32.xlu0 %v3036, 126
    %v3548 = vpop.permute.xlu0 %3547
    %3549 = vrot.lane.b32.xlu0 %v3067, 126
    %v3550 = vpop.permute.xlu0 %3549
    %v3551 = vsel %vm121, %v3536, %v3538
    %v3552 = vsel %vm121, %v3538, %v3540
    %v3553 = vsel %vm121, %v3540, %v3542
    %v3554 = vsel %vm121, %v3542, %v3544
    %v3555 = vsel %vm121, %v3544, %v3546
    %v3556 = vsel %vm121, %v3546, %v3548
    %v3557 = vsel %vm121, %v3548, %v3550
    %3566 = vrot.lane.b32.xlu0 %v3012, 125
    %v3567 = vpop.permute.xlu0 %3566
    %3568 = vrot.lane.b32.xlu0 %v3016, 125
    %v3569 = vpop.permute.xlu0 %3568
    %3570 = vrot.lane.b32.xlu0 %v3020, 125
    %v3571 = vpop.permute.xlu0 %3570
    %3572 = vrot.lane.b32.xlu0 %v3024, 125
    %v3573 = vpop.permute.xlu0 %3572
    %3574 = vrot.lane.b32.xlu0 %v3028, 125
    %v3575 = vpop.permute.xlu0 %3574
    %3576 = vrot.lane.b32.xlu0 %v3032, 125
    %v3577 = vpop.permute.xlu0 %3576
    %3578 = vrot.lane.b32.xlu0 %v3036, 125
    %v3579 = vpop.permute.xlu0 %3578
    %3580 = vrot.lane.b32.xlu0 %v3067, 125
    %v3581 = vpop.permute.xlu0 %3580
    %v3582 = vsel %vm149, %v3567, %v3569
    %v3583 = vsel %vm149, %v3569, %v3571
    %v3584 = vsel %vm149, %v3571, %v3573
    %v3585 = vsel %vm149, %v3573, %v3575
    %v3586 = vsel %vm149, %v3575, %v3577
    %v3587 = vsel %vm149, %v3577, %v3579
    %v3588 = vsel %vm149, %v3579, %v3581
    %v3598 = vlaneseq
    %v3599 = vshrl.u32 %v3598, 7
    %v3600 = vsub.s32 0, %v3599
    %v3601 = vrot.slane %v2889, %v3600
    %v3602 = vlaneseq
    %v3603 = vshrl.u32 %v3602, 7
    %v3604 = vsub.s32 1, %v3603
    %v3605 = vrot.slane %v2889, %v3604
    %v3606 = vlaneseq
    %v3607 = vshrl.u32 %v3606, 7
    %v3608 = vsub.s32 2, %v3607
    %v3609 = vrot.slane %v2889, %v3608
    %v3610 = vlaneseq
    %v3611 = vshrl.u32 %v3610, 7
    %v3612 = vsub.s32 3, %v3611
    %v3613 = vrot.slane %v2889, %v3612
    %v3614 = vlaneseq
    %v3615 = vshrl.u32 %v3614, 7
    %v3616 = vsub.s32 4, %v3615
    %v3617 = vrot.slane %v2889, %v3616
    %v3618 = vlaneseq
    %v3619 = vshrl.u32 %v3618, 7
    %v3620 = vsub.s32 5, %v3619
    %v3621 = vrot.slane %v2889, %v3620
    %v3622 = vlaneseq
    %v3623 = vshrl.u32 %v3622, 7
    %v3624 = vsub.s32 6, %v3623
    %v3625 = vrot.slane %v2889, %v3624
    %3626 = vrot.lane.b32.xlu0 %v3601, 97
    %v3627 = vpop.permute.xlu0 %3626
    %3628 = vrot.lane.b32.xlu0 %v3605, 97
    %v3629 = vpop.permute.xlu0 %3628
    %3630 = vrot.lane.b32.xlu0 %v3609, 97
    %v3631 = vpop.permute.xlu0 %3630
    %3632 = vrot.lane.b32.xlu0 %v3613, 97
    %v3633 = vpop.permute.xlu0 %3632
    %3634 = vrot.lane.b32.xlu0 %v3617, 97
    %v3635 = vpop.permute.xlu0 %3634
    %3636 = vrot.lane.b32.xlu0 %v3621, 97
    %v3637 = vpop.permute.xlu0 %3636
    %3638 = vrot.lane.b32.xlu0 %v3625, 97
    %v3639 = vpop.permute.xlu0 %3638
    %v3640 = vsel %vm814, %v3627, %v3629
    %v3641 = vsel %vm814, %v3629, %v3631
    %v3642 = vsel %vm814, %v3631, %v3633
    %v3643 = vsel %vm814, %v3633, %v3635
    %v3644 = vsel %vm814, %v3635, %v3637
    %v3645 = vsel %vm814, %v3637, %v3639
    %3654 = vrot.lane.b32.xlu0 %v3601, 96
    %v3655 = vpop.permute.xlu0 %3654
    %3656 = vrot.lane.b32.xlu0 %v3605, 96
    %v3657 = vpop.permute.xlu0 %3656
    %3658 = vrot.lane.b32.xlu0 %v3609, 96
    %v3659 = vpop.permute.xlu0 %3658
    %3660 = vrot.lane.b32.xlu0 %v3613, 96
    %v3661 = vpop.permute.xlu0 %3660
    %3662 = vrot.lane.b32.xlu0 %v3617, 96
    %v3663 = vpop.permute.xlu0 %3662
    %3664 = vrot.lane.b32.xlu0 %v3621, 96
    %v3665 = vpop.permute.xlu0 %3664
    %3666 = vrot.lane.b32.xlu0 %v3625, 96
    %v3667 = vpop.permute.xlu0 %3666
    %v3668 = vsel %vm240, %v3655, %v3657
    %v3669 = vsel %vm240, %v3657, %v3659
    %v3670 = vsel %vm240, %v3659, %v3661
    %v3671 = vsel %vm240, %v3661, %v3663
    %v3672 = vsel %vm240, %v3663, %v3665
    %v3673 = vsel %vm240, %v3665, %v3667
    %3682 = vrot.lane.b32.xlu0 %v3601, 95
    %v3683 = vpop.permute.xlu0 %3682
    %3684 = vrot.lane.b32.xlu0 %v3605, 95
    %v3685 = vpop.permute.xlu0 %3684
    %3686 = vrot.lane.b32.xlu0 %v3609, 95
    %v3687 = vpop.permute.xlu0 %3686
    %3688 = vrot.lane.b32.xlu0 %v3613, 95
    %v3689 = vpop.permute.xlu0 %3688
    %3690 = vrot.lane.b32.xlu0 %v3617, 95
    %v3691 = vpop.permute.xlu0 %3690
    %3692 = vrot.lane.b32.xlu0 %v3621, 95
    %v3693 = vpop.permute.xlu0 %3692
    %3694 = vrot.lane.b32.xlu0 %v3625, 95
    %v3695 = vpop.permute.xlu0 %3694
    %v3696 = vsel %vm271, %v3683, %v3685
    %v3697 = vsel %vm271, %v3685, %v3687
    %v3698 = vsel %vm271, %v3687, %v3689
    %v3699 = vsel %vm271, %v3689, %v3691
    %v3700 = vsel %vm271, %v3691, %v3693
    %v3701 = vsel %vm271, %v3693, %v3695
    %3710 = vrot.lane.b32.xlu0 %v3601, 94
    %v3711 = vpop.permute.xlu0 %3710
    %3712 = vrot.lane.b32.xlu0 %v3605, 94
    %v3713 = vpop.permute.xlu0 %3712
    %3714 = vrot.lane.b32.xlu0 %v3609, 94
    %v3715 = vpop.permute.xlu0 %3714
    %3716 = vrot.lane.b32.xlu0 %v3613, 94
    %v3717 = vpop.permute.xlu0 %3716
    %3718 = vrot.lane.b32.xlu0 %v3617, 94
    %v3719 = vpop.permute.xlu0 %3718
    %3720 = vrot.lane.b32.xlu0 %v3621, 94
    %v3721 = vpop.permute.xlu0 %3720
    %3722 = vrot.lane.b32.xlu0 %v3625, 94
    %v3723 = vpop.permute.xlu0 %3722
    %v3724 = vsel %vm302, %v3711, %v3713
    %v3725 = vsel %vm302, %v3713, %v3715
    %v3726 = vsel %vm302, %v3715, %v3717
    %v3727 = vsel %vm302, %v3717, %v3719
    %v3728 = vsel %vm302, %v3719, %v3721
    %v3729 = vsel %vm302, %v3721, %v3723
    %v3739 = vlaneseq
    %v3740 = vshrl.u32 %v3739, 7
    %v3741 = vsub.s32 0, %v3740
    %v3742 = vrot.slane %v2890, %v3741
    %v3743 = vlaneseq
    %v3744 = vshrl.u32 %v3743, 7
    %v3745 = vsub.s32 1, %v3744
    %v3746 = vrot.slane %v2890, %v3745
    %v3747 = vlaneseq
    %v3748 = vshrl.u32 %v3747, 7
    %v3749 = vsub.s32 2, %v3748
    %v3750 = vrot.slane %v2890, %v3749
    %v3751 = vlaneseq
    %v3752 = vshrl.u32 %v3751, 7
    %v3753 = vsub.s32 3, %v3752
    %v3754 = vrot.slane %v2890, %v3753
    %v3755 = vlaneseq
    %v3756 = vshrl.u32 %v3755, 7
    %v3757 = vsub.s32 4, %v3756
    %v3758 = vrot.slane %v2890, %v3757
    %v3759 = vlaneseq
    %v3760 = vshrl.u32 %v3759, 7
    %v3761 = vsub.s32 5, %v3760
    %v3762 = vrot.slane %v2890, %v3761
    %v3763 = vlaneseq
    %v3764 = vshrl.u32 %v3763, 7
    %v3765 = vsub.s32 6, %v3764
    %v3766 = vrot.slane %v2890, %v3765
    %3767 = vrot.lane.b32.xlu0 %v3742, 93
    %v3768 = vpop.permute.xlu0 %3767
    %3769 = vrot.lane.b32.xlu0 %v3746, 93
    %v3770 = vpop.permute.xlu0 %3769
    %3771 = vrot.lane.b32.xlu0 %v3750, 93
    %v3772 = vpop.permute.xlu0 %3771
    %3773 = vrot.lane.b32.xlu0 %v3754, 93
    %v3774 = vpop.permute.xlu0 %3773
    %3775 = vrot.lane.b32.xlu0 %v3758, 93
    %v3776 = vpop.permute.xlu0 %3775
    %3777 = vrot.lane.b32.xlu0 %v3762, 93
    %v3778 = vpop.permute.xlu0 %3777
    %3779 = vrot.lane.b32.xlu0 %v3766, 93
    %v3780 = vpop.permute.xlu0 %3779
    %v3781 = vsel %vm333, %v3768, %v3770
    %v3782 = vsel %vm333, %v3770, %v3772
    %v3783 = vsel %vm333, %v3772, %v3774
    %v3784 = vsel %vm333, %v3774, %v3776
    %v3785 = vsel %vm333, %v3776, %v3778
    %v3786 = vsel %vm333, %v3778, %v3780
    %v3787 = vsel %vm565, %v3012, %v3520
    %v3788 = vsel %vm565, %v3016, %v3521
    %v3789 = vsel %vm565, %v3020, %v3522
    %v3790 = vsel %vm565, %v3024, %v3523
    %v3791 = vsel %vm565, %v3028, %v3524
    %v3792 = vsel %vm565, %v3032, %v3525
    %v3793 = vsel %vm565, %v3036, %v3526
    %v3794 = vsel %vm565, %v3067, %v3519
    %v3795 = vsel %vm573, %v3787, %v3551
    %v3796 = vsel %vm573, %v3788, %v3552
    %v3797 = vsel %vm573, %v3789, %v3553
    %v3798 = vsel %vm573, %v3790, %v3554
    %v3799 = vsel %vm573, %v3791, %v3555
    %v3800 = vsel %vm573, %v3792, %v3556
    %v3801 = vsel %vm573, %v3793, %v3557
    %v3802 = vsel %vm573, %v3794, %v3550
    %v3803 = vsel %vm581, %v3795, %v3582
    %v3804 = vsel %vm581, %v3796, %v3583
    %v3805 = vsel %vm581, %v3797, %v3584
    %v3806 = vsel %vm581, %v3798, %v3585
    %v3807 = vsel %vm581, %v3799, %v3586
    %v3808 = vsel %vm581, %v3800, %v3587
    %v3809 = vsel %vm581, %v3801, %v3588
    %v3810 = vsel %vm581, %v3802, %v3581
    %v3811 = vsel %vm589, %v3803, %v3627
    %v3812 = vsel %vm589, %v3804, %v3640
    %v3813 = vsel %vm589, %v3805, %v3641
    %v3814 = vsel %vm589, %v3806, %v3642
    %v3815 = vsel %vm589, %v3807, %v3643
    %v3816 = vsel %vm589, %v3808, %v3644
    %v3817 = vsel %vm589, %v3809, %v3645
    %v3818 = vsel %vm589, %v3810, %v3639
    %v3819 = vsel %vm597, %v3811, %v3655
    %v3820 = vsel %vm597, %v3812, %v3668
    %v3821 = vsel %vm597, %v3813, %v3669
    %v3822 = vsel %vm597, %v3814, %v3670
    %v3823 = vsel %vm597, %v3815, %v3671
    %v3824 = vsel %vm597, %v3816, %v3672
    %v3825 = vsel %vm597, %v3817, %v3673
    %v3826 = vsel %vm597, %v3818, %v3667
    %v3827 = vsel %vm605, %v3819, %v3683
    %v3828 = vsel %vm605, %v3820, %v3696
    %v3829 = vsel %vm605, %v3821, %v3697
    %v3830 = vsel %vm605, %v3822, %v3698
    %v3831 = vsel %vm605, %v3823, %v3699
    %v3832 = vsel %vm605, %v3824, %v3700
    %v3833 = vsel %vm605, %v3825, %v3701
    %v3834 = vsel %vm605, %v3826, %v3695
    %v3835 = vsel %vm613, %v3827, %v3711
    %v3836 = vsel %vm613, %v3828, %v3724
    %v3837 = vsel %vm613, %v3829, %v3725
    %v3838 = vsel %vm613, %v3830, %v3726
    %v3839 = vsel %vm613, %v3831, %v3727
    %v3840 = vsel %vm613, %v3832, %v3728
    %v3841 = vsel %vm613, %v3833, %v3729
    %v3842 = vsel %vm613, %v3834, %v3723
    %3851 = vrot.lane.b32.xlu0 %v3835, 31
    %v3852 = vpop.permute.xlu0 %3851
    %3853 = vrot.lane.b32.xlu0 %v3836, 31
    %v3854 = vpop.permute.xlu0 %3853
    %3855 = vrot.lane.b32.xlu0 %v3837, 31
    %v3856 = vpop.permute.xlu0 %3855
    %3857 = vrot.lane.b32.xlu0 %v3838, 31
    %v3858 = vpop.permute.xlu0 %3857
    %3859 = vrot.lane.b32.xlu0 %v3839, 31
    %v3860 = vpop.permute.xlu0 %3859
    %3861 = vrot.lane.b32.xlu0 %v3840, 31
    %v3862 = vpop.permute.xlu0 %3861
    %3863 = vrot.lane.b32.xlu0 %v3841, 31
    %v3864 = vpop.permute.xlu0 %3863
    %3865 = vrot.lane.b32.xlu0 %v3842, 31
    %v3866 = vpop.permute.xlu0 %3865
    %3867 = vrot.lane.b32.xlu0 %v3768, 31
    %v3868 = vpop.permute.xlu0 %3867
    %3869 = vrot.lane.b32.xlu0 %v3781, 31
    %v3870 = vpop.permute.xlu0 %3869
    %3871 = vrot.lane.b32.xlu0 %v3782, 31
    %v3872 = vpop.permute.xlu0 %3871
    %3873 = vrot.lane.b32.xlu0 %v3783, 31
    %v3874 = vpop.permute.xlu0 %3873
    %3875 = vrot.lane.b32.xlu0 %v3784, 31
    %v3876 = vpop.permute.xlu0 %3875
    %3877 = vrot.lane.b32.xlu0 %v3785, 31
    %v3878 = vpop.permute.xlu0 %3877
    %3879 = vrot.lane.b32.xlu0 %v3786, 31
    %v3880 = vpop.permute.xlu0 %3879
    %3881 = vrot.lane.b32.xlu0 %v3780, 31
    %v3882 = vpop.permute.xlu0 %3881
    %v3883 = vsel %vm1058, %v3852, %v3854
    %v3884 = vsel %vm1058, %v3854, %v3856
    %v3885 = vsel %vm1058, %v3856, %v3858
    %v3886 = vsel %vm1058, %v3858, %v3860
    %v3887 = vsel %vm1058, %v3860, %v3862
    %v3888 = vsel %vm1058, %v3862, %v3864
    %v3889 = vsel %vm1058, %v3864, %v3866
    %v3890 = vsel %vm1058, %v3868, %v3870
    %v3891 = vsel %vm1058, %v3870, %v3872
    %v3892 = vsel %vm1058, %v3872, %v3874
    %v3893 = vsel %vm1058, %v3874, %v3876
    %v3894 = vsel %vm1058, %v3876, %v3878
    %v3895 = vsel %vm1058, %v3878, %v3880
    %v3896 = vsel %vm1058, %v3880, %v3882
    %v3904 = vld [vmem:[%s1] sm:$0xf]
    %v3905 = vld [vmem:[%s2] sm:$0xf]
    %3907 = vset.pattern.permute.xlu0 0
    %3908 = vperm.xlu0 %3907, %v3905
    %v3909 = vpop.permute.xlu0 %3908
    %v3912 = vsel %vm1087, %v3904, 0
    %v3914 = vsel %vm565, %v3890, 0
    %v3916 = vsel %vm565, %v3891, 0
    %v3918 = vsel %vm565, %v3892, 0
    %v3920 = vsel %vm565, %v3893, 0
    %v3922 = vsel %vm565, %v3894, 0
    %v3924 = vsel %vm565, %v3895, 0
    %v3926 = vsel %vm565, %v3896, 0
    %3928 = vmatprep.subr.mxu0 0.0
    %3929 = vmatpush1.msra.mxu0 0.0
    %3930 = vmatprep.subr.mxu0 0.0
    %3931 = vmatpush1.msra.mxu0 0.0
    %3932 = vmatprep.subr.mxu0 0.0
    %3933 = vmatpush1.msra.mxu0 0.0
    %3934 = vmatprep.subr.mxu0 0.0
    %3935 = vmatpush1.msra.mxu0 0.0
    %3936 = vmatprep.subr.mxu0 0.0
    %3937 = vmatpush1.msra.mxu0 0.0
    %3938 = vmatprep.subr.mxu0 0.0
    %3939 = vmatpush1.msra.mxu0 0.0
    %3940 = vmatprep.subr.mxu0 0.0
    %3941 = vmatpush1.msra.mxu0 0.0
    %3942 = vmatprep.subr.mxu0 0.0
    %3943 = vmatpush1.msra.mxu0 0.0
    %3944 = vmatprep.subr.mxu0 0.0
    %3945 = vmatpush1.msra.mxu0 0.0
    %3946 = vmatprep.subr.mxu0 0.0
    %3947 = vmatpush1.msra.mxu0 0.0
    %3948 = vmatprep.subr.mxu0 0.0
    %3949 = vmatpush1.msra.mxu0 0.0
    %3950 = vmatprep.subr.mxu0 0.0
    %3951 = vmatpush1.msra.mxu0 0.0
    %3952 = vmatprep.subr.mxu0 %v3916
    %3953 = vmatpush1.msra.mxu0 %v3914
    %3954 = vmatprep.subr.mxu0 %v3884
    %3955 = vmatpush1.msra.mxu0 %v3883
    %3956 = vmatprep.subr.mxu0 %v3490
    %3957 = vmatpush1.msra.mxu0 %v3489
    %3958 = vmatprep.subr.mxu0 %v3441
    %3959 = vmatpush1.msra.mxu0 %v3440
    %3960 = vmatprep.subr.mxu0 0.0
    %3961 = vmatpush2.msra.mxu0 0.0
    %3962 = vmatprep.subr.mxu0 0.0
    %3963 = vmatpush2.msra.mxu0 0.0
    %3964 = vmatprep.subr.mxu0 0.0
    %3965 = vmatpush2.msra.mxu0 0.0
    %3966 = vmatprep.subr.mxu0 0.0
    %3967 = vmatpush2.msra.mxu0 0.0
    %3968 = vmatprep.subr.mxu0 0.0
    %3969 = vmatpush2.msra.mxu0 0.0
    %3970 = vmatprep.subr.mxu0 0.0
    %3971 = vmatpush2.msra.mxu0 0.0
    %3972 = vmatprep.subr.mxu0 0.0
    %3973 = vmatpush2.msra.mxu0 0.0
    %3974 = vmatprep.subr.mxu0 0.0
    %3975 = vmatpush2.msra.mxu0 0.0
    %3976 = vmatprep.subr.mxu0 0.0
    %3977 = vmatpush2.msra.mxu0 0.0
    %3978 = vmatprep.subr.mxu0 0.0
    %3979 = vmatpush2.msra.mxu0 0.0
    %3980 = vmatprep.subr.mxu0 0.0
    %3981 = vmatpush2.msra.mxu0 0.0
    %3982 = vmatprep.subr.mxu0 0.0
    %3983 = vmatpush2.msra.mxu0 0.0
    %3984 = vmatprep.subr.mxu0 0.0
    %3985 = vmatpush2.msra.mxu0 0.0
    %3986 = vmatprep.subr.mxu0 0.0
    %3987 = vmatpush2.msra.mxu0 0.0
    %3988 = vmatprep.subr.mxu0 0.0
    %3989 = vmatpush2.msra.mxu0 0.0
    %3990 = vmatprep.subr.mxu0 0.0
    %3991 = vmatpush2.msra.mxu0 0.0
    %3992 = vmatprep.mubr.f32.mxu0 0.0
    %3993 = vmatmul.mubr.f32.gmra.mxu0 %v3912
    %v3994 = vpop.f32.mrf.mxu0
    %v3995 = vadd.f32 %v3909, %v3994
    %v3996 = vpop.f32.mrf.mxu0
    %v3997 = vadd.f32 %v3909, %v3996
    %3998 = vdwg.mxu0
    %3999 = vmatprep.subr.mxu0 0.0
    %4000 = vmatpush1.msra.mxu0 0.0
    %4001 = vmatprep.subr.mxu0 0.0
    %4002 = vmatpush1.msra.mxu0 0.0
    %4003 = vmatprep.subr.mxu0 0.0
    %4004 = vmatpush1.msra.mxu0 0.0
    %4005 = vmatprep.subr.mxu0 0.0
    %4006 = vmatpush1.msra.mxu0 0.0
    %4007 = vmatprep.subr.mxu0 0.0
    %4008 = vmatpush1.msra.mxu0 0.0
    %4009 = vmatprep.subr.mxu0 0.0
    %4010 = vmatpush1.msra.mxu0 0.0
    %4011 = vmatprep.subr.mxu0 0.0
    %4012 = vmatpush1.msra.mxu0 0.0
    %4013 = vmatprep.subr.mxu0 0.0
    %4014 = vmatpush1.msra.mxu0 0.0
    %4015 = vmatprep.subr.mxu0 0.0
    %4016 = vmatpush1.msra.mxu0 0.0
    %4017 = vmatprep.subr.mxu0 0.0
    %4018 = vmatpush1.msra.mxu0 0.0
    %4019 = vmatprep.subr.mxu0 0.0
    %4020 = vmatpush1.msra.mxu0 0.0
    %4021 = vmatprep.subr.mxu0 0.0
    %4022 = vmatpush1.msra.mxu0 0.0
    %4023 = vmatprep.subr.mxu0 %v3920
    %4024 = vmatpush1.msra.mxu0 %v3918
    %4025 = vmatprep.subr.mxu0 %v3886
    %4026 = vmatpush1.msra.mxu0 %v3885
    %4027 = vmatprep.subr.mxu0 %v3492
    %4028 = vmatpush1.msra.mxu0 %v3491
    %4029 = vmatprep.subr.mxu0 %v3443
    %4030 = vmatpush1.msra.mxu0 %v3442
    %4031 = vmatprep.subr.mxu0 0.0
    %4032 = vmatpush2.msra.mxu0 0.0
    %4033 = vmatprep.subr.mxu0 0.0
    %4034 = vmatpush2.msra.mxu0 0.0
    %4035 = vmatprep.subr.mxu0 0.0
    %4036 = vmatpush2.msra.mxu0 0.0
    %4037 = vmatprep.subr.mxu0 0.0
    %4038 = vmatpush2.msra.mxu0 0.0
    %4039 = vmatprep.subr.mxu0 0.0
    %4040 = vmatpush2.msra.mxu0 0.0
    %4041 = vmatprep.subr.mxu0 0.0
    %4042 = vmatpush2.msra.mxu0 0.0
    %4043 = vmatprep.subr.mxu0 0.0
    %4044 = vmatpush2.msra.mxu0 0.0
    %4045 = vmatprep.subr.mxu0 0.0
    %4046 = vmatpush2.msra.mxu0 0.0
    %4047 = vmatprep.subr.mxu0 0.0
    %4048 = vmatpush2.msra.mxu0 0.0
    %4049 = vmatprep.subr.mxu0 0.0
    %4050 = vmatpush2.msra.mxu0 0.0
    %4051 = vmatprep.subr.mxu0 0.0
    %4052 = vmatpush2.msra.mxu0 0.0
    %4053 = vmatprep.subr.mxu0 0.0
    %4054 = vmatpush2.msra.mxu0 0.0
    %4055 = vmatprep.subr.mxu0 0.0
    %4056 = vmatpush2.msra.mxu0 0.0
    %4057 = vmatprep.subr.mxu0 0.0
    %4058 = vmatpush2.msra.mxu0 0.0
    %4059 = vmatprep.subr.mxu0 0.0
    %4060 = vmatpush2.msra.mxu0 0.0
    %4061 = vmatprep.subr.mxu0 0.0
    %4062 = vmatpush2.msra.mxu0 0.0
    %4063 = vmatprep.mubr.f32.mxu0 0.0
    %4064 = vmatmul.mubr.f32.gmra.mxu0 %v3912
    %v4065 = vpop.f32.mrf.mxu0
    %v4066 = vadd.f32 %v3909, %v4065
    %v4067 = vpop.f32.mrf.mxu0
    %v4068 = vadd.f32 %v3909, %v4067
    %4069 = vdwg.mxu0
    %4070 = vmatprep.subr.mxu0 0.0
    %4071 = vmatpush1.msra.mxu0 0.0
    %4072 = vmatprep.subr.mxu0 0.0
    %4073 = vmatpush1.msra.mxu0 0.0
    %4074 = vmatprep.subr.mxu0 0.0
    %4075 = vmatpush1.msra.mxu0 0.0
    %4076 = vmatprep.subr.mxu0 0.0
    %4077 = vmatpush1.msra.mxu0 0.0
    %4078 = vmatprep.subr.mxu0 0.0
    %4079 = vmatpush1.msra.mxu0 0.0
    %4080 = vmatprep.subr.mxu0 0.0
    %4081 = vmatpush1.msra.mxu0 0.0
    %4082 = vmatprep.subr.mxu0 0.0
    %4083 = vmatpush1.msra.mxu0 0.0
    %4084 = vmatprep.subr.mxu0 0.0
    %4085 = vmatpush1.msra.mxu0 0.0
    %4086 = vmatprep.subr.mxu0 0.0
    %4087 = vmatpush1.msra.mxu0 0.0
    %4088 = vmatprep.subr.mxu0 0.0
    %4089 = vmatpush1.msra.mxu0 0.0
    %4090 = vmatprep.subr.mxu0 0.0
    %4091 = vmatpush1.msra.mxu0 0.0
    %4092 = vmatprep.subr.mxu0 0.0
    %4093 = vmatpush1.msra.mxu0 0.0
    %4094 = vmatprep.subr.mxu0 %v3924
    %4095 = vmatpush1.msra.mxu0 %v3922
    %4096 = vmatprep.subr.mxu0 %v3888
    %4097 = vmatpush1.msra.mxu0 %v3887
    %4098 = vmatprep.subr.mxu0 %v3494
    %4099 = vmatpush1.msra.mxu0 %v3493
    %4100 = vmatprep.subr.mxu0 %v3445
    %4101 = vmatpush1.msra.mxu0 %v3444
    %4102 = vmatprep.subr.mxu0 0.0
    %4103 = vmatpush2.msra.mxu0 0.0
    %4104 = vmatprep.subr.mxu0 0.0
    %4105 = vmatpush2.msra.mxu0 0.0
    %4106 = vmatprep.subr.mxu0 0.0
    %4107 = vmatpush2.msra.mxu0 0.0
    %4108 = vmatprep.subr.mxu0 0.0
    %4109 = vmatpush2.msra.mxu0 0.0
    %4110 = vmatprep.subr.mxu0 0.0
    %4111 = vmatpush2.msra.mxu0 0.0
    %4112 = vmatprep.subr.mxu0 0.0
    %4113 = vmatpush2.msra.mxu0 0.0
    %4114 = vmatprep.subr.mxu0 0.0
    %4115 = vmatpush2.msra.mxu0 0.0
    %4116 = vmatprep.subr.mxu0 0.0
    %4117 = vmatpush2.msra.mxu0 0.0
    %4118 = vmatprep.subr.mxu0 0.0
    %4119 = vmatpush2.msra.mxu0 0.0
    %4120 = vmatprep.subr.mxu0 0.0
    %4121 = vmatpush2.msra.mxu0 0.0
    %4122 = vmatprep.subr.mxu0 0.0
    %4123 = vmatpush2.msra.mxu0 0.0
    %4124 = vmatprep.subr.mxu0 0.0
    %4125 = vmatpush2.msra.mxu0 0.0
    %4126 = vmatprep.subr.mxu0 0.0
    %4127 = vmatpush2.msra.mxu0 0.0
    %4128 = vmatprep.subr.mxu0 0.0
    %4129 = vmatpush2.msra.mxu0 0.0
    %4130 = vmatprep.subr.mxu0 0.0
    %4131 = vmatpush2.msra.mxu0 0.0
    %4132 = vmatprep.subr.mxu0 0.0
    %4133 = vmatpush2.msra.mxu0 0.0
    %4134 = vmatprep.mubr.f32.mxu0 0.0
    %4135 = vmatmul.mubr.f32.gmra.mxu0 %v3912
    %v4136 = vpop.f32.mrf.mxu0
    %v4137 = vadd.f32 %v3909, %v4136
    %v4138 = vpop.f32.mrf.mxu0
    %v4139 = vadd.f32 %v3909, %v4138
    %4140 = vdwg.mxu0
    %4141 = vmatprep.subr.mxu0 0.0
    %4142 = vmatpush1.msra.mxu0 0.0
    %4143 = vmatprep.subr.mxu0 0.0
    %4144 = vmatpush1.msra.mxu0 0.0
    %4145 = vmatprep.subr.mxu0 0.0
    %4146 = vmatpush1.msra.mxu0 0.0
    %4147 = vmatprep.subr.mxu0 0.0
    %4148 = vmatpush1.msra.mxu0 0.0
    %4149 = vmatprep.subr.mxu0 0.0
    %4150 = vmatpush1.msra.mxu0 0.0
    %4151 = vmatprep.subr.mxu0 0.0
    %4152 = vmatpush1.msra.mxu0 0.0
    %4153 = vmatprep.subr.mxu0 0.0
    %4154 = vmatpush1.msra.mxu0 0.0
    %4155 = vmatprep.subr.mxu0 0.0
    %4156 = vmatpush1.msra.mxu0 0.0
    %4157 = vmatprep.subr.mxu0 0.0
    %4158 = vmatpush1.msra.mxu0 0.0
    %4159 = vmatprep.subr.mxu0 0.0
    %4160 = vmatpush1.msra.mxu0 0.0
    %4161 = vmatprep.subr.mxu0 0.0
    %4162 = vmatpush1.msra.mxu0 0.0
    %4163 = vmatprep.subr.mxu0 0.0
    %4164 = vmatpush1.msra.mxu0 0.0
    %4165 = vmatprep.subr.mxu0 0.0
    %4166 = vmatpush1.msra.mxu0 %v3926
    %4167 = vmatprep.subr.mxu0 0.0
    %4168 = vmatpush1.msra.mxu0 %v3889
    %4169 = vmatprep.subr.mxu0 0.0
    %4170 = vmatpush1.msra.mxu0 %v3495
    %4171 = vmatprep.subr.mxu0 0.0
    %4172 = vmatpush1.msra.mxu0 %v3446
    %4173 = vmatprep.subr.mxu0 0.0
    %4174 = vmatpush2.msra.mxu0 0.0
    %4175 = vmatprep.subr.mxu0 0.0
    %4176 = vmatpush2.msra.mxu0 0.0
    %4177 = vmatprep.subr.mxu0 0.0
    %4178 = vmatpush2.msra.mxu0 0.0
    %4179 = vmatprep.subr.mxu0 0.0
    %4180 = vmatpush2.msra.mxu0 0.0
    %4181 = vmatprep.subr.mxu0 0.0
    %4182 = vmatpush2.msra.mxu0 0.0
    %4183 = vmatprep.subr.mxu0 0.0
    %4184 = vmatpush2.msra.mxu0 0.0
    %4185 = vmatprep.subr.mxu0 0.0
    %4186 = vmatpush2.msra.mxu0 0.0
    %4187 = vmatprep.subr.mxu0 0.0
    %4188 = vmatpush2.msra.mxu0 0.0
    %4189 = vmatprep.subr.mxu0 0.0
    %4190 = vmatpush2.msra.mxu0 0.0
    %4191 = vmatprep.subr.mxu0 0.0
    %4192 = vmatpush2.msra.mxu0 0.0
    %4193 = vmatprep.subr.mxu0 0.0
    %4194 = vmatpush2.msra.mxu0 0.0
    %4195 = vmatprep.subr.mxu0 0.0
    %4196 = vmatpush2.msra.mxu0 0.0
    %4197 = vmatprep.subr.mxu0 0.0
    %4198 = vmatpush2.msra.mxu0 0.0
    %4199 = vmatprep.subr.mxu0 0.0
    %4200 = vmatpush2.msra.mxu0 0.0
    %4201 = vmatprep.subr.mxu0 0.0
    %4202 = vmatpush2.msra.mxu0 0.0
    %4203 = vmatprep.subr.mxu0 0.0
    %4204 = vmatpush2.msra.mxu0 0.0
    %4205 = vmatprep.mubr.f32.mxu0 0.0
    %4206 = vmatmul.mubr.f32.gmra.mxu0 %v3912
    %v4207 = vpop.f32.mrf.mxu0
    %v4208 = vadd.f32 %v3909, %v4207
    %v4209 = vpop.f32.mrf.mxu0
    %4210 = vdwg.mxu0
    %v4211 = vmax.f32 %v3995, 0.0
    %v4212 = vmax.f32 %v3997, 0.0
    %v4213 = vmax.f32 %v4066, 0.0
    %v4214 = vmax.f32 %v4068, 0.0
    %v4215 = vmax.f32 %v4137, 0.0
    %v4216 = vmax.f32 %v4139, 0.0
    %v4217 = vmax.f32 %v4208, 0.0
    %v4224 = vcombine.low %v4211, %v4212
    %v4225 = vcombine.low %v4213, %v4214
    %v4226 = vcombine.low %v4215, %v4216
    %s4230 = scalar_lea.vmem [#allocation2], 28
    %4231 = vst [vmem:[%s4230] sm:$0xff] %v4224
    %4232 = vst [vmem:[%s4230 + $0x8] sm:$0xff] %v4225
    %4233 = vst [vmem:[%s4230 + $0x10] sm:$0xff] %v4226
    %4234 = vst.msk [vmem:[%s4230 + $0x18] sm:$0xf] %vm1410, %v4217
    %v4235 = vld [vmem:[%s4230] sm:$0xff]
    %v4236 = vld [vmem:[%s4230 + $0x8] sm:$0xff]
    %v4237 = vld [vmem:[%s4230 + $0x10] sm:$0xff]
    %v4238 = vld [vmem:[%s4230 + $0x18] sm:$0xf]
    %4243 = vrot.lane.b32.xlu0 %v4235, 127
    %v4244 = vpop.permute.xlu0 %4243
    %4245 = vrot.lane.b32.xlu0 %v4236, 127
    %v4246 = vpop.permute.xlu0 %4245
    %4247 = vrot.lane.b32.xlu0 %v4237, 127
    %v4248 = vpop.permute.xlu0 %4247
    %4249 = vrot.lane.b32.xlu0 %v4238, 127
    %v4250 = vpop.permute.xlu0 %4249
    %v4251 = vrot.slane %v4244, 4
    %v4252 = vrot.slane %v4246, 4
    %v4253 = vrot.slane %v4248, 4
    %v4254 = vrot.slane %v4250, 4
    %v4255 = vsel %vm589, %v4251, %v4252
    %v4256 = vsel %vm93, %v4244, %v4255
    %v4257 = vsel %vm589, %v4252, %v4253
    %v4258 = vsel %vm93, %v4246, %v4257
    %v4259 = vsel %vm589, %v4253, %v4254
    %v4260 = vsel %vm93, %v4248, %v4259
    %v4265 = vmax.f32 %v4235, %v4256
    %v4266 = vmax.f32 %v4236, %v4258
    %v4267 = vmax.f32 %v4237, %v4260
    %v4268 = vmax.f32 %v4238, %v4250
    %4273 = vrot.lane.b32.xlu0 %v4265, 96
    %v4274 = vpop.permute.xlu0 %4273
    %4275 = vrot.lane.b32.xlu0 %v4266, 96
    %v4276 = vpop.permute.xlu0 %4275
    %4277 = vrot.lane.b32.xlu0 %v4267, 96
    %v4278 = vpop.permute.xlu0 %4277
    %4279 = vrot.lane.b32.xlu0 %v4268, 96
    %v4280 = vpop.permute.xlu0 %4279
    %v4281 = vrot.slane %v4274, 4
    %v4282 = vrot.slane %v4276, 4
    %v4283 = vrot.slane %v4278, 4
    %v4284 = vrot.slane %v4280, 4
    %v4285 = vsel %vm589, %v4281, %v4282
    %v4286 = vsel %vm240, %v4274, %v4285
    %v4287 = vsel %vm589, %v4282, %v4283
    %v4288 = vsel %vm240, %v4276, %v4287
    %v4289 = vsel %vm589, %v4283, %v4284
    %v4290 = vsel %vm240, %v4278, %v4289
    %v4295 = vmax.f32 %v4265, %v4286
    %v4296 = vmax.f32 %v4266, %v4288
    %v4297 = vmax.f32 %v4267, %v4290
    %v4298 = vmax.f32 %v4268, %v4280
    %v4299 = vld [vmem:[%s5] sm:$0xff]
    %v4300 = vld [vmem:[%s5 + $0x8] sm:$0xff]
    %v4301 = vld [vmem:[%s5 + $0x10] sm:$0xff]
    %v4302 = vld [vmem:[%s5 + $0x18] sm:$0xff]
    %v4303 = vld [vmem:[%s5 + $0x20] sm:$0xff]
    %v4304 = vld [vmem:[%s5 + $0x28] sm:$0xff]
    %v4305 = vld [vmem:[%s5 + $0x30] sm:$0xff]
    %v4306 = vld [vmem:[%s5 + $0x38] sm:$0xff]
    %v4307 = vld [vmem:[%s5 + $0x40] sm:$0xff]
    %v4308 = vld [vmem:[%s5 + $0x48] sm:$0xff]
    %v4309 = vld [vmem:[%s5 + $0x50] sm:$0xff]
    %v4310 = vld [vmem:[%s5 + $0x58] sm:$0xff]
    %v4311 = vld [vmem:[%s5 + $0x60] sm:$0xff]
    %v4312 = vld [vmem:[%s5 + $0x68] sm:$0xff]
    %v4313 = vld [vmem:[%s5 + $0x70] sm:$0xff]
    %v4314 = vld [vmem:[%s5 + $0x78] sm:$0xff]
    %v4315 = vld [vmem:[%s5 + $0x80] sm:$0xff]
    %v4316 = vld [vmem:[%s5 + $0x88] sm:$0xff]
    %v4317 = vld [vmem:[%s5 + $0x90] sm:$0xff]
    %v4318 = vld [vmem:[%s5 + $0x98] sm:$0xff]
    %v4319 = vld [vmem:[%s5 + $0xa0] sm:$0xff]
    %v4320 = vld [vmem:[%s5 + $0xa8] sm:$0xff]
    %v4321 = vld [vmem:[%s5 + $0xb0] sm:$0xff]
    %v4322 = vld [vmem:[%s5 + $0xb8] sm:$0xff]
    %v4323 = vld [vmem:[%s5 + $0xc0] sm:$0xff]
    %v4324 = vld [vmem:[%s5 + $0xc8] sm:$0xff]
    %v4325 = vld [vmem:[%s5 + $0xd0] sm:$0xff]
    %v4326 = vld [vmem:[%s5 + $0xd8] sm:$0xff]
    %v4327 = vld [vmem:[%s5 + $0xe0] sm:$0xff]
    %v4328 = vld [vmem:[%s5 + $0xe8] sm:$0xff]
    %v4329 = vld [vmem:[%s5 + $0xf0] sm:$0xff]
    %v4330 = vld [vmem:[%s5 + $0xf8] sm:$0xff]
    %v4331 = vld [vmem:[%s5 + $0x100] sm:$0xff]
    %v4332 = vld [vmem:[%s5 + $0x108] sm:$0xff]
    %v4333 = vld [vmem:[%s5 + $0x110] sm:$0xff]
    %v4334 = vld [vmem:[%s5 + $0x118] sm:$0xff]
    %v4335 = vld [vmem:[%s5 + $0x120] sm:$0xff]
    %v4336 = vld [vmem:[%s5 + $0x128] sm:$0xff]
    %v4337 = vld [vmem:[%s5 + $0x130] sm:$0xff]
    %v4338 = vld [vmem:[%s5 + $0x138] sm:$0xff]
    %v4339 = vld [vmem:[%s5 + $0x140] sm:$0xff]
    %v4340 = vld [vmem:[%s5 + $0x148] sm:$0xff]
    %v4341 = vld [vmem:[%s5 + $0x150] sm:$0xff]
    %v4342 = vld [vmem:[%s5 + $0x158] sm:$0xff]
    %v4343 = vld [vmem:[%s5 + $0x160] sm:$0xff]
    %v4344 = vld [vmem:[%s5 + $0x168] sm:$0xff]
    %v4345 = vld [vmem:[%s5 + $0x170] sm:$0xff]
    %v4346 = vld [vmem:[%s5 + $0x178] sm:$0xff]
    %v4347 = vld [vmem:[%s5 + $0x180] sm:$0xff]
    %v4348 = vld [vmem:[%s5 + $0x188] sm:$0xff]
    %v4349 = vld [vmem:[%s5 + $0x190] sm:$0xff]
    %v4350 = vld [vmem:[%s5 + $0x198] sm:$0xff]
    %v4351 = vld [vmem:[%s5 + $0x1a0] sm:$0xff]
    %v4352 = vld [vmem:[%s5 + $0x1a8] sm:$0xff]
    %v4353 = vld [vmem:[%s5 + $0x1b0] sm:$0xff]
    %v4354 = vld [vmem:[%s5 + $0x1b8] sm:$0xff]
    %v4355 = vld [vmem:[%s5 + $0x1c0] sm:$0xff]
    %v4356 = vld [vmem:[%s5 + $0x1c8] sm:$0xff]
    %v4357 = vld [vmem:[%s5 + $0x1d0] sm:$0xff]
    %v4358 = vld [vmem:[%s5 + $0x1d8] sm:$0xff]
    %v4359 = vld [vmem:[%s5 + $0x1e0] sm:$0xff]
    %v4360 = vld [vmem:[%s5 + $0x1e8] sm:$0xff]
    %v4361 = vld [vmem:[%s5 + $0x1f0] sm:$0xff]
    %v4362 = vld [vmem:[%s5 + $0x1f8] sm:$0xff]
    %v4363 = vld [vmem:[%s5 + $0x200] sm:$0xff]
    %v4364 = vld [vmem:[%s5 + $0x208] sm:$0xff]
    %v4365 = vld [vmem:[%s5 + $0x210] sm:$0xff]
    %v4366 = vld [vmem:[%s5 + $0x218] sm:$0xff]
    %v4367 = vld [vmem:[%s5 + $0x220] sm:$0xff]
    %v4368 = vld [vmem:[%s5 + $0x228] sm:$0xff]
    %v4369 = vld [vmem:[%s5 + $0x230] sm:$0xff]
    %v4370 = vld [vmem:[%s5 + $0x238] sm:$0xff]
    %v4371 = vld [vmem:[%s5 + $0x240] sm:$0xff]
    %v4372 = vld [vmem:[%s5 + $0x248] sm:$0xff]
    %v4373 = vld [vmem:[%s5 + $0x250] sm:$0xff]
    %v4374 = vld [vmem:[%s5 + $0x258] sm:$0xff]
    %v4375 = vld [vmem:[%s5 + $0x260] sm:$0xff]
    %v4376 = vld [vmem:[%s5 + $0x268] sm:$0xff]
    %v4377 = vld [vmem:[%s5 + $0x270] sm:$0xff]
    %v4378 = vld [vmem:[%s5 + $0x278] sm:$0xff]
    %v4379 = vld [vmem:[%s5 + $0x280] sm:$0xff]
    %v4380 = vld [vmem:[%s5 + $0x288] sm:$0xff]
    %v4381 = vld [vmem:[%s5 + $0x290] sm:$0xff]
    %v4382 = vld [vmem:[%s5 + $0x298] sm:$0xff]
    %v4383 = vld [vmem:[%s5 + $0x2a0] sm:$0xff]
    %v4384 = vld [vmem:[%s5 + $0x2a8] sm:$0xff]
    %v4385 = vld [vmem:[%s5 + $0x2b0] sm:$0xff]
    %v4386 = vld [vmem:[%s5 + $0x2b8] sm:$0xff]
    %v4387 = vld [vmem:[%s5 + $0x2c0] sm:$0xff]
    %v4388 = vld [vmem:[%s5 + $0x2c8] sm:$0xff]
    %v4389 = vld [vmem:[%s5 + $0x2d0] sm:$0xff]
    %v4390 = vld [vmem:[%s5 + $0x2d8] sm:$0xff]
    %v4391 = vld [vmem:[%s5 + $0x2e0] sm:$0xff]
    %v4392 = vld [vmem:[%s5 + $0x2e8] sm:$0xff]
    %v4393 = vld [vmem:[%s5 + $0x2f0] sm:$0xff]
    %v4394 = vld [vmem:[%s5 + $0x2f8] sm:$0xff]
    %v4395 = vld [vmem:[%s5 + $0x300] sm:$0xff]
    %v4396 = vld [vmem:[%s5 + $0x308] sm:$0xff]
    %v4397 = vld [vmem:[%s5 + $0x310] sm:$0xff]
    %v4398 = vld [vmem:[%s5 + $0x318] sm:$0xff]
    %v4399 = vld [vmem:[%s5 + $0x320] sm:$0xff]
    %v4400 = vld [vmem:[%s5 + $0x328] sm:$0xff]
    %v4401 = vld [vmem:[%s5 + $0x330] sm:$0xff]
    %v4402 = vld [vmem:[%s5 + $0x338] sm:$0xff]
    %v4403 = vld [vmem:[%s5 + $0x340] sm:$0xff]
    %v4404 = vld [vmem:[%s5 + $0x348] sm:$0xff]
    %v4405 = vld [vmem:[%s5 + $0x350] sm:$0xff]
    %v4406 = vld [vmem:[%s5 + $0x358] sm:$0xff]
    %v4407 = vld [vmem:[%s5 + $0x360] sm:$0xff]
    %v4408 = vld [vmem:[%s5 + $0x368] sm:$0xff]
    %v4409 = vld [vmem:[%s5 + $0x370] sm:$0xff]
    %v4410 = vld [vmem:[%s5 + $0x378] sm:$0xff]
    %v4411 = vld [vmem:[%s5 + $0x380] sm:$0xff]
    %v4412 = vld [vmem:[%s5 + $0x388] sm:$0xff]
    %v4413 = vld [vmem:[%s5 + $0x390] sm:$0xff]
    %v4414 = vld [vmem:[%s5 + $0x398] sm:$0xff]
    %v4415 = vld [vmem:[%s5 + $0x3a0] sm:$0xff]
    %v4416 = vld [vmem:[%s5 + $0x3a8] sm:$0xff]
    %v4417 = vld [vmem:[%s5 + $0x3b0] sm:$0xff]
    %v4418 = vld [vmem:[%s5 + $0x3b8] sm:$0xff]
    %v4419 = vld [vmem:[%s5 + $0x3c0] sm:$0xff]
    %v4420 = vld [vmem:[%s5 + $0x3c8] sm:$0xff]
    %v4421 = vld [vmem:[%s5 + $0x3d0] sm:$0xff]
    %v4422 = vld [vmem:[%s5 + $0x3d8] sm:$0xff]
    %v4423 = vld [vmem:[%s5 + $0x3e0] sm:$0xff]
    %v4424 = vld [vmem:[%s5 + $0x3e8] sm:$0xff]
    %v4425 = vld [vmem:[%s5 + $0x3f0] sm:$0xff]
    %v4426 = vld [vmem:[%s5 + $0x3f8] sm:$0xff]
    %v4427 = vld [vmem:[%s5 + $0x400] sm:$0xff]
    %v4428 = vld [vmem:[%s5 + $0x408] sm:$0xff]
    %v4429 = vld [vmem:[%s5 + $0x410] sm:$0xff]
    %v4430 = vld [vmem:[%s5 + $0x418] sm:$0xff]
    %v4431 = vld [vmem:[%s5 + $0x420] sm:$0xff]
    %v4432 = vld [vmem:[%s5 + $0x428] sm:$0xff]
    %v4433 = vld [vmem:[%s5 + $0x430] sm:$0xff]
    %v4434 = vld [vmem:[%s5 + $0x438] sm:$0xff]
    %v4435 = vld [vmem:[%s5 + $0x440] sm:$0xff]
    %v4436 = vld [vmem:[%s5 + $0x448] sm:$0xff]
    %v4437 = vld [vmem:[%s5 + $0x450] sm:$0xff]
    %v4438 = vld [vmem:[%s5 + $0x458] sm:$0xff]
    %v4439 = vld [vmem:[%s5 + $0x460] sm:$0xff]
    %v4440 = vld [vmem:[%s5 + $0x468] sm:$0xff]
    %v4441 = vld [vmem:[%s5 + $0x470] sm:$0xff]
    %v4442 = vld [vmem:[%s5 + $0x478] sm:$0xff]
    %v4443 = vld [vmem:[%s5 + $0x480] sm:$0xff]
    %v4444 = vld [vmem:[%s5 + $0x488] sm:$0xff]
    %v4445 = vld [vmem:[%s5 + $0x490] sm:$0xff]
    %v4446 = vld [vmem:[%s5 + $0x498] sm:$0xff]
    %v4447 = vld [vmem:[%s5 + $0x4a0] sm:$0xff]
    %v4448 = vld [vmem:[%s5 + $0x4a8] sm:$0xff]
    %v4449 = vld [vmem:[%s5 + $0x4b0] sm:$0xff]
    %v4450 = vld [vmem:[%s5 + $0x4b8] sm:$0xff]
    %v4451 = vld [vmem:[%s5 + $0x4c0] sm:$0xff]
    %v4452 = vld [vmem:[%s5 + $0x4c8] sm:$0xff]
    %v4453 = vld [vmem:[%s5 + $0x4d0] sm:$0xff]
    %v4454 = vld [vmem:[%s5 + $0x4d8] sm:$0xff]
    %v4455 = vld [vmem:[%s5 + $0x4e0] sm:$0xff]
    %v4456 = vld [vmem:[%s5 + $0x4e8] sm:$0xff]
    %v4457 = vld [vmem:[%s5 + $0x4f0] sm:$0xff]
    %v4458 = vld [vmem:[%s5 + $0x4f8] sm:$0xff]
    %v4459 = vld [vmem:[%s5 + $0x500] sm:$0xff]
    %v4460 = vld [vmem:[%s5 + $0x508] sm:$0xff]
    %v4461 = vld [vmem:[%s5 + $0x510] sm:$0xff]
    %v4462 = vld [vmem:[%s5 + $0x518] sm:$0xff]
    %v4463 = vld [vmem:[%s5 + $0x520] sm:$0xff]
    %v4464 = vld [vmem:[%s5 + $0x528] sm:$0xff]
    %v4465 = vld [vmem:[%s5 + $0x530] sm:$0xff]
    %v4466 = vld [vmem:[%s5 + $0x538] sm:$0xff]
    %v4467 = vld [vmem:[%s5 + $0x540] sm:$0xff]
    %v4468 = vld [vmem:[%s5 + $0x548] sm:$0xff]
    %v4469 = vld [vmem:[%s5 + $0x550] sm:$0xff]
    %v4470 = vld [vmem:[%s5 + $0x558] sm:$0xff]
    %v4471 = vld [vmem:[%s5 + $0x560] sm:$0xff]
    %v4472 = vld [vmem:[%s5 + $0x568] sm:$0xff]
    %v4473 = vld [vmem:[%s5 + $0x570] sm:$0xff]
    %v4474 = vld [vmem:[%s5 + $0x578] sm:$0xff]
    %v4475 = vld [vmem:[%s5 + $0x580] sm:$0xff]
    %v4476 = vld [vmem:[%s5 + $0x588] sm:$0xff]
    %v4477 = vld [vmem:[%s5 + $0x590] sm:$0xff]
    %v4478 = vld [vmem:[%s5 + $0x598] sm:$0xff]
    %v4479 = vld [vmem:[%s5 + $0x5a0] sm:$0xff]
    %v4480 = vld [vmem:[%s5 + $0x5a8] sm:$0xff]
    %v4481 = vld [vmem:[%s5 + $0x5b0] sm:$0xff]
    %v4482 = vld [vmem:[%s5 + $0x5b8] sm:$0xff]
    %v4483 = vld [vmem:[%s5 + $0x5c0] sm:$0xff]
    %v4484 = vld [vmem:[%s5 + $0x5c8] sm:$0xff]
    %v4485 = vld [vmem:[%s5 + $0x5d0] sm:$0xff]
    %v4486 = vld [vmem:[%s5 + $0x5d8] sm:$0xff]
    %v4487 = vld [vmem:[%s5 + $0x5e0] sm:$0xff]
    %v4488 = vld [vmem:[%s5 + $0x5e8] sm:$0xff]
    %v4489 = vld [vmem:[%s5 + $0x5f0] sm:$0xff]
    %v4490 = vld [vmem:[%s5 + $0x5f8] sm:$0xff]
    %v4491 = vld [vmem:[%s5 + $0x600] sm:$0xff]
    %v4492 = vld [vmem:[%s5 + $0x608] sm:$0xff]
    %v4493 = vld [vmem:[%s5 + $0x610] sm:$0xff]
    %v4494 = vld [vmem:[%s5 + $0x618] sm:$0xff]
    %v4495 = vld [vmem:[%s5 + $0x620] sm:$0xff]
    %v4496 = vld [vmem:[%s5 + $0x628] sm:$0xff]
    %v4497 = vld [vmem:[%s5 + $0x630] sm:$0xff]
    %v4498 = vld [vmem:[%s5 + $0x638] sm:$0xff]
    %v4499 = vld [vmem:[%s5 + $0x640] sm:$0xff]
    %v4500 = vld [vmem:[%s5 + $0x648] sm:$0xff]
    %v4501 = vld [vmem:[%s5 + $0x650] sm:$0xff]
    %v4502 = vld [vmem:[%s5 + $0x658] sm:$0xff]
    %v4503 = vld [vmem:[%s5 + $0x660] sm:$0xff]
    %v4504 = vld [vmem:[%s5 + $0x668] sm:$0xff]
    %v4505 = vld [vmem:[%s5 + $0x670] sm:$0xff]
    %v4506 = vld [vmem:[%s5 + $0x678] sm:$0xff]
    %v4507 = vld [vmem:[%s5 + $0x680] sm:$0xff]
    %v4508 = vld [vmem:[%s5 + $0x688] sm:$0xff]
    %v4509 = vld [vmem:[%s5 + $0x690] sm:$0xff]
    %v4510 = vld [vmem:[%s5 + $0x698] sm:$0xff]
    %v4511 = vld [vmem:[%s5 + $0x6a0] sm:$0xff]
    %v4512 = vld [vmem:[%s5 + $0x6a8] sm:$0xff]
    %v4513 = vld [vmem:[%s5 + $0x6b0] sm:$0xff]
    %v4514 = vld [vmem:[%s5 + $0x6b8] sm:$0xff]
    %v4515 = vld [vmem:[%s5 + $0x6c0] sm:$0xff]
    %v4516 = vld [vmem:[%s5 + $0x6c8] sm:$0xff]
    %v4517 = vld [vmem:[%s5 + $0x6d0] sm:$0xff]
    %v4518 = vld [vmem:[%s5 + $0x6d8] sm:$0xff]
    %v4519 = vld [vmem:[%s5 + $0x6e0] sm:$0xff]
    %v4520 = vld [vmem:[%s5 + $0x6e8] sm:$0xff]
    %v4521 = vld [vmem:[%s5 + $0x6f0] sm:$0xff]
    %v4522 = vld [vmem:[%s5 + $0x6f8] sm:$0xff]
    %v4523 = vld [vmem:[%s5 + $0x700] sm:$0xff]
    %v4524 = vld [vmem:[%s5 + $0x708] sm:$0xff]
    %v4525 = vld [vmem:[%s5 + $0x710] sm:$0xff]
    %v4526 = vld [vmem:[%s5 + $0x718] sm:$0xff]
    %v4527 = vld [vmem:[%s5 + $0x720] sm:$0xff]
    %v4528 = vld [vmem:[%s5 + $0x728] sm:$0xff]
    %v4529 = vld [vmem:[%s5 + $0x730] sm:$0xff]
    %v4530 = vld [vmem:[%s5 + $0x738] sm:$0xff]
    %v4531 = vld [vmem:[%s5 + $0x740] sm:$0xff]
    %v4532 = vld [vmem:[%s5 + $0x748] sm:$0xff]
    %v4533 = vld [vmem:[%s5 + $0x750] sm:$0xff]
    %v4534 = vld [vmem:[%s5 + $0x758] sm:$0xff]
    %v4535 = vld [vmem:[%s5 + $0x760] sm:$0xff]
    %v4536 = vld [vmem:[%s5 + $0x768] sm:$0xff]
    %v4537 = vld [vmem:[%s5 + $0x770] sm:$0xff]
    %v4538 = vld [vmem:[%s5 + $0x778] sm:$0xff]
    %v4539 = vld [vmem:[%s5 + $0x780] sm:$0xff]
    %v4540 = vld [vmem:[%s5 + $0x788] sm:$0xff]
    %v4541 = vld [vmem:[%s5 + $0x790] sm:$0xff]
    %v4542 = vld [vmem:[%s5 + $0x798] sm:$0xff]
    %v4543 = vld [vmem:[%s5 + $0x7a0] sm:$0xff]
    %v4544 = vld [vmem:[%s5 + $0x7a8] sm:$0xff]
    %v4545 = vld [vmem:[%s5 + $0x7b0] sm:$0xff]
    %v4546 = vld [vmem:[%s5 + $0x7b8] sm:$0xff]
    %v4547 = vld [vmem:[%s5 + $0x7c0] sm:$0xff]
    %v4548 = vld [vmem:[%s5 + $0x7c8] sm:$0xff]
    %v4549 = vld [vmem:[%s5 + $0x7d0] sm:$0xff]
    %v4550 = vld [vmem:[%s5 + $0x7d8] sm:$0xff]
    %v4551 = vld [vmem:[%s5 + $0x7e0] sm:$0xff]
    %v4552 = vld [vmem:[%s5 + $0x7e8] sm:$0xff]
    %v4553 = vld [vmem:[%s5 + $0x7f0] sm:$0xff]
    %v4554 = vld [vmem:[%s5 + $0x7f8] sm:$0xff]
    %v4555 = vld [vmem:[%s5 + $0x800] sm:$0xff]
    %v4556 = vld [vmem:[%s5 + $0x808] sm:$0xff]
    %v4557 = vld [vmem:[%s5 + $0x810] sm:$0xff]
    %v4558 = vld [vmem:[%s5 + $0x818] sm:$0xff]
    %v4559 = vld [vmem:[%s5 + $0x820] sm:$0xff]
    %v4560 = vld [vmem:[%s5 + $0x828] sm:$0xff]
    %v4561 = vld [vmem:[%s5 + $0x830] sm:$0xff]
    %v4562 = vld [vmem:[%s5 + $0x838] sm:$0xff]
    %v4563 = vld [vmem:[%s5 + $0x840] sm:$0xff]
    %v4564 = vld [vmem:[%s5 + $0x848] sm:$0xff]
    %v4565 = vld [vmem:[%s5 + $0x850] sm:$0xff]
    %v4566 = vld [vmem:[%s5 + $0x858] sm:$0xff]
    %v4567 = vld [vmem:[%s5 + $0x860] sm:$0xff]
    %v4568 = vld [vmem:[%s5 + $0x868] sm:$0xff]
    %v4569 = vld [vmem:[%s5 + $0x870] sm:$0xff]
    %v4570 = vld [vmem:[%s5 + $0x878] sm:$0xff]
    %v4571 = vld [vmem:[%s5 + $0x880] sm:$0xff]
    %v4572 = vld [vmem:[%s5 + $0x888] sm:$0xff]
    %v4573 = vld [vmem:[%s5 + $0x890] sm:$0xff]
    %v4574 = vld [vmem:[%s5 + $0x898] sm:$0xff]
    %v4575 = vld [vmem:[%s5 + $0x8a0] sm:$0xff]
    %v4576 = vld [vmem:[%s5 + $0x8a8] sm:$0xff]
    %v4577 = vld [vmem:[%s5 + $0x8b0] sm:$0xff]
    %v4578 = vld [vmem:[%s5 + $0x8b8] sm:$0xff]
    %v4579 = vld [vmem:[%s5 + $0x8c0] sm:$0xff]
    %v4580 = vld [vmem:[%s5 + $0x8c8] sm:$0xff]
    %v4581 = vld [vmem:[%s5 + $0x8d0] sm:$0xff]
    %v4582 = vld [vmem:[%s5 + $0x8d8] sm:$0xff]
    %v4583 = vld [vmem:[%s5 + $0x8e0] sm:$0xff]
    %v4584 = vld [vmem:[%s5 + $0x8e8] sm:$0xff]
    %v4585 = vld [vmem:[%s5 + $0x8f0] sm:$0xff]
    %v4586 = vld [vmem:[%s5 + $0x8f8] sm:$0xff]
    %v4587 = vld [vmem:[%s5 + $0x900] sm:$0xff]
    %v4588 = vld [vmem:[%s5 + $0x908] sm:$0xff]
    %v4589 = vld [vmem:[%s5 + $0x910] sm:$0xff]
    %v4590 = vld [vmem:[%s5 + $0x918] sm:$0xff]
    %v4591 = vld [vmem:[%s5 + $0x920] sm:$0xff]
    %v4592 = vld [vmem:[%s5 + $0x928] sm:$0xff]
    %v4593 = vld [vmem:[%s5 + $0x930] sm:$0xff]
    %v4594 = vld [vmem:[%s5 + $0x938] sm:$0xff]
    %v4595 = vld [vmem:[%s5 + $0x940] sm:$0xff]
    %v4596 = vld [vmem:[%s5 + $0x948] sm:$0xff]
    %v4597 = vld [vmem:[%s5 + $0x950] sm:$0xff]
    %v4598 = vld [vmem:[%s5 + $0x958] sm:$0xff]
    %v4599 = vld [vmem:[%s5 + $0x960] sm:$0xff]
    %v4600 = vld [vmem:[%s5 + $0x968] sm:$0xff]
    %v4601 = vld [vmem:[%s5 + $0x970] sm:$0xff]
    %v4602 = vld [vmem:[%s5 + $0x978] sm:$0xff]
    %v4603 = vld [vmem:[%s5 + $0x980] sm:$0xff]
    %v4604 = vld [vmem:[%s5 + $0x988] sm:$0xff]
    %v4605 = vld [vmem:[%s5 + $0x990] sm:$0xff]
    %v4606 = vld [vmem:[%s5 + $0x998] sm:$0xff]
    %v4607 = vld [vmem:[%s5 + $0x9a0] sm:$0xff]
    %v4608 = vld [vmem:[%s5 + $0x9a8] sm:$0xff]
    %v4609 = vld [vmem:[%s5 + $0x9b0] sm:$0xff]
    %v4610 = vld [vmem:[%s5 + $0x9b8] sm:$0xff]
    %v4611 = vld [vmem:[%s5 + $0x9c0] sm:$0xff]
    %v4612 = vld [vmem:[%s5 + $0x9c8] sm:$0xff]
    %v4613 = vld [vmem:[%s5 + $0x9d0] sm:$0xff]
    %v4614 = vld [vmem:[%s5 + $0x9d8] sm:$0xff]
    %v4615 = vld [vmem:[%s5 + $0x9e0] sm:$0xff]
    %v4616 = vld [vmem:[%s5 + $0x9e8] sm:$0xff]
    %v4617 = vld [vmem:[%s5 + $0x9f0] sm:$0xff]
    %v4618 = vld [vmem:[%s5 + $0x9f8] sm:$0xff]
    %v4619 = vld [vmem:[%s5 + $0xa00] sm:$0xff]
    %v4620 = vld [vmem:[%s5 + $0xa08] sm:$0x7]
    %v4621 = vld [vmem:[%s5 + $0xa10] sm:$0x7]
    %v4622 = vld [vmem:[%s5 + $0xa18] sm:$0x7]
    %v4627 = vcombine.high %v4295, %v4295
    %v4628 = vcombine.high %v4296, %v4296
    %v4629 = vcombine.high %v4297, %v4297
    %v4633 = vsel %vm1810, %v4298, 0
    %v4636 = vsel %vm581, %v4620, 0
    %v4639 = vsel %vm581, %v4621, 0
    %v4642 = vsel %vm581, %v4622, 0
    %4644 = vmatprep.subr.mxu0 %v4345
    %4645 = vmatpush1.msra.mxu0 %v4344
    %4646 = vmatprep.subr.mxu0 %v4342
    %4647 = vmatpush1.msra.mxu0 %v4341
    %4648 = vmatprep.subr.mxu0 %v4339
    %4649 = vmatpush1.msra.mxu0 %v4338
    %4650 = vmatprep.subr.mxu0 %v4336
    %4651 = vmatpush1.msra.mxu0 %v4335
    %4652 = vmatprep.subr.mxu0 %v4333
    %4653 = vmatpush1.msra.mxu0 %v4332
    %4654 = vmatprep.subr.mxu0 %v4330
    %4655 = vmatpush1.msra.mxu0 %v4329
    %4656 = vmatprep.subr.mxu0 %v4327
    %4657 = vmatpush1.msra.mxu0 %v4326
    %4658 = vmatprep.subr.mxu0 %v4324
    %4659 = vmatpush1.msra.mxu0 %v4323
    %4660 = vmatprep.subr.mxu0 %v4321
    %4661 = vmatpush1.msra.mxu0 %v4320
    %4662 = vmatprep.subr.mxu0 %v4318
    %4663 = vmatpush1.msra.mxu0 %v4317
    %4664 = vmatprep.subr.mxu0 %v4315
    %4665 = vmatpush1.msra.mxu0 %v4314
    %4666 = vmatprep.subr.mxu0 %v4312
    %4667 = vmatpush1.msra.mxu0 %v4311
    %4668 = vmatprep.subr.mxu0 %v4309
    %4669 = vmatpush1.msra.mxu0 %v4308
    %4670 = vmatprep.subr.mxu0 %v4306
    %4671 = vmatpush1.msra.mxu0 %v4305
    %4672 = vmatprep.subr.mxu0 %v4303
    %4673 = vmatpush1.msra.mxu0 %v4302
    %4674 = vmatprep.subr.mxu0 %v4300
    %4675 = vmatpush1.msra.mxu0 %v4299
    %4676 = vmatprep.subr.mxu0 %v4393
    %4677 = vmatpush2.msra.mxu0 %v4392
    %4678 = vmatprep.subr.mxu0 %v4390
    %4679 = vmatpush2.msra.mxu0 %v4389
    %4680 = vmatprep.subr.mxu0 %v4387
    %4681 = vmatpush2.msra.mxu0 %v4386
    %4682 = vmatprep.subr.mxu0 %v4384
    %4683 = vmatpush2.msra.mxu0 %v4383
    %4684 = vmatprep.subr.mxu0 %v4381
    %4685 = vmatpush2.msra.mxu0 %v4380
    %4686 = vmatprep.subr.mxu0 %v4378
    %4687 = vmatpush2.msra.mxu0 %v4377
    %4688 = vmatprep.subr.mxu0 %v4375
    %4689 = vmatpush2.msra.mxu0 %v4374
    %4690 = vmatprep.subr.mxu0 %v4372
    %4691 = vmatpush2.msra.mxu0 %v4371
    %4692 = vmatprep.subr.mxu0 %v4369
    %4693 = vmatpush2.msra.mxu0 %v4368
    %4694 = vmatprep.subr.mxu0 %v4366
    %4695 = vmatpush2.msra.mxu0 %v4365
    %4696 = vmatprep.subr.mxu0 %v4363
    %4697 = vmatpush2.msra.mxu0 %v4362
    %4698 = vmatprep.subr.mxu0 %v4360
    %4699 = vmatpush2.msra.mxu0 %v4359
    %4700 = vmatprep.subr.mxu0 %v4357
    %4701 = vmatpush2.msra.mxu0 %v4356
    %4702 = vmatprep.subr.mxu0 %v4354
    %4703 = vmatpush2.msra.mxu0 %v4353
    %4704 = vmatprep.subr.mxu0 %v4351
    %4705 = vmatpush2.msra.mxu0 %v4350
    %4706 = vmatprep.subr.mxu0 %v4348
    %4707 = vmatpush2.msra.mxu0 %v4347
    %4708 = vmatprep.mubr.f32.mxu0 %v4627
    %4709 = vmatmul.mubr.f32.gmra.mxu0 %v4295
    %v4710 = vpop.f32.mrf.mxu0
    %v4711 = vadd.f32 0.0, %v4710
    %v4712 = vpop.f32.mrf.mxu0
    %v4713 = vadd.f32 0.0, %v4712
    %4714 = vdwg.mxu0
    %4715 = vmatprep.subr.mxu0 %v4441
    %4716 = vmatpush1.msra.mxu0 %v4440
    %4717 = vmatprep.subr.mxu0 %v4438
    %4718 = vmatpush1.msra.mxu0 %v4437
    %4719 = vmatprep.subr.mxu0 %v4435
    %4720 = vmatpush1.msra.mxu0 %v4434
    %4721 = vmatprep.subr.mxu0 %v4432
    %4722 = vmatpush1.msra.mxu0 %v4431
    %4723 = vmatprep.subr.mxu0 %v4429
    %4724 = vmatpush1.msra.mxu0 %v4428
    %4725 = vmatprep.subr.mxu0 %v4426
    %4726 = vmatpush1.msra.mxu0 %v4425
    %4727 = vmatprep.subr.mxu0 %v4423
    %4728 = vmatpush1.msra.mxu0 %v4422
    %4729 = vmatprep.subr.mxu0 %v4420
    %4730 = vmatpush1.msra.mxu0 %v4419
    %4731 = vmatprep.subr.mxu0 %v4417
    %4732 = vmatpush1.msra.mxu0 %v4416
    %4733 = vmatprep.subr.mxu0 %v4414
    %4734 = vmatpush1.msra.mxu0 %v4413
    %4735 = vmatprep.subr.mxu0 %v4411
    %4736 = vmatpush1.msra.mxu0 %v4410
    %4737 = vmatprep.subr.mxu0 %v4408
    %4738 = vmatpush1.msra.mxu0 %v4407
    %4739 = vmatprep.subr.mxu0 %v4405
    %4740 = vmatpush1.msra.mxu0 %v4404
    %4741 = vmatprep.subr.mxu0 %v4402
    %4742 = vmatpush1.msra.mxu0 %v4401
    %4743 = vmatprep.subr.mxu0 %v4399
    %4744 = vmatpush1.msra.mxu0 %v4398
    %4745 = vmatprep.subr.mxu0 %v4396
    %4746 = vmatpush1.msra.mxu0 %v4395
    %4747 = vmatprep.subr.mxu0 %v4489
    %4748 = vmatpush2.msra.mxu0 %v4488
    %4749 = vmatprep.subr.mxu0 %v4486
    %4750 = vmatpush2.msra.mxu0 %v4485
    %4751 = vmatprep.subr.mxu0 %v4483
    %4752 = vmatpush2.msra.mxu0 %v4482
    %4753 = vmatprep.subr.mxu0 %v4480
    %4754 = vmatpush2.msra.mxu0 %v4479
    %4755 = vmatprep.subr.mxu0 %v4477
    %4756 = vmatpush2.msra.mxu0 %v4476
    %4757 = vmatprep.subr.mxu0 %v4474
    %4758 = vmatpush2.msra.mxu0 %v4473
    %4759 = vmatprep.subr.mxu0 %v4471
    %4760 = vmatpush2.msra.mxu0 %v4470
    %4761 = vmatprep.subr.mxu0 %v4468
    %4762 = vmatpush2.msra.mxu0 %v4467
    %4763 = vmatprep.subr.mxu0 %v4465
    %4764 = vmatpush2.msra.mxu0 %v4464
    %4765 = vmatprep.subr.mxu0 %v4462
    %4766 = vmatpush2.msra.mxu0 %v4461
    %4767 = vmatprep.subr.mxu0 %v4459
    %4768 = vmatpush2.msra.mxu0 %v4458
    %4769 = vmatprep.subr.mxu0 %v4456
    %4770 = vmatpush2.msra.mxu0 %v4455
    %4771 = vmatprep.subr.mxu0 %v4453
    %4772 = vmatpush2.msra.mxu0 %v4452
    %4773 = vmatprep.subr.mxu0 %v4450
    %4774 = vmatpush2.msra.mxu0 %v4449
    %4775 = vmatprep.subr.mxu0 %v4447
    %4776 = vmatpush2.msra.mxu0 %v4446
    %4777 = vmatprep.subr.mxu0 %v4444
    %4778 = vmatpush2.msra.mxu0 %v4443
    %4779 = vmatprep.mubr.f32.mxu0 %v4628
    %4780 = vmatmul.mubr.f32.gmra.mxu0 %v4296
    %v4781 = vpop.f32.mrf.mxu0
    %v4782 = vadd.f32 %v4711, %v4781
    %v4783 = vpop.f32.mrf.mxu0
    %v4784 = vadd.f32 %v4713, %v4783
    %4785 = vdwg.mxu0
    %4786 = vmatprep.subr.mxu0 %v4537
    %4787 = vmatpush1.msra.mxu0 %v4536
    %4788 = vmatprep.subr.mxu0 %v4534
    %4789 = vmatpush1.msra.mxu0 %v4533
    %4790 = vmatprep.subr.mxu0 %v4531
    %4791 = vmatpush1.msra.mxu0 %v4530
    %4792 = vmatprep.subr.mxu0 %v4528
    %4793 = vmatpush1.msra.mxu0 %v4527
    %4794 = vmatprep.subr.mxu0 %v4525
    %4795 = vmatpush1.msra.mxu0 %v4524
    %4796 = vmatprep.subr.mxu0 %v4522
    %4797 = vmatpush1.msra.mxu0 %v4521
    %4798 = vmatprep.subr.mxu0 %v4519
    %4799 = vmatpush1.msra.mxu0 %v4518
    %4800 = vmatprep.subr.mxu0 %v4516
    %4801 = vmatpush1.msra.mxu0 %v4515
    %4802 = vmatprep.subr.mxu0 %v4513
    %4803 = vmatpush1.msra.mxu0 %v4512
    %4804 = vmatprep.subr.mxu0 %v4510
    %4805 = vmatpush1.msra.mxu0 %v4509
    %4806 = vmatprep.subr.mxu0 %v4507
    %4807 = vmatpush1.msra.mxu0 %v4506
    %4808 = vmatprep.subr.mxu0 %v4504
    %4809 = vmatpush1.msra.mxu0 %v4503
    %4810 = vmatprep.subr.mxu0 %v4501
    %4811 = vmatpush1.msra.mxu0 %v4500
    %4812 = vmatprep.subr.mxu0 %v4498
    %4813 = vmatpush1.msra.mxu0 %v4497
    %4814 = vmatprep.subr.mxu0 %v4495
    %4815 = vmatpush1.msra.mxu0 %v4494
    %4816 = vmatprep.subr.mxu0 %v4492
    %4817 = vmatpush1.msra.mxu0 %v4491
    %4818 = vmatprep.subr.mxu0 %v4585
    %4819 = vmatpush2.msra.mxu0 %v4584
    %4820 = vmatprep.subr.mxu0 %v4582
    %4821 = vmatpush2.msra.mxu0 %v4581
    %4822 = vmatprep.subr.mxu0 %v4579
    %4823 = vmatpush2.msra.mxu0 %v4578
    %4824 = vmatprep.subr.mxu0 %v4576
    %4825 = vmatpush2.msra.mxu0 %v4575
    %4826 = vmatprep.subr.mxu0 %v4573
    %4827 = vmatpush2.msra.mxu0 %v4572
    %4828 = vmatprep.subr.mxu0 %v4570
    %4829 = vmatpush2.msra.mxu0 %v4569
    %4830 = vmatprep.subr.mxu0 %v4567
    %4831 = vmatpush2.msra.mxu0 %v4566
    %4832 = vmatprep.subr.mxu0 %v4564
    %4833 = vmatpush2.msra.mxu0 %v4563
    %4834 = vmatprep.subr.mxu0 %v4561
    %4835 = vmatpush2.msra.mxu0 %v4560
    %4836 = vmatprep.subr.mxu0 %v4558
    %4837 = vmatpush2.msra.mxu0 %v4557
    %4838 = vmatprep.subr.mxu0 %v4555
    %4839 = vmatpush2.msra.mxu0 %v4554
    %4840 = vmatprep.subr.mxu0 %v4552
    %4841 = vmatpush2.msra.mxu0 %v4551
    %4842 = vmatprep.subr.mxu0 %v4549
    %4843 = vmatpush2.msra.mxu0 %v4548
    %4844 = vmatprep.subr.mxu0 %v4546
    %4845 = vmatpush2.msra.mxu0 %v4545
    %4846 = vmatprep.subr.mxu0 %v4543
    %4847 = vmatpush2.msra.mxu0 %v4542
    %4848 = vmatprep.subr.mxu0 %v4540
    %4849 = vmatpush2.msra.mxu0 %v4539
    %4850 = vmatprep.mubr.f32.mxu0 %v4629
    %4851 = vmatmul.mubr.f32.gmra.mxu0 %v4297
    %v4852 = vpop.f32.mrf.mxu0
    %v4853 = vadd.f32 %v4782, %v4852
    %v4854 = vpop.f32.mrf.mxu0
    %v4855 = vadd.f32 %v4784, %v4854
    %4856 = vdwg.mxu0
    %4857 = vmatprep.subr.mxu0 0.0
    %4858 = vmatpush1.msra.mxu0 0.0
    %4859 = vmatprep.subr.mxu0 0.0
    %4860 = vmatpush1.msra.mxu0 0.0
    %4861 = vmatprep.subr.mxu0 0.0
    %4862 = vmatpush1.msra.mxu0 0.0
    %4863 = vmatprep.subr.mxu0 0.0
    %4864 = vmatpush1.msra.mxu0 0.0
    %4865 = vmatprep.subr.mxu0 %v4639
    %4866 = vmatpush1.msra.mxu0 %v4636
    %4867 = vmatprep.subr.mxu0 %v4618
    %4868 = vmatpush1.msra.mxu0 %v4617
    %4869 = vmatprep.subr.mxu0 %v4615
    %4870 = vmatpush1.msra.mxu0 %v4614
    %4871 = vmatprep.subr.mxu0 %v4612
    %4872 = vmatpush1.msra.mxu0 %v4611
    %4873 = vmatprep.subr.mxu0 %v4609
    %4874 = vmatpush1.msra.mxu0 %v4608
    %4875 = vmatprep.subr.mxu0 %v4606
    %4876 = vmatpush1.msra.mxu0 %v4605
    %4877 = vmatprep.subr.mxu0 %v4603
    %4878 = vmatpush1.msra.mxu0 %v4602
    %4879 = vmatprep.subr.mxu0 %v4600
    %4880 = vmatpush1.msra.mxu0 %v4599
    %4881 = vmatprep.subr.mxu0 %v4597
    %4882 = vmatpush1.msra.mxu0 %v4596
    %4883 = vmatprep.subr.mxu0 %v4594
    %4884 = vmatpush1.msra.mxu0 %v4593
    %4885 = vmatprep.subr.mxu0 %v4591
    %4886 = vmatpush1.msra.mxu0 %v4590
    %4887 = vmatprep.subr.mxu0 %v4588
    %4888 = vmatpush1.msra.mxu0 %v4587
    %4889 = vmatprep.subr.mxu0 0.0
    %4890 = vmatpush2.msra.mxu0 0.0
    %4891 = vmatprep.subr.mxu0 0.0
    %4892 = vmatpush2.msra.mxu0 0.0
    %4893 = vmatprep.subr.mxu0 0.0
    %4894 = vmatpush2.msra.mxu0 0.0
    %4895 = vmatprep.subr.mxu0 0.0
    %4896 = vmatpush2.msra.mxu0 0.0
    %4897 = vmatprep.subr.mxu0 0.0
    %4898 = vmatpush2.msra.mxu0 0.0
    %4899 = vmatprep.subr.mxu0 0.0
    %4900 = vmatpush2.msra.mxu0 0.0
    %4901 = vmatprep.subr.mxu0 0.0
    %4902 = vmatpush2.msra.mxu0 0.0
    %4903 = vmatprep.subr.mxu0 0.0
    %4904 = vmatpush2.msra.mxu0 0.0
    %4905 = vmatprep.subr.mxu0 0.0
    %4906 = vmatpush2.msra.mxu0 0.0
    %4907 = vmatprep.subr.mxu0 0.0
    %4908 = vmatpush2.msra.mxu0 0.0
    %4909 = vmatprep.subr.mxu0 0.0
    %4910 = vmatpush2.msra.mxu0 0.0
    %4911 = vmatprep.subr.mxu0 0.0
    %4912 = vmatpush2.msra.mxu0 0.0
    %4913 = vmatprep.subr.mxu0 0.0
    %4914 = vmatpush2.msra.mxu0 0.0
    %4915 = vmatprep.subr.mxu0 0.0
    %4916 = vmatpush2.msra.mxu0 0.0
    %4917 = vmatprep.subr.mxu0 0.0
    %4918 = vmatpush2.msra.mxu0 0.0
    %4919 = vmatprep.subr.mxu0 0.0
    %4920 = vmatpush2.msra.mxu0 0.0
    %4921 = vmatprep.mubr.f32.mxu0 0.0
    %4922 = vmatmul.mubr.f32.gmra.mxu0 %v4633
    %v4923 = vpop.f32.mrf.mxu0
    %v4924 = vadd.f32 %v4853, %v4923
    %v4925 = vpop.f32.mrf.mxu0
    %v4926 = vadd.f32 %v4855, %v4925
    %4927 = vdwg.mxu0
    %4928 = vmatprep.subr.mxu0 0.0
    %4929 = vmatpush1.msra.mxu0 %v4346
    %4930 = vmatprep.subr.mxu0 0.0
    %4931 = vmatpush1.msra.mxu0 %v4343
    %4932 = vmatprep.subr.mxu0 0.0
    %4933 = vmatpush1.msra.mxu0 %v4340
    %4934 = vmatprep.subr.mxu0 0.0
    %4935 = vmatpush1.msra.mxu0 %v4337
    %4936 = vmatprep.subr.mxu0 0.0
    %4937 = vmatpush1.msra.mxu0 %v4334
    %4938 = vmatprep.subr.mxu0 0.0
    %4939 = vmatpush1.msra.mxu0 %v4331
    %4940 = vmatprep.subr.mxu0 0.0
    %4941 = vmatpush1.msra.mxu0 %v4328
    %4942 = vmatprep.subr.mxu0 0.0
    %4943 = vmatpush1.msra.mxu0 %v4325
    %4944 = vmatprep.subr.mxu0 0.0
    %4945 = vmatpush1.msra.mxu0 %v4322
    %4946 = vmatprep.subr.mxu0 0.0
    %4947 = vmatpush1.msra.mxu0 %v4319
    %4948 = vmatprep.subr.mxu0 0.0
    %4949 = vmatpush1.msra.mxu0 %v4316
    %4950 = vmatprep.subr.mxu0 0.0
    %4951 = vmatpush1.msra.mxu0 %v4313
    %4952 = vmatprep.subr.mxu0 0.0
    %4953 = vmatpush1.msra.mxu0 %v4310
    %4954 = vmatprep.subr.mxu0 0.0
    %4955 = vmatpush1.msra.mxu0 %v4307
    %4956 = vmatprep.subr.mxu0 0.0
    %4957 = vmatpush1.msra.mxu0 %v4304
    %4958 = vmatprep.subr.mxu0 0.0
    %4959 = vmatpush1.msra.mxu0 %v4301
    %4960 = vmatprep.subr.mxu0 0.0
    %4961 = vmatpush2.msra.mxu0 %v4394
    %4962 = vmatprep.subr.mxu0 0.0
    %4963 = vmatpush2.msra.mxu0 %v4391
    %4964 = vmatprep.subr.mxu0 0.0
    %4965 = vmatpush2.msra.mxu0 %v4388
    %4966 = vmatprep.subr.mxu0 0.0
    %4967 = vmatpush2.msra.mxu0 %v4385
    %4968 = vmatprep.subr.mxu0 0.0
    %4969 = vmatpush2.msra.mxu0 %v4382
    %4970 = vmatprep.subr.mxu0 0.0
    %4971 = vmatpush2.msra.mxu0 %v4379
    %4972 = vmatprep.subr.mxu0 0.0
    %4973 = vmatpush2.msra.mxu0 %v4376
    %4974 = vmatprep.subr.mxu0 0.0
    %4975 = vmatpush2.msra.mxu0 %v4373
    %4976 = vmatprep.subr.mxu0 0.0
    %4977 = vmatpush2.msra.mxu0 %v4370
    %4978 = vmatprep.subr.mxu0 0.0
    %4979 = vmatpush2.msra.mxu0 %v4367
    %4980 = vmatprep.subr.mxu0 0.0
    %4981 = vmatpush2.msra.mxu0 %v4364
    %4982 = vmatprep.subr.mxu0 0.0
    %4983 = vmatpush2.msra.mxu0 %v4361
    %4984 = vmatprep.subr.mxu0 0.0
    %4985 = vmatpush2.msra.mxu0 %v4358
    %4986 = vmatprep.subr.mxu0 0.0
    %4987 = vmatpush2.msra.mxu0 %v4355
    %4988 = vmatprep.subr.mxu0 0.0
    %4989 = vmatpush2.msra.mxu0 %v4352
    %4990 = vmatprep.subr.mxu0 0.0
    %4991 = vmatpush2.msra.mxu0 %v4349
    %4992 = vmatprep.mubr.f32.mxu0 %v4627
    %4993 = vmatmul.mubr.f32.gmra.mxu0 %v4295
    %v4994 = vpop.f32.mrf.mxu0
    %v4995 = vadd.f32 0.0, %v4994
    %v4996 = vpop.f32.mrf.mxu0
    %4997 = vdwg.mxu0
    %4998 = vmatprep.subr.mxu0 0.0
    %4999 = vmatpush1.msra.mxu0 %v4442
    %5000 = vmatprep.subr.mxu0 0.0
    %5001 = vmatpush1.msra.mxu0 %v4439
    %5002 = vmatprep.subr.mxu0 0.0
    %5003 = vmatpush1.msra.mxu0 %v4436
    %5004 = vmatprep.subr.mxu0 0.0
    %5005 = vmatpush1.msra.mxu0 %v4433
    %5006 = vmatprep.subr.mxu0 0.0
    %5007 = vmatpush1.msra.mxu0 %v4430
    %5008 = vmatprep.subr.mxu0 0.0
    %5009 = vmatpush1.msra.mxu0 %v4427
    %5010 = vmatprep.subr.mxu0 0.0
    %5011 = vmatpush1.msra.mxu0 %v4424
    %5012 = vmatprep.subr.mxu0 0.0
    %5013 = vmatpush1.msra.mxu0 %v4421
    %5014 = vmatprep.subr.mxu0 0.0
    %5015 = vmatpush1.msra.mxu0 %v4418
    %5016 = vmatprep.subr.mxu0 0.0
    %5017 = vmatpush1.msra.mxu0 %v4415
    %5018 = vmatprep.subr.mxu0 0.0
    %5019 = vmatpush1.msra.mxu0 %v4412
    %5020 = vmatprep.subr.mxu0 0.0
    %5021 = vmatpush1.msra.mxu0 %v4409
    %5022 = vmatprep.subr.mxu0 0.0
    %5023 = vmatpush1.msra.mxu0 %v4406
    %5024 = vmatprep.subr.mxu0 0.0
    %5025 = vmatpush1.msra.mxu0 %v4403
    %5026 = vmatprep.subr.mxu0 0.0
    %5027 = vmatpush1.msra.mxu0 %v4400
    %5028 = vmatprep.subr.mxu0 0.0
    %5029 = vmatpush1.msra.mxu0 %v4397
    %5030 = vmatprep.subr.mxu0 0.0
    %5031 = vmatpush2.msra.mxu0 %v4490
    %5032 = vmatprep.subr.mxu0 0.0
    %5033 = vmatpush2.msra.mxu0 %v4487
    %5034 = vmatprep.subr.mxu0 0.0
    %5035 = vmatpush2.msra.mxu0 %v4484
    %5036 = vmatprep.subr.mxu0 0.0
    %5037 = vmatpush2.msra.mxu0 %v4481
    %5038 = vmatprep.subr.mxu0 0.0
    %5039 = vmatpush2.msra.mxu0 %v4478
    %5040 = vmatprep.subr.mxu0 0.0
    %5041 = vmatpush2.msra.mxu0 %v4475
    %5042 = vmatprep.subr.mxu0 0.0
    %5043 = vmatpush2.msra.mxu0 %v4472
    %5044 = vmatprep.subr.mxu0 0.0
    %5045 = vmatpush2.msra.mxu0 %v4469
    %5046 = vmatprep.subr.mxu0 0.0
    %5047 = vmatpush2.msra.mxu0 %v4466
    %5048 = vmatprep.subr.mxu0 0.0
    %5049 = vmatpush2.msra.mxu0 %v4463
    %5050 = vmatprep.subr.mxu0 0.0
    %5051 = vmatpush2.msra.mxu0 %v4460
    %5052 = vmatprep.subr.mxu0 0.0
    %5053 = vmatpush2.msra.mxu0 %v4457
    %5054 = vmatprep.subr.mxu0 0.0
    %5055 = vmatpush2.msra.mxu0 %v4454
    %5056 = vmatprep.subr.mxu0 0.0
    %5057 = vmatpush2.msra.mxu0 %v4451
    %5058 = vmatprep.subr.mxu0 0.0
    %5059 = vmatpush2.msra.mxu0 %v4448
    %5060 = vmatprep.subr.mxu0 0.0
    %5061 = vmatpush2.msra.mxu0 %v4445
    %5062 = vmatprep.mubr.f32.mxu0 %v4628
    %5063 = vmatmul.mubr.f32.gmra.mxu0 %v4296
    %v5064 = vpop.f32.mrf.mxu0
    %v5065 = vadd.f32 %v4995, %v5064
    %v5066 = vpop.f32.mrf.mxu0
    %5067 = vdwg.mxu0
    %5068 = vmatprep.subr.mxu0 0.0
    %5069 = vmatpush1.msra.mxu0 %v4538
    %5070 = vmatprep.subr.mxu0 0.0
    %5071 = vmatpush1.msra.mxu0 %v4535
    %5072 = vmatprep.subr.mxu0 0.0
    %5073 = vmatpush1.msra.mxu0 %v4532
    %5074 = vmatprep.subr.mxu0 0.0
    %5075 = vmatpush1.msra.mxu0 %v4529
    %5076 = vmatprep.subr.mxu0 0.0
    %5077 = vmatpush1.msra.mxu0 %v4526
    %5078 = vmatprep.subr.mxu0 0.0
    %5079 = vmatpush1.msra.mxu0 %v4523
    %5080 = vmatprep.subr.mxu0 0.0
    %5081 = vmatpush1.msra.mxu0 %v4520
    %5082 = vmatprep.subr.mxu0 0.0
    %5083 = vmatpush1.msra.mxu0 %v4517
    %5084 = vmatprep.subr.mxu0 0.0
    %5085 = vmatpush1.msra.mxu0 %v4514
    %5086 = vmatprep.subr.mxu0 0.0
    %5087 = vmatpush1.msra.mxu0 %v4511
    %5088 = vmatprep.subr.mxu0 0.0
    %5089 = vmatpush1.msra.mxu0 %v4508
    %5090 = vmatprep.subr.mxu0 0.0
    %5091 = vmatpush1.msra.mxu0 %v4505
    %5092 = vmatprep.subr.mxu0 0.0
    %5093 = vmatpush1.msra.mxu0 %v4502
    %5094 = vmatprep.subr.mxu0 0.0
    %5095 = vmatpush1.msra.mxu0 %v4499
    %5096 = vmatprep.subr.mxu0 0.0
    %5097 = vmatpush1.msra.mxu0 %v4496
    %5098 = vmatprep.subr.mxu0 0.0
    %5099 = vmatpush1.msra.mxu0 %v4493
    %5100 = vmatprep.subr.mxu0 0.0
    %5101 = vmatpush2.msra.mxu0 %v4586
    %5102 = vmatprep.subr.mxu0 0.0
    %5103 = vmatpush2.msra.mxu0 %v4583
    %5104 = vmatprep.subr.mxu0 0.0
    %5105 = vmatpush2.msra.mxu0 %v4580
    %5106 = vmatprep.subr.mxu0 0.0
    %5107 = vmatpush2.msra.mxu0 %v4577
    %5108 = vmatprep.subr.mxu0 0.0
    %5109 = vmatpush2.msra.mxu0 %v4574
    %5110 = vmatprep.subr.mxu0 0.0
    %5111 = vmatpush2.msra.mxu0 %v4571
    %5112 = vmatprep.subr.mxu0 0.0
    %5113 = vmatpush2.msra.mxu0 %v4568
    %5114 = vmatprep.subr.mxu0 0.0
    %5115 = vmatpush2.msra.mxu0 %v4565
    %5116 = vmatprep.subr.mxu0 0.0
    %5117 = vmatpush2.msra.mxu0 %v4562
    %5118 = vmatprep.subr.mxu0 0.0
    %5119 = vmatpush2.msra.mxu0 %v4559
    %5120 = vmatprep.subr.mxu0 0.0
    %5121 = vmatpush2.msra.mxu0 %v4556
    %5122 = vmatprep.subr.mxu0 0.0
    %5123 = vmatpush2.msra.mxu0 %v4553
    %5124 = vmatprep.subr.mxu0 0.0
    %5125 = vmatpush2.msra.mxu0 %v4550
    %5126 = vmatprep.subr.mxu0 0.0
    %5127 = vmatpush2.msra.mxu0 %v4547
    %5128 = vmatprep.subr.mxu0 0.0
    %5129 = vmatpush2.msra.mxu0 %v4544
    %5130 = vmatprep.subr.mxu0 0.0
    %5131 = vmatpush2.msra.mxu0 %v4541
    %5132 = vmatprep.mubr.f32.mxu0 %v4629
    %5133 = vmatmul.mubr.f32.gmra.mxu0 %v4297
    %v5134 = vpop.f32.mrf.mxu0
    %v5135 = vadd.f32 %v5065, %v5134
    %v5136 = vpop.f32.mrf.mxu0
    %5137 = vdwg.mxu0
    %5138 = vmatprep.subr.mxu0 0.0
    %5139 = vmatpush1.msra.mxu0 0.0
    %5140 = vmatprep.subr.mxu0 0.0
    %5141 = vmatpush1.msra.mxu0 0.0
    %5142 = vmatprep.subr.mxu0 0.0
    %5143 = vmatpush1.msra.mxu0 0.0
    %5144 = vmatprep.subr.mxu0 0.0
    %5145 = vmatpush1.msra.mxu0 0.0
    %5146 = vmatprep.subr.mxu0 0.0
    %5147 = vmatpush1.msra.mxu0 %v4642
    %5148 = vmatprep.subr.mxu0 0.0
    %5149 = vmatpush1.msra.mxu0 %v4619
    %5150 = vmatprep.subr.mxu0 0.0
    %5151 = vmatpush1.msra.mxu0 %v4616
    %5152 = vmatprep.subr.mxu0 0.0
    %5153 = vmatpush1.msra.mxu0 %v4613
    %5154 = vmatprep.subr.mxu0 0.0
    %5155 = vmatpush1.msra.mxu0 %v4610
    %5156 = vmatprep.subr.mxu0 0.0
    %5157 = vmatpush1.msra.mxu0 %v4607
    %5158 = vmatprep.subr.mxu0 0.0
    %5159 = vmatpush1.msra.mxu0 %v4604
    %5160 = vmatprep.subr.mxu0 0.0
    %5161 = vmatpush1.msra.mxu0 %v4601
    %5162 = vmatprep.subr.mxu0 0.0
    %5163 = vmatpush1.msra.mxu0 %v4598
    %5164 = vmatprep.subr.mxu0 0.0
    %5165 = vmatpush1.msra.mxu0 %v4595
    %5166 = vmatprep.subr.mxu0 0.0
    %5167 = vmatpush1.msra.mxu0 %v4592
    %5168 = vmatprep.subr.mxu0 0.0
    %5169 = vmatpush1.msra.mxu0 %v4589
    %5170 = vmatprep.subr.mxu0 0.0
    %5171 = vmatpush2.msra.mxu0 0.0
    %5172 = vmatprep.subr.mxu0 0.0
    %5173 = vmatpush2.msra.mxu0 0.0
    %5174 = vmatprep.subr.mxu0 0.0
    %5175 = vmatpush2.msra.mxu0 0.0
    %5176 = vmatprep.subr.mxu0 0.0
    %5177 = vmatpush2.msra.mxu0 0.0
    %5178 = vmatprep.subr.mxu0 0.0
    %5179 = vmatpush2.msra.mxu0 0.0
    %5180 = vmatprep.subr.mxu0 0.0
    %5181 = vmatpush2.msra.mxu0 0.0
    %5182 = vmatprep.subr.mxu0 0.0
    %5183 = vmatpush2.msra.mxu0 0.0
    %5184 = vmatprep.subr.mxu0 0.0
    %5185 = vmatpush2.msra.mxu0 0.0
    %5186 = vmatprep.subr.mxu0 0.0
    %5187 = vmatpush2.msra.mxu0 0.0
    %5188 = vmatprep.subr.mxu0 0.0
    %5189 = vmatpush2.msra.mxu0 0.0
    %5190 = vmatprep.subr.mxu0 0.0
    %5191 = vmatpush2.msra.mxu0 0.0
    %5192 = vmatprep.subr.mxu0 0.0
    %5193 = vmatpush2.msra.mxu0 0.0
    %5194 = vmatprep.subr.mxu0 0.0
    %5195 = vmatpush2.msra.mxu0 0.0
    %5196 = vmatprep.subr.mxu0 0.0
    %5197 = vmatpush2.msra.mxu0 0.0
    %5198 = vmatprep.subr.mxu0 0.0
    %5199 = vmatpush2.msra.mxu0 0.0
    %5200 = vmatprep.subr.mxu0 0.0
    %5201 = vmatpush2.msra.mxu0 0.0
    %5202 = vmatprep.mubr.f32.mxu0 0.0
    %5203 = vmatmul.mubr.f32.gmra.mxu0 %v4633
    %v5204 = vpop.f32.mrf.mxu0
    %v5205 = vadd.f32 %v5135, %v5204
    %v5206 = vpop.f32.mrf.mxu0
    %5207 = vdwg.mxu0
    %v5210 = vcombine.low %v4924, %v4926
    %s5212 = scalar_lea.vmem [#allocation3], 12
    %5213 = vst [vmem:[%s5212] sm:$0xff] %v5210
    %5214 = vst.msk [vmem:[%s5212 + $0x8] sm:$0xf] %vm2391, %v5205
    %v5215 = vld [vmem:[%s5212] sm:$0xff]
    %v5216 = vld [vmem:[%s5212 + $0x8] sm:$0xf]
    %v5218 = vcombine.high %v5215, %v5215
    %v5220 = vcombine.low %v5215, %v5215
    %5221 = vrot.lane.b32.xlu0 %v5220, 127
    %v5222 = vpop.permute.xlu0 %5221
    %5223 = vrot.lane.b32.xlu0 %v5215, 127
    %v5224 = vpop.permute.xlu0 %5223
    %v5225 = vsel %vm93, %v5222, %v5224
    %5228 = vrot.lane.b32.xlu0 %v5215, 126
    %v5229 = vpop.permute.xlu0 %5228
    %5230 = vrot.lane.b32.xlu0 %v5218, 126
    %v5231 = vpop.permute.xlu0 %5230
    %v5232 = vsel %vm121, %v5229, %v5231
    %5235 = vrot.lane.b32.xlu0 %v5220, 125
    %v5236 = vpop.permute.xlu0 %5235
    %5237 = vrot.lane.b32.xlu0 %v5215, 125
    %v5238 = vpop.permute.xlu0 %5237
    %v5239 = vsel %vm149, %v5236, %v5238
    %5242 = vrot.lane.b32.xlu0 %v5215, 124
    %v5243 = vpop.permute.xlu0 %5242
    %5244 = vrot.lane.b32.xlu0 %v5218, 124
    %v5245 = vpop.permute.xlu0 %5244
    %v5246 = vsel %vm206, %v5243, %v5245
    %v5250 = vcombine.low %v5216, %v5216
    %5251 = vrot.lane.b32.xlu0 %v5220, 110
    %v5252 = vpop.permute.xlu0 %5251
    %5253 = vrot.lane.b32.xlu0 %v5215, 110
    %v5254 = vpop.permute.xlu0 %5253
    %5255 = vrot.lane.b32.xlu0 %v5250, 110
    %v5256 = vpop.permute.xlu0 %5255
    %v5257 = vsel %vm2435, %v5252, %v5254
    %v5258 = vsel %vm2435, %v5254, %v5256
    %5261 = vrot.lane.b32.xlu0 %v5215, 109
    %v5262 = vpop.permute.xlu0 %5261
    %5263 = vrot.lane.b32.xlu0 %v5218, 109
    %v5264 = vpop.permute.xlu0 %5263
    %5265 = vrot.lane.b32.xlu0 %v5216, 109
    %v5266 = vpop.permute.xlu0 %5265
    %v5267 = vsel %vm2446, %v5262, %v5264
    %v5268 = vsel %vm2446, %v5264, %v5266
    %5271 = vrot.lane.b32.xlu0 %v5220, 108
    %v5272 = vpop.permute.xlu0 %5271
    %5273 = vrot.lane.b32.xlu0 %v5215, 108
    %v5274 = vpop.permute.xlu0 %5273
    %5275 = vrot.lane.b32.xlu0 %v5250, 108
    %v5276 = vpop.permute.xlu0 %5275
    %v5277 = vsel %vm2457, %v5272, %v5274
    %v5278 = vsel %vm2457, %v5274, %v5276
    %5281 = vrot.lane.b32.xlu0 %v5215, 107
    %v5282 = vpop.permute.xlu0 %5281
    %5283 = vrot.lane.b32.xlu0 %v5218, 107
    %v5284 = vpop.permute.xlu0 %5283
    %5285 = vrot.lane.b32.xlu0 %v5216, 107
    %v5286 = vpop.permute.xlu0 %5285
    %v5287 = vsel %vm2468, %v5282, %v5284
    %v5288 = vsel %vm2468, %v5284, %v5286
    %5291 = vrot.lane.b32.xlu0 %v5220, 106
    %v5292 = vpop.permute.xlu0 %5291
    %5293 = vrot.lane.b32.xlu0 %v5215, 106
    %v5294 = vpop.permute.xlu0 %5293
    %5295 = vrot.lane.b32.xlu0 %v5250, 106
    %v5296 = vpop.permute.xlu0 %5295
    %v5297 = vsel %vm2479, %v5292, %v5294
    %v5298 = vsel %vm2479, %v5294, %v5296
    %5301 = vrot.lane.b32.xlu0 %v5215, 92
    %v5302 = vpop.permute.xlu0 %5301
    %5303 = vrot.lane.b32.xlu0 %v5218, 92
    %v5304 = vpop.permute.xlu0 %5303
    %5305 = vrot.lane.b32.xlu0 %v5216, 92
    %v5306 = vpop.permute.xlu0 %5305
    %v5307 = vsel %vm364, %v5302, %v5304
    %v5308 = vsel %vm364, %v5304, %v5306
    %5311 = vrot.lane.b32.xlu0 %v5220, 91
    %v5312 = vpop.permute.xlu0 %5311
    %5313 = vrot.lane.b32.xlu0 %v5215, 91
    %v5314 = vpop.permute.xlu0 %5313
    %5315 = vrot.lane.b32.xlu0 %v5250, 91
    %v5316 = vpop.permute.xlu0 %5315
    %v5317 = vsel %vm1810, %v5312, %v5314
    %v5318 = vsel %vm1810, %v5314, %v5316
    %5321 = vrot.lane.b32.xlu0 %v5215, 90
    %v5322 = vpop.permute.xlu0 %5321
    %5323 = vrot.lane.b32.xlu0 %v5218, 90
    %v5324 = vpop.permute.xlu0 %5323
    %5325 = vrot.lane.b32.xlu0 %v5216, 90
    %v5326 = vpop.permute.xlu0 %5325
    %v5327 = vsel %vm2510, %v5322, %v5324
    %v5328 = vsel %vm2510, %v5324, %v5326
    %5331 = vrot.lane.b32.xlu0 %v5220, 89
    %v5332 = vpop.permute.xlu0 %5331
    %5333 = vrot.lane.b32.xlu0 %v5215, 89
    %v5334 = vpop.permute.xlu0 %5333
    %5335 = vrot.lane.b32.xlu0 %v5250, 89
    %v5336 = vpop.permute.xlu0 %5335
    %v5337 = vsel %vm2521, %v5332, %v5334
    %v5338 = vsel %vm2521, %v5334, %v5336
    %5341 = vrot.lane.b32.xlu0 %v5215, 88
    %v5342 = vpop.permute.xlu0 %5341
    %5343 = vrot.lane.b32.xlu0 %v5218, 88
    %v5344 = vpop.permute.xlu0 %5343
    %5345 = vrot.lane.b32.xlu0 %v5216, 88
    %v5346 = vpop.permute.xlu0 %5345
    %v5347 = vsel %vm2532, %v5342, %v5344
    %v5348 = vsel %vm2532, %v5344, %v5346
    %5351 = vrot.lane.b32.xlu0 %v5220, 74
    %v5352 = vpop.permute.xlu0 %5351
    %5353 = vrot.lane.b32.xlu0 %v5215, 74
    %v5354 = vpop.permute.xlu0 %5353
    %5355 = vrot.lane.b32.xlu0 %v5250, 74
    %v5356 = vpop.permute.xlu0 %5355
    %v5357 = vsel %vm2543, %v5352, %v5354
    %v5358 = vsel %vm2543, %v5354, %v5356
    %v5361 = vsel %vm589, %v5215, %v5225
    %v5362 = vsel %vm589, %v5218, %v5224
    %v5363 = vsel %vm589, %v5232, %v5239
    %v5364 = vsel %vm589, %v5231, %v5238
    %v5365 = vsel %vm589, %v5246, %v5257
    %v5366 = vsel %vm589, %v5245, %v5258
    %v5367 = vsel %vm589, %v5267, %v5277
    %v5368 = vsel %vm589, %v5268, %v5278
    %v5369 = vsel %vm589, %v5287, %v5297
    %v5370 = vsel %vm589, %v5288, %v5298
    %v5371 = vsel %vm589, %v5307, %v5317
    %v5372 = vsel %vm589, %v5308, %v5318
    %v5373 = vsel %vm589, %v5327, %v5337
    %v5374 = vsel %vm589, %v5328, %v5338
    %v5375 = vsel %vm589, %v5347, %v5357
    %v5376 = vsel %vm589, %v5348, %v5358
    %5377 = vrot.lane.b32.xlu0 %v5250, 127
    %v5378 = vpop.permute.xlu0 %5377
    %v5379 = vsel %vm93, %v5224, %v5378
    %5382 = vrot.lane.b32.xlu0 %v5216, 126
    %v5383 = vpop.permute.xlu0 %5382
    %v5384 = vsel %vm121, %v5231, %v5383
    %5387 = vrot.lane.b32.xlu0 %v5250, 125
    %v5388 = vpop.permute.xlu0 %5387
    %v5389 = vsel %vm149, %v5238, %v5388
    %5392 = vrot.lane.b32.xlu0 %v5215, 111
    %v5393 = vpop.permute.xlu0 %5392
    %5394 = vrot.lane.b32.xlu0 %v5218, 111
    %v5395 = vpop.permute.xlu0 %5394
    %5396 = vrot.lane.b32.xlu0 %v5216, 111
    %v5397 = vpop.permute.xlu0 %5396
    %v5398 = vsel %vm2585, %v5393, %v5395
    %v5399 = vsel %vm2585, %v5395, %v5397
    %v5406 = vsel %vm589, %v5218, %v5379
    %v5407 = vsel %vm589, %v5216, %v5378
    %v5408 = vsel %vm589, %v5384, %v5389
    %v5409 = vsel %vm589, %v5383, %v5388
    %v5410 = vsel %vm589, %v5398, %v5257
    %v5411 = vsel %vm589, %v5399, %v5258
    %v5412 = vsel %vm589, %v5397, %v5256
    %v5413 = vsel %vm589, %v5266, %v5276
    %5426 = vrot.lane.b32.xlu0 %v5361, 73
    %v5427 = vpop.permute.xlu0 %5426
    %5428 = vrot.lane.b32.xlu0 %v5406, 73
    %v5429 = vpop.permute.xlu0 %5428
    %5430 = vrot.lane.b32.xlu0 %v5407, 73
    %v5431 = vpop.permute.xlu0 %5430
    %5432 = vrot.lane.b32.xlu0 %v5363, 73
    %v5433 = vpop.permute.xlu0 %5432
    %5434 = vrot.lane.b32.xlu0 %v5408, 73
    %v5435 = vpop.permute.xlu0 %5434
    %5436 = vrot.lane.b32.xlu0 %v5409, 73
    %v5437 = vpop.permute.xlu0 %5436
    %5438 = vrot.lane.b32.xlu0 %v5410, 73
    %v5439 = vpop.permute.xlu0 %5438
    %5440 = vrot.lane.b32.xlu0 %v5411, 73
    %v5441 = vpop.permute.xlu0 %5440
    %5442 = vrot.lane.b32.xlu0 %v5412, 73
    %v5443 = vpop.permute.xlu0 %5442
    %5444 = vrot.lane.b32.xlu0 %v5367, 73
    %v5445 = vpop.permute.xlu0 %5444
    %5446 = vrot.lane.b32.xlu0 %v5368, 73
    %v5447 = vpop.permute.xlu0 %5446
    %5448 = vrot.lane.b32.xlu0 %v5413, 73
    %v5449 = vpop.permute.xlu0 %5448
    %5450 = vrot.lane.b32.xlu0 %v5287, 73
    %v5451 = vpop.permute.xlu0 %5450
    %5452 = vrot.lane.b32.xlu0 %v5288, 73
    %v5453 = vpop.permute.xlu0 %5452
    %5454 = vrot.lane.b32.xlu0 %v5286, 73
    %v5455 = vpop.permute.xlu0 %5454
    %v5456 = vsel %vm2644, %v5427, %v5429
    %v5457 = vsel %vm2644, %v5429, %v5431
    %v5458 = vsel %vm2644, %v5433, %v5435
    %v5459 = vsel %vm2644, %v5435, %v5437
    %v5460 = vsel %vm2644, %v5439, %v5441
    %v5461 = vsel %vm2644, %v5441, %v5443
    %v5462 = vsel %vm2644, %v5445, %v5447
    %v5463 = vsel %vm2644, %v5447, %v5449
    %v5464 = vsel %vm2644, %v5451, %v5453
    %v5465 = vsel %vm2644, %v5453, %v5455
    %v5474 = vld [vmem:[%s3] sm:$0xff]
    %v5475 = vld [vmem:[%s4] sm:$0xff]
    %5477 = vset.pattern.permute.xlu0 0
    %5478 = vperm.xlu0 %5477, %v5475
    %v5479 = vpop.permute.xlu0 %5478
    %v5482 = vsel %vm2670, %v5474, 0
    %v5484 = vsel %vm589, %v5464, 0
    %v5486 = vsel %vm589, %v5465, 0
    %5488 = vmatprep.subr.mxu0 0.0
    %5489 = vmatpush1.msra.mxu0 0.0
    %5490 = vmatprep.subr.mxu0 0.0
    %5491 = vmatpush1.msra.mxu0 0.0
    %5492 = vmatprep.subr.mxu0 0.0
    %5493 = vmatpush1.msra.mxu0 0.0
    %5494 = vmatprep.subr.mxu0 %v5486
    %5495 = vmatpush1.msra.mxu0 %v5484
    %5496 = vmatprep.subr.mxu0 %v5463
    %5497 = vmatpush1.msra.mxu0 %v5462
    %5498 = vmatprep.subr.mxu0 %v5461
    %5499 = vmatpush1.msra.mxu0 %v5460
    %5500 = vmatprep.subr.mxu0 %v5459
    %5501 = vmatpush1.msra.mxu0 %v5458
    %5502 = vmatprep.subr.mxu0 %v5457
    %5503 = vmatpush1.msra.mxu0 %v5456
    %5504 = vmatprep.subr.mxu0 %v5376
    %5505 = vmatpush1.msra.mxu0 %v5375
    %5506 = vmatprep.subr.mxu0 %v5374
    %5507 = vmatpush1.msra.mxu0 %v5373
    %5508 = vmatprep.subr.mxu0 %v5372
    %5509 = vmatpush1.msra.mxu0 %v5371
    %5510 = vmatprep.subr.mxu0 %v5370
    %5511 = vmatpush1.msra.mxu0 %v5369
    %5512 = vmatprep.subr.mxu0 %v5368
    %5513 = vmatpush1.msra.mxu0 %v5367
    %5514 = vmatprep.subr.mxu0 %v5366
    %5515 = vmatpush1.msra.mxu0 %v5365
    %5516 = vmatprep.subr.mxu0 %v5364
    %5517 = vmatpush1.msra.mxu0 %v5363
    %5518 = vmatprep.subr.mxu0 %v5362
    %5519 = vmatpush1.msra.mxu0 %v5361
    %5520 = vmatprep.subr.mxu0 0.0
    %5521 = vmatpush2.msra.mxu0 0.0
    %5522 = vmatprep.subr.mxu0 0.0
    %5523 = vmatpush2.msra.mxu0 0.0
    %5524 = vmatprep.subr.mxu0 0.0
    %5525 = vmatpush2.msra.mxu0 0.0
    %5526 = vmatprep.subr.mxu0 0.0
    %5527 = vmatpush2.msra.mxu0 0.0
    %5528 = vmatprep.subr.mxu0 0.0
    %5529 = vmatpush2.msra.mxu0 0.0
    %5530 = vmatprep.subr.mxu0 0.0
    %5531 = vmatpush2.msra.mxu0 0.0
    %5532 = vmatprep.subr.mxu0 0.0
    %5533 = vmatpush2.msra.mxu0 0.0
    %5534 = vmatprep.subr.mxu0 0.0
    %5535 = vmatpush2.msra.mxu0 0.0
    %5536 = vmatprep.subr.mxu0 0.0
    %5537 = vmatpush2.msra.mxu0 0.0
    %5538 = vmatprep.subr.mxu0 0.0
    %5539 = vmatpush2.msra.mxu0 0.0
    %5540 = vmatprep.subr.mxu0 0.0
    %5541 = vmatpush2.msra.mxu0 0.0
    %5542 = vmatprep.subr.mxu0 0.0
    %5543 = vmatpush2.msra.mxu0 0.0
    %5544 = vmatprep.subr.mxu0 0.0
    %5545 = vmatpush2.msra.mxu0 0.0
    %5546 = vmatprep.subr.mxu0 0.0
    %5547 = vmatpush2.msra.mxu0 0.0
    %5548 = vmatprep.subr.mxu0 0.0
    %5549 = vmatpush2.msra.mxu0 0.0
    %5550 = vmatprep.subr.mxu0 0.0
    %5551 = vmatpush2.msra.mxu0 0.0
    %5552 = vmatprep.mubr.f32.mxu0 0.0
    %5553 = vmatmul.mubr.f32.gmra.mxu0 %v5482
    %v5554 = vpop.f32.mrf.mxu0
    %v5555 = vadd.f32 %v5479, %v5554
    %v5556 = vpop.f32.mrf.mxu0
    %v5557 = vadd.f32 %v5479, %v5556
    %5558 = vdwg.mxu0
    %v5559 = vmax.f32 %v5555, 0.0
    %v5560 = vmax.f32 %v5557, 0.0
    %s5561 = scalar_lea.vmem [#allocation4], 16
    %5562 = vst [vmem:[%s5561] sm:$0xff] %v5559
    %5563 = vst.msk [vmem:[%s5561 + $0x8] sm:$0xff] %vm2752, %v5560
    %v5564 = vld [vmem:[%s5561] sm:$0xff]
    %v5565 = vld [vmem:[%s5561 + $0x8] sm:$0xff]
    %5568 = vrot.lane.b32.xlu0 %v5564, 127
    %v5569 = vpop.permute.xlu0 %5568
    %5570 = vrot.lane.b32.xlu0 %v5565, 127
    %v5571 = vpop.permute.xlu0 %5570
    %v5572 = vsel %vm93, %v5569, %v5571
    %v5575 = vmax.f32 %v5564, %v5572
    %v5576 = vmax.f32 %v5565, %v5571
    %5579 = vrot.lane.b32.xlu0 %v5575, 110
    %v5580 = vpop.permute.xlu0 %5579
    %5581 = vrot.lane.b32.xlu0 %v5576, 110
    %v5582 = vpop.permute.xlu0 %5581
    %v5583 = vsel %vm2435, %v5580, %v5582
    %v5586 = vmax.f32 %v5575, %v5583
    %v5587 = vmax.f32 %v5576, %v5582
    %v5588 = vld [vmem:[%s6] sm:$0xff]
    %v5589 = vld [vmem:[%s6 + $0x8] sm:$0xff]
    %v5590 = vld [vmem:[%s6 + $0x10] sm:$0xff]
    %v5591 = vld [vmem:[%s6 + $0x18] sm:$0xff]
    %v5592 = vld [vmem:[%s6 + $0x20] sm:$0xff]
    %v5593 = vld [vmem:[%s6 + $0x28] sm:$0xff]
    %v5594 = vld [vmem:[%s6 + $0x30] sm:$0xff]
    %v5595 = vld [vmem:[%s6 + $0x38] sm:$0xff]
    %v5596 = vld [vmem:[%s6 + $0x40] sm:$0xff]
    %v5597 = vld [vmem:[%s6 + $0x48] sm:$0xff]
    %v5598 = vld [vmem:[%s6 + $0x50] sm:$0xff]
    %v5599 = vld [vmem:[%s6 + $0x58] sm:$0xff]
    %v5600 = vld [vmem:[%s6 + $0x60] sm:$0xff]
    %v5601 = vld [vmem:[%s6 + $0x68] sm:$0xff]
    %v5602 = vld [vmem:[%s6 + $0x70] sm:$0xff]
    %v5603 = vld [vmem:[%s6 + $0x78] sm:$0xff]
    %v5604 = vld [vmem:[%s6 + $0x80] sm:$0xff]
    %v5605 = vld [vmem:[%s6 + $0x88] sm:$0xff]
    %v5606 = vld [vmem:[%s6 + $0x90] sm:$0xff]
    %v5607 = vld [vmem:[%s6 + $0x98] sm:$0xff]
    %v5608 = vld [vmem:[%s6 + $0xa0] sm:$0xff]
    %v5609 = vld [vmem:[%s6 + $0xa8] sm:$0xff]
    %v5610 = vld [vmem:[%s6 + $0xb0] sm:$0xff]
    %v5611 = vld [vmem:[%s6 + $0xb8] sm:$0xff]
    %v5612 = vld [vmem:[%s6 + $0xc0] sm:$0xff]
    %v5613 = vld [vmem:[%s6 + $0xc8] sm:$0xff]
    %v5614 = vld [vmem:[%s6 + $0xd0] sm:$0xff]
    %v5615 = vld [vmem:[%s6 + $0xd8] sm:$0xff]
    %v5616 = vld [vmem:[%s6 + $0xe0] sm:$0x1f]
    %v5618 = vsel %vm2807, %v5587, 0
    %v5621 = vsel %vm597, %v5616, 0
    %5623 = vmatprep.subr.mxu0 0.0
    %5624 = vmatpush1.msra.mxu0 %v5603
    %5625 = vmatprep.subr.mxu0 0.0
    %5626 = vmatpush1.msra.mxu0 %v5602
    %5627 = vmatprep.subr.mxu0 0.0
    %5628 = vmatpush1.msra.mxu0 %v5601
    %5629 = vmatprep.subr.mxu0 0.0
    %5630 = vmatpush1.msra.mxu0 %v5600
    %5631 = vmatprep.subr.mxu0 0.0
    %5632 = vmatpush1.msra.mxu0 %v5599
    %5633 = vmatprep.subr.mxu0 0.0
    %5634 = vmatpush1.msra.mxu0 %v5598
    %5635 = vmatprep.subr.mxu0 0.0
    %5636 = vmatpush1.msra.mxu0 %v5597
    %5637 = vmatprep.subr.mxu0 0.0
    %5638 = vmatpush1.msra.mxu0 %v5596
    %5639 = vmatprep.subr.mxu0 0.0
    %5640 = vmatpush1.msra.mxu0 %v5595
    %5641 = vmatprep.subr.mxu0 0.0
    %5642 = vmatpush1.msra.mxu0 %v5594
    %5643 = vmatprep.subr.mxu0 0.0
    %5644 = vmatpush1.msra.mxu0 %v5593
    %5645 = vmatprep.subr.mxu0 0.0
    %5646 = vmatpush1.msra.mxu0 %v5592
    %5647 = vmatprep.subr.mxu0 0.0
    %5648 = vmatpush1.msra.mxu0 %v5591
    %5649 = vmatprep.subr.mxu0 0.0
    %5650 = vmatpush1.msra.mxu0 %v5590
    %5651 = vmatprep.subr.mxu0 0.0
    %5652 = vmatpush1.msra.mxu0 %v5589
    %5653 = vmatprep.subr.mxu0 0.0
    %5654 = vmatpush1.msra.mxu0 %v5588
    %5655 = vmatprep.subr.mxu0 0.0
    %5656 = vmatpush2.msra.mxu0 0.0
    %5657 = vmatprep.subr.mxu0 0.0
    %5658 = vmatpush2.msra.mxu0 0.0
    %5659 = vmatprep.subr.mxu0 0.0
    %5660 = vmatpush2.msra.mxu0 0.0
    %5661 = vmatprep.subr.mxu0 0.0
    %5662 = vmatpush2.msra.mxu0 %v5621
    %5663 = vmatprep.subr.mxu0 0.0
    %5664 = vmatpush2.msra.mxu0 %v5615
    %5665 = vmatprep.subr.mxu0 0.0
    %5666 = vmatpush2.msra.mxu0 %v5614
    %5667 = vmatprep.subr.mxu0 0.0
    %5668 = vmatpush2.msra.mxu0 %v5613
    %5669 = vmatprep.subr.mxu0 0.0
    %5670 = vmatpush2.msra.mxu0 %v5612
    %5671 = vmatprep.subr.mxu0 0.0
    %5672 = vmatpush2.msra.mxu0 %v5611
    %5673 = vmatprep.subr.mxu0 0.0
    %5674 = vmatpush2.msra.mxu0 %v5610
    %5675 = vmatprep.subr.mxu0 0.0
    %5676 = vmatpush2.msra.mxu0 %v5609
    %5677 = vmatprep.subr.mxu0 0.0
    %5678 = vmatpush2.msra.mxu0 %v5608
    %5679 = vmatprep.subr.mxu0 0.0
    %5680 = vmatpush2.msra.mxu0 %v5607
    %5681 = vmatprep.subr.mxu0 0.0
    %5682 = vmatpush2.msra.mxu0 %v5606
    %5683 = vmatprep.subr.mxu0 0.0
    %5684 = vmatpush2.msra.mxu0 %v5605
    %5685 = vmatprep.subr.mxu0 0.0
    %5686 = vmatpush2.msra.mxu0 %v5604
    %5687 = vmatprep.mubr.f32.mxu0 %v5618
    %5688 = vmatmul.mubr.f32.gmra.mxu0 %v5586
    %v5689 = vpop.f32.mrf.mxu0
    %v5690 = vadd.f32 0.0, %v5689
    %v5691 = vpop.f32.mrf.mxu0
    %5692 = vdwg.mxu0
    %s5693 = scalar_lea.vmem [#allocation5], 8
    %5694 = vst.msk [vmem:[%s5693] sm:$0xff] %vm2884, %v5690
    %v5695 = vld [vmem:[#allocation5] sm:$0x1]
    %v5696 = vld [vmem:[#allocation5 + $0x8] sm:$0x1]
    %v5697 = vld [vmem:[%s7] sm:$0xff]
    %v5698 = vld [vmem:[%s7 + $0x8] sm:$0xff]
    %v5699 = vld [vmem:[%s7 + $0x10] sm:$0xff]
    %v5700 = vld [vmem:[%s7 + $0x18] sm:$0xff]
    %v5701 = vld [vmem:[%s7 + $0x20] sm:$0xff]
    %v5702 = vld [vmem:[%s7 + $0x28] sm:$0xff]
    %v5703 = vld [vmem:[%s7 + $0x30] sm:$0xff]
    %v5704 = vld [vmem:[%s7 + $0x38] sm:$0xff]
    %v5705 = vld [vmem:[%s7 + $0x40] sm:$0xff]
    %v5706 = vld [vmem:[%s7 + $0x48] sm:$0xff]
    %v5707 = vld [vmem:[%s7 + $0x50] sm:$0xff]
    %v5708 = vld [vmem:[%s7 + $0x58] sm:$0xff]
    %v5709 = vld [vmem:[%s7 + $0x60] sm:$0xff]
    %v5710 = vld [vmem:[%s7 + $0x68] sm:$0xff]
    %v5711 = vld [vmem:[%s7 + $0x70] sm:$0xff]
    %v5712 = vld [vmem:[%s7 + $0x78] sm:$0xff]
    %v5713 = vld [vmem:[%s7 + $0x80] sm:$0xff]
    %v5714 = vld [vmem:[%s7 + $0x88] sm:$0xff]
    %v5715 = vld [vmem:[%s7 + $0x90] sm:$0xff]
    %v5716 = vld [vmem:[%s7 + $0x98] sm:$0xff]
    %v5717 = vld [vmem:[%s7 + $0xa0] sm:$0xff]
    %v5718 = vld [vmem:[%s7 + $0xa8] sm:$0xff]
    %v5719 = vld [vmem:[%s7 + $0xb0] sm:$0xff]
    %v5720 = vld [vmem:[%s7 + $0xb8] sm:$0xff]
    %v5721 = vld [vmem:[%s7 + $0xc0] sm:$0x1]
    %v5722 = vld [vmem:[%s7 + $0xc8] sm:$0x1]
    %v5723 = vld [vmem:[%s7 + $0xd0] sm:$0x1]
    %v5724 = vld [vmem:[%s7 + $0xd8] sm:$0x1]
    %v5725 = vld [vmem:[#allocation5 + $0x1] sm:$0x1]
    %v5726 = vld [vmem:[#allocation5 + $0x9] sm:$0x1]
    %s5727 = scalar_lea.vmem %s7, 224
    %v5728 = vld [vmem:[%s5727] sm:$0xff]
    %v5729 = vld [vmem:[%s5727 + $0x8] sm:$0xff]
    %v5730 = vld [vmem:[%s5727 + $0x10] sm:$0xff]
    %v5731 = vld [vmem:[%s5727 + $0x18] sm:$0xff]
    %v5732 = vld [vmem:[%s5727 + $0x20] sm:$0xff]
    %v5733 = vld [vmem:[%s5727 + $0x28] sm:$0xff]
    %v5734 = vld [vmem:[%s5727 + $0x30] sm:$0xff]
    %v5735 = vld [vmem:[%s5727 + $0x38] sm:$0xff]
    %v5736 = vld [vmem:[%s5727 + $0x40] sm:$0xff]
    %v5737 = vld [vmem:[%s5727 + $0x48] sm:$0xff]
    %v5738 = vld [vmem:[%s5727 + $0x50] sm:$0xff]
    %v5739 = vld [vmem:[%s5727 + $0x58] sm:$0xff]
    %v5740 = vld [vmem:[%s5727 + $0x60] sm:$0xff]
    %v5741 = vld [vmem:[%s5727 + $0x68] sm:$0xff]
    %v5742 = vld [vmem:[%s5727 + $0x70] sm:$0xff]
    %v5743 = vld [vmem:[%s5727 + $0x78] sm:$0xff]
    %v5744 = vld [vmem:[%s5727 + $0x80] sm:$0xff]
    %v5745 = vld [vmem:[%s5727 + $0x88] sm:$0xff]
    %v5746 = vld [vmem:[%s5727 + $0x90] sm:$0xff]
    %v5747 = vld [vmem:[%s5727 + $0x98] sm:$0xff]
    %v5748 = vld [vmem:[%s5727 + $0xa0] sm:$0xff]
    %v5749 = vld [vmem:[%s5727 + $0xa8] sm:$0xff]
    %v5750 = vld [vmem:[%s5727 + $0xb0] sm:$0xff]
    %v5751 = vld [vmem:[%s5727 + $0xb8] sm:$0xff]
    %v5752 = vld [vmem:[%s5727 + $0xc0] sm:$0x1]
    %v5753 = vld [vmem:[%s5727 + $0xc8] sm:$0x1]
    %v5754 = vld [vmem:[%s5727 + $0xd0] sm:$0x1]
    %v5755 = vld [vmem:[%s5727 + $0xd8] sm:$0x1]
    %v5758 = vrot.slane %v5726, 7
    %vm5759 = vcmask 1041409
    %v5760 = vsel %vm5759, %v5758, %v5725
    %v5761 = vsel %vm2884, %v5760, 0
    %v5764 = vsel %vm565, %v5752, 0
    %v5767 = vsel %vm565, %v5753, 0
    %v5770 = vsel %vm565, %v5754, 0
    %v5773 = vsel %vm565, %v5755, 0
    %5775 = vmatprep.subr.mxu0 0.0
    %5776 = vmatpush1.msra.mxu0 0.0
    %5777 = vmatprep.subr.mxu0 0.0
    %5778 = vmatpush1.msra.mxu0 0.0
    %5779 = vmatprep.subr.mxu0 0.0
    %5780 = vmatpush1.msra.mxu0 0.0
    %5781 = vmatprep.subr.mxu0 0.0
    %5782 = vmatpush1.msra.mxu0 0.0
    %5783 = vmatprep.subr.mxu0 0.0
    %5784 = vmatpush1.msra.mxu0 0.0
    %5785 = vmatprep.subr.mxu0 0.0
    %5786 = vmatpush1.msra.mxu0 0.0
    %5787 = vmatprep.subr.mxu0 0.0
    %5788 = vmatpush1.msra.mxu0 0.0
    %5789 = vmatprep.subr.mxu0 0.0
    %5790 = vmatpush1.msra.mxu0 0.0
    %5791 = vmatprep.subr.mxu0 0.0
    %5792 = vmatpush1.msra.mxu0 0.0
    %5793 = vmatprep.subr.mxu0 %v5767
    %5794 = vmatpush1.msra.mxu0 %v5764
    %5795 = vmatprep.subr.mxu0 %v5749
    %5796 = vmatpush1.msra.mxu0 %v5748
    %5797 = vmatprep.subr.mxu0 %v5745
    %5798 = vmatpush1.msra.mxu0 %v5744
    %5799 = vmatprep.subr.mxu0 %v5741
    %5800 = vmatpush1.msra.mxu0 %v5740
    %5801 = vmatprep.subr.mxu0 %v5737
    %5802 = vmatpush1.msra.mxu0 %v5736
    %5803 = vmatprep.subr.mxu0 %v5733
    %5804 = vmatpush1.msra.mxu0 %v5732
    %5805 = vmatprep.subr.mxu0 %v5729
    %5806 = vmatpush1.msra.mxu0 %v5728
    %5807 = vmatprep.subr.mxu0 0.0
    %5808 = vmatpush2.msra.mxu0 0.0
    %5809 = vmatprep.subr.mxu0 0.0
    %5810 = vmatpush2.msra.mxu0 0.0
    %5811 = vmatprep.subr.mxu0 0.0
    %5812 = vmatpush2.msra.mxu0 0.0
    %5813 = vmatprep.subr.mxu0 0.0
    %5814 = vmatpush2.msra.mxu0 0.0
    %5815 = vmatprep.subr.mxu0 0.0
    %5816 = vmatpush2.msra.mxu0 0.0
    %5817 = vmatprep.subr.mxu0 0.0
    %5818 = vmatpush2.msra.mxu0 0.0
    %5819 = vmatprep.subr.mxu0 0.0
    %5820 = vmatpush2.msra.mxu0 0.0
    %5821 = vmatprep.subr.mxu0 0.0
    %5822 = vmatpush2.msra.mxu0 0.0
    %5823 = vmatprep.subr.mxu0 0.0
    %5824 = vmatpush2.msra.mxu0 0.0
    %5825 = vmatprep.subr.mxu0 0.0
    %5826 = vmatpush2.msra.mxu0 0.0
    %5827 = vmatprep.subr.mxu0 0.0
    %5828 = vmatpush2.msra.mxu0 0.0
    %5829 = vmatprep.subr.mxu0 0.0
    %5830 = vmatpush2.msra.mxu0 0.0
    %5831 = vmatprep.subr.mxu0 0.0
    %5832 = vmatpush2.msra.mxu0 0.0
    %5833 = vmatprep.subr.mxu0 0.0
    %5834 = vmatpush2.msra.mxu0 0.0
    %5835 = vmatprep.subr.mxu0 0.0
    %5836 = vmatpush2.msra.mxu0 0.0
    %5837 = vmatprep.subr.mxu0 0.0
    %5838 = vmatpush2.msra.mxu0 0.0
    %5839 = vmatprep.mubr.f32.mxu0 0.0
    %5840 = vmatmul.mubr.f32.gmra.mxu0 %v5761
    %v5841 = vpop.f32.mrf.mxu0
    %v5842 = vadd.f32 0.0, %v5841
    %v5843 = vpop.f32.mrf.mxu0
    %v5844 = vadd.f32 0.0, %v5843
    %5845 = vdwg.mxu0
    %5846 = vmatprep.subr.mxu0 0.0
    %5847 = vmatpush1.msra.mxu0 0.0
    %5848 = vmatprep.subr.mxu0 0.0
    %5849 = vmatpush1.msra.mxu0 0.0
    %5850 = vmatprep.subr.mxu0 0.0
    %5851 = vmatpush1.msra.mxu0 0.0
    %5852 = vmatprep.subr.mxu0 0.0
    %5853 = vmatpush1.msra.mxu0 0.0
    %5854 = vmatprep.subr.mxu0 0.0
    %5855 = vmatpush1.msra.mxu0 0.0
    %5856 = vmatprep.subr.mxu0 0.0
    %5857 = vmatpush1.msra.mxu0 0.0
    %5858 = vmatprep.subr.mxu0 0.0
    %5859 = vmatpush1.msra.mxu0 0.0
    %5860 = vmatprep.subr.mxu0 0.0
    %5861 = vmatpush1.msra.mxu0 0.0
    %5862 = vmatprep.subr.mxu0 0.0
    %5863 = vmatpush1.msra.mxu0 0.0
    %5864 = vmatprep.subr.mxu0 %v5773
    %5865 = vmatpush1.msra.mxu0 %v5770
    %5866 = vmatprep.subr.mxu0 %v5751
    %5867 = vmatpush1.msra.mxu0 %v5750
    %5868 = vmatprep.subr.mxu0 %v5747
    %5869 = vmatpush1.msra.mxu0 %v5746
    %5870 = vmatprep.subr.mxu0 %v5743
    %5871 = vmatpush1.msra.mxu0 %v5742
    %5872 = vmatprep.subr.mxu0 %v5739
    %5873 = vmatpush1.msra.mxu0 %v5738
    %5874 = vmatprep.subr.mxu0 %v5735
    %5875 = vmatpush1.msra.mxu0 %v5734
    %5876 = vmatprep.subr.mxu0 %v5731
    %5877 = vmatpush1.msra.mxu0 %v5730
    %5878 = vmatprep.subr.mxu0 0.0
    %5879 = vmatpush2.msra.mxu0 0.0
    %5880 = vmatprep.subr.mxu0 0.0
    %5881 = vmatpush2.msra.mxu0 0.0
    %5882 = vmatprep.subr.mxu0 0.0
    %5883 = vmatpush2.msra.mxu0 0.0
    %5884 = vmatprep.subr.mxu0 0.0
    %5885 = vmatpush2.msra.mxu0 0.0
    %5886 = vmatprep.subr.mxu0 0.0
    %5887 = vmatpush2.msra.mxu0 0.0
    %5888 = vmatprep.subr.mxu0 0.0
    %5889 = vmatpush2.msra.mxu0 0.0
    %5890 = vmatprep.subr.mxu0 0.0
    %5891 = vmatpush2.msra.mxu0 0.0
    %5892 = vmatprep.subr.mxu0 0.0
    %5893 = vmatpush2.msra.mxu0 0.0
    %5894 = vmatprep.subr.mxu0 0.0
    %5895 = vmatpush2.msra.mxu0 0.0
    %5896 = vmatprep.subr.mxu0 0.0
    %5897 = vmatpush2.msra.mxu0 0.0
    %5898 = vmatprep.subr.mxu0 0.0
    %5899 = vmatpush2.msra.mxu0 0.0
    %5900 = vmatprep.subr.mxu0 0.0
    %5901 = vmatpush2.msra.mxu0 0.0
    %5902 = vmatprep.subr.mxu0 0.0
    %5903 = vmatpush2.msra.mxu0 0.0
    %5904 = vmatprep.subr.mxu0 0.0
    %5905 = vmatpush2.msra.mxu0 0.0
    %5906 = vmatprep.subr.mxu0 0.0
    %5907 = vmatpush2.msra.mxu0 0.0
    %5908 = vmatprep.subr.mxu0 0.0
    %5909 = vmatpush2.msra.mxu0 0.0
    %5910 = vmatprep.mubr.f32.mxu0 0.0
    %5911 = vmatmul.mubr.f32.gmra.mxu0 %v5761
    %v5912 = vpop.f32.mrf.mxu0
    %v5913 = vadd.f32 0.0, %v5912
    %v5914 = vpop.f32.mrf.mxu0
    %v5915 = vadd.f32 0.0, %v5914
    %5916 = vdwg.mxu0
    %v5919 = vrot.slane %v5696, 7
    %v5920 = vsel %vm5759, %v5919, %v5695
    %v5921 = vsel %vm2884, %v5920, 0
    %v5924 = vsel %vm565, %v5721, 0
    %v5927 = vsel %vm565, %v5722, 0
    %v5930 = vsel %vm565, %v5723, 0
    %v5933 = vsel %vm565, %v5724, 0
    %5935 = vmatprep.subr.mxu0 0.0
    %5936 = vmatpush1.msra.mxu0 0.0
    %5937 = vmatprep.subr.mxu0 0.0
    %5938 = vmatpush1.msra.mxu0 0.0
    %5939 = vmatprep.subr.mxu0 0.0
    %5940 = vmatpush1.msra.mxu0 0.0
    %5941 = vmatprep.subr.mxu0 0.0
    %5942 = vmatpush1.msra.mxu0 0.0
    %5943 = vmatprep.subr.mxu0 0.0
    %5944 = vmatpush1.msra.mxu0 0.0
    %5945 = vmatprep.subr.mxu0 0.0
    %5946 = vmatpush1.msra.mxu0 0.0
    %5947 = vmatprep.subr.mxu0 0.0
    %5948 = vmatpush1.msra.mxu0 0.0
    %5949 = vmatprep.subr.mxu0 0.0
    %5950 = vmatpush1.msra.mxu0 0.0
    %5951 = vmatprep.subr.mxu0 0.0
    %5952 = vmatpush1.msra.mxu0 0.0
    %5953 = vmatprep.subr.mxu0 %v5927
    %5954 = vmatpush1.msra.mxu0 %v5924
    %5955 = vmatprep.subr.mxu0 %v5718
    %5956 = vmatpush1.msra.mxu0 %v5717
    %5957 = vmatprep.subr.mxu0 %v5714
    %5958 = vmatpush1.msra.mxu0 %v5713
    %5959 = vmatprep.subr.mxu0 %v5710
    %5960 = vmatpush1.msra.mxu0 %v5709
    %5961 = vmatprep.subr.mxu0 %v5706
    %5962 = vmatpush1.msra.mxu0 %v5705
    %5963 = vmatprep.subr.mxu0 %v5702
    %5964 = vmatpush1.msra.mxu0 %v5701
    %5965 = vmatprep.subr.mxu0 %v5698
    %5966 = vmatpush1.msra.mxu0 %v5697
    %5967 = vmatprep.subr.mxu0 0.0
    %5968 = vmatpush2.msra.mxu0 0.0
    %5969 = vmatprep.subr.mxu0 0.0
    %5970 = vmatpush2.msra.mxu0 0.0
    %5971 = vmatprep.subr.mxu0 0.0
    %5972 = vmatpush2.msra.mxu0 0.0
    %5973 = vmatprep.subr.mxu0 0.0
    %5974 = vmatpush2.msra.mxu0 0.0
    %5975 = vmatprep.subr.mxu0 0.0
    %5976 = vmatpush2.msra.mxu0 0.0
    %5977 = vmatprep.subr.mxu0 0.0
    %5978 = vmatpush2.msra.mxu0 0.0
    %5979 = vmatprep.subr.mxu0 0.0
    %5980 = vmatpush2.msra.mxu0 0.0
    %5981 = vmatprep.subr.mxu0 0.0
    %5982 = vmatpush2.msra.mxu0 0.0
    %5983 = vmatprep.subr.mxu0 0.0
    %5984 = vmatpush2.msra.mxu0 0.0
    %5985 = vmatprep.subr.mxu0 0.0
    %5986 = vmatpush2.msra.mxu0 0.0
    %5987 = vmatprep.subr.mxu0 0.0
    %5988 = vmatpush2.msra.mxu0 0.0
    %5989 = vmatprep.subr.mxu0 0.0
    %5990 = vmatpush2.msra.mxu0 0.0
    %5991 = vmatprep.subr.mxu0 0.0
    %5992 = vmatpush2.msra.mxu0 0.0
    %5993 = vmatprep.subr.mxu0 0.0
    %5994 = vmatpush2.msra.mxu0 0.0
    %5995 = vmatprep.subr.mxu0 0.0
    %5996 = vmatpush2.msra.mxu0 0.0
    %5997 = vmatprep.subr.mxu0 0.0
    %5998 = vmatpush2.msra.mxu0 0.0
    %5999 = vmatprep.mubr.f32.mxu0 0.0
    %6000 = vmatmul.mubr.f32.gmra.mxu0 %v5921
    %v6001 = vpop.f32.mrf.mxu0
    %v6002 = vadd.f32 %v5842, %v6001
    %v6003 = vpop.f32.mrf.mxu0
    %v6004 = vadd.f32 %v5844, %v6003
    %6005 = vdwg.mxu0
    %6006 = vmatprep.subr.mxu0 0.0
    %6007 = vmatpush1.msra.mxu0 0.0
    %6008 = vmatprep.subr.mxu0 0.0
    %6009 = vmatpush1.msra.mxu0 0.0
    %6010 = vmatprep.subr.mxu0 0.0
    %6011 = vmatpush1.msra.mxu0 0.0
    %6012 = vmatprep.subr.mxu0 0.0
    %6013 = vmatpush1.msra.mxu0 0.0
    %6014 = vmatprep.subr.mxu0 0.0
    %6015 = vmatpush1.msra.mxu0 0.0
    %6016 = vmatprep.subr.mxu0 0.0
    %6017 = vmatpush1.msra.mxu0 0.0
    %6018 = vmatprep.subr.mxu0 0.0
    %6019 = vmatpush1.msra.mxu0 0.0
    %6020 = vmatprep.subr.mxu0 0.0
    %6021 = vmatpush1.msra.mxu0 0.0
    %6022 = vmatprep.subr.mxu0 0.0
    %6023 = vmatpush1.msra.mxu0 0.0
    %6024 = vmatprep.subr.mxu0 %v5933
    %6025 = vmatpush1.msra.mxu0 %v5930
    %6026 = vmatprep.subr.mxu0 %v5720
    %6027 = vmatpush1.msra.mxu0 %v5719
    %6028 = vmatprep.subr.mxu0 %v5716
    %6029 = vmatpush1.msra.mxu0 %v5715
    %6030 = vmatprep.subr.mxu0 %v5712
    %6031 = vmatpush1.msra.mxu0 %v5711
    %6032 = vmatprep.subr.mxu0 %v5708
    %6033 = vmatpush1.msra.mxu0 %v5707
    %6034 = vmatprep.subr.mxu0 %v5704
    %6035 = vmatpush1.msra.mxu0 %v5703
    %6036 = vmatprep.subr.mxu0 %v5700
    %6037 = vmatpush1.msra.mxu0 %v5699
    %6038 = vmatprep.subr.mxu0 0.0
    %6039 = vmatpush2.msra.mxu0 0.0
    %6040 = vmatprep.subr.mxu0 0.0
    %6041 = vmatpush2.msra.mxu0 0.0
    %6042 = vmatprep.subr.mxu0 0.0
    %6043 = vmatpush2.msra.mxu0 0.0
    %6044 = vmatprep.subr.mxu0 0.0
    %6045 = vmatpush2.msra.mxu0 0.0
    %6046 = vmatprep.subr.mxu0 0.0
    %6047 = vmatpush2.msra.mxu0 0.0
    %6048 = vmatprep.subr.mxu0 0.0
    %6049 = vmatpush2.msra.mxu0 0.0
    %6050 = vmatprep.subr.mxu0 0.0
    %6051 = vmatpush2.msra.mxu0 0.0
    %6052 = vmatprep.subr.mxu0 0.0
    %6053 = vmatpush2.msra.mxu0 0.0
    %6054 = vmatprep.subr.mxu0 0.0
    %6055 = vmatpush2.msra.mxu0 0.0
    %6056 = vmatprep.subr.mxu0 0.0
    %6057 = vmatpush2.msra.mxu0 0.0
    %6058 = vmatprep.subr.mxu0 0.0
    %6059 = vmatpush2.msra.mxu0 0.0
    %6060 = vmatprep.subr.mxu0 0.0
    %6061 = vmatpush2.msra.mxu0 0.0
    %6062 = vmatprep.subr.mxu0 0.0
    %6063 = vmatpush2.msra.mxu0 0.0
    %6064 = vmatprep.subr.mxu0 0.0
    %6065 = vmatpush2.msra.mxu0 0.0
    %6066 = vmatprep.subr.mxu0 0.0
    %6067 = vmatpush2.msra.mxu0 0.0
    %6068 = vmatprep.subr.mxu0 0.0
    %6069 = vmatpush2.msra.mxu0 0.0
    %6070 = vmatprep.mubr.f32.mxu0 0.0
    %6071 = vmatmul.mubr.f32.gmra.mxu0 %v5921
    %v6072 = vpop.f32.mrf.mxu0
    %v6073 = vadd.f32 %v5913, %v6072
    %v6074 = vpop.f32.mrf.mxu0
    %v6075 = vadd.f32 %v5915, %v6074
    %6076 = vdwg.mxu0
    %v6077 = vld [vmem:[#allocation5 + $0x2] sm:$0x1]
    %v6078 = vld [vmem:[#allocation5 + $0xa] sm:$0x1]
    %s6079 = scalar_lea.vmem %s7, 448
    %v6080 = vld [vmem:[%s6079] sm:$0xff]
    %v6081 = vld [vmem:[%s6079 + $0x8] sm:$0xff]
    %v6082 = vld [vmem:[%s6079 + $0x10] sm:$0xff]
    %v6083 = vld [vmem:[%s6079 + $0x18] sm:$0xff]
    %v6084 = vld [vmem:[%s6079 + $0x20] sm:$0xff]
    %v6085 = vld [vmem:[%s6079 + $0x28] sm:$0xff]
    %v6086 = vld [vmem:[%s6079 + $0x30] sm:$0xff]
    %v6087 = vld [vmem:[%s6079 + $0x38] sm:$0xff]
    %v6088 = vld [vmem:[%s6079 + $0x40] sm:$0xff]
    %v6089 = vld [vmem:[%s6079 + $0x48] sm:$0xff]
    %v6090 = vld [vmem:[%s6079 + $0x50] sm:$0xff]
    %v6091 = vld [vmem:[%s6079 + $0x58] sm:$0xff]
    %v6092 = vld [vmem:[%s6079 + $0x60] sm:$0xff]
    %v6093 = vld [vmem:[%s6079 + $0x68] sm:$0xff]
    %v6094 = vld [vmem:[%s6079 + $0x70] sm:$0xff]
    %v6095 = vld [vmem:[%s6079 + $0x78] sm:$0xff]
    %v6096 = vld [vmem:[%s6079 + $0x80] sm:$0xff]
    %v6097 = vld [vmem:[%s6079 + $0x88] sm:$0xff]
    %v6098 = vld [vmem:[%s6079 + $0x90] sm:$0xff]
    %v6099 = vld [vmem:[%s6079 + $0x98] sm:$0xff]
    %v6100 = vld [vmem:[%s6079 + $0xa0] sm:$0xff]
    %v6101 = vld [vmem:[%s6079 + $0xa8] sm:$0xff]
    %v6102 = vld [vmem:[%s6079 + $0xb0] sm:$0xff]
    %v6103 = vld [vmem:[%s6079 + $0xb8] sm:$0xff]
    %v6104 = vld [vmem:[%s6079 + $0xc0] sm:$0x1]
    %v6105 = vld [vmem:[%s6079 + $0xc8] sm:$0x1]
    %v6106 = vld [vmem:[%s6079 + $0xd0] sm:$0x1]
    %v6107 = vld [vmem:[%s6079 + $0xd8] sm:$0x1]
    %v6110 = vrot.slane %v6078, 7
    %v6111 = vsel %vm5759, %v6110, %v6077
    %v6112 = vsel %vm2884, %v6111, 0
    %v6115 = vsel %vm565, %v6104, 0
    %v6118 = vsel %vm565, %v6105, 0
    %v6121 = vsel %vm565, %v6106, 0
    %v6124 = vsel %vm565, %v6107, 0
    %6126 = vmatprep.subr.mxu0 0.0
    %6127 = vmatpush1.msra.mxu0 0.0
    %6128 = vmatprep.subr.mxu0 0.0
    %6129 = vmatpush1.msra.mxu0 0.0
    %6130 = vmatprep.subr.mxu0 0.0
    %6131 = vmatpush1.msra.mxu0 0.0
    %6132 = vmatprep.subr.mxu0 0.0
    %6133 = vmatpush1.msra.mxu0 0.0
    %6134 = vmatprep.subr.mxu0 0.0
    %6135 = vmatpush1.msra.mxu0 0.0
    %6136 = vmatprep.subr.mxu0 0.0
    %6137 = vmatpush1.msra.mxu0 0.0
    %6138 = vmatprep.subr.mxu0 0.0
    %6139 = vmatpush1.msra.mxu0 0.0
    %6140 = vmatprep.subr.mxu0 0.0
    %6141 = vmatpush1.msra.mxu0 0.0
    %6142 = vmatprep.subr.mxu0 0.0
    %6143 = vmatpush1.msra.mxu0 0.0
    %6144 = vmatprep.subr.mxu0 %v6118
    %6145 = vmatpush1.msra.mxu0 %v6115
    %6146 = vmatprep.subr.mxu0 %v6101
    %6147 = vmatpush1.msra.mxu0 %v6100
    %6148 = vmatprep.subr.mxu0 %v6097
    %6149 = vmatpush1.msra.mxu0 %v6096
    %6150 = vmatprep.subr.mxu0 %v6093
    %6151 = vmatpush1.msra.mxu0 %v6092
    %6152 = vmatprep.subr.mxu0 %v6089
    %6153 = vmatpush1.msra.mxu0 %v6088
    %6154 = vmatprep.subr.mxu0 %v6085
    %6155 = vmatpush1.msra.mxu0 %v6084
    %6156 = vmatprep.subr.mxu0 %v6081
    %6157 = vmatpush1.msra.mxu0 %v6080
    %6158 = vmatprep.subr.mxu0 0.0
    %6159 = vmatpush2.msra.mxu0 0.0
    %6160 = vmatprep.subr.mxu0 0.0
    %6161 = vmatpush2.msra.mxu0 0.0
    %6162 = vmatprep.subr.mxu0 0.0
    %6163 = vmatpush2.msra.mxu0 0.0
    %6164 = vmatprep.subr.mxu0 0.0
    %6165 = vmatpush2.msra.mxu0 0.0
    %6166 = vmatprep.subr.mxu0 0.0
    %6167 = vmatpush2.msra.mxu0 0.0
    %6168 = vmatprep.subr.mxu0 0.0
    %6169 = vmatpush2.msra.mxu0 0.0
    %6170 = vmatprep.subr.mxu0 0.0
    %6171 = vmatpush2.msra.mxu0 0.0
    %6172 = vmatprep.subr.mxu0 0.0
    %6173 = vmatpush2.msra.mxu0 0.0
    %6174 = vmatprep.subr.mxu0 0.0
    %6175 = vmatpush2.msra.mxu0 0.0
    %6176 = vmatprep.subr.mxu0 0.0
    %6177 = vmatpush2.msra.mxu0 0.0
    %6178 = vmatprep.subr.mxu0 0.0
    %6179 = vmatpush2.msra.mxu0 0.0
    %6180 = vmatprep.subr.mxu0 0.0
    %6181 = vmatpush2.msra.mxu0 0.0
    %6182 = vmatprep.subr.mxu0 0.0
    %6183 = vmatpush2.msra.mxu0 0.0
    %6184 = vmatprep.subr.mxu0 0.0
    %6185 = vmatpush2.msra.mxu0 0.0
    %6186 = vmatprep.subr.mxu0 0.0
    %6187 = vmatpush2.msra.mxu0 0.0
    %6188 = vmatprep.subr.mxu0 0.0
    %6189 = vmatpush2.msra.mxu0 0.0
    %6190 = vmatprep.mubr.f32.mxu0 0.0
    %6191 = vmatmul.mubr.f32.gmra.mxu0 %v6112
    %v6192 = vpop.f32.mrf.mxu0
    %v6193 = vadd.f32 0.0, %v6192
    %v6194 = vpop.f32.mrf.mxu0
    %v6195 = vadd.f32 0.0, %v6194
    %6196 = vdwg.mxu0
    %6197 = vmatprep.subr.mxu0 0.0
    %6198 = vmatpush1.msra.mxu0 0.0
    %6199 = vmatprep.subr.mxu0 0.0
    %6200 = vmatpush1.msra.mxu0 0.0
    %6201 = vmatprep.subr.mxu0 0.0
    %6202 = vmatpush1.msra.mxu0 0.0
    %6203 = vmatprep.subr.mxu0 0.0
    %6204 = vmatpush1.msra.mxu0 0.0
    %6205 = vmatprep.subr.mxu0 0.0
    %6206 = vmatpush1.msra.mxu0 0.0
    %6207 = vmatprep.subr.mxu0 0.0
    %6208 = vmatpush1.msra.mxu0 0.0
    %6209 = vmatprep.subr.mxu0 0.0
    %6210 = vmatpush1.msra.mxu0 0.0
    %6211 = vmatprep.subr.mxu0 0.0
    %6212 = vmatpush1.msra.mxu0 0.0
    %6213 = vmatprep.subr.mxu0 0.0
    %6214 = vmatpush1.msra.mxu0 0.0
    %6215 = vmatprep.subr.mxu0 %v6124
    %6216 = vmatpush1.msra.mxu0 %v6121
    %6217 = vmatprep.subr.mxu0 %v6103
    %6218 = vmatpush1.msra.mxu0 %v6102
    %6219 = vmatprep.subr.mxu0 %v6099
    %6220 = vmatpush1.msra.mxu0 %v6098
    %6221 = vmatprep.subr.mxu0 %v6095
    %6222 = vmatpush1.msra.mxu0 %v6094
    %6223 = vmatprep.subr.mxu0 %v6091
    %6224 = vmatpush1.msra.mxu0 %v6090
    %6225 = vmatprep.subr.mxu0 %v6087
    %6226 = vmatpush1.msra.mxu0 %v6086
    %6227 = vmatprep.subr.mxu0 %v6083
    %6228 = vmatpush1.msra.mxu0 %v6082
    %6229 = vmatprep.subr.mxu0 0.0
    %6230 = vmatpush2.msra.mxu0 0.0
    %6231 = vmatprep.subr.mxu0 0.0
    %6232 = vmatpush2.msra.mxu0 0.0
    %6233 = vmatprep.subr.mxu0 0.0
    %6234 = vmatpush2.msra.mxu0 0.0
    %6235 = vmatprep.subr.mxu0 0.0
    %6236 = vmatpush2.msra.mxu0 0.0
    %6237 = vmatprep.subr.mxu0 0.0
    %6238 = vmatpush2.msra.mxu0 0.0
    %6239 = vmatprep.subr.mxu0 0.0
    %6240 = vmatpush2.msra.mxu0 0.0
    %6241 = vmatprep.subr.mxu0 0.0
    %6242 = vmatpush2.msra.mxu0 0.0
    %6243 = vmatprep.subr.mxu0 0.0
    %6244 = vmatpush2.msra.mxu0 0.0
    %6245 = vmatprep.subr.mxu0 0.0
    %6246 = vmatpush2.msra.mxu0 0.0
    %6247 = vmatprep.subr.mxu0 0.0
    %6248 = vmatpush2.msra.mxu0 0.0
    %6249 = vmatprep.subr.mxu0 0.0
    %6250 = vmatpush2.msra.mxu0 0.0
    %6251 = vmatprep.subr.mxu0 0.0
    %6252 = vmatpush2.msra.mxu0 0.0
    %6253 = vmatprep.subr.mxu0 0.0
    %6254 = vmatpush2.msra.mxu0 0.0
    %6255 = vmatprep.subr.mxu0 0.0
    %6256 = vmatpush2.msra.mxu0 0.0
    %6257 = vmatprep.subr.mxu0 0.0
    %6258 = vmatpush2.msra.mxu0 0.0
    %6259 = vmatprep.subr.mxu0 0.0
    %6260 = vmatpush2.msra.mxu0 0.0
    %6261 = vmatprep.mubr.f32.mxu0 0.0
    %6262 = vmatmul.mubr.f32.gmra.mxu0 %v6112
    %v6263 = vpop.f32.mrf.mxu0
    %v6264 = vadd.f32 0.0, %v6263
    %v6265 = vpop.f32.mrf.mxu0
    %v6266 = vadd.f32 0.0, %v6265
    %6267 = vdwg.mxu0
    %v6268 = vadd.f32 %v6002, %v6193
    %v6269 = vadd.f32 %v6004, %v6195
    %v6270 = vadd.f32 %v6073, %v6264
    %v6271 = vadd.f32 %v6075, %v6266
    %v6272 = vld [vmem:[#allocation5 + $0x3] sm:$0x1]
    %v6273 = vld [vmem:[#allocation5 + $0xb] sm:$0x1]
    %s6274 = scalar_lea.vmem %s7, 672
    %v6275 = vld [vmem:[%s6274] sm:$0xff]
    %v6276 = vld [vmem:[%s6274 + $0x8] sm:$0xff]
    %v6277 = vld [vmem:[%s6274 + $0x10] sm:$0xff]
    %v6278 = vld [vmem:[%s6274 + $0x18] sm:$0xff]
    %v6279 = vld [vmem:[%s6274 + $0x20] sm:$0xff]
    %v6280 = vld [vmem:[%s6274 + $0x28] sm:$0xff]
    %v6281 = vld [vmem:[%s6274 + $0x30] sm:$0xff]
    %v6282 = vld [vmem:[%s6274 + $0x38] sm:$0xff]
    %v6283 = vld [vmem:[%s6274 + $0x40] sm:$0xff]
    %v6284 = vld [vmem:[%s6274 + $0x48] sm:$0xff]
    %v6285 = vld [vmem:[%s6274 + $0x50] sm:$0xff]
    %v6286 = vld [vmem:[%s6274 + $0x58] sm:$0xff]
    %v6287 = vld [vmem:[%s6274 + $0x60] sm:$0xff]
    %v6288 = vld [vmem:[%s6274 + $0x68] sm:$0xff]
    %v6289 = vld [vmem:[%s6274 + $0x70] sm:$0xff]
    %v6290 = vld [vmem:[%s6274 + $0x78] sm:$0xff]
    %v6291 = vld [vmem:[%s6274 + $0x80] sm:$0xff]
    %v6292 = vld [vmem:[%s6274 + $0x88] sm:$0xff]
    %v6293 = vld [vmem:[%s6274 + $0x90] sm:$0xff]
    %v6294 = vld [vmem:[%s6274 + $0x98] sm:$0xff]
    %v6295 = vld [vmem:[%s6274 + $0xa0] sm:$0xff]
    %v6296 = vld [vmem:[%s6274 + $0xa8] sm:$0xff]
    %v6297 = vld [vmem:[%s6274 + $0xb0] sm:$0xff]
    %v6298 = vld [vmem:[%s6274 + $0xb8] sm:$0xff]
    %v6299 = vld [vmem:[%s6274 + $0xc0] sm:$0x1]
    %v6300 = vld [vmem:[%s6274 + $0xc8] sm:$0x1]
    %v6301 = vld [vmem:[%s6274 + $0xd0] sm:$0x1]
    %v6302 = vld [vmem:[%s6274 + $0xd8] sm:$0x1]
    %v6305 = vrot.slane %v6273, 7
    %v6306 = vsel %vm5759, %v6305, %v6272
    %v6307 = vsel %vm2884, %v6306, 0
    %v6310 = vsel %vm565, %v6299, 0
    %v6313 = vsel %vm565, %v6300, 0
    %v6316 = vsel %vm565, %v6301, 0
    %v6319 = vsel %vm565, %v6302, 0
    %6321 = vmatprep.subr.mxu0 0.0
    %6322 = vmatpush1.msra.mxu0 0.0
    %6323 = vmatprep.subr.mxu0 0.0
    %6324 = vmatpush1.msra.mxu0 0.0
    %6325 = vmatprep.subr.mxu0 0.0
    %6326 = vmatpush1.msra.mxu0 0.0
    %6327 = vmatprep.subr.mxu0 0.0
    %6328 = vmatpush1.msra.mxu0 0.0
    %6329 = vmatprep.subr.mxu0 0.0
    %6330 = vmatpush1.msra.mxu0 0.0
    %6331 = vmatprep.subr.mxu0 0.0
    %6332 = vmatpush1.msra.mxu0 0.0
    %6333 = vmatprep.subr.mxu0 0.0
    %6334 = vmatpush1.msra.mxu0 0.0
    %6335 = vmatprep.subr.mxu0 0.0
    %6336 = vmatpush1.msra.mxu0 0.0
    %6337 = vmatprep.subr.mxu0 0.0
    %6338 = vmatpush1.msra.mxu0 0.0
    %6339 = vmatprep.subr.mxu0 %v6313
    %6340 = vmatpush1.msra.mxu0 %v6310
    %6341 = vmatprep.subr.mxu0 %v6296
    %6342 = vmatpush1.msra.mxu0 %v6295
    %6343 = vmatprep.subr.mxu0 %v6292
    %6344 = vmatpush1.msra.mxu0 %v6291
    %6345 = vmatprep.subr.mxu0 %v6288
    %6346 = vmatpush1.msra.mxu0 %v6287
    %6347 = vmatprep.subr.mxu0 %v6284
    %6348 = vmatpush1.msra.mxu0 %v6283
    %6349 = vmatprep.subr.mxu0 %v6280
    %6350 = vmatpush1.msra.mxu0 %v6279
    %6351 = vmatprep.subr.mxu0 %v6276
    %6352 = vmatpush1.msra.mxu0 %v6275
    %6353 = vmatprep.subr.mxu0 0.0
    %6354 = vmatpush2.msra.mxu0 0.0
    %6355 = vmatprep.subr.mxu0 0.0
    %6356 = vmatpush2.msra.mxu0 0.0
    %6357 = vmatprep.subr.mxu0 0.0
    %6358 = vmatpush2.msra.mxu0 0.0
    %6359 = vmatprep.subr.mxu0 0.0
    %6360 = vmatpush2.msra.mxu0 0.0
    %6361 = vmatprep.subr.mxu0 0.0
    %6362 = vmatpush2.msra.mxu0 0.0
    %6363 = vmatprep.subr.mxu0 0.0
    %6364 = vmatpush2.msra.mxu0 0.0
    %6365 = vmatprep.subr.mxu0 0.0
    %6366 = vmatpush2.msra.mxu0 0.0
    %6367 = vmatprep.subr.mxu0 0.0
    %6368 = vmatpush2.msra.mxu0 0.0
    %6369 = vmatprep.subr.mxu0 0.0
    %6370 = vmatpush2.msra.mxu0 0.0
    %6371 = vmatprep.subr.mxu0 0.0
    %6372 = vmatpush2.msra.mxu0 0.0
    %6373 = vmatprep.subr.mxu0 0.0
    %6374 = vmatpush2.msra.mxu0 0.0
    %6375 = vmatprep.subr.mxu0 0.0
    %6376 = vmatpush2.msra.mxu0 0.0
    %6377 = vmatprep.subr.mxu0 0.0
    %6378 = vmatpush2.msra.mxu0 0.0
    %6379 = vmatprep.subr.mxu0 0.0
    %6380 = vmatpush2.msra.mxu0 0.0
    %6381 = vmatprep.subr.mxu0 0.0
    %6382 = vmatpush2.msra.mxu0 0.0
    %6383 = vmatprep.subr.mxu0 0.0
    %6384 = vmatpush2.msra.mxu0 0.0
    %6385 = vmatprep.mubr.f32.mxu0 0.0
    %6386 = vmatmul.mubr.f32.gmra.mxu0 %v6307
    %v6387 = vpop.f32.mrf.mxu0
    %v6388 = vadd.f32 0.0, %v6387
    %v6389 = vpop.f32.mrf.mxu0
    %v6390 = vadd.f32 0.0, %v6389
    %6391 = vdwg.mxu0
    %6392 = vmatprep.subr.mxu0 0.0
    %6393 = vmatpush1.msra.mxu0 0.0
    %6394 = vmatprep.subr.mxu0 0.0
    %6395 = vmatpush1.msra.mxu0 0.0
    %6396 = vmatprep.subr.mxu0 0.0
    %6397 = vmatpush1.msra.mxu0 0.0
    %6398 = vmatprep.subr.mxu0 0.0
    %6399 = vmatpush1.msra.mxu0 0.0
    %6400 = vmatprep.subr.mxu0 0.0
    %6401 = vmatpush1.msra.mxu0 0.0
    %6402 = vmatprep.subr.mxu0 0.0
    %6403 = vmatpush1.msra.mxu0 0.0
    %6404 = vmatprep.subr.mxu0 0.0
    %6405 = vmatpush1.msra.mxu0 0.0
    %6406 = vmatprep.subr.mxu0 0.0
    %6407 = vmatpush1.msra.mxu0 0.0
    %6408 = vmatprep.subr.mxu0 0.0
    %6409 = vmatpush1.msra.mxu0 0.0
    %6410 = vmatprep.subr.mxu0 %v6319
    %6411 = vmatpush1.msra.mxu0 %v6316
    %6412 = vmatprep.subr.mxu0 %v6298
    %6413 = vmatpush1.msra.mxu0 %v6297
    %6414 = vmatprep.subr.mxu0 %v6294
    %6415 = vmatpush1.msra.mxu0 %v6293
    %6416 = vmatprep.subr.mxu0 %v6290
    %6417 = vmatpush1.msra.mxu0 %v6289
    %6418 = vmatprep.subr.mxu0 %v6286
    %6419 = vmatpush1.msra.mxu0 %v6285
    %6420 = vmatprep.subr.mxu0 %v6282
    %6421 = vmatpush1.msra.mxu0 %v6281
    %6422 = vmatprep.subr.mxu0 %v6278
    %6423 = vmatpush1.msra.mxu0 %v6277
    %6424 = vmatprep.subr.mxu0 0.0
    %6425 = vmatpush2.msra.mxu0 0.0
    %6426 = vmatprep.subr.mxu0 0.0
    %6427 = vmatpush2.msra.mxu0 0.0
    %6428 = vmatprep.subr.mxu0 0.0
    %6429 = vmatpush2.msra.mxu0 0.0
    %6430 = vmatprep.subr.mxu0 0.0
    %6431 = vmatpush2.msra.mxu0 0.0
    %6432 = vmatprep.subr.mxu0 0.0
    %6433 = vmatpush2.msra.mxu0 0.0
    %6434 = vmatprep.subr.mxu0 0.0
    %6435 = vmatpush2.msra.mxu0 0.0
    %6436 = vmatprep.subr.mxu0 0.0
    %6437 = vmatpush2.msra.mxu0 0.0
    %6438 = vmatprep.subr.mxu0 0.0
    %6439 = vmatpush2.msra.mxu0 0.0
    %6440 = vmatprep.subr.mxu0 0.0
    %6441 = vmatpush2.msra.mxu0 0.0
    %6442 = vmatprep.subr.mxu0 0.0
    %6443 = vmatpush2.msra.mxu0 0.0
    %6444 = vmatprep.subr.mxu0 0.0
    %6445 = vmatpush2.msra.mxu0 0.0
    %6446 = vmatprep.subr.mxu0 0.0
    %6447 = vmatpush2.msra.mxu0 0.0
    %6448 = vmatprep.subr.mxu0 0.0
    %6449 = vmatpush2.msra.mxu0 0.0
    %6450 = vmatprep.subr.mxu0 0.0
    %6451 = vmatpush2.msra.mxu0 0.0
    %6452 = vmatprep.subr.mxu0 0.0
    %6453 = vmatpush2.msra.mxu0 0.0
    %6454 = vmatprep.subr.mxu0 0.0
    %6455 = vmatpush2.msra.mxu0 0.0
    %6456 = vmatprep.mubr.f32.mxu0 0.0
    %6457 = vmatmul.mubr.f32.gmra.mxu0 %v6307
    %v6458 = vpop.f32.mrf.mxu0
    %v6459 = vadd.f32 0.0, %v6458
    %v6460 = vpop.f32.mrf.mxu0
    %v6461 = vadd.f32 0.0, %v6460
    %6462 = vdwg.mxu0
    %v6463 = vadd.f32 %v6268, %v6388
    %v6464 = vadd.f32 %v6269, %v6390
    %v6465 = vadd.f32 %v6270, %v6459
    %v6466 = vadd.f32 %v6271, %v6461
    %v6467 = vld [vmem:[#allocation5 + $0x4] sm:$0x1]
    %v6468 = vld [vmem:[#allocation5 + $0xc] sm:$0x1]
    %s6469 = scalar_lea.vmem %s7, 896
    %v6470 = vld [vmem:[%s6469] sm:$0xff]
    %v6471 = vld [vmem:[%s6469 + $0x8] sm:$0xff]
    %v6472 = vld [vmem:[%s6469 + $0x10] sm:$0xff]
    %v6473 = vld [vmem:[%s6469 + $0x18] sm:$0xff]
    %v6474 = vld [vmem:[%s6469 + $0x20] sm:$0xff]
    %v6475 = vld [vmem:[%s6469 + $0x28] sm:$0xff]
    %v6476 = vld [vmem:[%s6469 + $0x30] sm:$0xff]
    %v6477 = vld [vmem:[%s6469 + $0x38] sm:$0xff]
    %v6478 = vld [vmem:[%s6469 + $0x40] sm:$0xff]
    %v6479 = vld [vmem:[%s6469 + $0x48] sm:$0xff]
    %v6480 = vld [vmem:[%s6469 + $0x50] sm:$0xff]
    %v6481 = vld [vmem:[%s6469 + $0x58] sm:$0xff]
    %v6482 = vld [vmem:[%s6469 + $0x60] sm:$0xff]
    %v6483 = vld [vmem:[%s6469 + $0x68] sm:$0xff]
    %v6484 = vld [vmem:[%s6469 + $0x70] sm:$0xff]
    %v6485 = vld [vmem:[%s6469 + $0x78] sm:$0xff]
    %v6486 = vld [vmem:[%s6469 + $0x80] sm:$0xff]
    %v6487 = vld [vmem:[%s6469 + $0x88] sm:$0xff]
    %v6488 = vld [vmem:[%s6469 + $0x90] sm:$0xff]
    %v6489 = vld [vmem:[%s6469 + $0x98] sm:$0xff]
    %v6490 = vld [vmem:[%s6469 + $0xa0] sm:$0xff]
    %v6491 = vld [vmem:[%s6469 + $0xa8] sm:$0xff]
    %v6492 = vld [vmem:[%s6469 + $0xb0] sm:$0xff]
    %v6493 = vld [vmem:[%s6469 + $0xb8] sm:$0xff]
    %v6494 = vld [vmem:[%s6469 + $0xc0] sm:$0x1]
    %v6495 = vld [vmem:[%s6469 + $0xc8] sm:$0x1]
    %v6496 = vld [vmem:[%s6469 + $0xd0] sm:$0x1]
    %v6497 = vld [vmem:[%s6469 + $0xd8] sm:$0x1]
    %v6500 = vrot.slane %v6468, 7
    %v6501 = vsel %vm5759, %v6500, %v6467
    %v6502 = vsel %vm2884, %v6501, 0
    %v6505 = vsel %vm565, %v6494, 0
    %v6508 = vsel %vm565, %v6495, 0
    %v6511 = vsel %vm565, %v6496, 0
    %v6514 = vsel %vm565, %v6497, 0
    %6516 = vmatprep.subr.mxu0 0.0
    %6517 = vmatpush1.msra.mxu0 0.0
    %6518 = vmatprep.subr.mxu0 0.0
    %6519 = vmatpush1.msra.mxu0 0.0
    %6520 = vmatprep.subr.mxu0 0.0
    %6521 = vmatpush1.msra.mxu0 0.0
    %6522 = vmatprep.subr.mxu0 0.0
    %6523 = vmatpush1.msra.mxu0 0.0
    %6524 = vmatprep.subr.mxu0 0.0
    %6525 = vmatpush1.msra.mxu0 0.0
    %6526 = vmatprep.subr.mxu0 0.0
    %6527 = vmatpush1.msra.mxu0 0.0
    %6528 = vmatprep.subr.mxu0 0.0
    %6529 = vmatpush1.msra.mxu0 0.0
    %6530 = vmatprep.subr.mxu0 0.0
    %6531 = vmatpush1.msra.mxu0 0.0
    %6532 = vmatprep.subr.mxu0 0.0
    %6533 = vmatpush1.msra.mxu0 0.0
    %6534 = vmatprep.subr.mxu0 %v6508
    %6535 = vmatpush1.msra.mxu0 %v6505
    %6536 = vmatprep.subr.mxu0 %v6491
    %6537 = vmatpush1.msra.mxu0 %v6490
    %6538 = vmatprep.subr.mxu0 %v6487
    %6539 = vmatpush1.msra.mxu0 %v6486
    %6540 = vmatprep.subr.mxu0 %v6483
    %6541 = vmatpush1.msra.mxu0 %v6482
    %6542 = vmatprep.subr.mxu0 %v6479
    %6543 = vmatpush1.msra.mxu0 %v6478
    %6544 = vmatprep.subr.mxu0 %v6475
    %6545 = vmatpush1.msra.mxu0 %v6474
    %6546 = vmatprep.subr.mxu0 %v6471
    %6547 = vmatpush1.msra.mxu0 %v6470
    %6548 = vmatprep.subr.mxu0 0.0
    %6549 = vmatpush2.msra.mxu0 0.0
    %6550 = vmatprep.subr.mxu0 0.0
    %6551 = vmatpush2.msra.mxu0 0.0
    %6552 = vmatprep.subr.mxu0 0.0
    %6553 = vmatpush2.msra.mxu0 0.0
    %6554 = vmatprep.subr.mxu0 0.0
    %6555 = vmatpush2.msra.mxu0 0.0
    %6556 = vmatprep.subr.mxu0 0.0
    %6557 = vmatpush2.msra.mxu0 0.0
    %6558 = vmatprep.subr.mxu0 0.0
    %6559 = vmatpush2.msra.mxu0 0.0
    %6560 = vmatprep.subr.mxu0 0.0
    %6561 = vmatpush2.msra.mxu0 0.0
    %6562 = vmatprep.subr.mxu0 0.0
    %6563 = vmatpush2.msra.mxu0 0.0
    %6564 = vmatprep.subr.mxu0 0.0
    %6565 = vmatpush2.msra.mxu0 0.0
    %6566 = vmatprep.subr.mxu0 0.0
    %6567 = vmatpush2.msra.mxu0 0.0
    %6568 = vmatprep.subr.mxu0 0.0
    %6569 = vmatpush2.msra.mxu0 0.0
    %6570 = vmatprep.subr.mxu0 0.0
    %6571 = vmatpush2.msra.mxu0 0.0
    %6572 = vmatprep.subr.mxu0 0.0
    %6573 = vmatpush2.msra.mxu0 0.0
    %6574 = vmatprep.subr.mxu0 0.0
    %6575 = vmatpush2.msra.mxu0 0.0
    %6576 = vmatprep.subr.mxu0 0.0
    %6577 = vmatpush2.msra.mxu0 0.0
    %6578 = vmatprep.subr.mxu0 0.0
    %6579 = vmatpush2.msra.mxu0 0.0
    %6580 = vmatprep.mubr.f32.mxu0 0.0
    %6581 = vmatmul.mubr.f32.gmra.mxu0 %v6502
    %v6582 = vpop.f32.mrf.mxu0
    %v6583 = vadd.f32 0.0, %v6582
    %v6584 = vpop.f32.mrf.mxu0
    %v6585 = vadd.f32 0.0, %v6584
    %6586 = vdwg.mxu0
    %6587 = vmatprep.subr.mxu0 0.0
    %6588 = vmatpush1.msra.mxu0 0.0
    %6589 = vmatprep.subr.mxu0 0.0
    %6590 = vmatpush1.msra.mxu0 0.0
    %6591 = vmatprep.subr.mxu0 0.0
    %6592 = vmatpush1.msra.mxu0 0.0
    %6593 = vmatprep.subr.mxu0 0.0
    %6594 = vmatpush1.msra.mxu0 0.0
    %6595 = vmatprep.subr.mxu0 0.0
    %6596 = vmatpush1.msra.mxu0 0.0
    %6597 = vmatprep.subr.mxu0 0.0
    %6598 = vmatpush1.msra.mxu0 0.0
    %6599 = vmatprep.subr.mxu0 0.0
    %6600 = vmatpush1.msra.mxu0 0.0
    %6601 = vmatprep.subr.mxu0 0.0
    %6602 = vmatpush1.msra.mxu0 0.0
    %6603 = vmatprep.subr.mxu0 0.0
    %6604 = vmatpush1.msra.mxu0 0.0
    %6605 = vmatprep.subr.mxu0 %v6514
    %6606 = vmatpush1.msra.mxu0 %v6511
    %6607 = vmatprep.subr.mxu0 %v6493
    %6608 = vmatpush1.msra.mxu0 %v6492
    %6609 = vmatprep.subr.mxu0 %v6489
    %6610 = vmatpush1.msra.mxu0 %v6488
    %6611 = vmatprep.subr.mxu0 %v6485
    %6612 = vmatpush1.msra.mxu0 %v6484
    %6613 = vmatprep.subr.mxu0 %v6481
    %6614 = vmatpush1.msra.mxu0 %v6480
    %6615 = vmatprep.subr.mxu0 %v6477
    %6616 = vmatpush1.msra.mxu0 %v6476
    %6617 = vmatprep.subr.mxu0 %v6473
    %6618 = vmatpush1.msra.mxu0 %v6472
    %6619 = vmatprep.subr.mxu0 0.0
    %6620 = vmatpush2.msra.mxu0 0.0
    %6621 = vmatprep.subr.mxu0 0.0
    %6622 = vmatpush2.msra.mxu0 0.0
    %6623 = vmatprep.subr.mxu0 0.0
    %6624 = vmatpush2.msra.mxu0 0.0
    %6625 = vmatprep.subr.mxu0 0.0
    %6626 = vmatpush2.msra.mxu0 0.0
    %6627 = vmatprep.subr.mxu0 0.0
    %6628 = vmatpush2.msra.mxu0 0.0
    %6629 = vmatprep.subr.mxu0 0.0
    %6630 = vmatpush2.msra.mxu0 0.0
    %6631 = vmatprep.subr.mxu0 0.0
    %6632 = vmatpush2.msra.mxu0 0.0
    %6633 = vmatprep.subr.mxu0 0.0
    %6634 = vmatpush2.msra.mxu0 0.0
    %6635 = vmatprep.subr.mxu0 0.0
    %6636 = vmatpush2.msra.mxu0 0.0
    %6637 = vmatprep.subr.mxu0 0.0
    %6638 = vmatpush2.msra.mxu0 0.0
    %6639 = vmatprep.subr.mxu0 0.0
    %6640 = vmatpush2.msra.mxu0 0.0
    %6641 = vmatprep.subr.mxu0 0.0
    %6642 = vmatpush2.msra.mxu0 0.0
    %6643 = vmatprep.subr.mxu0 0.0
    %6644 = vmatpush2.msra.mxu0 0.0
    %6645 = vmatprep.subr.mxu0 0.0
    %6646 = vmatpush2.msra.mxu0 0.0
    %6647 = vmatprep.subr.mxu0 0.0
    %6648 = vmatpush2.msra.mxu0 0.0
    %6649 = vmatprep.subr.mxu0 0.0
    %6650 = vmatpush2.msra.mxu0 0.0
    %6651 = vmatprep.mubr.f32.mxu0 0.0
    %6652 = vmatmul.mubr.f32.gmra.mxu0 %v6502
    %v6653 = vpop.f32.mrf.mxu0
    %v6654 = vadd.f32 0.0, %v6653
    %v6655 = vpop.f32.mrf.mxu0
    %v6656 = vadd.f32 0.0, %v6655
    %6657 = vdwg.mxu0
    %v6658 = vadd.f32 %v6463, %v6583
    %v6659 = vadd.f32 %v6464, %v6585
    %v6660 = vadd.f32 %v6465, %v6654
    %v6661 = vadd.f32 %v6466, %v6656
    %v6662 = vld [vmem:[#allocation5 + $0x5] sm:$0x1]
    %v6663 = vld [vmem:[#allocation5 + $0xd] sm:$0x1]
    %s6664 = scalar_lea.vmem %s7, 1120
    %v6665 = vld [vmem:[%s6664] sm:$0xff]
    %v6666 = vld [vmem:[%s6664 + $0x8] sm:$0xff]
    %v6667 = vld [vmem:[%s6664 + $0x10] sm:$0xff]
    %v6668 = vld [vmem:[%s6664 + $0x18] sm:$0xff]
    %v6669 = vld [vmem:[%s6664 + $0x20] sm:$0xff]
    %v6670 = vld [vmem:[%s6664 + $0x28] sm:$0xff]
    %v6671 = vld [vmem:[%s6664 + $0x30] sm:$0xff]
    %v6672 = vld [vmem:[%s6664 + $0x38] sm:$0xff]
    %v6673 = vld [vmem:[%s6664 + $0x40] sm:$0xff]
    %v6674 = vld [vmem:[%s6664 + $0x48] sm:$0xff]
    %v6675 = vld [vmem:[%s6664 + $0x50] sm:$0xff]
    %v6676 = vld [vmem:[%s6664 + $0x58] sm:$0xff]
    %v6677 = vld [vmem:[%s6664 + $0x60] sm:$0xff]
    %v6678 = vld [vmem:[%s6664 + $0x68] sm:$0xff]
    %v6679 = vld [vmem:[%s6664 + $0x70] sm:$0xff]
    %v6680 = vld [vmem:[%s6664 + $0x78] sm:$0xff]
    %v6681 = vld [vmem:[%s6664 + $0x80] sm:$0xff]
    %v6682 = vld [vmem:[%s6664 + $0x88] sm:$0xff]
    %v6683 = vld [vmem:[%s6664 + $0x90] sm:$0xff]
    %v6684 = vld [vmem:[%s6664 + $0x98] sm:$0xff]
    %v6685 = vld [vmem:[%s6664 + $0xa0] sm:$0xff]
    %v6686 = vld [vmem:[%s6664 + $0xa8] sm:$0xff]
    %v6687 = vld [vmem:[%s6664 + $0xb0] sm:$0xff]
    %v6688 = vld [vmem:[%s6664 + $0xb8] sm:$0xff]
    %v6689 = vld [vmem:[%s6664 + $0xc0] sm:$0x1]
    %v6690 = vld [vmem:[%s6664 + $0xc8] sm:$0x1]
    %v6691 = vld [vmem:[%s6664 + $0xd0] sm:$0x1]
    %v6692 = vld [vmem:[%s6664 + $0xd8] sm:$0x1]
    %v6695 = vrot.slane %v6663, 7
    %v6696 = vsel %vm5759, %v6695, %v6662
    %v6697 = vsel %vm2884, %v6696, 0
    %v6700 = vsel %vm565, %v6689, 0
    %v6703 = vsel %vm565, %v6690, 0
    %v6706 = vsel %vm565, %v6691, 0
    %v6709 = vsel %vm565, %v6692, 0
    %6711 = vmatprep.subr.mxu0 0.0
    %6712 = vmatpush1.msra.mxu0 0.0
    %6713 = vmatprep.subr.mxu0 0.0
    %6714 = vmatpush1.msra.mxu0 0.0
    %6715 = vmatprep.subr.mxu0 0.0
    %6716 = vmatpush1.msra.mxu0 0.0
    %6717 = vmatprep.subr.mxu0 0.0
    %6718 = vmatpush1.msra.mxu0 0.0
    %6719 = vmatprep.subr.mxu0 0.0
    %6720 = vmatpush1.msra.mxu0 0.0
    %6721 = vmatprep.subr.mxu0 0.0
    %6722 = vmatpush1.msra.mxu0 0.0
    %6723 = vmatprep.subr.mxu0 0.0
    %6724 = vmatpush1.msra.mxu0 0.0
    %6725 = vmatprep.subr.mxu0 0.0
    %6726 = vmatpush1.msra.mxu0 0.0
    %6727 = vmatprep.subr.mxu0 0.0
    %6728 = vmatpush1.msra.mxu0 0.0
    %6729 = vmatprep.subr.mxu0 %v6703
    %6730 = vmatpush1.msra.mxu0 %v6700
    %6731 = vmatprep.subr.mxu0 %v6686
    %6732 = vmatpush1.msra.mxu0 %v6685
    %6733 = vmatprep.subr.mxu0 %v6682
    %6734 = vmatpush1.msra.mxu0 %v6681
    %6735 = vmatprep.subr.mxu0 %v6678
    %6736 = vmatpush1.msra.mxu0 %v6677
    %6737 = vmatprep.subr.mxu0 %v6674
    %6738 = vmatpush1.msra.mxu0 %v6673
    %6739 = vmatprep.subr.mxu0 %v6670
    %6740 = vmatpush1.msra.mxu0 %v6669
    %6741 = vmatprep.subr.mxu0 %v6666
    %6742 = vmatpush1.msra.mxu0 %v6665
    %6743 = vmatprep.subr.mxu0 0.0
    %6744 = vmatpush2.msra.mxu0 0.0
    %6745 = vmatprep.subr.mxu0 0.0
    %6746 = vmatpush2.msra.mxu0 0.0
    %6747 = vmatprep.subr.mxu0 0.0
    %6748 = vmatpush2.msra.mxu0 0.0
    %6749 = vmatprep.subr.mxu0 0.0
    %6750 = vmatpush2.msra.mxu0 0.0
    %6751 = vmatprep.subr.mxu0 0.0
    %6752 = vmatpush2.msra.mxu0 0.0
    %6753 = vmatprep.subr.mxu0 0.0
    %6754 = vmatpush2.msra.mxu0 0.0
    %6755 = vmatprep.subr.mxu0 0.0
    %6756 = vmatpush2.msra.mxu0 0.0
    %6757 = vmatprep.subr.mxu0 0.0
    %6758 = vmatpush2.msra.mxu0 0.0
    %6759 = vmatprep.subr.mxu0 0.0
    %6760 = vmatpush2.msra.mxu0 0.0
    %6761 = vmatprep.subr.mxu0 0.0
    %6762 = vmatpush2.msra.mxu0 0.0
    %6763 = vmatprep.subr.mxu0 0.0
    %6764 = vmatpush2.msra.mxu0 0.0
    %6765 = vmatprep.subr.mxu0 0.0
    %6766 = vmatpush2.msra.mxu0 0.0
    %6767 = vmatprep.subr.mxu0 0.0
    %6768 = vmatpush2.msra.mxu0 0.0
    %6769 = vmatprep.subr.mxu0 0.0
    %6770 = vmatpush2.msra.mxu0 0.0
    %6771 = vmatprep.subr.mxu0 0.0
    %6772 = vmatpush2.msra.mxu0 0.0
    %6773 = vmatprep.subr.mxu0 0.0
    %6774 = vmatpush2.msra.mxu0 0.0
    %6775 = vmatprep.mubr.f32.mxu0 0.0
    %6776 = vmatmul.mubr.f32.gmra.mxu0 %v6697
    %v6777 = vpop.f32.mrf.mxu0
    %v6778 = vadd.f32 0.0, %v6777
    %v6779 = vpop.f32.mrf.mxu0
    %v6780 = vadd.f32 0.0, %v6779
    %6781 = vdwg.mxu0
    %6782 = vmatprep.subr.mxu0 0.0
    %6783 = vmatpush1.msra.mxu0 0.0
    %6784 = vmatprep.subr.mxu0 0.0
    %6785 = vmatpush1.msra.mxu0 0.0
    %6786 = vmatprep.subr.mxu0 0.0
    %6787 = vmatpush1.msra.mxu0 0.0
    %6788 = vmatprep.subr.mxu0 0.0
    %6789 = vmatpush1.msra.mxu0 0.0
    %6790 = vmatprep.subr.mxu0 0.0
    %6791 = vmatpush1.msra.mxu0 0.0
    %6792 = vmatprep.subr.mxu0 0.0
    %6793 = vmatpush1.msra.mxu0 0.0
    %6794 = vmatprep.subr.mxu0 0.0
    %6795 = vmatpush1.msra.mxu0 0.0
    %6796 = vmatprep.subr.mxu0 0.0
    %6797 = vmatpush1.msra.mxu0 0.0
    %6798 = vmatprep.subr.mxu0 0.0
    %6799 = vmatpush1.msra.mxu0 0.0
    %6800 = vmatprep.subr.mxu0 %v6709
    %6801 = vmatpush1.msra.mxu0 %v6706
    %6802 = vmatprep.subr.mxu0 %v6688
    %6803 = vmatpush1.msra.mxu0 %v6687
    %6804 = vmatprep.subr.mxu0 %v6684
    %6805 = vmatpush1.msra.mxu0 %v6683
    %6806 = vmatprep.subr.mxu0 %v6680
    %6807 = vmatpush1.msra.mxu0 %v6679
    %6808 = vmatprep.subr.mxu0 %v6676
    %6809 = vmatpush1.msra.mxu0 %v6675
    %6810 = vmatprep.subr.mxu0 %v6672
    %6811 = vmatpush1.msra.mxu0 %v6671
    %6812 = vmatprep.subr.mxu0 %v6668
    %6813 = vmatpush1.msra.mxu0 %v6667
    %6814 = vmatprep.subr.mxu0 0.0
    %6815 = vmatpush2.msra.mxu0 0.0
    %6816 = vmatprep.subr.mxu0 0.0
    %6817 = vmatpush2.msra.mxu0 0.0
    %6818 = vmatprep.subr.mxu0 0.0
    %6819 = vmatpush2.msra.mxu0 0.0
    %6820 = vmatprep.subr.mxu0 0.0
    %6821 = vmatpush2.msra.mxu0 0.0
    %6822 = vmatprep.subr.mxu0 0.0
    %6823 = vmatpush2.msra.mxu0 0.0
    %6824 = vmatprep.subr.mxu0 0.0
    %6825 = vmatpush2.msra.mxu0 0.0
    %6826 = vmatprep.subr.mxu0 0.0
    %6827 = vmatpush2.msra.mxu0 0.0
    %6828 = vmatprep.subr.mxu0 0.0
    %6829 = vmatpush2.msra.mxu0 0.0
    %6830 = vmatprep.subr.mxu0 0.0
    %6831 = vmatpush2.msra.mxu0 0.0
    %6832 = vmatprep.subr.mxu0 0.0
    %6833 = vmatpush2.msra.mxu0 0.0
    %6834 = vmatprep.subr.mxu0 0.0
    %6835 = vmatpush2.msra.mxu0 0.0
    %6836 = vmatprep.subr.mxu0 0.0
    %6837 = vmatpush2.msra.mxu0 0.0
    %6838 = vmatprep.subr.mxu0 0.0
    %6839 = vmatpush2.msra.mxu0 0.0
    %6840 = vmatprep.subr.mxu0 0.0
    %6841 = vmatpush2.msra.mxu0 0.0
    %6842 = vmatprep.subr.mxu0 0.0
    %6843 = vmatpush2.msra.mxu0 0.0
    %6844 = vmatprep.subr.mxu0 0.0
    %6845 = vmatpush2.msra.mxu0 0.0
    %6846 = vmatprep.mubr.f32.mxu0 0.0
    %6847 = vmatmul.mubr.f32.gmra.mxu0 %v6697
    %v6848 = vpop.f32.mrf.mxu0
    %v6849 = vadd.f32 0.0, %v6848
    %v6850 = vpop.f32.mrf.mxu0
    %v6851 = vadd.f32 0.0, %v6850
    %6852 = vdwg.mxu0
    %v6853 = vadd.f32 %v6658, %v6778
    %v6854 = vadd.f32 %v6659, %v6780
    %v6855 = vadd.f32 %v6660, %v6849
    %v6856 = vadd.f32 %v6661, %v6851
    %v6857 = vld [vmem:[#allocation5 + $0x6] sm:$0x1]
    %v6858 = vld [vmem:[#allocation5 + $0xe] sm:$0x1]
    %s6859 = scalar_lea.vmem %s7, 1344
    %v6860 = vld [vmem:[%s6859] sm:$0xff]
    %v6861 = vld [vmem:[%s6859 + $0x8] sm:$0xff]
    %v6862 = vld [vmem:[%s6859 + $0x10] sm:$0xff]
    %v6863 = vld [vmem:[%s6859 + $0x18] sm:$0xff]
    %v6864 = vld [vmem:[%s6859 + $0x20] sm:$0xff]
    %v6865 = vld [vmem:[%s6859 + $0x28] sm:$0xff]
    %v6866 = vld [vmem:[%s6859 + $0x30] sm:$0xff]
    %v6867 = vld [vmem:[%s6859 + $0x38] sm:$0xff]
    %v6868 = vld [vmem:[%s6859 + $0x40] sm:$0xff]
    %v6869 = vld [vmem:[%s6859 + $0x48] sm:$0xff]
    %v6870 = vld [vmem:[%s6859 + $0x50] sm:$0xff]
    %v6871 = vld [vmem:[%s6859 + $0x58] sm:$0xff]
    %v6872 = vld [vmem:[%s6859 + $0x60] sm:$0xff]
    %v6873 = vld [vmem:[%s6859 + $0x68] sm:$0xff]
    %v6874 = vld [vmem:[%s6859 + $0x70] sm:$0xff]
    %v6875 = vld [vmem:[%s6859 + $0x78] sm:$0xff]
    %v6876 = vld [vmem:[%s6859 + $0x80] sm:$0xff]
    %v6877 = vld [vmem:[%s6859 + $0x88] sm:$0xff]
    %v6878 = vld [vmem:[%s6859 + $0x90] sm:$0xff]
    %v6879 = vld [vmem:[%s6859 + $0x98] sm:$0xff]
    %v6880 = vld [vmem:[%s6859 + $0xa0] sm:$0xff]
    %v6881 = vld [vmem:[%s6859 + $0xa8] sm:$0xff]
    %v6882 = vld [vmem:[%s6859 + $0xb0] sm:$0xff]
    %v6883 = vld [vmem:[%s6859 + $0xb8] sm:$0xff]
    %v6884 = vld [vmem:[%s6859 + $0xc0] sm:$0x1]
    %v6885 = vld [vmem:[%s6859 + $0xc8] sm:$0x1]
    %v6886 = vld [vmem:[%s6859 + $0xd0] sm:$0x1]
    %v6887 = vld [vmem:[%s6859 + $0xd8] sm:$0x1]
    %v6890 = vrot.slane %v6858, 7
    %v6891 = vsel %vm5759, %v6890, %v6857
    %v6892 = vsel %vm2884, %v6891, 0
    %v6895 = vsel %vm565, %v6884, 0
    %v6898 = vsel %vm565, %v6885, 0
    %v6901 = vsel %vm565, %v6886, 0
    %v6904 = vsel %vm565, %v6887, 0
    %6906 = vmatprep.subr.mxu0 0.0
    %6907 = vmatpush1.msra.mxu0 0.0
    %6908 = vmatprep.subr.mxu0 0.0
    %6909 = vmatpush1.msra.mxu0 0.0
    %6910 = vmatprep.subr.mxu0 0.0
    %6911 = vmatpush1.msra.mxu0 0.0
    %6912 = vmatprep.subr.mxu0 0.0
    %6913 = vmatpush1.msra.mxu0 0.0
    %6914 = vmatprep.subr.mxu0 0.0
    %6915 = vmatpush1.msra.mxu0 0.0
    %6916 = vmatprep.subr.mxu0 0.0
    %6917 = vmatpush1.msra.mxu0 0.0
    %6918 = vmatprep.subr.mxu0 0.0
    %6919 = vmatpush1.msra.mxu0 0.0
    %6920 = vmatprep.subr.mxu0 0.0
    %6921 = vmatpush1.msra.mxu0 0.0
    %6922 = vmatprep.subr.mxu0 0.0
    %6923 = vmatpush1.msra.mxu0 0.0
    %6924 = vmatprep.subr.mxu0 %v6898
    %6925 = vmatpush1.msra.mxu0 %v6895
    %6926 = vmatprep.subr.mxu0 %v6881
    %6927 = vmatpush1.msra.mxu0 %v6880
    %6928 = vmatprep.subr.mxu0 %v6877
    %6929 = vmatpush1.msra.mxu0 %v6876
    %6930 = vmatprep.subr.mxu0 %v6873
    %6931 = vmatpush1.msra.mxu0 %v6872
    %6932 = vmatprep.subr.mxu0 %v6869
    %6933 = vmatpush1.msra.mxu0 %v6868
    %6934 = vmatprep.subr.mxu0 %v6865
    %6935 = vmatpush1.msra.mxu0 %v6864
    %6936 = vmatprep.subr.mxu0 %v6861
    %6937 = vmatpush1.msra.mxu0 %v6860
    %6938 = vmatprep.subr.mxu0 0.0
    %6939 = vmatpush2.msra.mxu0 0.0
    %6940 = vmatprep.subr.mxu0 0.0
    %6941 = vmatpush2.msra.mxu0 0.0
    %6942 = vmatprep.subr.mxu0 0.0
    %6943 = vmatpush2.msra.mxu0 0.0
    %6944 = vmatprep.subr.mxu0 0.0
    %6945 = vmatpush2.msra.mxu0 0.0
    %6946 = vmatprep.subr.mxu0 0.0
    %6947 = vmatpush2.msra.mxu0 0.0
    %6948 = vmatprep.subr.mxu0 0.0
    %6949 = vmatpush2.msra.mxu0 0.0
    %6950 = vmatprep.subr.mxu0 0.0
    %6951 = vmatpush2.msra.mxu0 0.0
    %6952 = vmatprep.subr.mxu0 0.0
    %6953 = vmatpush2.msra.mxu0 0.0
    %6954 = vmatprep.subr.mxu0 0.0
    %6955 = vmatpush2.msra.mxu0 0.0
    %6956 = vmatprep.subr.mxu0 0.0
    %6957 = vmatpush2.msra.mxu0 0.0
    %6958 = vmatprep.subr.mxu0 0.0
    %6959 = vmatpush2.msra.mxu0 0.0
    %6960 = vmatprep.subr.mxu0 0.0
    %6961 = vmatpush2.msra.mxu0 0.0
    %6962 = vmatprep.subr.mxu0 0.0
    %6963 = vmatpush2.msra.mxu0 0.0
    %6964 = vmatprep.subr.mxu0 0.0
    %6965 = vmatpush2.msra.mxu0 0.0
    %6966 = vmatprep.subr.mxu0 0.0
    %6967 = vmatpush2.msra.mxu0 0.0
    %6968 = vmatprep.subr.mxu0 0.0
    %6969 = vmatpush2.msra.mxu0 0.0
    %6970 = vmatprep.mubr.f32.mxu0 0.0
    %6971 = vmatmul.mubr.f32.gmra.mxu0 %v6892
    %v6972 = vpop.f32.mrf.mxu0
    %v6973 = vadd.f32 0.0, %v6972
    %v6974 = vpop.f32.mrf.mxu0
    %v6975 = vadd.f32 0.0, %v6974
    %6976 = vdwg.mxu0
    %6977 = vmatprep.subr.mxu0 0.0
    %6978 = vmatpush1.msra.mxu0 0.0
    %6979 = vmatprep.subr.mxu0 0.0
    %6980 = vmatpush1.msra.mxu0 0.0
    %6981 = vmatprep.subr.mxu0 0.0
    %6982 = vmatpush1.msra.mxu0 0.0
    %6983 = vmatprep.subr.mxu0 0.0
    %6984 = vmatpush1.msra.mxu0 0.0
    %6985 = vmatprep.subr.mxu0 0.0
    %6986 = vmatpush1.msra.mxu0 0.0
    %6987 = vmatprep.subr.mxu0 0.0
    %6988 = vmatpush1.msra.mxu0 0.0
    %6989 = vmatprep.subr.mxu0 0.0
    %6990 = vmatpush1.msra.mxu0 0.0
    %6991 = vmatprep.subr.mxu0 0.0
    %6992 = vmatpush1.msra.mxu0 0.0
    %6993 = vmatprep.subr.mxu0 0.0
    %6994 = vmatpush1.msra.mxu0 0.0
    %6995 = vmatprep.subr.mxu0 %v6904
    %6996 = vmatpush1.msra.mxu0 %v6901
    %6997 = vmatprep.subr.mxu0 %v6883
    %6998 = vmatpush1.msra.mxu0 %v6882
    %6999 = vmatprep.subr.mxu0 %v6879
    %7000 = vmatpush1.msra.mxu0 %v6878
    %7001 = vmatprep.subr.mxu0 %v6875
    %7002 = vmatpush1.msra.mxu0 %v6874
    %7003 = vmatprep.subr.mxu0 %v6871
    %7004 = vmatpush1.msra.mxu0 %v6870
    %7005 = vmatprep.subr.mxu0 %v6867
    %7006 = vmatpush1.msra.mxu0 %v6866
    %7007 = vmatprep.subr.mxu0 %v6863
    %7008 = vmatpush1.msra.mxu0 %v6862
    %7009 = vmatprep.subr.mxu0 0.0
    %7010 = vmatpush2.msra.mxu0 0.0
    %7011 = vmatprep.subr.mxu0 0.0
    %7012 = vmatpush2.msra.mxu0 0.0
    %7013 = vmatprep.subr.mxu0 0.0
    %7014 = vmatpush2.msra.mxu0 0.0
    %7015 = vmatprep.subr.mxu0 0.0
    %7016 = vmatpush2.msra.mxu0 0.0
    %7017 = vmatprep.subr.mxu0 0.0
    %7018 = vmatpush2.msra.mxu0 0.0
    %7019 = vmatprep.subr.mxu0 0.0
    %7020 = vmatpush2.msra.mxu0 0.0
    %7021 = vmatprep.subr.mxu0 0.0
    %7022 = vmatpush2.msra.mxu0 0.0
    %7023 = vmatprep.subr.mxu0 0.0
    %7024 = vmatpush2.msra.mxu0 0.0
    %7025 = vmatprep.subr.mxu0 0.0
    %7026 = vmatpush2.msra.mxu0 0.0
    %7027 = vmatprep.subr.mxu0 0.0
    %7028 = vmatpush2.msra.mxu0 0.0
    %7029 = vmatprep.subr.mxu0 0.0
    %7030 = vmatpush2.msra.mxu0 0.0
    %7031 = vmatprep.subr.mxu0 0.0
    %7032 = vmatpush2.msra.mxu0 0.0
    %7033 = vmatprep.subr.mxu0 0.0
    %7034 = vmatpush2.msra.mxu0 0.0
    %7035 = vmatprep.subr.mxu0 0.0
    %7036 = vmatpush2.msra.mxu0 0.0
    %7037 = vmatprep.subr.mxu0 0.0
    %7038 = vmatpush2.msra.mxu0 0.0
    %7039 = vmatprep.subr.mxu0 0.0
    %7040 = vmatpush2.msra.mxu0 0.0
    %7041 = vmatprep.mubr.f32.mxu0 0.0
    %7042 = vmatmul.mubr.f32.gmra.mxu0 %v6892
    %v7043 = vpop.f32.mrf.mxu0
    %v7044 = vadd.f32 0.0, %v7043
    %v7045 = vpop.f32.mrf.mxu0
    %v7046 = vadd.f32 0.0, %v7045
    %7047 = vdwg.mxu0
    %v7048 = vadd.f32 %v6853, %v6973
    %v7049 = vadd.f32 %v6854, %v6975
    %v7050 = vadd.f32 %v6855, %v7044
    %v7051 = vadd.f32 %v6856, %v7046
    %v7052 = vld [vmem:[#allocation5 + $0x7] sm:$0x1]
    %v7053 = vld [vmem:[#allocation5 + $0xf] sm:$0x1]
    %s7054 = scalar_lea.vmem %s7, 1568
    %v7055 = vld [vmem:[%s7054] sm:$0xff]
    %v7056 = vld [vmem:[%s7054 + $0x8] sm:$0xff]
    %v7057 = vld [vmem:[%s7054 + $0x10] sm:$0xff]
    %v7058 = vld [vmem:[%s7054 + $0x18] sm:$0xff]
    %v7059 = vld [vmem:[%s7054 + $0x20] sm:$0xff]
    %v7060 = vld [vmem:[%s7054 + $0x28] sm:$0xff]
    %v7061 = vld [vmem:[%s7054 + $0x30] sm:$0xff]
    %v7062 = vld [vmem:[%s7054 + $0x38] sm:$0xff]
    %v7063 = vld [vmem:[%s7054 + $0x40] sm:$0xff]
    %v7064 = vld [vmem:[%s7054 + $0x48] sm:$0xff]
    %v7065 = vld [vmem:[%s7054 + $0x50] sm:$0xff]
    %v7066 = vld [vmem:[%s7054 + $0x58] sm:$0xff]
    %v7067 = vld [vmem:[%s7054 + $0x60] sm:$0xff]
    %v7068 = vld [vmem:[%s7054 + $0x68] sm:$0xff]
    %v7069 = vld [vmem:[%s7054 + $0x70] sm:$0xff]
    %v7070 = vld [vmem:[%s7054 + $0x78] sm:$0xff]
    %v7071 = vld [vmem:[%s7054 + $0x80] sm:$0xff]
    %v7072 = vld [vmem:[%s7054 + $0x88] sm:$0xff]
    %v7073 = vld [vmem:[%s7054 + $0x90] sm:$0xff]
    %v7074 = vld [vmem:[%s7054 + $0x98] sm:$0xff]
    %v7075 = vld [vmem:[%s7054 + $0xa0] sm:$0xff]
    %v7076 = vld [vmem:[%s7054 + $0xa8] sm:$0xff]
    %v7077 = vld [vmem:[%s7054 + $0xb0] sm:$0xff]
    %v7078 = vld [vmem:[%s7054 + $0xb8] sm:$0xff]
    %v7079 = vld [vmem:[%s7054 + $0xc0] sm:$0x1]
    %v7080 = vld [vmem:[%s7054 + $0xc8] sm:$0x1]
    %v7081 = vld [vmem:[%s7054 + $0xd0] sm:$0x1]
    %v7082 = vld [vmem:[%s7054 + $0xd8] sm:$0x1]
    %v7085 = vrot.slane %v7053, 7
    %v7086 = vsel %vm5759, %v7085, %v7052
    %v7087 = vsel %vm2884, %v7086, 0
    %v7090 = vsel %vm565, %v7079, 0
    %v7093 = vsel %vm565, %v7080, 0
    %v7096 = vsel %vm565, %v7081, 0
    %v7099 = vsel %vm565, %v7082, 0
    %7101 = vmatprep.subr.mxu0 0.0
    %7102 = vmatpush1.msra.mxu0 0.0
    %7103 = vmatprep.subr.mxu0 0.0
    %7104 = vmatpush1.msra.mxu0 0.0
    %7105 = vmatprep.subr.mxu0 0.0
    %7106 = vmatpush1.msra.mxu0 0.0
    %7107 = vmatprep.subr.mxu0 0.0
    %7108 = vmatpush1.msra.mxu0 0.0
    %7109 = vmatprep.subr.mxu0 0.0
    %7110 = vmatpush1.msra.mxu0 0.0
    %7111 = vmatprep.subr.mxu0 0.0
    %7112 = vmatpush1.msra.mxu0 0.0
    %7113 = vmatprep.subr.mxu0 0.0
    %7114 = vmatpush1.msra.mxu0 0.0
    %7115 = vmatprep.subr.mxu0 0.0
    %7116 = vmatpush1.msra.mxu0 0.0
    %7117 = vmatprep.subr.mxu0 0.0
    %7118 = vmatpush1.msra.mxu0 0.0
    %7119 = vmatprep.subr.mxu0 %v7093
    %7120 = vmatpush1.msra.mxu0 %v7090
    %7121 = vmatprep.subr.mxu0 %v7076
    %7122 = vmatpush1.msra.mxu0 %v7075
    %7123 = vmatprep.subr.mxu0 %v7072
    %7124 = vmatpush1.msra.mxu0 %v7071
    %7125 = vmatprep.subr.mxu0 %v7068
    %7126 = vmatpush1.msra.mxu0 %v7067
    %7127 = vmatprep.subr.mxu0 %v7064
    %7128 = vmatpush1.msra.mxu0 %v7063
    %7129 = vmatprep.subr.mxu0 %v7060
    %7130 = vmatpush1.msra.mxu0 %v7059
    %7131 = vmatprep.subr.mxu0 %v7056
    %7132 = vmatpush1.msra.mxu0 %v7055
    %7133 = vmatprep.subr.mxu0 0.0
    %7134 = vmatpush2.msra.mxu0 0.0
    %7135 = vmatprep.subr.mxu0 0.0
    %7136 = vmatpush2.msra.mxu0 0.0
    %7137 = vmatprep.subr.mxu0 0.0
    %7138 = vmatpush2.msra.mxu0 0.0
    %7139 = vmatprep.subr.mxu0 0.0
    %7140 = vmatpush2.msra.mxu0 0.0
    %7141 = vmatprep.subr.mxu0 0.0
    %7142 = vmatpush2.msra.mxu0 0.0
    %7143 = vmatprep.subr.mxu0 0.0
    %7144 = vmatpush2.msra.mxu0 0.0
    %7145 = vmatprep.subr.mxu0 0.0
    %7146 = vmatpush2.msra.mxu0 0.0
    %7147 = vmatprep.subr.mxu0 0.0
    %7148 = vmatpush2.msra.mxu0 0.0
    %7149 = vmatprep.subr.mxu0 0.0
    %7150 = vmatpush2.msra.mxu0 0.0
    %7151 = vmatprep.subr.mxu0 0.0
    %7152 = vmatpush2.msra.mxu0 0.0
    %7153 = vmatprep.subr.mxu0 0.0
    %7154 = vmatpush2.msra.mxu0 0.0
    %7155 = vmatprep.subr.mxu0 0.0
    %7156 = vmatpush2.msra.mxu0 0.0
    %7157 = vmatprep.subr.mxu0 0.0
    %7158 = vmatpush2.msra.mxu0 0.0
    %7159 = vmatprep.subr.mxu0 0.0
    %7160 = vmatpush2.msra.mxu0 0.0
    %7161 = vmatprep.subr.mxu0 0.0
    %7162 = vmatpush2.msra.mxu0 0.0
    %7163 = vmatprep.subr.mxu0 0.0
    %7164 = vmatpush2.msra.mxu0 0.0
    %7165 = vmatprep.mubr.f32.mxu0 0.0
    %7166 = vmatmul.mubr.f32.gmra.mxu0 %v7087
    %v7167 = vpop.f32.mrf.mxu0
    %v7168 = vadd.f32 0.0, %v7167
    %v7169 = vpop.f32.mrf.mxu0
    %v7170 = vadd.f32 0.0, %v7169
    %7171 = vdwg.mxu0
    %7172 = vmatprep.subr.mxu0 0.0
    %7173 = vmatpush1.msra.mxu0 0.0
    %7174 = vmatprep.subr.mxu0 0.0
    %7175 = vmatpush1.msra.mxu0 0.0
    %7176 = vmatprep.subr.mxu0 0.0
    %7177 = vmatpush1.msra.mxu0 0.0
    %7178 = vmatprep.subr.mxu0 0.0
    %7179 = vmatpush1.msra.mxu0 0.0
    %7180 = vmatprep.subr.mxu0 0.0
    %7181 = vmatpush1.msra.mxu0 0.0
    %7182 = vmatprep.subr.mxu0 0.0
    %7183 = vmatpush1.msra.mxu0 0.0
    %7184 = vmatprep.subr.mxu0 0.0
    %7185 = vmatpush1.msra.mxu0 0.0
    %7186 = vmatprep.subr.mxu0 0.0
    %7187 = vmatpush1.msra.mxu0 0.0
    %7188 = vmatprep.subr.mxu0 0.0
    %7189 = vmatpush1.msra.mxu0 0.0
    %7190 = vmatprep.subr.mxu0 %v7099
    %7191 = vmatpush1.msra.mxu0 %v7096
    %7192 = vmatprep.subr.mxu0 %v7078
    %7193 = vmatpush1.msra.mxu0 %v7077
    %7194 = vmatprep.subr.mxu0 %v7074
    %7195 = vmatpush1.msra.mxu0 %v7073
    %7196 = vmatprep.subr.mxu0 %v7070
    %7197 = vmatpush1.msra.mxu0 %v7069
    %7198 = vmatprep.subr.mxu0 %v7066
    %7199 = vmatpush1.msra.mxu0 %v7065
    %7200 = vmatprep.subr.mxu0 %v7062
    %7201 = vmatpush1.msra.mxu0 %v7061
    %7202 = vmatprep.subr.mxu0 %v7058
    %7203 = vmatpush1.msra.mxu0 %v7057
    %7204 = vmatprep.subr.mxu0 0.0
    %7205 = vmatpush2.msra.mxu0 0.0
    %7206 = vmatprep.subr.mxu0 0.0
    %7207 = vmatpush2.msra.mxu0 0.0
    %7208 = vmatprep.subr.mxu0 0.0
    %7209 = vmatpush2.msra.mxu0 0.0
    %7210 = vmatprep.subr.mxu0 0.0
    %7211 = vmatpush2.msra.mxu0 0.0
    %7212 = vmatprep.subr.mxu0 0.0
    %7213 = vmatpush2.msra.mxu0 0.0
    %7214 = vmatprep.subr.mxu0 0.0
    %7215 = vmatpush2.msra.mxu0 0.0
    %7216 = vmatprep.subr.mxu0 0.0
    %7217 = vmatpush2.msra.mxu0 0.0
    %7218 = vmatprep.subr.mxu0 0.0
    %7219 = vmatpush2.msra.mxu0 0.0
    %7220 = vmatprep.subr.mxu0 0.0
    %7221 = vmatpush2.msra.mxu0 0.0
    %7222 = vmatprep.subr.mxu0 0.0
    %7223 = vmatpush2.msra.mxu0 0.0
    %7224 = vmatprep.subr.mxu0 0.0
    %7225 = vmatpush2.msra.mxu0 0.0
    %7226 = vmatprep.subr.mxu0 0.0
    %7227 = vmatpush2.msra.mxu0 0.0
    %7228 = vmatprep.subr.mxu0 0.0
    %7229 = vmatpush2.msra.mxu0 0.0
    %7230 = vmatprep.subr.mxu0 0.0
    %7231 = vmatpush2.msra.mxu0 0.0
    %7232 = vmatprep.subr.mxu0 0.0
    %7233 = vmatpush2.msra.mxu0 0.0
    %7234 = vmatprep.subr.mxu0 0.0
    %7235 = vmatpush2.msra.mxu0 0.0
    %7236 = vmatprep.mubr.f32.mxu0 0.0
    %7237 = vmatmul.mubr.f32.gmra.mxu0 %v7087
    %v7238 = vpop.f32.mrf.mxu0
    %v7239 = vadd.f32 0.0, %v7238
    %v7240 = vpop.f32.mrf.mxu0
    %v7241 = vadd.f32 0.0, %v7240
    %7242 = vdwg.mxu0
    %v7243 = vadd.f32 %v7048, %v7168
    %v7244 = vadd.f32 %v7049, %v7170
    %v7245 = vadd.f32 %v7050, %v7239
    %v7246 = vadd.f32 %v7051, %v7241
    %v7247 = vld [vmem:[%s8] sm:$0xf]
    %v7249 = vlaneseq
    %v7250 = vshrl.u32 %v7249, 7
    %v7251 = vsub.s32 0, %v7250
    %v7252 = vrot.slane %v7247, %v7251
    %v7253 = vlaneseq
    %v7254 = vshrl.u32 %v7253, 7
    %v7255 = vsub.s32 1, %v7254
    %v7256 = vrot.slane %v7247, %v7255
    %v7257 = vlaneseq
    %v7258 = vshrl.u32 %v7257, 7
    %v7259 = vsub.s32 2, %v7258
    %v7260 = vrot.slane %v7247, %v7259
    %v7261 = vlaneseq
    %v7262 = vshrl.u32 %v7261, 7
    %v7263 = vsub.s32 3, %v7262
    %v7264 = vrot.slane %v7247, %v7263
    %v7269 = vadd.f32 %v7243, %v7252
    %v7270 = vadd.f32 %v7244, %v7256
    %v7271 = vadd.f32 %v7245, %v7260
    %v7272 = vadd.f32 %v7246, %v7264
    %v7273 = vmax.f32 %v7269, 0.0
    %v7274 = vmax.f32 %v7270, 0.0
    %v7275 = vmax.f32 %v7271, 0.0
    %v7276 = vmax.f32 %v7272, 0.0
    %v7277 = vld [vmem:[%s9] sm:$0xff]
    %v7278 = vld [vmem:[%s9 + $0x8] sm:$0xff]
    %v7279 = vld [vmem:[%s9 + $0x10] sm:$0xff]
    %v7280 = vld [vmem:[%s9 + $0x18] sm:$0xff]
    %v7281 = vld [vmem:[%s9 + $0x20] sm:$0xff]
    %v7282 = vld [vmem:[%s9 + $0x28] sm:$0xff]
    %v7283 = vld [vmem:[%s9 + $0x30] sm:$0xff]
    %v7284 = vld [vmem:[%s9 + $0x38] sm:$0xff]
    %v7285 = vld [vmem:[%s9 + $0x40] sm:$0xff]
    %v7286 = vld [vmem:[%s9 + $0x48] sm:$0xff]
    %v7287 = vld [vmem:[%s9 + $0x50] sm:$0xff]
    %v7288 = vld [vmem:[%s9 + $0x58] sm:$0xff]
    %v7289 = vld [vmem:[%s9 + $0x60] sm:$0xff]
    %v7290 = vld [vmem:[%s9 + $0x68] sm:$0xff]
    %v7291 = vld [vmem:[%s9 + $0x70] sm:$0xff]
    %v7292 = vld [vmem:[%s9 + $0x78] sm:$0xff]
    %v7293 = vld [vmem:[%s9 + $0x80] sm:$0xff]
    %v7294 = vld [vmem:[%s9 + $0x88] sm:$0xff]
    %v7295 = vld [vmem:[%s9 + $0x90] sm:$0xff]
    %v7296 = vld [vmem:[%s9 + $0x98] sm:$0xff]
    %v7297 = vld [vmem:[%s9 + $0xa0] sm:$0xff]
    %v7298 = vld [vmem:[%s9 + $0xa8] sm:$0xff]
    %v7299 = vld [vmem:[%s9 + $0xb0] sm:$0xff]
    %v7300 = vld [vmem:[%s9 + $0xb8] sm:$0xff]
    %v7301 = vld [vmem:[%s9 + $0xc0] sm:$0xff]
    %v7302 = vld [vmem:[%s9 + $0xc8] sm:$0xff]
    %v7303 = vld [vmem:[%s9 + $0xd0] sm:$0xff]
    %v7304 = vld [vmem:[%s9 + $0xd8] sm:$0xff]
    %v7305 = vld [vmem:[%s9 + $0xe0] sm:$0xff]
    %v7306 = vld [vmem:[%s9 + $0xe8] sm:$0xff]
    %v7307 = vld [vmem:[%s9 + $0xf0] sm:$0xff]
    %v7308 = vld [vmem:[%s9 + $0xf8] sm:$0xff]
    %v7309 = vld [vmem:[%s9 + $0x100] sm:$0xff]
    %v7310 = vld [vmem:[%s9 + $0x108] sm:$0xff]
    %v7311 = vld [vmem:[%s9 + $0x110] sm:$0xff]
    %v7312 = vld [vmem:[%s9 + $0x118] sm:$0xff]
    %v7313 = vld [vmem:[%s9 + $0x120] sm:$0xff]
    %v7314 = vld [vmem:[%s9 + $0x128] sm:$0xff]
    %v7315 = vld [vmem:[%s9 + $0x130] sm:$0xff]
    %v7316 = vld [vmem:[%s9 + $0x138] sm:$0xff]
    %v7317 = vld [vmem:[%s9 + $0x140] sm:$0xff]
    %v7318 = vld [vmem:[%s9 + $0x148] sm:$0xff]
    %v7319 = vld [vmem:[%s9 + $0x150] sm:$0xff]
    %v7320 = vld [vmem:[%s9 + $0x158] sm:$0xff]
    %v7321 = vld [vmem:[%s9 + $0x160] sm:$0xff]
    %v7322 = vld [vmem:[%s9 + $0x168] sm:$0xff]
    %v7323 = vld [vmem:[%s9 + $0x170] sm:$0xff]
    %v7324 = vld [vmem:[%s9 + $0x178] sm:$0xff]
    %v7325 = vld [vmem:[%s9 + $0x180] sm:$0xff]
    %v7326 = vld [vmem:[%s9 + $0x188] sm:$0xff]
    %v7327 = vld [vmem:[%s9 + $0x190] sm:$0xff]
    %v7328 = vld [vmem:[%s9 + $0x198] sm:$0xff]
    %v7329 = vld [vmem:[%s9 + $0x1a0] sm:$0xff]
    %v7330 = vld [vmem:[%s9 + $0x1a8] sm:$0xff]
    %v7331 = vld [vmem:[%s9 + $0x1b0] sm:$0xff]
    %v7332 = vld [vmem:[%s9 + $0x1b8] sm:$0xff]
    %v7333 = vld [vmem:[%s9 + $0x1c0] sm:$0xff]
    %v7334 = vld [vmem:[%s9 + $0x1c8] sm:$0xff]
    %v7335 = vld [vmem:[%s9 + $0x1d0] sm:$0xff]
    %v7336 = vld [vmem:[%s9 + $0x1d8] sm:$0xff]
    %v7337 = vld [vmem:[%s9 + $0x1e0] sm:$0xff]
    %v7338 = vld [vmem:[%s9 + $0x1e8] sm:$0xff]
    %v7339 = vld [vmem:[%s9 + $0x1f0] sm:$0xff]
    %v7340 = vld [vmem:[%s9 + $0x1f8] sm:$0xff]
    %v7341 = vld [vmem:[%s10] sm:$0x1]
    %v7343 = vlaneseq
    %v7344 = vshrl.u32 %v7343, 7
    %v7345 = vsub.s32 0, %v7344
    %v7346 = vrot.slane %v7341, %v7345
    %7348 = vmatprep.subr.mxu0 0.0
    %7349 = vmatpush1.msra.mxu0 %v7292
    %7350 = vmatprep.subr.mxu0 0.0
    %7351 = vmatpush1.msra.mxu0 %v7291
    %7352 = vmatprep.subr.mxu0 0.0
    %7353 = vmatpush1.msra.mxu0 %v7290
    %7354 = vmatprep.subr.mxu0 0.0
    %7355 = vmatpush1.msra.mxu0 %v7289
    %7356 = vmatprep.subr.mxu0 0.0
    %7357 = vmatpush1.msra.mxu0 %v7288
    %7358 = vmatprep.subr.mxu0 0.0
    %7359 = vmatpush1.msra.mxu0 %v7287
    %7360 = vmatprep.subr.mxu0 0.0
    %7361 = vmatpush1.msra.mxu0 %v7286
    %7362 = vmatprep.subr.mxu0 0.0
    %7363 = vmatpush1.msra.mxu0 %v7285
    %7364 = vmatprep.subr.mxu0 0.0
    %7365 = vmatpush1.msra.mxu0 %v7284
    %7366 = vmatprep.subr.mxu0 0.0
    %7367 = vmatpush1.msra.mxu0 %v7283
    %7368 = vmatprep.subr.mxu0 0.0
    %7369 = vmatpush1.msra.mxu0 %v7282
    %7370 = vmatprep.subr.mxu0 0.0
    %7371 = vmatpush1.msra.mxu0 %v7281
    %7372 = vmatprep.subr.mxu0 0.0
    %7373 = vmatpush1.msra.mxu0 %v7280
    %7374 = vmatprep.subr.mxu0 0.0
    %7375 = vmatpush1.msra.mxu0 %v7279
    %7376 = vmatprep.subr.mxu0 0.0
    %7377 = vmatpush1.msra.mxu0 %v7278
    %7378 = vmatprep.subr.mxu0 0.0
    %7379 = vmatpush1.msra.mxu0 %v7277
    %7380 = vmatprep.subr.mxu0 0.0
    %7381 = vmatpush2.msra.mxu0 %v7308
    %7382 = vmatprep.subr.mxu0 0.0
    %7383 = vmatpush2.msra.mxu0 %v7307
    %7384 = vmatprep.subr.mxu0 0.0
    %7385 = vmatpush2.msra.mxu0 %v7306
    %7386 = vmatprep.subr.mxu0 0.0
    %7387 = vmatpush2.msra.mxu0 %v7305
    %7388 = vmatprep.subr.mxu0 0.0
    %7389 = vmatpush2.msra.mxu0 %v7304
    %7390 = vmatprep.subr.mxu0 0.0
    %7391 = vmatpush2.msra.mxu0 %v7303
    %7392 = vmatprep.subr.mxu0 0.0
    %7393 = vmatpush2.msra.mxu0 %v7302
    %7394 = vmatprep.subr.mxu0 0.0
    %7395 = vmatpush2.msra.mxu0 %v7301
    %7396 = vmatprep.subr.mxu0 0.0
    %7397 = vmatpush2.msra.mxu0 %v7300
    %7398 = vmatprep.subr.mxu0 0.0
    %7399 = vmatpush2.msra.mxu0 %v7299
    %7400 = vmatprep.subr.mxu0 0.0
    %7401 = vmatpush2.msra.mxu0 %v7298
    %7402 = vmatprep.subr.mxu0 0.0
    %7403 = vmatpush2.msra.mxu0 %v7297
    %7404 = vmatprep.subr.mxu0 0.0
    %7405 = vmatpush2.msra.mxu0 %v7296
    %7406 = vmatprep.subr.mxu0 0.0
    %7407 = vmatpush2.msra.mxu0 %v7295
    %7408 = vmatprep.subr.mxu0 0.0
    %7409 = vmatpush2.msra.mxu0 %v7294
    %7410 = vmatprep.subr.mxu0 0.0
    %7411 = vmatpush2.msra.mxu0 %v7293
    %7412 = vmatprep.mubr.f32.mxu0 %v7274
    %7413 = vmatmul.mubr.f32.gmra.mxu0 %v7273
    %v7414 = vpop.f32.mrf.mxu0
    %v7415 = vadd.f32 %v7346, %v7414
    %v7416 = vpop.f32.mrf.mxu0
    %7417 = vdwg.mxu0
    %7418 = vmatprep.subr.mxu0 0.0
    %7419 = vmatpush1.msra.mxu0 %v7324
    %7420 = vmatprep.subr.mxu0 0.0
    %7421 = vmatpush1.msra.mxu0 %v7323
    %7422 = vmatprep.subr.mxu0 0.0
    %7423 = vmatpush1.msra.mxu0 %v7322
    %7424 = vmatprep.subr.mxu0 0.0
    %7425 = vmatpush1.msra.mxu0 %v7321
    %7426 = vmatprep.subr.mxu0 0.0
    %7427 = vmatpush1.msra.mxu0 %v7320
    %7428 = vmatprep.subr.mxu0 0.0
    %7429 = vmatpush1.msra.mxu0 %v7319
    %7430 = vmatprep.subr.mxu0 0.0
    %7431 = vmatpush1.msra.mxu0 %v7318
    %7432 = vmatprep.subr.mxu0 0.0
    %7433 = vmatpush1.msra.mxu0 %v7317
    %7434 = vmatprep.subr.mxu0 0.0
    %7435 = vmatpush1.msra.mxu0 %v7316
    %7436 = vmatprep.subr.mxu0 0.0
    %7437 = vmatpush1.msra.mxu0 %v7315
    %7438 = vmatprep.subr.mxu0 0.0
    %7439 = vmatpush1.msra.mxu0 %v7314
    %7440 = vmatprep.subr.mxu0 0.0
    %7441 = vmatpush1.msra.mxu0 %v7313
    %7442 = vmatprep.subr.mxu0 0.0
    %7443 = vmatpush1.msra.mxu0 %v7312
    %7444 = vmatprep.subr.mxu0 0.0
    %7445 = vmatpush1.msra.mxu0 %v7311
    %7446 = vmatprep.subr.mxu0 0.0
    %7447 = vmatpush1.msra.mxu0 %v7310
    %7448 = vmatprep.subr.mxu0 0.0
    %7449 = vmatpush1.msra.mxu0 %v7309
    %7450 = vmatprep.subr.mxu0 0.0
    %7451 = vmatpush2.msra.mxu0 %v7340
    %7452 = vmatprep.subr.mxu0 0.0
    %7453 = vmatpush2.msra.mxu0 %v7339
    %7454 = vmatprep.subr.mxu0 0.0
    %7455 = vmatpush2.msra.mxu0 %v7338
    %7456 = vmatprep.subr.mxu0 0.0
    %7457 = vmatpush2.msra.mxu0 %v7337
    %7458 = vmatprep.subr.mxu0 0.0
    %7459 = vmatpush2.msra.mxu0 %v7336
    %7460 = vmatprep.subr.mxu0 0.0
    %7461 = vmatpush2.msra.mxu0 %v7335
    %7462 = vmatprep.subr.mxu0 0.0
    %7463 = vmatpush2.msra.mxu0 %v7334
    %7464 = vmatprep.subr.mxu0 0.0
    %7465 = vmatpush2.msra.mxu0 %v7333
    %7466 = vmatprep.subr.mxu0 0.0
    %7467 = vmatpush2.msra.mxu0 %v7332
    %7468 = vmatprep.subr.mxu0 0.0
    %7469 = vmatpush2.msra.mxu0 %v7331
    %7470 = vmatprep.subr.mxu0 0.0
    %7471 = vmatpush2.msra.mxu0 %v7330
    %7472 = vmatprep.subr.mxu0 0.0
    %7473 = vmatpush2.msra.mxu0 %v7329
    %7474 = vmatprep.subr.mxu0 0.0
    %7475 = vmatpush2.msra.mxu0 %v7328
    %7476 = vmatprep.subr.mxu0 0.0
    %7477 = vmatpush2.msra.mxu0 %v7327
    %7478 = vmatprep.subr.mxu0 0.0
    %7479 = vmatpush2.msra.mxu0 %v7326
    %7480 = vmatprep.subr.mxu0 0.0
    %7481 = vmatpush2.msra.mxu0 %v7325
    %7482 = vmatprep.mubr.f32.mxu0 %v7276
    %7483 = vmatmul.mubr.f32.gmra.mxu0 %v7275
    %v7484 = vpop.f32.mrf.mxu0
    %v7485 = vadd.f32 %v7415, %v7484
    %v7486 = vpop.f32.mrf.mxu0
    %7487 = vdwg.mxu0
    %vm7488 = vcmask 74752
    %v7489 = vsel %vm7488, %v7485, -inf
    %v7490 = vrot.slane %v7489, 4
    %v7491 = vmax.f32 %v7489, %v7490
    %v7492 = vrot.slane %v7491, 2
    %v7493 = vmax.f32 %v7491, %v7492
    %v7494 = vrot.slane %v7493, 1
    %v7495 = vmax.f32 %v7493, %v7494
    %v7496 = vsub.f32 %v7485, %v7495
    %v7497 = vmul.f32 %v7496, 1.442695
    %v7498 = vpow.pop %v7497
    %v7499 = vsel %vm7488, %v7498, 0.0
    %v7500 = vrot.slane %v7499, 4
    %v7501 = vadd.f32 %v7499, %v7500
    %v7502 = vrot.slane %v7501, 2
    %v7503 = vadd.f32 %v7501, %v7502
    %v7504 = vrot.slane %v7503, 1
    %v7505 = vadd.f32 %v7503, %v7504
    %v7506 = vlog2.pop %v7505
    %v7507 = vmul.f32 %v7506, 0.6931472
    %v7508 = vadd.f32 %v7507, %v7495
    %v7509 = vsub.f32 %v7485, %v7508
    %7510 = vst.msk [vmem:[#allocation6] sm:$0x3] %vm7488, %v7509
    // Predicated region
    $region46: #{convnet_forward.1} parent=1 // pred_check
      _
    $region47: #{convnet_forward.1} parent=1 // pred_check_branch
      %7512 = sbr.rel (0) target = $region49
    $region48: #{convnet_forward.1} parent=1 // pred_region
      %s7514 = ssub.s32 32, 32
      %7515 = vsyncadd [#allocation7], %s7514
      %s7517 = sshll.u32 [#allocation6], 4
      %s7518 = int_to_ptr.vmem [resolvable:$true] %s7517
      %7520 = dma.vmem_to_hbm [thread:$0]  %s7518, 32, %s11, [#allocation7]
    $region49: #{convnet_forward.1} parent=1 // pred_fallthru
      _
    // Predicated region
    $region50: #{convnet_forward.1} parent=1 // pred_check
      _
    $region51: #{convnet_forward.1} parent=1 // pred_check_branch
      %7522 = sbr.rel (0) target = $region53
    $region52: #{convnet_forward.1} parent=1 // pred_region
      %7523 = dma.done [#allocation7], 32
    $region53: #{convnet_forward.1} parent=1 // pred_fallthru
      _
    %7524 = vsyncpa [#allocation7], 1

</llo_original>
